<compile_context>
chip_gen: v5e
topology: v5e:2x2
jax: 0.10.0
libtpu: 0.0.40
codegen_flags: <defaults>
</compile_context>

<pallas_src>
import functools

import jax
import jax.numpy as jnp
from jax.experimental import pallas as pl
from jax.experimental.pallas import tpu as pltpu

NUM_CLASSES = 15
NUM_CHANNELS = 15
K_NEIGH = 24
PN_FEATS = 256          # pointnet_encoder output width
EPS = 1e-5              # BatchNorm eps
PDIST_EPS = 1e-6        # nn.PairwiseDistance eps (added to the difference)
SLOPE = 0.01            # LeakyReLU negative slope
HIGH = jax.lax.Precision.HIGHEST


def _leaky(x):
    return jnp.maximum(x, SLOPE * x)


def _mm(x, w_ref):
    """Matmul against a weight ref; casts the activation to the weight dtype so the
    wrapper can opt into bf16 MXU inputs while keeping f32 accumulation."""
    w = w_ref[...]
    return jnp.dot(x.astype(w.dtype), w, preferred_element_type=jnp.float32)


def _round_up(x, m):
    return ((x + m - 1) // m) * m


def _tile_and_pad(n, cap):
    """Pick a row tile <= cap (multiple of 8) and the padded extent it divides."""
    steps = max(1, -(-n // cap))
    tile = _round_up(-(-n // steps), 8)
    return tile, tile * steps


# ============================================================================
# Pallas kernels
# ============================================================================
def pointnet_pool_kernel(x_ref, w1, b1, w2, b2, w3, b3, out_ref, maxacc):
    """Per-point MLP 15->64->128->256 (conv1d k=1 + folded BN + LeakyReLU) and max over
    points.  Grid = (B, N_tiles); the point-tile axis is the reduction axis."""
    nt = pl.program_id(1)

    @pl.when(nt == 0)
    def _():
        maxacc[...] = jnp.full_like(maxacc, -jnp.inf)

    h = _leaky(_mm(x_ref[0], w1) + b1[...])            # (tile_n, 64)
    h = _leaky(_mm(h, w2) + b2[...])                   # (tile_n, 128)
    h = _leaky(_mm(h, w3) + b3[...])                   # (tile_n, 256)

    # Pairwise-tree max over 8-row groups (pure VPU); the single cross-sublane reduce
    # happens once in the epilogue.
    groups = h.shape[0] // 8
    parts = [h[g * 8:(g + 1) * 8, :] for g in range(groups)]
    while len(parts) > 1:
        nxt = [jnp.maximum(parts[i], parts[i + 1]) for i in range(0, len(parts) - 1, 2)]
        if len(parts) % 2:
            nxt.append(parts[-1])
        parts = nxt
    maxacc[...] = jnp.maximum(maxacc[...], parts[0])

    @pl.when(nt == pl.num_programs(1) - 1)
    def _():
        out_ref[0] = jnp.max(maxacc[...], axis=0, keepdims=True)   # (1, 256)


def gac_edge_kernel(lsam_ref, z_ref, ad_ref,
                    w1, b1, w2z, w2r, b2, w3, b3, out_ref):
    """Fused gac_block math on a (tile_n, C) slab of one (batch, neighbour) slice, with
    the sum over neighbours folded in (trailing grid axis, out block resident):
       r    = lrelu(bn1(conv1(lsam)))
       f    = lrelu(bn2(conv2(cat(z, r))))          (conv2 split into w2z / w2r)
       attn = softmax_c(lrelu(bn3(conv3(cat(a, d)))))   (a and d pre-concatenated)
       out += attn * f"""
    kk = pl.program_id(2)

    @pl.when(kk == 0)
    def _():
        out_ref[...] = jnp.zeros_like(out_ref)

    r = _leaky(_mm(lsam_ref[0, 0], w1) + b1[...])                 # (tile_n, 16)
    f = _leaky(_mm(z_ref[0, 0], w2z) + _mm(r, w2r) + b2[...])     # (tile_n, out_c)

    att = _leaky(_mm(ad_ref[0, 0], w3) + b3[...])                 # (tile_n, out_c)
    att = att - jnp.max(att, axis=-1, keepdims=True)
    e = jnp.exp(att)
    att = e * pl.reciprocal(jnp.sum(e, axis=-1, keepdims=True), approx=True)

    out_ref[...] += (att * f)[None].astype(out_ref.dtype)


def seg_head_kernel(rc_ref, cb_ref,
                    w4, b4, w1b, b1, w2, b2, w3, b3, wc, bc, out_ref):
    """gac conv4+bn4, the 512->512->256->128->num_classes head and log-softmax.
    cb_ref is the per-batch pointnet contribution pooled @ (scale-folded) W1a.
    The class dim is padded to 128 lanes with -1e30 biases (exact)."""
    x2 = _leaky(_mm(rc_ref[0], w4) + b4[...])                     # (tile, 256)
    h = _leaky(_mm(x2, w1b) + cb_ref[0] + b1[...])                # (tile, 512)
    h = _leaky(_mm(h, w2) + b2[...])                              # (tile, 256)
    h = _leaky(_mm(h, w3) + b3[...])                              # (tile, 128)
    logits = _mm(h, wc) + bc[...]                                 # (tile, 128 padded)
    m = jnp.max(logits, axis=-1, keepdims=True)
    lse = jnp.log(jnp.sum(jnp.exp(logits - m), axis=-1, keepdims=True)) + m
    out_ref[...] = ((logits - lse)[None]).astype(out_ref.dtype)


# ============================================================================
# Shared data prep (pure JAX) - mirrors the PyTorch tensor plumbing exactly
# ============================================================================
# TODO(synk): kNN top-k, the data-dependent neighbor gather (get_knn) and the raw
# .view/transpose scramble plumbing of gac_block stay in XLA; the raw view semantics of
# the PyTorch code prevent dropping the relayouts without changing results.
def knn_idx(x_bdn, k):
    inner = -2.0 * jnp.einsum("bdn,bdm->bnm", x_bdn, x_bdn, precision=HIGH)
    xx = jnp.sum(x_bdn ** 2, axis=1)                                  # (B, N)
    pairwise = -xx[:, None, :] - inner - xx[:, :, None]               # -||xi - xj||^2
    return jax.lax.top_k(pairwise, k)[1]                              # (B, N, k)


def get_knn(x_bdn, k, dim9):
    B, D, N = x_bdn.shape
    idx = knn_idx(x_bdn[:, 9:12, :] if dim9 else x_bdn[:, :-3, :], k)
    x_bnd = jnp.transpose(x_bdn, (0, 2, 1))                           # (B, N, D)
    feature = x_bnd[jnp.arange(B)[:, None, None], idx]                # (B, N, k, D)
    xr = jnp.broadcast_to(x_bnd[:, :, None, :], (B, N, k, D))
    f = jnp.concatenate([feature - xr, xr, feature], axis=3)          # (B, N, k, 3D)
    return jnp.transpose(f, (0, 3, 1, 2))                             # (B, 3D, N, k)


def gac_block_prep(x, in_c, layer_num):
    """Reproduces gac_block's slicing / PairwiseDistance / raw .view reshapes.
    Returns lsam (B*K, 9, N), z (B*K, 2C, N), ad (B*K, 2C+1, N)."""
    B, _, N, K = x.shape
    if layer_num == 0:
        los = [i * in_c + 9 for i in range(3)]
    else:
        los = [(i + 1) * in_c + i * 3 for i in range(3)]
    yy = [x[:, l:l + 3] for l in los]
    lsam = jnp.concatenate(yy, axis=1).reshape(-1, 9, N)              # (B*K, 9, N)
    coord_i, coord_j = yy[1], yy[2]
    d = jnp.sqrt(jnp.sum((coord_j - coord_i + PDIST_EPS) ** 2, axis=1))   # (B, N, K)
    d = d.reshape(-1, 1, N)                                           # (B*K, 1, N)
    if layer_num >= 1:
        x = jnp.concatenate([x[:, :in_c], x[:, in_c + 3:2 * in_c + 3],
                             x[:, 2 * in_c + 6:3 * in_c + 6]], axis=1)
    z = x[:, in_c:].reshape(-1, 2 * in_c, N)
    a1 = x[:, :in_c].reshape(-1, in_c, N)
    a2 = x[:, 2 * in_c:].reshape(-1, in_c, N)
    ad = jnp.concatenate([a1, a2, d], axis=1)                         # (B*K, 2C+1, N)
    return lsam, z, ad


# ============================================================================
# Parameters and BN folding
# ============================================================================
def init_params(key):
    keys = iter(jax.random.split(key, 256))

    def nrm(shape, scale=0.1):
        return scale * jax.random.normal(next(keys), shape, dtype=jnp.float32)

    def conv(cin, cout):
        return {"w": nrm((cout, cin)), "b": nrm((cout,), 0.05)}

    def bn(c):
        return {"gamma": 1.0 + nrm((c,)), "beta": nrm((c,)),
                "mean": nrm((c,), 0.05),
                "var": 0.5 + jax.random.uniform(next(keys), (c,), dtype=jnp.float32)}

    def gac_blk(in_c, out_c):
        return {"conv1": conv(9, 16), "bn1": bn(16),
                "conv2": conv(2 * in_c + 16, out_c), "bn2": bn(out_c),
                "conv3": conv(2 * in_c + 1, out_c), "bn3": bn(out_c)}

    return {
        "pn": {"conv1": conv(NUM_CHANNELS, 64), "bn1": bn(64),
               "conv2": conv(64, 128), "bn2": bn(128),
               "conv3": conv(128, PN_FEATS), "bn3": bn(PN_FEATS)},
        "gac": {"blocks": [gac_blk(NUM_CHANNELS, 64), gac_blk(64, 128), gac_blk(128, 256)],
                "conv4": conv(64 + 128 + 256, 256), "bn4": bn(256)},
        "head": {"conv1": conv(512, 512), "bn1": bn(512),
                 "conv2": conv(512, 256), "bn2": bn(256),
                 "conv3": conv(256, 128), "bn3": bn(128),
                 "conv4": conv(128, NUM_CLASSES)},
    }


def _fold_bn(conv, bn):
    """Return (W, shift) with BN scale folded into the weight so
    BN(conv(x)) == x @ W + shift  (exact, inference-mode BN)."""
    scale = bn["gamma"] / jnp.sqrt(bn["var"] + EPS)
    w = conv["w"].T * scale[None, :]
    shift = (conv["b"] - bn["mean"]) * scale + bn["beta"]
    return w, shift[None, :]


def _wcast(w, use_bf16):
    # v5e note: only the MXU-facing weights/activations get bf16; all elementwise math
    # stays f32 (preferred_element_type=f32 accumulation), so no bf16 VPU path is needed.
    return w.astype(jnp.bfloat16) if use_bf16 else w


# ============================================================================
# Pallas wrappers
# ============================================================================
def pointnet_pallas(x_bdn, pp, *, use_bf16=False, tile_cap=1024):
    B, C, N = x_bdn.shape
    xt = jnp.transpose(x_bdn, (0, 2, 1))                       # (B, N, C)
    tile_n, n_pad = _tile_and_pad(N, tile_cap)
    if n_pad != N:
        # Edge-replicate padding: duplicated points never change the max (exact).
        xt = jnp.pad(xt, ((0, 0), (0, n_pad - N), (0, 0)), mode="edge")

    w1, b1 = _fold_bn(pp["conv1"], pp["bn1"])
    w2, b2 = _fold_bn(pp["conv2"], pp["bn2"])
    w3, b3 = _fold_bn(pp["conv3"], pp["bn3"])
    w1, w2, w3 = (_wcast(w, use_bf16) for w in (w1, w2, w3))
    weights = [w1, b1, w2, b2, w3, b3]

    # TODO(synk): for B==1 (or odd B) on v7x the single parallel axis leaves one
    # TensorCore idle for this (tiny) stage; splitting the point axis would fix it.
    const = lambda a: pl.BlockSpec(a.shape, lambda b, n: (0, 0))
    out = pl.pallas_call(
        pointnet_pool_kernel,
        out_shape=jax.ShapeDtypeStruct((B, 1, PN_FEATS), jnp.float32),
        grid_spec=pltpu.PrefetchScalarGridSpec(
            num_scalar_prefetch=0,
            grid=(B, n_pad // tile_n),
            in_specs=[pl.BlockSpec((1, tile_n, C), lambda b, n: (b, n, 0))]
                     + [const(a) for a in weights],
            out_specs=pl.BlockSpec((1, 1, PN_FEATS), lambda b, n: (b, 0, 0)),
            scratch_shapes=[pltpu.VMEM((8, PN_FEATS), jnp.float32)],
        ),
        compiler_params=pltpu.CompilerParams(
            dimension_semantics=("parallel", "arbitrary")),
    )(xt, *weights)
    return out[:, 0, :]                                         # (B, 256)


def gac_block_pallas(x_bcnk, bp, in_c, out_c, layer_num, k,
                     *, use_bf16=False, tile_cap=1024):
    B, _, N, K = x_bcnk.shape
    lsam, z, ad = gac_block_prep(x_bcnk, in_c, layer_num)       # (B*K, C, N) each

    # Channels-last edge slabs, leading dim split back to (B, K, N, C) so the k-sum can
    # be the trailing grid axis (matches the PyTorch .view(B,k,out_c,N).sum(1) grouping).
    def rows(v):
        return jnp.transpose(v, (0, 2, 1)).reshape(B, K, N, v.shape[1])
    lsam_r, z_r, ad_r = rows(lsam), rows(z), rows(ad)

    tile_n, n_pad = _tile_and_pad(N, tile_cap)
    if n_pad != N:
        padf = lambda v: jnp.pad(v, ((0, 0), (0, 0), (0, n_pad - N), (0, 0)))
        lsam_r, z_r, ad_r = padf(lsam_r), padf(z_r), padf(ad_r)

    w1, b1 = _fold_bn(bp["conv1"], bp["bn1"])                   # (9, 16)
    w2, b2 = _fold_bn(bp["conv2"], bp["bn2"])                   # (2C+16, out)
    w2z, w2r = w2[:2 * in_c], w2[2 * in_c:]
    w3, b3 = _fold_bn(bp["conv3"], bp["bn3"])                   # (2C+1, out)
    w1, w2z, w2r, w3 = (_wcast(w, use_bf16) for w in (w1, w2z, w2r, w3))
    if use_bf16:
        lsam_r, z_r, ad_r = (v.astype(jnp.bfloat16) for v in (lsam_r, z_r, ad_r))
    weights = [w1, b1, w2z, w2r, b2, w3, b3]

    # VMEM fits the 16 MiB v5e scoped default at tile_cap=1024 for the widest block
    # (~9 MiB incl. double buffers); no vmem_limit override needed.
    const = lambda a: pl.BlockSpec(a.shape, lambda b, nt, kk: (0, 0))
    edge = lambda c: pl.BlockSpec((1, 1, tile_n, c), lambda b, nt, kk: (b, kk, nt, 0))
    out = pl.pallas_call(
        gac_edge_kernel,
        out_shape=jax.ShapeDtypeStruct((B, n_pad, out_c), jnp.float32),
        grid_spec=pltpu.PrefetchScalarGridSpec(
            num_scalar_prefetch=0,
            grid=(B, n_pad // tile_n, K),
            in_specs=[edge(9), edge(2 * in_c), edge(2 * in_c + 1)]
                     + [const(w) for w in weights],
            out_specs=pl.BlockSpec((1, tile_n, out_c), lambda b, nt, kk: (b, nt, 0)),
        ),
        compiler_params=pltpu.CompilerParams(
            dimension_semantics=("parallel", "parallel", "arbitrary")),
    )(lsam_r, z_r, ad_r, *weights)

    res = out[:, :N, :]                                         # (B, N, out_c)
    return jnp.transpose(res, (0, 2, 1))                        # (B, out_c, N)


def seg_head_pallas(res_cat_bdn, pooled, gp, hp, *, use_bf16=False, tile_cap=1024):
    B, _, N = res_cat_bdn.shape
    rc = jnp.transpose(res_cat_bdn, (0, 2, 1))                  # (B, N, 448)
    tile_n, n_pad = _tile_and_pad(N, tile_cap)
    if n_pad != N:
        rc = jnp.pad(rc, ((0, 0), (0, n_pad - N), (0, 0)))

    w4, b4 = _fold_bn(gp["conv4"], gp["bn4"])                   # (448, 256)
    w1, b1 = _fold_bn(hp["conv1"], hp["bn1"])                   # (512, 512), scale folded
    w1a, w1b = w1[:PN_FEATS], w1[PN_FEATS:]
    cb = jnp.dot(pooled, w1a, precision=HIGH).reshape(B, 1, 512)    # pointnet term
    w2, b2 = _fold_bn(hp["conv2"], hp["bn2"])                   # (512, 256)
    w3, b3 = _fold_bn(hp["conv3"], hp["bn3"])                   # (256, 128)

    # Lane-dense output: pad the class dim to 128 with zero weight columns and a -1e30
    # pad bias; exp underflows to exactly 0 so the log-softmax over real classes is exact.
    c_pad = _round_up(NUM_CLASSES, 128)
    wc = jnp.zeros((128, c_pad), jnp.float32).at[:, :NUM_CLASSES].set(hp["conv4"]["w"].T)
    bc = jnp.full((1, c_pad), -1e30, jnp.float32).at[0, :NUM_CLASSES].set(hp["conv4"]["b"])

    w4, w1b, w2, w3, wc = (_wcast(w, use_bf16) for w in (w4, w1b, w2, w3, wc))
    if use_bf16:
        rc = rc.astype(jnp.bfloat16)
    weights = [w4, b4, w1b, b1, w2, b2, w3, b3, wc, bc]

    const = lambda a: pl.BlockSpec(a.shape, lambda b, n: (0, 0))
    out = pl.pallas_call(
        seg_head_kernel,
        out_shape=jax.ShapeDtypeStruct((B, n_pad, c_pad), jnp.float32),
        grid_spec=pltpu.PrefetchScalarGridSpec(
            num_scalar_prefetch=0,
            grid=(B, n_pad // tile_n),
            in_specs=[pl.BlockSpec((1, tile_n, rc.shape[-1]), lambda b, n: (b, n, 0)),
                      pl.BlockSpec((1, 1, 512), lambda b, n: (b, 0, 0))]
                     + [const(w) for w in weights],
            out_specs=pl.BlockSpec((1, tile_n, c_pad), lambda b, n: (b, n, 0)),
        ),
        compiler_params=pltpu.CompilerParams(
            dimension_semantics=("parallel", "parallel")),
    )(rc, cb, *weights)
    return out[:, :N, :NUM_CLASSES]


@functools.partial(jax.jit, static_argnames=("use_bf16", "tile_cap", "edge_tile_cap"))
def gac_seg2_forward(x_bdn, params, use_bf16=False, tile_cap=1024, edge_tile_cap=1024):
    """Full GAC_seg2 forward. x_bdn: (B, num_channels, N).  Returns (B, N, num_classes)
    log-probabilities.  Set use_bf16=True on v6e/v7x for bf16 MXU inputs."""
    pooled = pointnet_pallas(x_bdn, params["pn"], use_bf16=use_bf16, tile_cap=tile_cap)

    gp = params["gac"]
    y = x_bdn
    xk = get_knn(x_bdn, K_NEIGH, dim9=True)
    res = gac_block_pallas(xk, gp["blocks"][0], NUM_CHANNELS, 64, 0, K_NEIGH,
                           use_bf16=use_bf16, tile_cap=edge_tile_cap)
    res_c = jnp.concatenate([res, y[:, 9:12, :]], axis=1)
    res2 = gac_block_pallas(get_knn(res_c, K_NEIGH, dim9=False),
                            gp["blocks"][1], 64, 128, 1, K_NEIGH,
                            use_bf16=use_bf16, tile_cap=edge_tile_cap)
    res2_c = jnp.concatenate([res2, y[:, 9:12, :]], axis=1)
    res3 = gac_block_pallas(get_knn(res2_c, K_NEIGH, dim9=False),
                            gp["blocks"][2], 128, 256, 2, K_NEIGH,
                            use_bf16=use_bf16, tile_cap=edge_tile_cap)
    res_cat = jnp.concatenate([res, res2, res3], axis=1)        # (B, 448, N)
    return seg_head_pallas(res_cat, pooled, gp, params["head"],
                           use_bf16=use_bf16, tile_cap=tile_cap)


# ============================================================================
# Pure-JAX references (eval-mode BN), mirroring the PyTorch forward
# ============================================================================
def _bn_eval(h_bcn, bn):
    return ((h_bcn - bn["mean"][None, :, None]) / jnp.sqrt(bn["var"][None, :, None] + EPS)
            * bn["gamma"][None, :, None] + bn["beta"][None, :, None])


def _conv_bn_lrelu_ref(v_bcn, conv, bn):
    h = jnp.einsum("oc,bcn->bon", conv["w"], v_bcn, precision=HIGH) + conv["b"][None, :, None]
    return _leaky(_bn_eval(h, bn))


def pointnet_ref(x_bdn, pp):
    h = _conv_bn_lrelu_ref(x_bdn, pp["conv1"], pp["bn1"])
    h = _conv_bn_lrelu_ref(h, pp["conv2"], pp["bn2"])
    h = _conv_bn_lrelu_ref(h, pp["conv3"], pp["bn3"])
    return jnp.max(h, axis=2)                                   # (B, 256)


def gac_block_ref(x_bcnk, bp, in_c, out_c, layer_num, k):
    B, _, N, _ = x_bcnk.shape
    lsam, z, ad = gac_block_prep(x_bcnk, in_c, layer_num)
    r = _conv_bn_lrelu_ref(lsam, bp["conv1"], bp["bn1"])
    f_cap = _conv_bn_lrelu_ref(jnp.concatenate([z, r], axis=1), bp["conv2"], bp["bn2"])
    attn = _conv_bn_lrelu_ref(ad, bp["conv3"], bp["bn3"])
    attn = jax.nn.softmax(attn, axis=1)
    return (attn * f_cap).reshape(B, k, out_c, N).sum(axis=1)   # (B, out_c, N)


def seg_head_ref(res_cat_bdn, pooled, gp, hp):
    B, _, N = res_cat_bdn.shape
    x2 = _conv_bn_lrelu_ref(res_cat_bdn, gp["conv4"], gp["bn4"])
    x1 = jnp.broadcast_to(pooled[:, :, None], (B, PN_FEATS, N))
    h = jnp.concatenate([x1, x2], axis=1)
    h = _conv_bn_lrelu_ref(h, hp["conv1"], hp["bn1"])
    h = _conv_bn_lrelu_ref(h, hp["conv2"], hp["bn2"])
    h = _conv_bn_lrelu_ref(h, hp["conv3"], hp["bn3"])
    logits = (jnp.einsum("oc,bcn->bon", hp["conv4"]["w"], h, precision=HIGH)
              + hp["conv4"]["b"][None, :, None])
    return jax.nn.log_softmax(jnp.transpose(logits, (0, 2, 1)), axis=-1)


def gac_seg2_reference(x_bdn, params):
    gp = params["gac"]
    pooled = pointnet_ref(x_bdn, params["pn"])
    xk = get_knn(x_bdn, K_NEIGH, dim9=True)
    res = gac_block_ref(xk, gp["blocks"][0], NUM_CHANNELS, 64, 0, K_NEIGH)
    res_c = jnp.concatenate([res, x_bdn[:, 9:12, :]], axis=1)
    res2 = gac_block_ref(get_knn(res_c, K_NEIGH, dim9=False), gp["blocks"][1], 64, 128, 1, K_NEIGH)
    res2_c = jnp.concatenate([res2, x_bdn[:, 9:12, :]], axis=1)
    res3 = gac_block_ref(get_knn(res2_c, K_NEIGH, dim9=False), gp["blocks"][2], 128, 256, 2, K_NEIGH)
    res_cat = jnp.concatenate([res, res2, res3], axis=1)
    return seg_head_ref(res_cat, pooled, gp, params["head"])


# ============================================================================
if __name__ == "__main__":
    key = jax.random.PRNGKey(0)
    k_param, k_x = jax.random.split(key)

    B, C, N = 2, NUM_CHANNELS, 64        # small but valid: N >= K_NEIGH
    params = init_params(k_param)
    x = jax.random.normal(k_x, (B, C, N), dtype=jnp.float32)

    # End-to-end jitted Pallas forward.
    out = gac_seg2_forward(x, params)
    out = jax.block_until_ready(out)
    assert out.shape == (B, N, NUM_CLASSES)
    assert bool(jnp.all(jnp.isfinite(out)))

    # Full pure-JAX mirror of the PyTorch forward (shape check).  End-to-end value
    # comparison is skipped on purpose: near-tie kNN selections are sensitive to f32
    # rounding differences between the two matmul paths, so each Pallas kernel is
    # validated stage-wise below on identical inputs instead.
    ref_full = gac_seg2_reference(x, params)
    assert ref_full.shape == out.shape

    gp, hp = params["gac"], params["head"]
    tol = dict(atol=2e-3, rtol=2e-3)
    # gac blocks use the EUP approximate reciprocal for the softmax; allow a bit more.
    tol_blk = dict(atol=1e-2, rtol=1e-2)

    pooled = pointnet_pallas(x, params["pn"])
    assert jnp.allclose(pooled, pointnet_ref(x, params["pn"]), **tol)

    xk = get_knn(x, K_NEIGH, dim9=True)
    res = gac_block_pallas(xk, gp["blocks"][0], NUM_CHANNELS, 64, 0, K_NEIGH)
    assert jnp.allclose(res, gac_block_ref(xk, gp["blocks"][0], NUM_CHANNELS, 64, 0, K_NEIGH),
                        **tol_blk)

    res_c = jnp.concatenate([res, x[:, 9:12, :]], axis=1)
    x2k = get_knn(res_c, K_NEIGH, dim9=False)
    res2 = gac_block_pallas(x2k, gp["blocks"][1], 64, 128, 1, K_NEIGH)
    assert jnp.allclose(res2, gac_block_ref(x2k, gp["blocks"][1], 64, 128, 1, K_NEIGH), **tol_blk)

    res2_c = jnp.concatenate([res2, x[:, 9:12, :]], axis=1)
    x3k = get_knn(res2_c, K_NEIGH, dim9=False)
    res3 = gac_block_pallas(x3k, gp["blocks"][2], 128, 256, 2, K_NEIGH)
    assert jnp.allclose(res3, gac_block_ref(x3k, gp["blocks"][2], 128, 256, 2, K_NEIGH), **tol_blk)

    res_cat = jnp.concatenate([res, res2, res3], axis=1)
    head = seg_head_pallas(res_cat, pooled, gp, hp)
    assert jnp.allclose(head, seg_head_ref(res_cat, pooled, gp, hp), **tol)

    print("KERNEL_OK")
</pallas_src>

<mosaic_0001>
module attributes {stable_mosaic.version = 11 : i64} {
  func.func @gac_edge_kernel(%arg0: i32, %arg1: i32, %arg2: i32, %arg3: memref<1x1x64x9xf32, #tpu.memory_space<vmem>>, %arg4: memref<1x1x64x30xf32, #tpu.memory_space<vmem>>, %arg5: memref<1x1x64x31xf32, #tpu.memory_space<vmem>>, %arg6: memref<9x16xf32, #tpu.memory_space<vmem>>, %arg7: memref<1x16xf32, #tpu.memory_space<vmem>>, %arg8: memref<30x64xf32, #tpu.memory_space<vmem>>, %arg9: memref<16x64xf32, #tpu.memory_space<vmem>>, %arg10: memref<1x64xf32, #tpu.memory_space<vmem>>, %arg11: memref<31x64xf32, #tpu.memory_space<vmem>>, %arg12: memref<1x64xf32, #tpu.memory_space<vmem>>, %arg13: memref<1x64x64xf32, #tpu.memory_space<vmem>>) attributes {dimension_semantics = [#tpu.dimension_semantics<parallel>, #tpu.dimension_semantics<parallel>, #tpu.dimension_semantics<arbitrary>], iteration_bounds = array<i64: 2, 1, 24>, scalar_prefetch = 0 : i64, scratch_operands = 0 : i64, tpu.core_type = #tpu.core_type<tc>, window_params = [{transform_indices = @transform_0, window_bounds = array<i64: 1, 1, 64, 9>}, {transform_indices = @transform_1, window_bounds = array<i64: 1, 1, 64, 30>}, {transform_indices = @transform_2, window_bounds = array<i64: 1, 1, 64, 31>}, {pipeline_mode = #tpu.pipeline_mode<synchronous>, transform_indices = @transform_3, window_bounds = array<i64: 9, 16>}, {pipeline_mode = #tpu.pipeline_mode<synchronous>, transform_indices = @transform_4, window_bounds = array<i64: 1, 16>}, {pipeline_mode = #tpu.pipeline_mode<synchronous>, transform_indices = @transform_5, window_bounds = array<i64: 30, 64>}, {pipeline_mode = #tpu.pipeline_mode<synchronous>, transform_indices = @transform_6, window_bounds = array<i64: 16, 64>}, {pipeline_mode = #tpu.pipeline_mode<synchronous>, transform_indices = @transform_7, window_bounds = array<i64: 1, 64>}, {pipeline_mode = #tpu.pipeline_mode<synchronous>, transform_indices = @transform_8, window_bounds = array<i64: 31, 64>}, {pipeline_mode = #tpu.pipeline_mode<synchronous>, transform_indices = @transform_9, window_bounds = array<i64: 1, 64>}, {transform_indices = @transform_10, window_bounds = array<i64: 1, 64, 64>}]} {
    %c0_i32 = arith.constant 0 : i32
    %0 = arith.cmpi eq, %arg2, %c0_i32 : i32
    %1 = arith.extui %0 : i1 to i32
    %c0_i32_0 = arith.constant 0 : i32
    %2 = arith.cmpi ne, %1, %c0_i32_0 : i32
    scf.if %2 {
      %cst_40 = arith.constant 0.000000e+00 : f32
      %51 = vector.broadcast %cst_40 : f32 to vector<1x64x64xf32>
      %c0_41 = arith.constant 0 : index
      %c0_42 = arith.constant 0 : index
      %c0_43 = arith.constant 0 : index
      %52 = vector.load %arg13[%c0_41, %c0_42, %c0_43] : memref<1x64x64xf32, #tpu.memory_space<vmem>>, vector<1x64x64xf32>
      tpu.vector_store %arg13[%c0_41, %c0_42, %c0_43], %51 {strides = array<i32>} : memref<1x64x64xf32, #tpu.memory_space<vmem>>, vector<1x64x64xf32>,
    } else {
    }
    %c0 = arith.constant 0 : index
    %c0_1 = arith.constant 0 : index
    %c0_2 = arith.constant 0 : index
    %c0_3 = arith.constant 0 : index
    %3 = vector.load %arg3[%c0, %c0_1, %c0_2, %c0_3] : memref<1x1x64x9xf32, #tpu.memory_space<vmem>>, vector<1x1x64x9xf32>
    %4 = vector.shape_cast %3 : vector<1x1x64x9xf32> to vector<64x9xf32>
    %c0_4 = arith.constant 0 : index
    %c0_5 = arith.constant 0 : index
    %5 = vector.load %arg6[%c0_4, %c0_5] : memref<9x16xf32, #tpu.memory_space<vmem>>, vector<9x16xf32>
    %cst = arith.constant dense<0.000000e+00> : vector<64x16xf32>
    %6 = tpu.matmul %4, %5, %cst {dimension_numbers = #tpu.dot_dimension_numbers<[1], [0], [0], [1], [0, 0, 1, 1], [], []>} : vector<64x9xf32>, vector<9x16xf32>, vector<64x16xf32> -> vector<64x16xf32>
    %c0_6 = arith.constant 0 : index
    %c0_7 = arith.constant 0 : index
    %7 = vector.load %arg7[%c0_6, %c0_7] : memref<1x16xf32, #tpu.memory_space<vmem>>, vector<1x16xf32>
    %8 = vector.broadcast %7 : vector<1x16xf32> to vector<64x16xf32>
    %9 = arith.addf %6, %8 : vector<64x16xf32>
    %cst_8 = arith.constant 0.00999999977 : f32
    %10 = vector.broadcast %cst_8 : f32 to vector<64x16xf32>
    %11 = arith.mulf %10, %9 : vector<64x16xf32>
    %12 = arith.maximumf %9, %11 : vector<64x16xf32>
    %c0_9 = arith.constant 0 : index
    %c0_10 = arith.constant 0 : index
    %c0_11 = arith.constant 0 : index
    %c0_12 = arith.constant 0 : index
    %13 = vector.load %arg4[%c0_9, %c0_10, %c0_11, %c0_12] : memref<1x1x64x30xf32, #tpu.memory_space<vmem>>, vector<1x1x64x30xf32>
    %14 = vector.shape_cast %13 : vector<1x1x64x30xf32> to vector<64x30xf32>
    %c0_13 = arith.constant 0 : index
    %c0_14 = arith.constant 0 : index
    %15 = vector.load %arg8[%c0_13, %c0_14] : memref<30x64xf32, #tpu.memory_space<vmem>>, vector<30x64xf32>
    %cst_15 = arith.constant dense<0.000000e+00> : vector<64x64xf32>
    %16 = tpu.matmul %14, %15, %cst_15 {dimension_numbers = #tpu.dot_dimension_numbers<[1], [0], [0], [1], [0, 0, 1, 1], [], []>} : vector<64x30xf32>, vector<30x64xf32>, vector<64x64xf32> -> vector<64x64xf32>
    %c0_16 = arith.constant 0 : index
    %c0_17 = arith.constant 0 : index
    %17 = vector.load %arg9[%c0_16, %c0_17] : memref<16x64xf32, #tpu.memory_space<vmem>>, vector<16x64xf32>
    %cst_18 = arith.constant dense<0.000000e+00> : vector<64x64xf32>
    %18 = tpu.matmul %12, %17, %cst_18 {dimension_numbers = #tpu.dot_dimension_numbers<[1], [0], [0], [1], [0, 0, 1, 1], [], []>} : vector<64x16xf32>, vector<16x64xf32>, vector<64x64xf32> -> vector<64x64xf32>
    %19 = arith.addf %16, %18 : vector<64x64xf32>
    %c0_19 = arith.constant 0 : index
    %c0_20 = arith.constant 0 : index
    %20 = vector.load %arg10[%c0_19, %c0_20] : memref<1x64xf32, #tpu.memory_space<vmem>>, vector<1x64xf32>
    %21 = vector.broadcast %20 : vector<1x64xf32> to vector<64x64xf32>
    %22 = arith.addf %19, %21 : vector<64x64xf32>
    %cst_21 = arith.constant 0.00999999977 : f32
    %23 = vector.broadcast %cst_21 : f32 to vector<64x64xf32>
    %24 = arith.mulf %23, %22 : vector<64x64xf32>
    %25 = arith.maximumf %22, %24 : vector<64x64xf32>
    %c0_22 = arith.constant 0 : index
    %c0_23 = arith.constant 0 : index
    %c0_24 = arith.constant 0 : index
    %c0_25 = arith.constant 0 : index
    %26 = vector.load %arg5[%c0_22, %c0_23, %c0_24, %c0_25] : memref<1x1x64x31xf32, #tpu.memory_space<vmem>>, vector<1x1x64x31xf32>
    %27 = vector.shape_cast %26 : vector<1x1x64x31xf32> to vector<64x31xf32>
    %c0_26 = arith.constant 0 : index
    %c0_27 = arith.constant 0 : index
    %28 = vector.load %arg11[%c0_26, %c0_27] : memref<31x64xf32, #tpu.memory_space<vmem>>, vector<31x64xf32>
    %cst_28 = arith.constant dense<0.000000e+00> : vector<64x64xf32>
    %29 = tpu.matmul %27, %28, %cst_28 {dimension_numbers = #tpu.dot_dimension_numbers<[1], [0], [0], [1], [0, 0, 1, 1], [], []>} : vector<64x31xf32>, vector<31x64xf32>, vector<64x64xf32> -> vector<64x64xf32>
    %c0_29 = arith.constant 0 : index
    %c0_30 = arith.constant 0 : index
    %30 = vector.load %arg12[%c0_29, %c0_30] : memref<1x64xf32, #tpu.memory_space<vmem>>, vector<1x64xf32>
    %31 = vector.broadcast %30 : vector<1x64xf32> to vector<64x64xf32>
    %32 = arith.addf %29, %31 : vector<64x64xf32>
    %cst_31 = arith.constant 0.00999999977 : f32
    %33 = vector.broadcast %cst_31 : f32 to vector<64x64xf32>
    %34 = arith.mulf %33, %32 : vector<64x64xf32>
    %35 = arith.maximumf %32, %34 : vector<64x64xf32>
    %cst_32 = arith.constant dense<0xFF800000> : vector<64xf32>
    %36 = vector.multi_reduction <maximumf>, %35, %cst_32 [1] : vector<64x64xf32> to vector<64xf32>
    %37 = vector.shape_cast %36 : vector<64xf32> to vector<64x1xf32>
    %38 = vector.broadcast %37 : vector<64x1xf32> to vector<64x64xf32>
    %39 = arith.subf %35, %38 : vector<64x64xf32>
    %40 = math.exp %39 : vector<64x64xf32>
    %cst_33 = arith.constant dense<0.000000e+00> : vector<64xf32>
    %41 = vector.multi_reduction <add>, %40, %cst_33 [1] : vector<64x64xf32> to vector<64xf32>
    %42 = vector.shape_cast %41 : vector<64xf32> to vector<64x1xf32>
    %43 = tpu.reciprocal %42 {approx = true} : vector<64x1xf32> -> vector<64x1xf32>
    %44 = vector.broadcast %43 : vector<64x1xf32> to vector<64x64xf32>
    %45 = arith.mulf %40, %44 : vector<64x64xf32>
    %c0_34 = arith.constant 0 : index
    %c0_35 = arith.constant 0 : index
    %c0_36 = arith.constant 0 : index
    %46 = vector.load %arg13[%c0_34, %c0_35, %c0_36] : memref<1x64x64xf32, #tpu.memory_space<vmem>>, vector<1x64x64xf32>
    %47 = arith.mulf %45, %25 : vector<64x64xf32>
    %48 = vector.shape_cast %47 : vector<64x64xf32> to vector<1x64x64xf32>
    %49 = arith.addf %46, %48 : vector<1x64x64xf32>
    %c0_37 = arith.constant 0 : index
    %c0_38 = arith.constant 0 : index
    %c0_39 = arith.constant 0 : index
    %50 = vector.load %arg13[%c0_37, %c0_38, %c0_39] : memref<1x64x64xf32, #tpu.memory_space<vmem>>, vector<1x64x64xf32>
    tpu.vector_store %arg13[%c0_37, %c0_38, %c0_39], %49 {strides = array<i32>} : memref<1x64x64xf32, #tpu.memory_space<vmem>>, vector<1x64x64xf32>,
    return
  }
  func.func @transform_0(%arg0: i32, %arg1: i32, %arg2: i32) -> (i32, i32, i32, i32) {
    %c0_i32 = arith.constant 0 : i32
    %c0_i32_0 = arith.constant 0 : i32
    return %arg0, %arg2, %arg1, %c0_i32 : i32, i32, i32, i32
  }
  func.func @transform_1(%arg0: i32, %arg1: i32, %arg2: i32) -> (i32, i32, i32, i32) {
    %c0_i32 = arith.constant 0 : i32
    %c0_i32_0 = arith.constant 0 : i32
    return %arg0, %arg2, %arg1, %c0_i32 : i32, i32, i32, i32
  }
  func.func @transform_2(%arg0: i32, %arg1: i32, %arg2: i32) -> (i32, i32, i32, i32) {
    %c0_i32 = arith.constant 0 : i32
    %c0_i32_0 = arith.constant 0 : i32
    return %arg0, %arg2, %arg1, %c0_i32 : i32, i32, i32, i32
  }
  func.func @transform_3(%arg0: i32, %arg1: i32, %arg2: i32) -> (i32, i32) {
    %c0_i32 = arith.constant 0 : i32
    %c0_i32_0 = arith.constant 0 : i32
    %c0_i32_1 = arith.constant 0 : i32
    return %c0_i32, %c0_i32_0 : i32, i32
  }
  func.func @transform_4(%arg0: i32, %arg1: i32, %arg2: i32) -> (i32, i32) {
    %c0_i32 = arith.constant 0 : i32
    %c0_i32_0 = arith.constant 0 : i32
    %c0_i32_1 = arith.constant 0 : i32
    return %c0_i32, %c0_i32_0 : i32, i32
  }
  func.func @transform_5(%arg0: i32, %arg1: i32, %arg2: i32) -> (i32, i32) {
    %c0_i32 = arith.constant 0 : i32
    %c0_i32_0 = arith.constant 0 : i32
    %c0_i32_1 = arith.constant 0 : i32
    return %c0_i32, %c0_i32_0 : i32, i32
  }
  func.func @transform_6(%arg0: i32, %arg1: i32, %arg2: i32) -> (i32, i32) {
    %c0_i32 = arith.constant 0 : i32
    %c0_i32_0 = arith.constant 0 : i32
    %c0_i32_1 = arith.constant 0 : i32
    return %c0_i32, %c0_i32_0 : i32, i32
  }
  func.func @transform_7(%arg0: i32, %arg1: i32, %arg2: i32) -> (i32, i32) {
    %c0_i32 = arith.constant 0 : i32
    %c0_i32_0 = arith.constant 0 : i32
    %c0_i32_1 = arith.constant 0 : i32
    return %c0_i32, %c0_i32_0 : i32, i32
  }
  func.func @transform_8(%arg0: i32, %arg1: i32, %arg2: i32) -> (i32, i32) {
    %c0_i32 = arith.constant 0 : i32
    %c0_i32_0 = arith.constant 0 : i32
    %c0_i32_1 = arith.constant 0 : i32
    return %c0_i32, %c0_i32_0 : i32, i32
  }
  func.func @transform_9(%arg0: i32, %arg1: i32, %arg2: i32) -> (i32, i32) {
    %c0_i32 = arith.constant 0 : i32
    %c0_i32_0 = arith.constant 0 : i32
    %c0_i32_1 = arith.constant 0 : i32
    return %c0_i32, %c0_i32_0 : i32, i32
  }
  func.func @transform_10(%arg0: i32, %arg1: i32, %arg2: i32) -> (i32, i32, i32) {
    %c0_i32 = arith.constant 0 : i32
    %c0_i32_0 = arith.constant 0 : i32
    return %arg0, %arg1, %c0_i32 : i32, i32, i32
  }
}

module attributes {stable_mosaic.version = 11 : i64} {
  func.func @gac_edge_kernel(%arg0: i32, %arg1: i32, %arg2: i32, %arg3: memref<1x1x64x9xf32, #tpu.memory_space<vmem>>, %arg4: memref<1x1x64x128xf32, #tpu.memory_space<vmem>>, %arg5: memref<1x1x64x129xf32, #tpu.memory_space<vmem>>, %arg6: memref<9x16xf32, #tpu.memory_space<vmem>>, %arg7: memref<1x16xf32, #tpu.memory_space<vmem>>, %arg8: memref<128x128xf32, #tpu.memory_space<vmem>>, %arg9: memref<16x128xf32, #tpu.memory_space<vmem>>, %arg10: memref<1x128xf32, #tpu.memory_space<vmem>>, %arg11: memref<129x128xf32, #tpu.memory_space<vmem>>, %arg12: memref<1x128xf32, #tpu.memory_space<vmem>>, %arg13: memref<1x64x128xf32, #tpu.memory_space<vmem>>) attributes {dimension_semantics = [#tpu.dimension_semantics<parallel>, #tpu.dimension_semantics<parallel>, #tpu.dimension_semantics<arbitrary>], iteration_bounds = array<i64: 2, 1, 24>, scalar_prefetch = 0 : i64, scratch_operands = 0 : i64, tpu.core_type = #tpu.core_type<tc>, window_params = [{transform_indices = @transform_0, window_bounds = array<i64: 1, 1, 64, 9>}, {transform_indices = @transform_1, window_bounds = array<i64: 1, 1, 64, 128>}, {transform_indices = @transform_2, window_bounds = array<i64: 1, 1, 64, 129>}, {pipeline_mode = #tpu.pipeline_mode<synchronous>, transform_indices = @transform_3, window_bounds = array<i64: 9, 16>}, {pipeline_mode = #tpu.pipeline_mode<synchronous>, transform_indices = @transform_4, window_bounds = array<i64: 1, 16>}, {pipeline_mode = #tpu.pipeline_mode<synchronous>, transform_indices = @transform_5, window_bounds = array<i64: 128, 128>}, {pipeline_mode = #tpu.pipeline_mode<synchronous>, transform_indices = @transform_6, window_bounds = array<i64: 16, 128>}, {pipeline_mode = #tpu.pipeline_mode<synchronous>, transform_indices = @transform_7, window_bounds = array<i64: 1, 128>}, {pipeline_mode = #tpu.pipeline_mode<synchronous>, transform_indices = @transform_8, window_bounds = array<i64: 129, 128>}, {pipeline_mode = #tpu.pipeline_mode<synchronous>, transform_indices = @transform_9, window_bounds = array<i64: 1, 128>}, {transform_indices = @transform_10, window_bounds = array<i64: 1, 64, 128>}]} {
    %c0_i32 = arith.constant 0 : i32
    %0 = arith.cmpi eq, %arg2, %c0_i32 : i32
    %1 = arith.extui %0 : i1 to i32
    %c0_i32_0 = arith.constant 0 : i32
    %2 = arith.cmpi ne, %1, %c0_i32_0 : i32
    scf.if %2 {
      %cst_40 = arith.constant 0.000000e+00 : f32
      %51 = vector.broadcast %cst_40 : f32 to vector<1x64x128xf32>
      %c0_41 = arith.constant 0 : index
      %c0_42 = arith.constant 0 : index
      %c0_43 = arith.constant 0 : index
      %52 = vector.load %arg13[%c0_41, %c0_42, %c0_43] : memref<1x64x128xf32, #tpu.memory_space<vmem>>, vector<1x64x128xf32>
      tpu.vector_store %arg13[%c0_41, %c0_42, %c0_43], %51 {strides = array<i32>} : memref<1x64x128xf32, #tpu.memory_space<vmem>>, vector<1x64x128xf32>,
    } else {
    }
    %c0 = arith.constant 0 : index
    %c0_1 = arith.constant 0 : index
    %c0_2 = arith.constant 0 : index
    %c0_3 = arith.constant 0 : index
    %3 = vector.load %arg3[%c0, %c0_1, %c0_2, %c0_3] : memref<1x1x64x9xf32, #tpu.memory_space<vmem>>, vector<1x1x64x9xf32>
    %4 = vector.shape_cast %3 : vector<1x1x64x9xf32> to vector<64x9xf32>
    %c0_4 = arith.constant 0 : index
    %c0_5 = arith.constant 0 : index
    %5 = vector.load %arg6[%c0_4, %c0_5] : memref<9x16xf32, #tpu.memory_space<vmem>>, vector<9x16xf32>
    %cst = arith.constant dense<0.000000e+00> : vector<64x16xf32>
    %6 = tpu.matmul %4, %5, %cst {dimension_numbers = #tpu.dot_dimension_numbers<[1], [0], [0], [1], [0, 0, 1, 1], [], []>} : vector<64x9xf32>, vector<9x16xf32>, vector<64x16xf32> -> vector<64x16xf32>
    %c0_6 = arith.constant 0 : index
    %c0_7 = arith.constant 0 : index
    %7 = vector.load %arg7[%c0_6, %c0_7] : memref<1x16xf32, #tpu.memory_space<vmem>>, vector<1x16xf32>
    %8 = vector.broadcast %7 : vector<1x16xf32> to vector<64x16xf32>
    %9 = arith.addf %6, %8 : vector<64x16xf32>
    %cst_8 = arith.constant 0.00999999977 : f32
    %10 = vector.broadcast %cst_8 : f32 to vector<64x16xf32>
    %11 = arith.mulf %10, %9 : vector<64x16xf32>
    %12 = arith.maximumf %9, %11 : vector<64x16xf32>
    %c0_9 = arith.constant 0 : index
    %c0_10 = arith.constant 0 : index
    %c0_11 = arith.constant 0 : index
    %c0_12 = arith.constant 0 : index
    %13 = vector.load %arg4[%c0_9, %c0_10, %c0_11, %c0_12] : memref<1x1x64x128xf32, #tpu.memory_space<vmem>>, vector<1x1x64x128xf32>
    %14 = vector.shape_cast %13 : vector<1x1x64x128xf32> to vector<64x128xf32>
    %c0_13 = arith.constant 0 : index
    %c0_14 = arith.constant 0 : index
    %15 = vector.load %arg8[%c0_13, %c0_14] : memref<128x128xf32, #tpu.memory_space<vmem>>, vector<128x128xf32>
    %cst_15 = arith.constant dense<0.000000e+00> : vector<64x128xf32>
    %16 = tpu.matmul %14, %15, %cst_15 {dimension_numbers = #tpu.dot_dimension_numbers<[1], [0], [0], [1], [0, 0, 1, 1], [], []>} : vector<64x128xf32>, vector<128x128xf32>, vector<64x128xf32> -> vector<64x128xf32>
    %c0_16 = arith.constant 0 : index
    %c0_17 = arith.constant 0 : index
    %17 = vector.load %arg9[%c0_16, %c0_17] : memref<16x128xf32, #tpu.memory_space<vmem>>, vector<16x128xf32>
    %cst_18 = arith.constant dense<0.000000e+00> : vector<64x128xf32>
    %18 = tpu.matmul %12, %17, %cst_18 {dimension_numbers = #tpu.dot_dimension_numbers<[1], [0], [0], [1], [0, 0, 1, 1], [], []>} : vector<64x16xf32>, vector<16x128xf32>, vector<64x128xf32> -> vector<64x128xf32>
    %19 = arith.addf %16, %18 : vector<64x128xf32>
    %c0_19 = arith.constant 0 : index
    %c0_20 = arith.constant 0 : index
    %20 = vector.load %arg10[%c0_19, %c0_20] : memref<1x128xf32, #tpu.memory_space<vmem>>, vector<1x128xf32>
    %21 = vector.broadcast %20 : vector<1x128xf32> to vector<64x128xf32>
    %22 = arith.addf %19, %21 : vector<64x128xf32>
    %cst_21 = arith.constant 0.00999999977 : f32
    %23 = vector.broadcast %cst_21 : f32 to vector<64x128xf32>
    %24 = arith.mulf %23, %22 : vector<64x128xf32>
    %25 = arith.maximumf %22, %24 : vector<64x128xf32>
    %c0_22 = arith.constant 0 : index
    %c0_23 = arith.constant 0 : index
    %c0_24 = arith.constant 0 : index
    %c0_25 = arith.constant 0 : index
    %26 = vector.load %arg5[%c0_22, %c0_23, %c0_24, %c0_25] : memref<1x1x64x129xf32, #tpu.memory_space<vmem>>, vector<1x1x64x129xf32>
    %27 = vector.shape_cast %26 : vector<1x1x64x129xf32> to vector<64x129xf32>
    %c0_26 = arith.constant 0 : index
    %c0_27 = arith.constant 0 : index
    %28 = vector.load %arg11[%c0_26, %c0_27] : memref<129x128xf32, #tpu.memory_space<vmem>>, vector<129x128xf32>
    %cst_28 = arith.constant dense<0.000000e+00> : vector<64x128xf32>
    %29 = tpu.matmul %27, %28, %cst_28 {dimension_numbers = #tpu.dot_dimension_numbers<[1], [0], [0], [1], [0, 0, 1, 1], [], []>} : vector<64x129xf32>, vector<129x128xf32>, vector<64x128xf32> -> vector<64x128xf32>
    %c0_29 = arith.constant 0 : index
    %c0_30 = arith.constant 0 : index
    %30 = vector.load %arg12[%c0_29, %c0_30] : memref<1x128xf32, #tpu.memory_space<vmem>>, vector<1x128xf32>
    %31 = vector.broadcast %30 : vector<1x128xf32> to vector<64x128xf32>
    %32 = arith.addf %29, %31 : vector<64x128xf32>
    %cst_31 = arith.constant 0.00999999977 : f32
    %33 = vector.broadcast %cst_31 : f32 to vector<64x128xf32>
    %34 = arith.mulf %33, %32 : vector<64x128xf32>
    %35 = arith.maximumf %32, %34 : vector<64x128xf32>
    %cst_32 = arith.constant dense<0xFF800000> : vector<64xf32>
    %36 = vector.multi_reduction <maximumf>, %35, %cst_32 [1] : vector<64x128xf32> to vector<64xf32>
    %37 = vector.shape_cast %36 : vector<64xf32> to vector<64x1xf32>
    %38 = vector.broadcast %37 : vector<64x1xf32> to vector<64x128xf32>
    %39 = arith.subf %35, %38 : vector<64x128xf32>
    %40 = math.exp %39 : vector<64x128xf32>
    %cst_33 = arith.constant dense<0.000000e+00> : vector<64xf32>
    %41 = vector.multi_reduction <add>, %40, %cst_33 [1] : vector<64x128xf32> to vector<64xf32>
    %42 = vector.shape_cast %41 : vector<64xf32> to vector<64x1xf32>
    %43 = tpu.reciprocal %42 {approx = true} : vector<64x1xf32> -> vector<64x1xf32>
    %44 = vector.broadcast %43 : vector<64x1xf32> to vector<64x128xf32>
    %45 = arith.mulf %40, %44 : vector<64x128xf32>
    %c0_34 = arith.constant 0 : index
    %c0_35 = arith.constant 0 : index
    %c0_36 = arith.constant 0 : index
    %46 = vector.load %arg13[%c0_34, %c0_35, %c0_36] : memref<1x64x128xf32, #tpu.memory_space<vmem>>, vector<1x64x128xf32>
    %47 = arith.mulf %45, %25 : vector<64x128xf32>
    %48 = vector.shape_cast %47 : vector<64x128xf32> to vector<1x64x128xf32>
    %49 = arith.addf %46, %48 : vector<1x64x128xf32>
    %c0_37 = arith.constant 0 : index
    %c0_38 = arith.constant 0 : index
    %c0_39 = arith.constant 0 : index
    %50 = vector.load %arg13[%c0_37, %c0_38, %c0_39] : memref<1x64x128xf32, #tpu.memory_space<vmem>>, vector<1x64x128xf32>
    tpu.vector_store %arg13[%c0_37, %c0_38, %c0_39], %49 {strides = array<i32>} : memref<1x64x128xf32, #tpu.memory_space<vmem>>, vector<1x64x128xf32>,
    return
  }
  func.func @transform_0(%arg0: i32, %arg1: i32, %arg2: i32) -> (i32, i32, i32, i32) {
    %c0_i32 = arith.constant 0 : i32
    %c0_i32_0 = arith.constant 0 : i32
    return %arg0, %arg2, %arg1, %c0_i32 : i32, i32, i32, i32
  }
  func.func @transform_1(%arg0: i32, %arg1: i32, %arg2: i32) -> (i32, i32, i32, i32) {
    %c0_i32 = arith.constant 0 : i32
    %c0_i32_0 = arith.constant 0 : i32
    return %arg0, %arg2, %arg1, %c0_i32 : i32, i32, i32, i32
  }
  func.func @transform_2(%arg0: i32, %arg1: i32, %arg2: i32) -> (i32, i32, i32, i32) {
    %c0_i32 = arith.constant 0 : i32
    %c0_i32_0 = arith.constant 0 : i32
    return %arg0, %arg2, %arg1, %c0_i32 : i32, i32, i32, i32
  }
  func.func @transform_3(%arg0: i32, %arg1: i32, %arg2: i32) -> (i32, i32) {
    %c0_i32 = arith.constant 0 : i32
    %c0_i32_0 = arith.constant 0 : i32
    %c0_i32_1 = arith.constant 0 : i32
    return %c0_i32, %c0_i32_0 : i32, i32
  }
  func.func @transform_4(%arg0: i32, %arg1: i32, %arg2: i32) -> (i32, i32) {
    %c0_i32 = arith.constant 0 : i32
    %c0_i32_0 = arith.constant 0 : i32
    %c0_i32_1 = arith.constant 0 : i32
    return %c0_i32, %c0_i32_0 : i32, i32
  }
  func.func @transform_5(%arg0: i32, %arg1: i32, %arg2: i32) -> (i32, i32) {
    %c0_i32 = arith.constant 0 : i32
    %c0_i32_0 = arith.constant 0 : i32
    %c0_i32_1 = arith.constant 0 : i32
    return %c0_i32, %c0_i32_0 : i32, i32
  }
  func.func @transform_6(%arg0: i32, %arg1: i32, %arg2: i32) -> (i32, i32) {
    %c0_i32 = arith.constant 0 : i32
    %c0_i32_0 = arith.constant 0 : i32
    %c0_i32_1 = arith.constant 0 : i32
    return %c0_i32, %c0_i32_0 : i32, i32
  }
  func.func @transform_7(%arg0: i32, %arg1: i32, %arg2: i32) -> (i32, i32) {
    %c0_i32 = arith.constant 0 : i32
    %c0_i32_0 = arith.constant 0 : i32
    %c0_i32_1 = arith.constant 0 : i32
    return %c0_i32, %c0_i32_0 : i32, i32
  }
  func.func @transform_8(%arg0: i32, %arg1: i32, %arg2: i32) -> (i32, i32) {
    %c0_i32 = arith.constant 0 : i32
    %c0_i32_0 = arith.constant 0 : i32
    %c0_i32_1 = arith.constant 0 : i32
    return %c0_i32, %c0_i32_0 : i32, i32
  }
  func.func @transform_9(%arg0: i32, %arg1: i32, %arg2: i32) -> (i32, i32) {
    %c0_i32 = arith.constant 0 : i32
    %c0_i32_0 = arith.constant 0 : i32
    %c0_i32_1 = arith.constant 0 : i32
    return %c0_i32, %c0_i32_0 : i32, i32
  }
  func.func @transform_10(%arg0: i32, %arg1: i32, %arg2: i32) -> (i32, i32, i32) {
    %c0_i32 = arith.constant 0 : i32
    %c0_i32_0 = arith.constant 0 : i32
    return %arg0, %arg1, %c0_i32 : i32, i32, i32
  }
}

module attributes {stable_mosaic.version = 11 : i64} {
  func.func @gac_edge_kernel(%arg0: i32, %arg1: i32, %arg2: i32, %arg3: memref<1x1x64x9xf32, #tpu.memory_space<vmem>>, %arg4: memref<1x1x64x256xf32, #tpu.memory_space<vmem>>, %arg5: memref<1x1x64x257xf32, #tpu.memory_space<vmem>>, %arg6: memref<9x16xf32, #tpu.memory_space<vmem>>, %arg7: memref<1x16xf32, #tpu.memory_space<vmem>>, %arg8: memref<256x256xf32, #tpu.memory_space<vmem>>, %arg9: memref<16x256xf32, #tpu.memory_space<vmem>>, %arg10: memref<1x256xf32, #tpu.memory_space<vmem>>, %arg11: memref<257x256xf32, #tpu.memory_space<vmem>>, %arg12: memref<1x256xf32, #tpu.memory_space<vmem>>, %arg13: memref<1x64x256xf32, #tpu.memory_space<vmem>>) attributes {dimension_semantics = [#tpu.dimension_semantics<parallel>, #tpu.dimension_semantics<parallel>, #tpu.dimension_semantics<arbitrary>], iteration_bounds = array<i64: 2, 1, 24>, scalar_prefetch = 0 : i64, scratch_operands = 0 : i64, tpu.core_type = #tpu.core_type<tc>, window_params = [{transform_indices = @transform_0, window_bounds = array<i64: 1, 1, 64, 9>}, {transform_indices = @transform_1, window_bounds = array<i64: 1, 1, 64, 256>}, {transform_indices = @transform_2, window_bounds = array<i64: 1, 1, 64, 257>}, {pipeline_mode = #tpu.pipeline_mode<synchronous>, transform_indices = @transform_3, window_bounds = array<i64: 9, 16>}, {pipeline_mode = #tpu.pipeline_mode<synchronous>, transform_indices = @transform_4, window_bounds = array<i64: 1, 16>}, {pipeline_mode = #tpu.pipeline_mode<synchronous>, transform_indices = @transform_5, window_bounds = array<i64: 256, 256>}, {pipeline_mode = #tpu.pipeline_mode<synchronous>, transform_indices = @transform_6, window_bounds = array<i64: 16, 256>}, {pipeline_mode = #tpu.pipeline_mode<synchronous>, transform_indices = @transform_7, window_bounds = array<i64: 1, 256>}, {pipeline_mode = #tpu.pipeline_mode<synchronous>, transform_indices = @transform_8, window_bounds = array<i64: 257, 256>}, {pipeline_mode = #tpu.pipeline_mode<synchronous>, transform_indices = @transform_9, window_bounds = array<i64: 1, 256>}, {transform_indices = @transform_10, window_bounds = array<i64: 1, 64, 256>}]} {
    %c0_i32 = arith.constant 0 : i32
    %0 = arith.cmpi eq, %arg2, %c0_i32 : i32
    %1 = arith.extui %0 : i1 to i32
    %c0_i32_0 = arith.constant 0 : i32
    %2 = arith.cmpi ne, %1, %c0_i32_0 : i32
    scf.if %2 {
      %cst_40 = arith.constant 0.000000e+00 : f32
      %51 = vector.broadcast %cst_40 : f32 to vector<1x64x256xf32>
      %c0_41 = arith.constant 0 : index
      %c0_42 = arith.constant 0 : index
      %c0_43 = arith.constant 0 : index
      %52 = vector.load %arg13[%c0_41, %c0_42, %c0_43] : memref<1x64x256xf32, #tpu.memory_space<vmem>>, vector<1x64x256xf32>
      tpu.vector_store %arg13[%c0_41, %c0_42, %c0_43], %51 {strides = array<i32>} : memref<1x64x256xf32, #tpu.memory_space<vmem>>, vector<1x64x256xf32>,
    } else {
    }
    %c0 = arith.constant 0 : index
    %c0_1 = arith.constant 0 : index
    %c0_2 = arith.constant 0 : index
    %c0_3 = arith.constant 0 : index
    %3 = vector.load %arg3[%c0, %c0_1, %c0_2, %c0_3] : memref<1x1x64x9xf32, #tpu.memory_space<vmem>>, vector<1x1x64x9xf32>
    %4 = vector.shape_cast %3 : vector<1x1x64x9xf32> to vector<64x9xf32>
    %c0_4 = arith.constant 0 : index
    %c0_5 = arith.constant 0 : index
    %5 = vector.load %arg6[%c0_4, %c0_5] : memref<9x16xf32, #tpu.memory_space<vmem>>, vector<9x16xf32>
    %cst = arith.constant dense<0.000000e+00> : vector<64x16xf32>
    %6 = tpu.matmul %4, %5, %cst {dimension_numbers = #tpu.dot_dimension_numbers<[1], [0], [0], [1], [0, 0, 1, 1], [], []>} : vector<64x9xf32>, vector<9x16xf32>, vector<64x16xf32> -> vector<64x16xf32>
    %c0_6 = arith.constant 0 : index
    %c0_7 = arith.constant 0 : index
    %7 = vector.load %arg7[%c0_6, %c0_7] : memref<1x16xf32, #tpu.memory_space<vmem>>, vector<1x16xf32>
    %8 = vector.broadcast %7 : vector<1x16xf32> to vector<64x16xf32>
    %9 = arith.addf %6, %8 : vector<64x16xf32>
    %cst_8 = arith.constant 0.00999999977 : f32
    %10 = vector.broadcast %cst_8 : f32 to vector<64x16xf32>
    %11 = arith.mulf %10, %9 : vector<64x16xf32>
    %12 = arith.maximumf %9, %11 : vector<64x16xf32>
    %c0_9 = arith.constant 0 : index
    %c0_10 = arith.constant 0 : index
    %c0_11 = arith.constant 0 : index
    %c0_12 = arith.constant 0 : index
    %13 = vector.load %arg4[%c0_9, %c0_10, %c0_11, %c0_12] : memref<1x1x64x256xf32, #tpu.memory_space<vmem>>, vector<1x1x64x256xf32>
    %14 = vector.shape_cast %13 : vector<1x1x64x256xf32> to vector<64x256xf32>
    %c0_13 = arith.constant 0 : index
    %c0_14 = arith.constant 0 : index
    %15 = vector.load %arg8[%c0_13, %c0_14] : memref<256x256xf32, #tpu.memory_space<vmem>>, vector<256x256xf32>
    %cst_15 = arith.constant dense<0.000000e+00> : vector<64x256xf32>
    %16 = tpu.matmul %14, %15, %cst_15 {dimension_numbers = #tpu.dot_dimension_numbers<[1], [0], [0], [1], [0, 0, 1, 1], [], []>} : vector<64x256xf32>, vector<256x256xf32>, vector<64x256xf32> -> vector<64x256xf32>
    %c0_16 = arith.constant 0 : index
    %c0_17 = arith.constant 0 : index
    %17 = vector.load %arg9[%c0_16, %c0_17] : memref<16x256xf32, #tpu.memory_space<vmem>>, vector<16x256xf32>
    %cst_18 = arith.constant dense<0.000000e+00> : vector<64x256xf32>
    %18 = tpu.matmul %12, %17, %cst_18 {dimension_numbers = #tpu.dot_dimension_numbers<[1], [0], [0], [1], [0, 0, 1, 1], [], []>} : vector<64x16xf32>, vector<16x256xf32>, vector<64x256xf32> -> vector<64x256xf32>
    %19 = arith.addf %16, %18 : vector<64x256xf32>
    %c0_19 = arith.constant 0 : index
    %c0_20 = arith.constant 0 : index
    %20 = vector.load %arg10[%c0_19, %c0_20] : memref<1x256xf32, #tpu.memory_space<vmem>>, vector<1x256xf32>
    %21 = vector.broadcast %20 : vector<1x256xf32> to vector<64x256xf32>
    %22 = arith.addf %19, %21 : vector<64x256xf32>
    %cst_21 = arith.constant 0.00999999977 : f32
    %23 = vector.broadcast %cst_21 : f32 to vector<64x256xf32>
    %24 = arith.mulf %23, %22 : vector<64x256xf32>
    %25 = arith.maximumf %22, %24 : vector<64x256xf32>
    %c0_22 = arith.constant 0 : index
    %c0_23 = arith.constant 0 : index
    %c0_24 = arith.constant 0 : index
    %c0_25 = arith.constant 0 : index
    %26 = vector.load %arg5[%c0_22, %c0_23, %c0_24, %c0_25] : memref<1x1x64x257xf32, #tpu.memory_space<vmem>>, vector<1x1x64x257xf32>
    %27 = vector.shape_cast %26 : vector<1x1x64x257xf32> to vector<64x257xf32>
    %c0_26 = arith.constant 0 : index
    %c0_27 = arith.constant 0 : index
    %28 = vector.load %arg11[%c0_26, %c0_27] : memref<257x256xf32, #tpu.memory_space<vmem>>, vector<257x256xf32>
    %cst_28 = arith.constant dense<0.000000e+00> : vector<64x256xf32>
    %29 = tpu.matmul %27, %28, %cst_28 {dimension_numbers = #tpu.dot_dimension_numbers<[1], [0], [0], [1], [0, 0, 1, 1], [], []>} : vector<64x257xf32>, vector<257x256xf32>, vector<64x256xf32> -> vector<64x256xf32>
    %c0_29 = arith.constant 0 : index
    %c0_30 = arith.constant 0 : index
    %30 = vector.load %arg12[%c0_29, %c0_30] : memref<1x256xf32, #tpu.memory_space<vmem>>, vector<1x256xf32>
    %31 = vector.broadcast %30 : vector<1x256xf32> to vector<64x256xf32>
    %32 = arith.addf %29, %31 : vector<64x256xf32>
    %cst_31 = arith.constant 0.00999999977 : f32
    %33 = vector.broadcast %cst_31 : f32 to vector<64x256xf32>
    %34 = arith.mulf %33, %32 : vector<64x256xf32>
    %35 = arith.maximumf %32, %34 : vector<64x256xf32>
    %cst_32 = arith.constant dense<0xFF800000> : vector<64xf32>
    %36 = vector.multi_reduction <maximumf>, %35, %cst_32 [1] : vector<64x256xf32> to vector<64xf32>
    %37 = vector.shape_cast %36 : vector<64xf32> to vector<64x1xf32>
    %38 = vector.broadcast %37 : vector<64x1xf32> to vector<64x256xf32>
    %39 = arith.subf %35, %38 : vector<64x256xf32>
    %40 = math.exp %39 : vector<64x256xf32>
    %cst_33 = arith.constant dense<0.000000e+00> : vector<64xf32>
    %41 = vector.multi_reduction <add>, %40, %cst_33 [1] : vector<64x256xf32> to vector<64xf32>
    %42 = vector.shape_cast %41 : vector<64xf32> to vector<64x1xf32>
    %43 = tpu.reciprocal %42 {approx = true} : vector<64x1xf32> -> vector<64x1xf32>
    %44 = vector.broadcast %43 : vector<64x1xf32> to vector<64x256xf32>
    %45 = arith.mulf %40, %44 : vector<64x256xf32>
    %c0_34 = arith.constant 0 : index
    %c0_35 = arith.constant 0 : index
    %c0_36 = arith.constant 0 : index
    %46 = vector.load %arg13[%c0_34, %c0_35, %c0_36] : memref<1x64x256xf32, #tpu.memory_space<vmem>>, vector<1x64x256xf32>
    %47 = arith.mulf %45, %25 : vector<64x256xf32>
    %48 = vector.shape_cast %47 : vector<64x256xf32> to vector<1x64x256xf32>
    %49 = arith.addf %46, %48 : vector<1x64x256xf32>
    %c0_37 = arith.constant 0 : index
    %c0_38 = arith.constant 0 : index
    %c0_39 = arith.constant 0 : index
    %50 = vector.load %arg13[%c0_37, %c0_38, %c0_39] : memref<1x64x256xf32, #tpu.memory_space<vmem>>, vector<1x64x256xf32>
    tpu.vector_store %arg13[%c0_37, %c0_38, %c0_39], %49 {strides = array<i32>} : memref<1x64x256xf32, #tpu.memory_space<vmem>>, vector<1x64x256xf32>,
    return
  }
  func.func @transform_0(%arg0: i32, %arg1: i32, %arg2: i32) -> (i32, i32, i32, i32) {
    %c0_i32 = arith.constant 0 : i32
    %c0_i32_0 = arith.constant 0 : i32
    return %arg0, %arg2, %arg1, %c0_i32 : i32, i32, i32, i32
  }
  func.func @transform_1(%arg0: i32, %arg1: i32, %arg2: i32) -> (i32, i32, i32, i32) {
    %c0_i32 = arith.constant 0 : i32
    %c0_i32_0 = arith.constant 0 : i32
    return %arg0, %arg2, %arg1, %c0_i32 : i32, i32, i32, i32
  }
  func.func @transform_2(%arg0: i32, %arg1: i32, %arg2: i32) -> (i32, i32, i32, i32) {
    %c0_i32 = arith.constant 0 : i32
    %c0_i32_0 = arith.constant 0 : i32
    return %arg0, %arg2, %arg1, %c0_i32 : i32, i32, i32, i32
  }
  func.func @transform_3(%arg0: i32, %arg1: i32, %arg2: i32) -> (i32, i32) {
    %c0_i32 = arith.constant 0 : i32
    %c0_i32_0 = arith.constant 0 : i32
    %c0_i32_1 = arith.constant 0 : i32
    return %c0_i32, %c0_i32_0 : i32, i32
  }
  func.func @transform_4(%arg0: i32, %arg1: i32, %arg2: i32) -> (i32, i32) {
    %c0_i32 = arith.constant 0 : i32
    %c0_i32_0 = arith.constant 0 : i32
    %c0_i32_1 = arith.constant 0 : i32
    return %c0_i32, %c0_i32_0 : i32, i32
  }
  func.func @transform_5(%arg0: i32, %arg1: i32, %arg2: i32) -> (i32, i32) {
    %c0_i32 = arith.constant 0 : i32
    %c0_i32_0 = arith.constant 0 : i32
    %c0_i32_1 = arith.constant 0 : i32
    return %c0_i32, %c0_i32_0 : i32, i32
  }
  func.func @transform_6(%arg0: i32, %arg1: i32, %arg2: i32) -> (i32, i32) {
    %c0_i32 = arith.constant 0 : i32
    %c0_i32_0 = arith.constant 0 : i32
    %c0_i32_1 = arith.constant 0 : i32
    return %c0_i32, %c0_i32_0 : i32, i32
  }
  func.func @transform_7(%arg0: i32, %arg1: i32, %arg2: i32) -> (i32, i32) {
    %c0_i32 = arith.constant 0 : i32
    %c0_i32_0 = arith.constant 0 : i32
    %c0_i32_1 = arith.constant 0 : i32
    return %c0_i32, %c0_i32_0 : i32, i32
  }
  func.func @transform_8(%arg0: i32, %arg1: i32, %arg2: i32) -> (i32, i32) {
    %c0_i32 = arith.constant 0 : i32
    %c0_i32_0 = arith.constant 0 : i32
    %c0_i32_1 = arith.constant 0 : i32
    return %c0_i32, %c0_i32_0 : i32, i32
  }
  func.func @transform_9(%arg0: i32, %arg1: i32, %arg2: i32) -> (i32, i32) {
    %c0_i32 = arith.constant 0 : i32
    %c0_i32_0 = arith.constant 0 : i32
    %c0_i32_1 = arith.constant 0 : i32
    return %c0_i32, %c0_i32_0 : i32, i32
  }
  func.func @transform_10(%arg0: i32, %arg1: i32, %arg2: i32) -> (i32, i32, i32) {
    %c0_i32 = arith.constant 0 : i32
    %c0_i32_0 = arith.constant 0 : i32
    return %arg0, %arg1, %c0_i32 : i32, i32, i32
  }
}

module attributes {stable_mosaic.version = 11 : i64} {
  func.func @pointnet_pool_kernel(%arg0: i32, %arg1: i32, %arg2: memref<1x64x15xf32, #tpu.memory_space<vmem>>, %arg3: memref<15x64xf32, #tpu.memory_space<vmem>>, %arg4: memref<1x64xf32, #tpu.memory_space<vmem>>, %arg5: memref<64x128xf32, #tpu.memory_space<vmem>>, %arg6: memref<1x128xf32, #tpu.memory_space<vmem>>, %arg7: memref<128x256xf32, #tpu.memory_space<vmem>>, %arg8: memref<1x256xf32, #tpu.memory_space<vmem>>, %arg9: memref<1x1x256xf32, #tpu.memory_space<vmem>>, %arg10: memref<8x256xf32, #tpu.memory_space<vmem>>) attributes {dimension_semantics = [#tpu.dimension_semantics<parallel>, #tpu.dimension_semantics<arbitrary>], iteration_bounds = array<i64: 2, 1>, scalar_prefetch = 0 : i64, scratch_operands = 1 : i64, tpu.core_type = #tpu.core_type<tc>, window_params = [{transform_indices = @transform_0, window_bounds = array<i64: 1, 64, 15>}, {pipeline_mode = #tpu.pipeline_mode<synchronous>, transform_indices = @transform_1, window_bounds = array<i64: 15, 64>}, {pipeline_mode = #tpu.pipeline_mode<synchronous>, transform_indices = @transform_2, window_bounds = array<i64: 1, 64>}, {pipeline_mode = #tpu.pipeline_mode<synchronous>, transform_indices = @transform_3, window_bounds = array<i64: 64, 128>}, {pipeline_mode = #tpu.pipeline_mode<synchronous>, transform_indices = @transform_4, window_bounds = array<i64: 1, 128>}, {pipeline_mode = #tpu.pipeline_mode<synchronous>, transform_indices = @transform_5, window_bounds = array<i64: 128, 256>}, {pipeline_mode = #tpu.pipeline_mode<synchronous>, transform_indices = @transform_6, window_bounds = array<i64: 1, 256>}, {transform_indices = @transform_7, window_bounds = array<i64: 1, 1, 256>}]} {
    %c0_i32 = arith.constant 0 : i32
    %0 = arith.cmpi eq, %arg1, %c0_i32 : i32
    %1 = arith.extui %0 : i1 to i32
    %c0_i32_0 = arith.constant 0 : i32
    %2 = arith.cmpi ne, %1, %c0_i32_0 : i32
    scf.if %2 {
      %cst_26 = arith.constant 0xFF800000 : f32
      %50 = vector.broadcast %cst_26 : f32 to vector<8x256xf32>
      %c0_27 = arith.constant 0 : index
      %c0_28 = arith.constant 0 : index
      %51 = vector.load %arg10[%c0_27, %c0_28] : memref<8x256xf32, #tpu.memory_space<vmem>>, vector<8x256xf32>
      tpu.vector_store %arg10[%c0_27, %c0_28], %50 {strides = array<i32>} : memref<8x256xf32, #tpu.memory_space<vmem>>, vector<8x256xf32>,
    } else {
    }
    %c0 = arith.constant 0 : index
    %c0_1 = arith.constant 0 : index
    %c0_2 = arith.constant 0 : index
    %3 = vector.load %arg2[%c0, %c0_1, %c0_2] : memref<1x64x15xf32, #tpu.memory_space<vmem>>, vector<1x64x15xf32>
    %4 = vector.shape_cast %3 : vector<1x64x15xf32> to vector<64x15xf32>
    %c0_3 = arith.constant 0 : index
    %c0_4 = arith.constant 0 : index
    %5 = vector.load %arg3[%c0_3, %c0_4] : memref<15x64xf32, #tpu.memory_space<vmem>>, vector<15x64xf32>
    %cst = arith.constant dense<0.000000e+00> : vector<64x64xf32>
    %6 = tpu.matmul %4, %5, %cst {dimension_numbers = #tpu.dot_dimension_numbers<[1], [0], [0], [1], [0, 0, 1, 1], [], []>} : vector<64x15xf32>, vector<15x64xf32>, vector<64x64xf32> -> vector<64x64xf32>
    %c0_5 = arith.constant 0 : index
    %c0_6 = arith.constant 0 : index
    %7 = vector.load %arg4[%c0_5, %c0_6] : memref<1x64xf32, #tpu.memory_space<vmem>>, vector<1x64xf32>
    %8 = vector.broadcast %7 : vector<1x64xf32> to vector<64x64xf32>
    %9 = arith.addf %6, %8 : vector<64x64xf32>
    %cst_7 = arith.constant 0.00999999977 : f32
    %10 = vector.broadcast %cst_7 : f32 to vector<64x64xf32>
    %11 = arith.mulf %10, %9 : vector<64x64xf32>
    %12 = arith.maximumf %9, %11 : vector<64x64xf32>
    %c0_8 = arith.constant 0 : index
    %c0_9 = arith.constant 0 : index
    %13 = vector.load %arg5[%c0_8, %c0_9] : memref<64x128xf32, #tpu.memory_space<vmem>>, vector<64x128xf32>
    %cst_10 = arith.constant dense<0.000000e+00> : vector<64x128xf32>
    %14 = tpu.matmul %12, %13, %cst_10 {dimension_numbers = #tpu.dot_dimension_numbers<[1], [0], [0], [1], [0, 0, 1, 1], [], []>} : vector<64x64xf32>, vector<64x128xf32>, vector<64x128xf32> -> vector<64x128xf32>
    %c0_11 = arith.constant 0 : index
    %c0_12 = arith.constant 0 : index
    %15 = vector.load %arg6[%c0_11, %c0_12] : memref<1x128xf32, #tpu.memory_space<vmem>>, vector<1x128xf32>
    %16 = vector.broadcast %15 : vector<1x128xf32> to vector<64x128xf32>
    %17 = arith.addf %14, %16 : vector<64x128xf32>
    %cst_13 = arith.constant 0.00999999977 : f32
    %18 = vector.broadcast %cst_13 : f32 to vector<64x128xf32>
    %19 = arith.mulf %18, %17 : vector<64x128xf32>
    %20 = arith.maximumf %17, %19 : vector<64x128xf32>
    %c0_14 = arith.constant 0 : index
    %c0_15 = arith.constant 0 : index
    %21 = vector.load %arg7[%c0_14, %c0_15] : memref<128x256xf32, #tpu.memory_space<vmem>>, vector<128x256xf32>
    %cst_16 = arith.constant dense<0.000000e+00> : vector<64x256xf32>
    %22 = tpu.matmul %20, %21, %cst_16 {dimension_numbers = #tpu.dot_dimension_numbers<[1], [0], [0], [1], [0, 0, 1, 1], [], []>} : vector<64x128xf32>, vector<128x256xf32>, vector<64x256xf32> -> vector<64x256xf32>
    %c0_17 = arith.constant 0 : index
    %c0_18 = arith.constant 0 : index
    %23 = vector.load %arg8[%c0_17, %c0_18] : memref<1x256xf32, #tpu.memory_space<vmem>>, vector<1x256xf32>
    %24 = vector.broadcast %23 : vector<1x256xf32> to vector<64x256xf32>
    %25 = arith.addf %22, %24 : vector<64x256xf32>
    %cst_19 = arith.constant 0.00999999977 : f32
    %26 = vector.broadcast %cst_19 : f32 to vector<64x256xf32>
    %27 = arith.mulf %26, %25 : vector<64x256xf32>
    %28 = arith.maximumf %25, %27 : vector<64x256xf32>
    %29 = vector.extract_strided_slice %28 {offsets = [0, 0], sizes = [8, 256], strides = [1, 1]} : vector<64x256xf32> to vector<8x256xf32>
    %30 = vector.extract_strided_slice %28 {offsets = [8, 0], sizes = [8, 256], strides = [1, 1]} : vector<64x256xf32> to vector<8x256xf32>
    %31 = vector.extract_strided_slice %28 {offsets = [16, 0], sizes = [8, 256], strides = [1, 1]} : vector<64x256xf32> to vector<8x256xf32>
    %32 = vector.extract_strided_slice %28 {offsets = [24, 0], sizes = [8, 256], strides = [1, 1]} : vector<64x256xf32> to vector<8x256xf32>
    %33 = vector.extract_strided_slice %28 {offsets = [32, 0], sizes = [8, 256], strides = [1, 1]} : vector<64x256xf32> to vector<8x256xf32>
    %34 = vector.extract_strided_slice %28 {offsets = [40, 0], sizes = [8, 256], strides = [1, 1]} : vector<64x256xf32> to vector<8x256xf32>
    %35 = vector.extract_strided_slice %28 {offsets = [48, 0], sizes = [8, 256], strides = [1, 1]} : vector<64x256xf32> to vector<8x256xf32>
    %36 = vector.extract_strided_slice %28 {offsets = [56, 0], sizes = [8, 256], strides = [1, 1]} : vector<64x256xf32> to vector<8x256xf32>
    %37 = arith.maximumf %29, %30 : vector<8x256xf32>
    %38 = arith.maximumf %31, %32 : vector<8x256xf32>
    %39 = arith.maximumf %33, %34 : vector<8x256xf32>
    %40 = arith.maximumf %35, %36 : vector<8x256xf32>
    %41 = arith.maximumf %37, %38 : vector<8x256xf32>
    %42 = arith.maximumf %39, %40 : vector<8x256xf32>
    %43 = arith.maximumf %41, %42 : vector<8x256xf32>
    %c0_20 = arith.constant 0 : index
    %c0_21 = arith.constant 0 : index
    %44 = vector.load %arg10[%c0_20, %c0_21] : memref<8x256xf32, #tpu.memory_space<vmem>>, vector<8x256xf32>
    %45 = arith.maximumf %44, %43 : vector<8x256xf32>
    %c0_22 = arith.constant 0 : index
    %c0_23 = arith.constant 0 : index
    %46 = vector.load %arg10[%c0_22, %c0_23] : memref<8x256xf32, #tpu.memory_space<vmem>>, vector<8x256xf32>
    tpu.vector_store %arg10[%c0_22, %c0_23], %45 {strides = array<i32>} : memref<8x256xf32, #tpu.memory_space<vmem>>, vector<8x256xf32>,
    %c0_i32_24 = arith.constant 0 : i32
    %47 = arith.cmpi eq, %arg1, %c0_i32_24 : i32
    %48 = arith.extui %47 : i1 to i32
    %c0_i32_25 = arith.constant 0 : i32
    %49 = arith.cmpi ne, %48, %c0_i32_25 : i32
    scf.if %49 {
      %c0_26 = arith.constant 0 : index
      %c0_27 = arith.constant 0 : index
      %50 = vector.load %arg10[%c0_26, %c0_27] : memref<8x256xf32, #tpu.memory_space<vmem>>, vector<8x256xf32>
      %cst_28 = arith.constant dense<0xFF800000> : vector<256xf32>
      %51 = vector.multi_reduction <maximumf>, %50, %cst_28 [0] : vector<8x256xf32> to vector<256xf32>
      %52 = vector.shape_cast %51 : vector<256xf32> to vector<1x256xf32>
      %c0_29 = arith.constant 0 : index
      %c0_30 = arith.constant 0 : index
      %c0_31 = arith.constant 0 : index
      %53 = vector.load %arg9[%c0_29, %c0_30, %c0_31] : memref<1x1x256xf32, #tpu.memory_space<vmem>>, vector<1x1x256xf32>
      %54 = vector.shape_cast %53 : vector<1x1x256xf32> to vector<1x256xf32>
      %55 = vector.shape_cast %52 : vector<1x256xf32> to vector<1x1x256xf32>
      tpu.vector_store %arg9[%c0_29, %c0_30, %c0_31], %55 {strides = array<i32>} : memref<1x1x256xf32, #tpu.memory_space<vmem>>, vector<1x1x256xf32>,
    } else {
    }
    return
  }
  func.func @transform_0(%arg0: i32, %arg1: i32) -> (i32, i32, i32) {
    %c0_i32 = arith.constant 0 : i32
    %c0_i32_0 = arith.constant 0 : i32
    return %arg0, %arg1, %c0_i32 : i32, i32, i32
  }
  func.func @transform_1(%arg0: i32, %arg1: i32) -> (i32, i32) {
    %c0_i32 = arith.constant 0 : i32
    %c0_i32_0 = arith.constant 0 : i32
    %c0_i32_1 = arith.constant 0 : i32
    return %c0_i32, %c0_i32_0 : i32, i32
  }
  func.func @transform_2(%arg0: i32, %arg1: i32) -> (i32, i32) {
    %c0_i32 = arith.constant 0 : i32
    %c0_i32_0 = arith.constant 0 : i32
    %c0_i32_1 = arith.constant 0 : i32
    return %c0_i32, %c0_i32_0 : i32, i32
  }
  func.func @transform_3(%arg0: i32, %arg1: i32) -> (i32, i32) {
    %c0_i32 = arith.constant 0 : i32
    %c0_i32_0 = arith.constant 0 : i32
    %c0_i32_1 = arith.constant 0 : i32
    return %c0_i32, %c0_i32_0 : i32, i32
  }
  func.func @transform_4(%arg0: i32, %arg1: i32) -> (i32, i32) {
    %c0_i32 = arith.constant 0 : i32
    %c0_i32_0 = arith.constant 0 : i32
    %c0_i32_1 = arith.constant 0 : i32
    return %c0_i32, %c0_i32_0 : i32, i32
  }
  func.func @transform_5(%arg0: i32, %arg1: i32) -> (i32, i32) {
    %c0_i32 = arith.constant 0 : i32
    %c0_i32_0 = arith.constant 0 : i32
    %c0_i32_1 = arith.constant 0 : i32
    return %c0_i32, %c0_i32_0 : i32, i32
  }
  func.func @transform_6(%arg0: i32, %arg1: i32) -> (i32, i32) {
    %c0_i32 = arith.constant 0 : i32
    %c0_i32_0 = arith.constant 0 : i32
    %c0_i32_1 = arith.constant 0 : i32
    return %c0_i32, %c0_i32_0 : i32, i32
  }
  func.func @transform_7(%arg0: i32, %arg1: i32) -> (i32, i32, i32) {
    %c0_i32 = arith.constant 0 : i32
    %c0_i32_0 = arith.constant 0 : i32
    %c0_i32_1 = arith.constant 0 : i32
    return %arg0, %c0_i32, %c0_i32_0 : i32, i32, i32
  }
}

module attributes {stable_mosaic.version = 11 : i64} {
  func.func @seg_head_kernel(%arg0: i32, %arg1: i32, %arg2: memref<1x64x448xf32, #tpu.memory_space<vmem>>, %arg3: memref<1x1x512xf32, #tpu.memory_space<vmem>>, %arg4: memref<448x256xf32, #tpu.memory_space<vmem>>, %arg5: memref<1x256xf32, #tpu.memory_space<vmem>>, %arg6: memref<256x512xf32, #tpu.memory_space<vmem>>, %arg7: memref<1x512xf32, #tpu.memory_space<vmem>>, %arg8: memref<512x256xf32, #tpu.memory_space<vmem>>, %arg9: memref<1x256xf32, #tpu.memory_space<vmem>>, %arg10: memref<256x128xf32, #tpu.memory_space<vmem>>, %arg11: memref<1x128xf32, #tpu.memory_space<vmem>>, %arg12: memref<128x128xf32, #tpu.memory_space<vmem>>, %arg13: memref<1x128xf32, #tpu.memory_space<vmem>>, %arg14: memref<1x64x128xf32, #tpu.memory_space<vmem>>) attributes {dimension_semantics = [#tpu.dimension_semantics<parallel>, #tpu.dimension_semantics<parallel>], iteration_bounds = array<i64: 2, 1>, scalar_prefetch = 0 : i64, scratch_operands = 0 : i64, tpu.core_type = #tpu.core_type<tc>, window_params = [{transform_indices = @transform_0, window_bounds = array<i64: 1, 64, 448>}, {transform_indices = @transform_1, window_bounds = array<i64: 1, 1, 512>}, {pipeline_mode = #tpu.pipeline_mode<synchronous>, transform_indices = @transform_2, window_bounds = array<i64: 448, 256>}, {pipeline_mode = #tpu.pipeline_mode<synchronous>, transform_indices = @transform_3, window_bounds = array<i64: 1, 256>}, {pipeline_mode = #tpu.pipeline_mode<synchronous>, transform_indices = @transform_4, window_bounds = array<i64: 256, 512>}, {pipeline_mode = #tpu.pipeline_mode<synchronous>, transform_indices = @transform_5, window_bounds = array<i64: 1, 512>}, {pipeline_mode = #tpu.pipeline_mode<synchronous>, transform_indices = @transform_6, window_bounds = array<i64: 512, 256>}, {pipeline_mode = #tpu.pipeline_mode<synchronous>, transform_indices = @transform_7, window_bounds = array<i64: 1, 256>}, {pipeline_mode = #tpu.pipeline_mode<synchronous>, transform_indices = @transform_8, window_bounds = array<i64: 256, 128>}, {pipeline_mode = #tpu.pipeline_mode<synchronous>, transform_indices = @transform_9, window_bounds = array<i64: 1, 128>}, {pipeline_mode = #tpu.pipeline_mode<synchronous>, transform_indices = @transform_10, window_bounds = array<i64: 128, 128>}, {pipeline_mode = #tpu.pipeline_mode<synchronous>, transform_indices = @transform_11, window_bounds = array<i64: 1, 128>}, {transform_indices = @transform_12, window_bounds = array<i64: 1, 64, 128>}]} {
    %c0 = arith.constant 0 : index
    %c0_0 = arith.constant 0 : index
    %c0_1 = arith.constant 0 : index
    %0 = vector.load %arg2[%c0, %c0_0, %c0_1] : memref<1x64x448xf32, #tpu.memory_space<vmem>>, vector<1x64x448xf32>
    %1 = vector.shape_cast %0 : vector<1x64x448xf32> to vector<64x448xf32>
    %c0_2 = arith.constant 0 : index
    %c0_3 = arith.constant 0 : index
    %2 = vector.load %arg4[%c0_2, %c0_3] : memref<448x256xf32, #tpu.memory_space<vmem>>, vector<448x256xf32>
    %cst = arith.constant dense<0.000000e+00> : vector<64x256xf32>
    %3 = tpu.matmul %1, %2, %cst {dimension_numbers = #tpu.dot_dimension_numbers<[1], [0], [0], [1], [0, 0, 1, 1], [], []>} : vector<64x448xf32>, vector<448x256xf32>, vector<64x256xf32> -> vector<64x256xf32>
    %c0_4 = arith.constant 0 : index
    %c0_5 = arith.constant 0 : index
    %4 = vector.load %arg5[%c0_4, %c0_5] : memref<1x256xf32, #tpu.memory_space<vmem>>, vector<1x256xf32>
    %5 = vector.broadcast %4 : vector<1x256xf32> to vector<64x256xf32>
    %6 = arith.addf %3, %5 : vector<64x256xf32>
    %cst_6 = arith.constant 0.00999999977 : f32
    %7 = vector.broadcast %cst_6 : f32 to vector<64x256xf32>
    %8 = arith.mulf %7, %6 : vector<64x256xf32>
    %9 = arith.maximumf %6, %8 : vector<64x256xf32>
    %c0_7 = arith.constant 0 : index
    %c0_8 = arith.constant 0 : index
    %10 = vector.load %arg6[%c0_7, %c0_8] : memref<256x512xf32, #tpu.memory_space<vmem>>, vector<256x512xf32>
    %cst_9 = arith.constant dense<0.000000e+00> : vector<64x512xf32>
    %11 = tpu.matmul %9, %10, %cst_9 {dimension_numbers = #tpu.dot_dimension_numbers<[1], [0], [0], [1], [0, 0, 1, 1], [], []>} : vector<64x256xf32>, vector<256x512xf32>, vector<64x512xf32> -> vector<64x512xf32>
    %c0_10 = arith.constant 0 : index
    %c0_11 = arith.constant 0 : index
    %c0_12 = arith.constant 0 : index
    %12 = vector.load %arg3[%c0_10, %c0_11, %c0_12] : memref<1x1x512xf32, #tpu.memory_space<vmem>>, vector<1x1x512xf32>
    %13 = vector.shape_cast %12 : vector<1x1x512xf32> to vector<1x512xf32>
    %14 = vector.broadcast %13 : vector<1x512xf32> to vector<64x512xf32>
    %15 = arith.addf %11, %14 : vector<64x512xf32>
    %c0_13 = arith.constant 0 : index
    %c0_14 = arith.constant 0 : index
    %16 = vector.load %arg7[%c0_13, %c0_14] : memref<1x512xf32, #tpu.memory_space<vmem>>, vector<1x512xf32>
    %17 = vector.broadcast %16 : vector<1x512xf32> to vector<64x512xf32>
    %18 = arith.addf %15, %17 : vector<64x512xf32>
    %cst_15 = arith.constant 0.00999999977 : f32
    %19 = vector.broadcast %cst_15 : f32 to vector<64x512xf32>
    %20 = arith.mulf %19, %18 : vector<64x512xf32>
    %21 = arith.maximumf %18, %20 : vector<64x512xf32>
    %c0_16 = arith.constant 0 : index
    %c0_17 = arith.constant 0 : index
    %22 = vector.load %arg8[%c0_16, %c0_17] : memref<512x256xf32, #tpu.memory_space<vmem>>, vector<512x256xf32>
    %cst_18 = arith.constant dense<0.000000e+00> : vector<64x256xf32>
    %23 = tpu.matmul %21, %22, %cst_18 {dimension_numbers = #tpu.dot_dimension_numbers<[1], [0], [0], [1], [0, 0, 1, 1], [], []>} : vector<64x512xf32>, vector<512x256xf32>, vector<64x256xf32> -> vector<64x256xf32>
    %c0_19 = arith.constant 0 : index
    %c0_20 = arith.constant 0 : index
    %24 = vector.load %arg9[%c0_19, %c0_20] : memref<1x256xf32, #tpu.memory_space<vmem>>, vector<1x256xf32>
    %25 = vector.broadcast %24 : vector<1x256xf32> to vector<64x256xf32>
    %26 = arith.addf %23, %25 : vector<64x256xf32>
    %cst_21 = arith.constant 0.00999999977 : f32
    %27 = vector.broadcast %cst_21 : f32 to vector<64x256xf32>
    %28 = arith.mulf %27, %26 : vector<64x256xf32>
    %29 = arith.maximumf %26, %28 : vector<64x256xf32>
    %c0_22 = arith.constant 0 : index
    %c0_23 = arith.constant 0 : index
    %30 = vector.load %arg10[%c0_22, %c0_23] : memref<256x128xf32, #tpu.memory_space<vmem>>, vector<256x128xf32>
    %cst_24 = arith.constant dense<0.000000e+00> : vector<64x128xf32>
    %31 = tpu.matmul %29, %30, %cst_24 {dimension_numbers = #tpu.dot_dimension_numbers<[1], [0], [0], [1], [0, 0, 1, 1], [], []>} : vector<64x256xf32>, vector<256x128xf32>, vector<64x128xf32> -> vector<64x128xf32>
    %c0_25 = arith.constant 0 : index
    %c0_26 = arith.constant 0 : index
    %32 = vector.load %arg11[%c0_25, %c0_26] : memref<1x128xf32, #tpu.memory_space<vmem>>, vector<1x128xf32>
    %33 = vector.broadcast %32 : vector<1x128xf32> to vector<64x128xf32>
    %34 = arith.addf %31, %33 : vector<64x128xf32>
    %cst_27 = arith.constant 0.00999999977 : f32
    %35 = vector.broadcast %cst_27 : f32 to vector<64x128xf32>
    %36 = arith.mulf %35, %34 : vector<64x128xf32>
    %37 = arith.maximumf %34, %36 : vector<64x128xf32>
    %c0_28 = arith.constant 0 : index
    %c0_29 = arith.constant 0 : index
    %38 = vector.load %arg12[%c0_28, %c0_29] : memref<128x128xf32, #tpu.memory_space<vmem>>, vector<128x128xf32>
    %cst_30 = arith.constant dense<0.000000e+00> : vector<64x128xf32>
    %39 = tpu.matmul %37, %38, %cst_30 {dimension_numbers = #tpu.dot_dimension_numbers<[1], [0], [0], [1], [0, 0, 1, 1], [], []>} : vector<64x128xf32>, vector<128x128xf32>, vector<64x128xf32> -> vector<64x128xf32>
    %c0_31 = arith.constant 0 : index
    %c0_32 = arith.constant 0 : index
    %40 = vector.load %arg13[%c0_31, %c0_32] : memref<1x128xf32, #tpu.memory_space<vmem>>, vector<1x128xf32>
    %41 = vector.broadcast %40 : vector<1x128xf32> to vector<64x128xf32>
    %42 = arith.addf %39, %41 : vector<64x128xf32>
    %cst_33 = arith.constant dense<0xFF800000> : vector<64xf32>
    %43 = vector.multi_reduction <maximumf>, %42, %cst_33 [1] : vector<64x128xf32> to vector<64xf32>
    %44 = vector.shape_cast %43 : vector<64xf32> to vector<64x1xf32>
    %45 = vector.broadcast %44 : vector<64x1xf32> to vector<64x128xf32>
    %46 = arith.subf %42, %45 : vector<64x128xf32>
    %47 = math.exp %46 : vector<64x128xf32>
    %cst_34 = arith.constant dense<0.000000e+00> : vector<64xf32>
    %48 = vector.multi_reduction <add>, %47, %cst_34 [1] : vector<64x128xf32> to vector<64xf32>
    %49 = vector.shape_cast %48 : vector<64xf32> to vector<64x1xf32>
    %50 = math.log %49 : vector<64x1xf32>
    %51 = arith.addf %50, %44 : vector<64x1xf32>
    %52 = vector.broadcast %51 : vector<64x1xf32> to vector<64x128xf32>
    %53 = arith.subf %42, %52 : vector<64x128xf32>
    %54 = vector.shape_cast %53 : vector<64x128xf32> to vector<1x64x128xf32>
    %c0_35 = arith.constant 0 : index
    %c0_36 = arith.constant 0 : index
    %c0_37 = arith.constant 0 : index
    %55 = vector.load %arg14[%c0_35, %c0_36, %c0_37] : memref<1x64x128xf32, #tpu.memory_space<vmem>>, vector<1x64x128xf32>
    tpu.vector_store %arg14[%c0_35, %c0_36, %c0_37], %54 {strides = array<i32>} : memref<1x64x128xf32, #tpu.memory_space<vmem>>, vector<1x64x128xf32>,
    return
  }
  func.func @transform_0(%arg0: i32, %arg1: i32) -> (i32, i32, i32) {
    %c0_i32 = arith.constant 0 : i32
    %c0_i32_0 = arith.constant 0 : i32
    return %arg0, %arg1, %c0_i32 : i32, i32, i32
  }
  func.func @transform_1(%arg0: i32, %arg1: i32) -> (i32, i32, i32) {
    %c0_i32 = arith.constant 0 : i32
    %c0_i32_0 = arith.constant 0 : i32
    %c0_i32_1 = arith.constant 0 : i32
    return %arg0, %c0_i32, %c0_i32_0 : i32, i32, i32
  }
  func.func @transform_2(%arg0: i32, %arg1: i32) -> (i32, i32) {
    %c0_i32 = arith.constant 0 : i32
    %c0_i32_0 = arith.constant 0 : i32
    %c0_i32_1 = arith.constant 0 : i32
    return %c0_i32, %c0_i32_0 : i32, i32
  }
  func.func @transform_3(%arg0: i32, %arg1: i32) -> (i32, i32) {
    %c0_i32 = arith.constant 0 : i32
    %c0_i32_0 = arith.constant 0 : i32
    %c0_i32_1 = arith.constant 0 : i32
    return %c0_i32, %c0_i32_0 : i32, i32
  }
  func.func @transform_4(%arg0: i32, %arg1: i32) -> (i32, i32) {
    %c0_i32 = arith.constant 0 : i32
    %c0_i32_0 = arith.constant 0 : i32
    %c0_i32_1 = arith.constant 0 : i32
    return %c0_i32, %c0_i32_0 : i32, i32
  }
  func.func @transform_5(%arg0: i32, %arg1: i32) -> (i32, i32) {
    %c0_i32 = arith.constant 0 : i32
    %c0_i32_0 = arith.constant 0 : i32
    %c0_i32_1 = arith.constant 0 : i32
    return %c0_i32, %c0_i32_0 : i32, i32
  }
  func.func @transform_6(%arg0: i32, %arg1: i32) -> (i32, i32) {
    %c0_i32 = arith.constant 0 : i32
    %c0_i32_0 = arith.constant 0 : i32
    %c0_i32_1 = arith.constant 0 : i32
    return %c0_i32, %c0_i32_0 : i32, i32
  }
  func.func @transform_7(%arg0: i32, %arg1: i32) -> (i32, i32) {
    %c0_i32 = arith.constant 0 : i32
    %c0_i32_0 = arith.constant 0 : i32
    %c0_i32_1 = arith.constant 0 : i32
    return %c0_i32, %c0_i32_0 : i32, i32
  }
  func.func @transform_8(%arg0: i32, %arg1: i32) -> (i32, i32) {
    %c0_i32 = arith.constant 0 : i32
    %c0_i32_0 = arith.constant 0 : i32
    %c0_i32_1 = arith.constant 0 : i32
    return %c0_i32, %c0_i32_0 : i32, i32
  }
  func.func @transform_9(%arg0: i32, %arg1: i32) -> (i32, i32) {
    %c0_i32 = arith.constant 0 : i32
    %c0_i32_0 = arith.constant 0 : i32
    %c0_i32_1 = arith.constant 0 : i32
    return %c0_i32, %c0_i32_0 : i32, i32
  }
  func.func @transform_10(%arg0: i32, %arg1: i32) -> (i32, i32) {
    %c0_i32 = arith.constant 0 : i32
    %c0_i32_0 = arith.constant 0 : i32
    %c0_i32_1 = arith.constant 0 : i32
    return %c0_i32, %c0_i32_0 : i32, i32
  }
  func.func @transform_11(%arg0: i32, %arg1: i32) -> (i32, i32) {
    %c0_i32 = arith.constant 0 : i32
    %c0_i32_0 = arith.constant 0 : i32
    %c0_i32_1 = arith.constant 0 : i32
    return %c0_i32, %c0_i32_0 : i32, i32
  }
  func.func @transform_12(%arg0: i32, %arg1: i32) -> (i32, i32, i32) {
    %c0_i32 = arith.constant 0 : i32
    %c0_i32_0 = arith.constant 0 : i32
    return %arg0, %arg1, %c0_i32 : i32, i32, i32
  }
}

</mosaic_0001>

<llo_original>
// kernel: neg.0
$region0: #{neg.0}
  #allocation0 [shape = 's32[1]{0}', space=sflag, size = 0x4, scoped, tag = 'scoped memory for neg.0']
  %s0 = inlined_call_operand.vmem [shape: f32[2,64], index: 0, kind: input, shape index: {}]
  %s1 = inlined_call_operand.vmem [shape: f32[2,64], index: 1, kind: output, shape index: {}]
  %v2 = vld [vmem:[%s0] sm:$0x3]
  %3 = xla_tuple %v2
  %4 = xla_tuple %3
  %v5 = vxor.u32 %v2, 2147483648
  %6 = xla_tuple %v5
  %7 = vst [vmem:[%s1] sm:$0x3] %v5

// kernel: gac_seg2_forward.6
$region0: #{gac_seg2_forward.6}
  #allocation0 [shape = 'u32[]', space=smem, size = 0x4, offset = 0x4, fixed_abs, tag = 'smem constant byte address 0x4 - core index']
  #allocation1 [shape = 'u32[72,128]{1,0:T(1,128)}', space=vmem, size = 0x9000, scoped, tag = 'internal scratch']
  %s0 = inlined_call_operand.vmem [shape: f32[2,24,64,9], index: 0, kind: input, shape index: {}]
  %s1 = inlined_call_operand.vmem [shape: f32[2,24,64,30], index: 1, kind: input, shape index: {}]
  %s2 = inlined_call_operand.vmem [shape: f32[2,24,64,31], index: 2, kind: input, shape index: {}]
  %s3 = inlined_call_operand.vmem [shape: f32[9,16], index: 3, kind: input, shape index: {}]
  %s4 = inlined_call_operand.vmem [shape: f32[1,16], index: 4, kind: input, shape index: {}]
  %s5 = inlined_call_operand.vmem [shape: f32[30,64], index: 5, kind: input, shape index: {}]
  %s6 = inlined_call_operand.vmem [shape: f32[16,64], index: 6, kind: input, shape index: {}]
  %s7 = inlined_call_operand.vmem [shape: f32[1,64], index: 7, kind: input, shape index: {}]
  %s8 = inlined_call_operand.vmem [shape: f32[31,64], index: 8, kind: input, shape index: {}]
  %s9 = inlined_call_operand.vmem [shape: f32[1,64], index: 9, kind: input, shape index: {}]
  %s10 = inlined_call_operand.vmem [shape: f32[2,64,64], index: 10, kind: output, shape index: {}]
  %s11 = sld [smem:[#allocation0]]
  $region77: #{gac_seg2_forward.6} parent=0
    _
  %s13 = ssub.s32 1, %s11
  %s14 = scalar_select 0, %s13, %s11
  loop: start=0, step=1, limit=50
  $region2: #{gac_seg2_forward.6} parent=0 // loop_pre_header
    _
  $region3: #{gac_seg2_forward.6} parent=0 // loop_header
    %s16 = sphi 0, %s20
    %p17 = scmp.ge.s32.totalorder %s16, 50
    %s23 = sphi 0, %s42
    %s24 = sphi 0, %s38
    %s25 = sphi 0, %s34
    %s26 = sphi 0, %s23
    %s27 = sphi 0, %s24
    %s28 = sphi 0, %s25
    %s29 = sphi 0, %s26
    %s30 = sphi 0, %s27
    %s31 = sphi 0, %s28
    %s49 = sphi 0, %s51
    %s52 = sphi 0, %s49
    %s53 = sphi 0, %s52
    %s69 = sphi 0, %s53
    %s79 = sphi 0, %s81
    %s82 = sphi 0, %s79
    %s83 = sphi 0, %s82
    %s99 = sphi 0, %s83
    %s109 = sphi 0, %s111
    %s112 = sphi 0, %s109
    %s113 = sphi 0, %s112
    %s129 = sphi 0, %s113
    %s133 = sphi 0, %s133
    %s135 = sphi 0, %s133
    %s136 = sphi 0, %s135
    %s150 = sphi 0, %s136
    %s154 = sphi 0, %s154
    %s156 = sphi 0, %s154
    %s157 = sphi 0, %s156
    %s171 = sphi 0, %s157
    %s175 = sphi 0, %s175
    %s177 = sphi 0, %s175
    %s178 = sphi 0, %s177
    %s192 = sphi 0, %s178
    %s196 = sphi 0, %s196
    %s198 = sphi 0, %s196
    %s199 = sphi 0, %s198
    %s213 = sphi 0, %s199
    %s217 = sphi 0, %s217
    %s219 = sphi 0, %s217
    %s220 = sphi 0, %s219
    %s234 = sphi 0, %s220
    %s238 = sphi 0, %s238
    %s240 = sphi 0, %s238
    %s241 = sphi 0, %s240
    %s255 = sphi 0, %s241
    %s259 = sphi 0, %s259
    %s261 = sphi 0, %s259
    %s262 = sphi 0, %s261
    %s276 = sphi 0, %s262
    %s284 = sphi 0, %s286
    %s287 = sphi 0, %s284
    %s288 = sphi 0, %s287
    %s304 = sphi 0, %s288
  $region4: #{gac_seg2_forward.6} parent=0 // loop_header_branch
    %19 = sbr.rel (%p17) target = $region8
  $region5: #{gac_seg2_forward.6} parent=0 // loop_body
    %s21 = ssub.s32 %s16, 1
    %s22 = ssub.s32 %s16, 2
    %s32 = sadd.s32 1, %s25
    %p33 = scmp.ge.s32.totalorder %s32, 24
    %s34 = scalar_select %p33, 0, %s32
    %s35 = sadd.s32 1, %s24
    %s36 = scalar_select %p33, %s35, %s24
    %p37 = scmp.ge.s32.totalorder %s36, 1
    %s38 = scalar_select %p37, 0, %s36
    %s39 = sadd.s32 1, %s23
    %s40 = scalar_select %p37, %s39, %s23
    %p41 = scmp.ge.s32.totalorder %s40, 2
    %s42 = scalar_select %p41, 0, %s40
    %s43 = ssub.s32 %s23, %s42
    %s44 = ssub.s32 %s25, %s34
    %s45 = sor.u32 %s43, %s44
    %s46 = ssub.s32 %s24, %s38
    %s47 = sor.u32 %s45, %s46
    %p48 = scmp.eq.s32.totalorder %s47, 0
    %s50 = sadd.s32 %s49, 1
    %s51 = scalar_select %p48, %s49, %s50
    %p54 = pneg %p48
    %p55 = scmp.eq.s32.totalorder %s16, 47
    %p56 = por %p54, %p55
    %p57 = scmp.ne.s32.totalorder %s49, %s52
    %p58 = scmp.eq.s32.totalorder %s16, 0
    %p59 = por %p57, %p58
    %p60 = scmp.ne.s32.totalorder %s49, %s52
    %p61 = scmp.eq.s32.totalorder %s21, 47
    %p62 = por %p60, %p61
    %p63 = scmp.ne.s32.totalorder %s52, %s53
    %p64 = scmp.eq.s32.totalorder %s21, 0
    %p65 = por %p63, %p64
    %p66 = scmp.ne.s32.totalorder %s52, %s53
    %p67 = scmp.eq.s32.totalorder %s22, 47
    %p68 = por %p66, %p67
    %p70 = scmp.ne.s32.totalorder %s53, %s69
    %p71 = scmp.eq.s32.totalorder %s22, 0
    %p72 = por %p70, %p71
    %s73 = ssub.s32 %s23, %s42
    %s74 = ssub.s32 %s25, %s34
    %s75 = sor.u32 %s73, %s74
    %s76 = ssub.s32 %s24, %s38
    %s77 = sor.u32 %s75, %s76
    %p78 = scmp.eq.s32.totalorder %s77, 0
    %s80 = sadd.s32 %s79, 1
    %s81 = scalar_select %p78, %s79, %s80
    %p84 = pneg %p78
    %p85 = scmp.eq.s32.totalorder %s16, 47
    %p86 = por %p84, %p85
    %p87 = scmp.ne.s32.totalorder %s79, %s82
    %p88 = scmp.eq.s32.totalorder %s16, 0
    %p89 = por %p87, %p88
    %p90 = scmp.ne.s32.totalorder %s79, %s82
    %p91 = scmp.eq.s32.totalorder %s21, 47
    %p92 = por %p90, %p91
    %p93 = scmp.ne.s32.totalorder %s82, %s83
    %p94 = scmp.eq.s32.totalorder %s21, 0
    %p95 = por %p93, %p94
    %p96 = scmp.ne.s32.totalorder %s82, %s83
    %p97 = scmp.eq.s32.totalorder %s22, 47
    %p98 = por %p96, %p97
    %p100 = scmp.ne.s32.totalorder %s83, %s99
    %p101 = scmp.eq.s32.totalorder %s22, 0
    %p102 = por %p100, %p101
    %s103 = ssub.s32 %s23, %s42
    %s104 = ssub.s32 %s25, %s34
    %s105 = sor.u32 %s103, %s104
    %s106 = ssub.s32 %s24, %s38
    %s107 = sor.u32 %s105, %s106
    %p108 = scmp.eq.s32.totalorder %s107, 0
    %s110 = sadd.s32 %s109, 1
    %s111 = scalar_select %p108, %s109, %s110
    %p114 = pneg %p108
    %p115 = scmp.eq.s32.totalorder %s16, 47
    %p116 = por %p114, %p115
    %p117 = scmp.ne.s32.totalorder %s109, %s112
    %p118 = scmp.eq.s32.totalorder %s16, 0
    %p119 = por %p117, %p118
    %p120 = scmp.ne.s32.totalorder %s109, %s112
    %p121 = scmp.eq.s32.totalorder %s21, 47
    %p122 = por %p120, %p121
    %p123 = scmp.ne.s32.totalorder %s112, %s113
    %p124 = scmp.eq.s32.totalorder %s21, 0
    %p125 = por %p123, %p124
    %p126 = scmp.ne.s32.totalorder %s112, %s113
    %p127 = scmp.eq.s32.totalorder %s22, 47
    %p128 = por %p126, %p127
    %p130 = scmp.ne.s32.totalorder %s113, %s129
    %p131 = scmp.eq.s32.totalorder %s22, 0
    %p132 = por %p130, %p131
    %s134 = sadd.s32 %s133, 1
    %p137 = scmp.eq.s32.totalorder %s16, 47
    %p138 = scmp.ne.s32.totalorder %s133, %s135
    %p139 = scmp.eq.s32.totalorder %s16, 0
    %p140 = por %p138, %p139
    %p141 = scmp.ne.s32.totalorder %s133, %s135
    %p142 = scmp.eq.s32.totalorder %s21, 47
    %p143 = por %p141, %p142
    %p144 = scmp.ne.s32.totalorder %s135, %s136
    %p145 = scmp.eq.s32.totalorder %s21, 0
    %p146 = por %p144, %p145
    %p147 = scmp.ne.s32.totalorder %s135, %s136
    %p148 = scmp.eq.s32.totalorder %s22, 47
    %p149 = por %p147, %p148
    %p151 = scmp.ne.s32.totalorder %s136, %s150
    %p152 = scmp.eq.s32.totalorder %s22, 0
    %p153 = por %p151, %p152
    %s155 = sadd.s32 %s154, 1
    %p158 = scmp.eq.s32.totalorder %s16, 47
    %p159 = scmp.ne.s32.totalorder %s154, %s156
    %p160 = scmp.eq.s32.totalorder %s16, 0
    %p161 = por %p159, %p160
    %p162 = scmp.ne.s32.totalorder %s154, %s156
    %p163 = scmp.eq.s32.totalorder %s21, 47
    %p164 = por %p162, %p163
    %p165 = scmp.ne.s32.totalorder %s156, %s157
    %p166 = scmp.eq.s32.totalorder %s21, 0
    %p167 = por %p165, %p166
    %p168 = scmp.ne.s32.totalorder %s156, %s157
    %p169 = scmp.eq.s32.totalorder %s22, 47
    %p170 = por %p168, %p169
    %p172 = scmp.ne.s32.totalorder %s157, %s171
    %p173 = scmp.eq.s32.totalorder %s22, 0
    %p174 = por %p172, %p173
    %s176 = sadd.s32 %s175, 1
    %p179 = scmp.eq.s32.totalorder %s16, 47
    %p180 = scmp.ne.s32.totalorder %s175, %s177
    %p181 = scmp.eq.s32.totalorder %s16, 0
    %p182 = por %p180, %p181
    %p183 = scmp.ne.s32.totalorder %s175, %s177
    %p184 = scmp.eq.s32.totalorder %s21, 47
    %p185 = por %p183, %p184
    %p186 = scmp.ne.s32.totalorder %s177, %s178
    %p187 = scmp.eq.s32.totalorder %s21, 0
    %p188 = por %p186, %p187
    %p189 = scmp.ne.s32.totalorder %s177, %s178
    %p190 = scmp.eq.s32.totalorder %s22, 47
    %p191 = por %p189, %p190
    %p193 = scmp.ne.s32.totalorder %s178, %s192
    %p194 = scmp.eq.s32.totalorder %s22, 0
    %p195 = por %p193, %p194
    %s197 = sadd.s32 %s196, 1
    %p200 = scmp.eq.s32.totalorder %s16, 47
    %p201 = scmp.ne.s32.totalorder %s196, %s198
    %p202 = scmp.eq.s32.totalorder %s16, 0
    %p203 = por %p201, %p202
    %p204 = scmp.ne.s32.totalorder %s196, %s198
    %p205 = scmp.eq.s32.totalorder %s21, 47
    %p206 = por %p204, %p205
    %p207 = scmp.ne.s32.totalorder %s198, %s199
    %p208 = scmp.eq.s32.totalorder %s21, 0
    %p209 = por %p207, %p208
    %p210 = scmp.ne.s32.totalorder %s198, %s199
    %p211 = scmp.eq.s32.totalorder %s22, 47
    %p212 = por %p210, %p211
    %p214 = scmp.ne.s32.totalorder %s199, %s213
    %p215 = scmp.eq.s32.totalorder %s22, 0
    %p216 = por %p214, %p215
    %s218 = sadd.s32 %s217, 1
    %p221 = scmp.eq.s32.totalorder %s16, 47
    %p222 = scmp.ne.s32.totalorder %s217, %s219
    %p223 = scmp.eq.s32.totalorder %s16, 0
    %p224 = por %p222, %p223
    %p225 = scmp.ne.s32.totalorder %s217, %s219
    %p226 = scmp.eq.s32.totalorder %s21, 47
    %p227 = por %p225, %p226
    %p228 = scmp.ne.s32.totalorder %s219, %s220
    %p229 = scmp.eq.s32.totalorder %s21, 0
    %p230 = por %p228, %p229
    %p231 = scmp.ne.s32.totalorder %s219, %s220
    %p232 = scmp.eq.s32.totalorder %s22, 47
    %p233 = por %p231, %p232
    %p235 = scmp.ne.s32.totalorder %s220, %s234
    %p236 = scmp.eq.s32.totalorder %s22, 0
    %p237 = por %p235, %p236
    %s239 = sadd.s32 %s238, 1
    %p242 = scmp.eq.s32.totalorder %s16, 47
    %p243 = scmp.ne.s32.totalorder %s238, %s240
    %p244 = scmp.eq.s32.totalorder %s16, 0
    %p245 = por %p243, %p244
    %p246 = scmp.ne.s32.totalorder %s238, %s240
    %p247 = scmp.eq.s32.totalorder %s21, 47
    %p248 = por %p246, %p247
    %p249 = scmp.ne.s32.totalorder %s240, %s241
    %p250 = scmp.eq.s32.totalorder %s21, 0
    %p251 = por %p249, %p250
    %p252 = scmp.ne.s32.totalorder %s240, %s241
    %p253 = scmp.eq.s32.totalorder %s22, 47
    %p254 = por %p252, %p253
    %p256 = scmp.ne.s32.totalorder %s241, %s255
    %p257 = scmp.eq.s32.totalorder %s22, 0
    %p258 = por %p256, %p257
    %s260 = sadd.s32 %s259, 1
    %p263 = scmp.eq.s32.totalorder %s16, 47
    %p264 = scmp.ne.s32.totalorder %s259, %s261
    %p265 = scmp.eq.s32.totalorder %s16, 0
    %p266 = por %p264, %p265
    %p267 = scmp.ne.s32.totalorder %s259, %s261
    %p268 = scmp.eq.s32.totalorder %s21, 47
    %p269 = por %p267, %p268
    %p270 = scmp.ne.s32.totalorder %s261, %s262
    %p271 = scmp.eq.s32.totalorder %s21, 0
    %p272 = por %p270, %p271
    %p273 = scmp.ne.s32.totalorder %s261, %s262
    %p274 = scmp.eq.s32.totalorder %s22, 47
    %p275 = por %p273, %p274
    %p277 = scmp.ne.s32.totalorder %s262, %s276
    %p278 = scmp.eq.s32.totalorder %s22, 0
    %p279 = por %p277, %p278
    %s280 = ssub.s32 %s23, %s42
    %s281 = ssub.s32 %s24, %s38
    %s282 = sor.u32 %s280, %s281
    %p283 = scmp.eq.s32.totalorder %s282, 0
    %s285 = sadd.s32 %s284, 1
    %s286 = scalar_select %p283, %s284, %s285
    %p289 = pneg %p283
    %p290 = scmp.eq.s32.totalorder %s16, 47
    %p291 = por %p289, %p290
    %p292 = scmp.ne.s32.totalorder %s284, %s287
    %p293 = scmp.eq.s32.totalorder %s16, 0
    %p294 = por %p292, %p293
    %p295 = scmp.ne.s32.totalorder %s284, %s287
    %p296 = scmp.eq.s32.totalorder %s21, 47
    %p297 = por %p295, %p296
    %p298 = scmp.ne.s32.totalorder %s287, %s288
    %p299 = scmp.eq.s32.totalorder %s21, 0
    %p300 = por %p298, %p299
    %p301 = scmp.ne.s32.totalorder %s287, %s288
    %p302 = scmp.eq.s32.totalorder %s22, 47
    %p303 = por %p301, %p302
    %p305 = scmp.ne.s32.totalorder %s288, %s304
    %p306 = scmp.eq.s32.totalorder %s22, 0
    %p307 = por %p305, %p306
    %p308 = scmp.le.s32.totalorder 1, %s16
    %p309 = scmp.lt.s32.totalorder %s16, 49
    %p310 = pnand %p308, %p309
    %p311 = pneg %p310
    // Predicated region
    $region9: #{gac_seg2_forward.6} parent=5 // pred_check
      _
    $region10: #{gac_seg2_forward.6} parent=5 // pred_check_branch
      %313 = sbr.rel (%p310) target = $region12
    $region11: #{gac_seg2_forward.6} parent=5 // pred_region
      %s314 = ssub.s32 %s16, 1
      // Predicated region
      $region13: #{gac_seg2_forward.6} parent=11 // pred_check
        %p315 = pneg %p146
      $region14: #{gac_seg2_forward.6} parent=11 // pred_check_branch
        %317 = sbr.rel (%p315) target = $region16
      $region15: #{gac_seg2_forward.6} parent=11 // pred_region
        _
      $region16: #{gac_seg2_forward.6} parent=11 // pred_fallthru
        _
      // Predicated region
      $region17: #{gac_seg2_forward.6} parent=11 // pred_check
        %p318 = pneg %p167
      $region18: #{gac_seg2_forward.6} parent=11 // pred_check_branch
        %320 = sbr.rel (%p318) target = $region20
      $region19: #{gac_seg2_forward.6} parent=11 // pred_region
        _
      $region20: #{gac_seg2_forward.6} parent=11 // pred_fallthru
        _
      // Predicated region
      $region21: #{gac_seg2_forward.6} parent=11 // pred_check
        %p321 = pneg %p188
      $region22: #{gac_seg2_forward.6} parent=11 // pred_check_branch
        %323 = sbr.rel (%p321) target = $region24
      $region23: #{gac_seg2_forward.6} parent=11 // pred_region
        _
      $region24: #{gac_seg2_forward.6} parent=11 // pred_fallthru
        _
      // Predicated region
      $region25: #{gac_seg2_forward.6} parent=11 // pred_check
        %p324 = pneg %p209
      $region26: #{gac_seg2_forward.6} parent=11 // pred_check_branch
        %326 = sbr.rel (%p324) target = $region28
      $region27: #{gac_seg2_forward.6} parent=11 // pred_region
        _
      $region28: #{gac_seg2_forward.6} parent=11 // pred_fallthru
        _
      // Predicated region
      $region29: #{gac_seg2_forward.6} parent=11 // pred_check
        %p327 = pneg %p230
      $region30: #{gac_seg2_forward.6} parent=11 // pred_check_branch
        %329 = sbr.rel (%p327) target = $region32
      $region31: #{gac_seg2_forward.6} parent=11 // pred_region
        _
      $region32: #{gac_seg2_forward.6} parent=11 // pred_fallthru
        _
      // Predicated region
      $region33: #{gac_seg2_forward.6} parent=11 // pred_check
        %p330 = pneg %p251
      $region34: #{gac_seg2_forward.6} parent=11 // pred_check_branch
        %332 = sbr.rel (%p330) target = $region36
      $region35: #{gac_seg2_forward.6} parent=11 // pred_region
        _
      $region36: #{gac_seg2_forward.6} parent=11 // pred_fallthru
        _
      // Predicated region
      $region37: #{gac_seg2_forward.6} parent=11 // pred_check
        %p333 = pneg %p272
      $region38: #{gac_seg2_forward.6} parent=11 // pred_check_branch
        %335 = sbr.rel (%p333) target = $region40
      $region39: #{gac_seg2_forward.6} parent=11 // pred_region
        _
      $region40: #{gac_seg2_forward.6} parent=11 // pred_fallthru
        _
    $region12: #{gac_seg2_forward.6} parent=5 // pred_fallthru
      _
    %p336 = scmp.lt.s32.totalorder %s16, 48
    // Predicated region
    $region41: #{gac_seg2_forward.6} parent=5 // pred_check
      %p337 = pneg %p336
    $region42: #{gac_seg2_forward.6} parent=5 // pred_check_branch
      %339 = sbr.rel (%p337) target = $region44
    $region43: #{gac_seg2_forward.6} parent=5 // pred_region
      // Predicated region
      $region45: #{gac_seg2_forward.6} parent=43 // pred_check
        %p340 = pneg %p59
      $region46: #{gac_seg2_forward.6} parent=43 // pred_check_branch
        %342 = sbr.rel (%p340) target = $region48
      $region47: #{gac_seg2_forward.6} parent=43 // pred_region
        %s343 = smul.u32 8, %s24
        %p344 = scmp.lt.s32.totalorder %s23, 1
        %s345 = scalar_select %p344, %s23, 1
        %p346 = scmp.lt.s32.totalorder %s25, 23
        %s347 = scalar_select %p346, %s25, 23
        %p348 = scmp.lt.s32.totalorder %s343, 7
        %s349 = scalar_select %p348, %s343, 7
        %s350 = smul.addr %s347, 8
        %s351 = sadd.s32 %s349, %s350
        %s352 = smul.addr %s345, 192
        %s353 = sadd.s32 %s351, %s352
        %s354 = smul.addr %s353, 8
        %s355 = scalar_lea.vmem %s0, %s354
        %s356 = smul.u32 8, %s24
      $region48: #{gac_seg2_forward.6} parent=43 // pred_fallthru
        _
      // Predicated region
      $region49: #{gac_seg2_forward.6} parent=43 // pred_check
        %p357 = pneg %p89
      $region50: #{gac_seg2_forward.6} parent=43 // pred_check_branch
        %359 = sbr.rel (%p357) target = $region52
      $region51: #{gac_seg2_forward.6} parent=43 // pred_region
        %s360 = smul.u32 8, %s24
        %p361 = scmp.lt.s32.totalorder %s23, 1
        %s362 = scalar_select %p361, %s23, 1
        %p363 = scmp.lt.s32.totalorder %s25, 23
        %s364 = scalar_select %p363, %s25, 23
        %p365 = scmp.lt.s32.totalorder %s360, 7
        %s366 = scalar_select %p365, %s360, 7
        %s367 = smul.addr %s364, 8
        %s368 = sadd.s32 %s366, %s367
        %s369 = smul.addr %s362, 192
        %s370 = sadd.s32 %s368, %s369
        %s371 = smul.addr %s370, 8
        %s372 = scalar_lea.vmem %s1, %s371
        %s373 = smul.u32 8, %s24
      $region52: #{gac_seg2_forward.6} parent=43 // pred_fallthru
        _
      // Predicated region
      $region53: #{gac_seg2_forward.6} parent=43 // pred_check
        %p374 = pneg %p119
      $region54: #{gac_seg2_forward.6} parent=43 // pred_check_branch
        %376 = sbr.rel (%p374) target = $region56
      $region55: #{gac_seg2_forward.6} parent=43 // pred_region
        %s377 = smul.u32 8, %s24
        %p378 = scmp.lt.s32.totalorder %s23, 1
        %s379 = scalar_select %p378, %s23, 1
        %p380 = scmp.lt.s32.totalorder %s25, 23
        %s381 = scalar_select %p380, %s25, 23
        %p382 = scmp.lt.s32.totalorder %s377, 7
        %s383 = scalar_select %p382, %s377, 7
        %s384 = smul.addr %s381, 8
        %s385 = sadd.s32 %s383, %s384
        %s386 = smul.addr %s379, 192
        %s387 = sadd.s32 %s385, %s386
        %s388 = smul.addr %s387, 8
        %s389 = scalar_lea.vmem %s2, %s388
        %s390 = smul.u32 8, %s24
      $region56: #{gac_seg2_forward.6} parent=43 // pred_fallthru
        _
    $region44: #{gac_seg2_forward.6} parent=5 // pred_fallthru
      _
    %p391 = scmp.le.s32.totalorder 1, %s16
    %p392 = scmp.lt.s32.totalorder %s16, 49
    %p393 = pnand %p391, %p392
    %p394 = pneg %p393
    // Predicated region
    $region57: #{gac_seg2_forward.6} parent=5 // pred_check
      _
    $region58: #{gac_seg2_forward.6} parent=5 // pred_check_branch
      %396 = sbr.rel (%p393) target = $region60
    $region59: #{gac_seg2_forward.6} parent=5 // pred_region
      %s397 = ssub.s32 %s16, 1
      %s398 = smul.u32 8, %s27
      %p399 = scmp.lt.s32.totalorder %s26, 1
      %s400 = scalar_select %p399, %s26, 1
      %p401 = scmp.lt.s32.totalorder %s28, 23
      %s402 = scalar_select %p401, %s28, 23
      %p403 = scmp.lt.s32.totalorder %s398, 7
      %s404 = scalar_select %p403, %s398, 7
      %s405 = smul.addr %s402, 8
      %s406 = sadd.s32 %s404, %s405
      %s407 = smul.addr %s400, 192
      %s408 = sadd.s32 %s406, %s407
      %s409 = smul.addr %s408, 8
      %s410 = scalar_lea.vmem %s0, %s409
      %p411 = pneg %p65
      %p412 = pneg %p62
      %s413 = smul.u32 8, %s27
      %p414 = scmp.lt.s32.totalorder %s26, 1
      %s415 = scalar_select %p414, %s26, 1
      %p416 = scmp.lt.s32.totalorder %s28, 23
      %s417 = scalar_select %p416, %s28, 23
      %p418 = scmp.lt.s32.totalorder %s413, 7
      %s419 = scalar_select %p418, %s413, 7
      %s420 = smul.addr %s417, 8
      %s421 = sadd.s32 %s419, %s420
      %s422 = smul.addr %s415, 192
      %s423 = sadd.s32 %s421, %s422
      %s424 = smul.addr %s423, 8
      %s425 = scalar_lea.vmem %s1, %s424
      %p426 = pneg %p95
      %p427 = pneg %p92
      %s428 = smul.u32 8, %s27
      %p429 = scmp.lt.s32.totalorder %s26, 1
      %s430 = scalar_select %p429, %s26, 1
      %p431 = scmp.lt.s32.totalorder %s28, 23
      %s432 = scalar_select %p431, %s28, 23
      %p433 = scmp.lt.s32.totalorder %s428, 7
      %s434 = scalar_select %p433, %s428, 7
      %s435 = smul.addr %s432, 8
      %s436 = sadd.s32 %s434, %s435
      %s437 = smul.addr %s430, 192
      %s438 = sadd.s32 %s436, %s437
      %s439 = smul.addr %s438, 8
      %s440 = scalar_lea.vmem %s2, %s439
      %p441 = pneg %p125
      %p442 = pneg %p122
      %p443 = pneg %p146
      %p444 = pneg %p143
      %p445 = pneg %p167
      %p446 = pneg %p164
      %p447 = pneg %p188
      %p448 = pneg %p185
      %p449 = pneg %p209
      %p450 = pneg %p206
      %p451 = pneg %p230
      %p452 = pneg %p227
      %p453 = pneg %p251
      %p454 = pneg %p248
      %p455 = pneg %p272
      %p456 = pneg %p269
      %p457 = pneg %p300
      %p458 = pneg %p297
      %s459 = smul.u32 8, %s27
      %p460 = scmp.lt.s32.totalorder %s26, 1
      %s461 = scalar_select %p460, %s26, 1
      %p462 = scmp.lt.s32.totalorder %s459, 7
      %s463 = scalar_select %p462, %s459, 7
      %s464 = smul.addr %s461, 8
      %s465 = sadd.s32 %s463, %s464
      %s466 = smul.addr %s465, 8
      %s467 = scalar_lea.vmem %s10, %s466
      %s468 = smul.u32 8, %s27
      %p469 = scmp.lt.s32.totalorder %s26, 1
      %s470 = scalar_select %p469, %s26, 1
      %p471 = scmp.lt.s32.totalorder %s28, 23
      %s472 = scalar_select %p471, %s28, 23
      %p473 = scmp.lt.s32.totalorder %s468, 7
      %s474 = scalar_select %p473, %s468, 7
      %s475 = smul.addr %s472, 8
      %s476 = sadd.s32 %s474, %s475
      %s477 = smul.addr %s470, 192
      %s478 = sadd.s32 %s476, %s477
      %s479 = smul.addr %s478, 8
      %s480 = scalar_lea.vmem %s0, %s479
      %s481 = smul.u32 8, %s27
      %s482 = smul.u32 8, %s27
      %p483 = scmp.lt.s32.totalorder %s26, 1
      %s484 = scalar_select %p483, %s26, 1
      %p485 = scmp.lt.s32.totalorder %s28, 23
      %s486 = scalar_select %p485, %s28, 23
      %p487 = scmp.lt.s32.totalorder %s482, 7
      %s488 = scalar_select %p487, %s482, 7
      %s489 = smul.addr %s486, 8
      %s490 = sadd.s32 %s488, %s489
      %s491 = smul.addr %s484, 192
      %s492 = sadd.s32 %s490, %s491
      %s493 = smul.addr %s492, 8
      %s494 = scalar_lea.vmem %s1, %s493
      %s495 = smul.u32 8, %s27
      %s496 = smul.u32 8, %s27
      %p497 = scmp.lt.s32.totalorder %s26, 1
      %s498 = scalar_select %p497, %s26, 1
      %p499 = scmp.lt.s32.totalorder %s28, 23
      %s500 = scalar_select %p499, %s28, 23
      %p501 = scmp.lt.s32.totalorder %s496, 7
      %s502 = scalar_select %p501, %s496, 7
      %s503 = smul.addr %s500, 8
      %s504 = sadd.s32 %s502, %s503
      %s505 = smul.addr %s498, 192
      %s506 = sadd.s32 %s504, %s505
      %s507 = smul.addr %s506, 8
      %s508 = scalar_lea.vmem %s2, %s507
      %s509 = smul.u32 8, %s27
      %s510 = smul.u32 8, %s27
      %p511 = scmp.lt.s32.totalorder %s26, 1
      %s512 = scalar_select %p511, %s26, 1
      %p513 = scmp.lt.s32.totalorder %s510, 7
      %s514 = scalar_select %p513, %s510, 7
      %s515 = smul.addr %s512, 8
      %s516 = sadd.s32 %s514, %s515
      %s517 = smul.addr %s516, 8
      %s518 = scalar_lea.vmem %s10, %s517
      %s519 = smul.u32 8, %s27
      %p520 = scmp.eq.s32.totalorder %s28, 0
      // Predicated region
      $region61: #{gac_seg2_forward.6} parent=59 // pred_check
        %p521 = pneg %p520
      $region62: #{gac_seg2_forward.6} parent=59 // pred_check_branch
        %523 = sbr.rel (%p521) target = $region64
      $region63: #{gac_seg2_forward.6} parent=59 // pred_region
        %vm524 = vcmask 523264
        %525 = vst.msk [vmem:[%s518] sm:$0xff] %vm524, 0.0
        %526 = vst.msk [vmem:[%s518 + $0x8] sm:$0xff] %vm524, 0.0
        %527 = vst.msk [vmem:[%s518 + $0x10] sm:$0xff] %vm524, 0.0
        %528 = vst.msk [vmem:[%s518 + $0x18] sm:$0xff] %vm524, 0.0
        %529 = vst.msk [vmem:[%s518 + $0x20] sm:$0xff] %vm524, 0.0
        %530 = vst.msk [vmem:[%s518 + $0x28] sm:$0xff] %vm524, 0.0
        %531 = vst.msk [vmem:[%s518 + $0x30] sm:$0xff] %vm524, 0.0
        %532 = vst.msk [vmem:[%s518 + $0x38] sm:$0xff] %vm524, 0.0
      $region64: #{gac_seg2_forward.6} parent=59 // pred_fallthru
        _
      %v533 = vld [vmem:[%s480] sm:$0xff]
      %v534 = vld [vmem:[%s480 + $0x8] sm:$0xff]
      %v535 = vld [vmem:[%s480 + $0x10] sm:$0xff]
      %v536 = vld [vmem:[%s480 + $0x18] sm:$0xff]
      %v537 = vld [vmem:[%s480 + $0x20] sm:$0xff]
      %v538 = vld [vmem:[%s480 + $0x28] sm:$0xff]
      %v539 = vld [vmem:[%s480 + $0x30] sm:$0xff]
      %v540 = vld [vmem:[%s480 + $0x38] sm:$0xff]
      %v541 = vld [vmem:[%s3] sm:$0xff]
      %v542 = vld [vmem:[%s3 + $0x8] sm:$0x1]
      %v543 = vld [vmem:[%s4] sm:$0x1]
      %v545 = vperm.slane %v543, 0
      %vm547 = vcmask 72704
      %v549 = vsel %vm547, %v533, 0
      %v552 = vsel %vm547, %v534, 0
      %v555 = vsel %vm547, %v535, 0
      %v558 = vsel %vm547, %v536, 0
      %v561 = vsel %vm547, %v537, 0
      %v564 = vsel %vm547, %v538, 0
      %v567 = vsel %vm547, %v539, 0
      %v570 = vsel %vm547, %v540, 0
      %vm572 = vcmask 1040384
      %v574 = vsel %vm572, %v542, 0
      %576 = vmatpush.msra.mxu0 0.0
      %577 = vmatpush.msra.mxu0 0.0
      %578 = vmatpush.msra.mxu0 0.0
      %579 = vmatpush.msra.mxu0 0.0
      %580 = vmatpush.msra.mxu0 0.0
      %581 = vmatpush.msra.mxu0 0.0
      %582 = vmatpush.msra.mxu0 0.0
      %583 = vmatpush.msra.mxu0 0.0
      %584 = vmatpush.msra.mxu0 0.0
      %585 = vmatpush.msra.mxu0 0.0
      %586 = vmatpush.msra.mxu0 0.0
      %587 = vmatpush.msra.mxu0 0.0
      %588 = vmatpush.msra.mxu0 0.0
      %589 = vmatpush.msra.mxu0 0.0
      %590 = vmatpush.msra.mxu0 %v574
      %591 = vmatpush.msra.mxu0 %v541
      %592 = vmatmul.f32.gmra.mxu0 %v549
      %v593 = vpop.f32.mrf.mxu0
      %v594 = vadd.f32 %v545, %v593
      %595 = vmatmul.f32.gmra.mxu0 %v552
      %v596 = vpop.f32.mrf.mxu0
      %v597 = vadd.f32 %v545, %v596
      %598 = vmatmul.f32.gmra.mxu0 %v555
      %v599 = vpop.f32.mrf.mxu0
      %v600 = vadd.f32 %v545, %v599
      %601 = vmatmul.f32.gmra.mxu0 %v558
      %v602 = vpop.f32.mrf.mxu0
      %v603 = vadd.f32 %v545, %v602
      %604 = vmatmul.f32.gmra.mxu0 %v561
      %v605 = vpop.f32.mrf.mxu0
      %v606 = vadd.f32 %v545, %v605
      %607 = vmatmul.f32.gmra.mxu0 %v564
      %v608 = vpop.f32.mrf.mxu0
      %v609 = vadd.f32 %v545, %v608
      %610 = vmatmul.f32.gmra.mxu0 %v567
      %v611 = vpop.f32.mrf.mxu0
      %v612 = vadd.f32 %v545, %v611
      %613 = vmatmul.f32.gmra.mxu0 %v570
      %v614 = vpop.f32.mrf.mxu0
      %v615 = vadd.f32 %v545, %v614
      %616 = vdwg.mxu0
      %v617 = vmul.f32 %v594, 0.01
      %v618 = vmul.f32 %v597, 0.01
      %v619 = vmul.f32 %v600, 0.01
      %v620 = vmul.f32 %v603, 0.01
      %v621 = vmul.f32 %v606, 0.01
      %v622 = vmul.f32 %v609, 0.01
      %v623 = vmul.f32 %v612, 0.01
      %v624 = vmul.f32 %v615, 0.01
      %v625 = vmax.f32 %v594, %v617
      %v626 = vmax.f32 %v597, %v618
      %v627 = vmax.f32 %v600, %v619
      %v628 = vmax.f32 %v603, %v620
      %v629 = vmax.f32 %v606, %v621
      %v630 = vmax.f32 %v609, %v622
      %v631 = vmax.f32 %v612, %v623
      %v632 = vmax.f32 %v615, %v624
      %v633 = vld [vmem:[%s494] sm:$0xff]
      %v634 = vld [vmem:[%s494 + $0x8] sm:$0xff]
      %v635 = vld [vmem:[%s494 + $0x10] sm:$0xff]
      %v636 = vld [vmem:[%s494 + $0x18] sm:$0xff]
      %v637 = vld [vmem:[%s494 + $0x20] sm:$0xff]
      %v638 = vld [vmem:[%s494 + $0x28] sm:$0xff]
      %v639 = vld [vmem:[%s494 + $0x30] sm:$0xff]
      %v640 = vld [vmem:[%s494 + $0x38] sm:$0xff]
      %v641 = vld [vmem:[%s5] sm:$0xff]
      %v642 = vld [vmem:[%s5 + $0x8] sm:$0xff]
      %v643 = vld [vmem:[%s5 + $0x10] sm:$0xff]
      %v644 = vld [vmem:[%s5 + $0x18] sm:$0x3f]
      %v645 = vld [vmem:[%s6] sm:$0xff]
      %v646 = vld [vmem:[%s6 + $0x8] sm:$0xff]
      %vm647 = vcmask 130048
      %v649 = vsel %vm647, %v625, 0
      %v652 = vsel %vm647, %v626, 0
      %v655 = vsel %vm647, %v627, 0
      %v658 = vsel %vm647, %v628, 0
      %v661 = vsel %vm647, %v629, 0
      %v664 = vsel %vm647, %v630, 0
      %v667 = vsel %vm647, %v631, 0
      %v670 = vsel %vm647, %v632, 0
      %672 = vmatpush.msra.mxu0 0.0
      %673 = vmatpush.msra.mxu0 0.0
      %674 = vmatpush.msra.mxu0 0.0
      %675 = vmatpush.msra.mxu0 0.0
      %676 = vmatpush.msra.mxu0 0.0
      %677 = vmatpush.msra.mxu0 0.0
      %678 = vmatpush.msra.mxu0 0.0
      %679 = vmatpush.msra.mxu0 0.0
      %680 = vmatpush.msra.mxu0 0.0
      %681 = vmatpush.msra.mxu0 0.0
      %682 = vmatpush.msra.mxu0 0.0
      %683 = vmatpush.msra.mxu0 0.0
      %684 = vmatpush.msra.mxu0 0.0
      %685 = vmatpush.msra.mxu0 0.0
      %686 = vmatpush.msra.mxu0 %v646
      %687 = vmatpush.msra.mxu0 %v645
      %688 = vmatmul.f32.gmra.mxu0 %v649
      %v689 = vpop.f32.mrf.mxu0
      %v690 = vadd.f32 0.0, %v689
      %691 = vmatmul.f32.gmra.mxu0 %v652
      %v692 = vpop.f32.mrf.mxu0
      %v693 = vadd.f32 0.0, %v692
      %694 = vmatmul.f32.gmra.mxu0 %v655
      %v695 = vpop.f32.mrf.mxu0
      %v696 = vadd.f32 0.0, %v695
      %697 = vmatmul.f32.gmra.mxu0 %v658
      %v698 = vpop.f32.mrf.mxu0
      %v699 = vadd.f32 0.0, %v698
      %700 = vmatmul.f32.gmra.mxu0 %v661
      %v701 = vpop.f32.mrf.mxu0
      %v702 = vadd.f32 0.0, %v701
      %703 = vmatmul.f32.gmra.mxu0 %v664
      %v704 = vpop.f32.mrf.mxu0
      %v705 = vadd.f32 0.0, %v704
      %706 = vmatmul.f32.gmra.mxu0 %v667
      %v707 = vpop.f32.mrf.mxu0
      %v708 = vadd.f32 0.0, %v707
      %709 = vmatmul.f32.gmra.mxu0 %v670
      %v710 = vpop.f32.mrf.mxu0
      %v711 = vadd.f32 0.0, %v710
      %712 = vdwg.mxu0
      %vm713 = vcmask 244736
      %v715 = vsel %vm713, %v633, 0
      %v718 = vsel %vm713, %v634, 0
      %v721 = vsel %vm713, %v635, 0
      %v724 = vsel %vm713, %v636, 0
      %v727 = vsel %vm713, %v637, 0
      %v730 = vsel %vm713, %v638, 0
      %v733 = vsel %vm713, %v639, 0
      %v736 = vsel %vm713, %v640, 0
      %vm738 = vcmask 1045504
      %v740 = vsel %vm738, %v644, 0
      %742 = vmatpush.msra.mxu0 0.0
      %743 = vmatpush.msra.mxu0 0.0
      %744 = vmatpush.msra.mxu0 0.0
      %745 = vmatpush.msra.mxu0 0.0
      %746 = vmatpush.msra.mxu0 0.0
      %747 = vmatpush.msra.mxu0 0.0
      %748 = vmatpush.msra.mxu0 0.0
      %749 = vmatpush.msra.mxu0 0.0
      %750 = vmatpush.msra.mxu0 0.0
      %751 = vmatpush.msra.mxu0 0.0
      %752 = vmatpush.msra.mxu0 0.0
      %753 = vmatpush.msra.mxu0 0.0
      %754 = vmatpush.msra.mxu0 %v740
      %755 = vmatpush.msra.mxu0 %v643
      %756 = vmatpush.msra.mxu0 %v642
      %757 = vmatpush.msra.mxu0 %v641
      %758 = vmatmul.f32.gmra.mxu0 %v715
      %v759 = vpop.f32.mrf.mxu0
      %v760 = vadd.f32 %v690, %v759
      %761 = vmatmul.f32.gmra.mxu0 %v718
      %v762 = vpop.f32.mrf.mxu0
      %v763 = vadd.f32 %v693, %v762
      %764 = vmatmul.f32.gmra.mxu0 %v721
      %v765 = vpop.f32.mrf.mxu0
      %v766 = vadd.f32 %v696, %v765
      %767 = vmatmul.f32.gmra.mxu0 %v724
      %v768 = vpop.f32.mrf.mxu0
      %v769 = vadd.f32 %v699, %v768
      %770 = vmatmul.f32.gmra.mxu0 %v727
      %v771 = vpop.f32.mrf.mxu0
      %v772 = vadd.f32 %v702, %v771
      %773 = vmatmul.f32.gmra.mxu0 %v730
      %v774 = vpop.f32.mrf.mxu0
      %v775 = vadd.f32 %v705, %v774
      %776 = vmatmul.f32.gmra.mxu0 %v733
      %v777 = vpop.f32.mrf.mxu0
      %v778 = vadd.f32 %v708, %v777
      %779 = vmatmul.f32.gmra.mxu0 %v736
      %v780 = vpop.f32.mrf.mxu0
      %v781 = vadd.f32 %v711, %v780
      %782 = vdwg.mxu0
      %v783 = vld [vmem:[%s7] sm:$0x1]
      %v785 = vperm.slane %v783, 0
      %v787 = vadd.f32 %v760, %v785
      %v788 = vadd.f32 %v763, %v785
      %v789 = vadd.f32 %v766, %v785
      %v790 = vadd.f32 %v769, %v785
      %v791 = vadd.f32 %v772, %v785
      %v792 = vadd.f32 %v775, %v785
      %v793 = vadd.f32 %v778, %v785
      %v794 = vadd.f32 %v781, %v785
      %v795 = vmul.f32 %v787, 0.01
      %v796 = vmul.f32 %v788, 0.01
      %v797 = vmul.f32 %v789, 0.01
      %v798 = vmul.f32 %v790, 0.01
      %v799 = vmul.f32 %v791, 0.01
      %v800 = vmul.f32 %v792, 0.01
      %v801 = vmul.f32 %v793, 0.01
      %v802 = vmul.f32 %v794, 0.01
      %v803 = vmax.f32 %v787, %v795
      %v804 = vmax.f32 %v788, %v796
      %v805 = vmax.f32 %v789, %v797
      %v806 = vmax.f32 %v790, %v798
      %v807 = vmax.f32 %v791, %v799
      %v808 = vmax.f32 %v792, %v800
      %v809 = vmax.f32 %v793, %v801
      %v810 = vmax.f32 %v794, %v802
      %v811 = vld [vmem:[%s508] sm:$0xff]
      %v812 = vld [vmem:[%s508 + $0x8] sm:$0xff]
      %v813 = vld [vmem:[%s508 + $0x10] sm:$0xff]
      %v814 = vld [vmem:[%s508 + $0x18] sm:$0xff]
      %v815 = vld [vmem:[%s508 + $0x20] sm:$0xff]
      %v816 = vld [vmem:[%s508 + $0x28] sm:$0xff]
      %v817 = vld [vmem:[%s508 + $0x30] sm:$0xff]
      %v818 = vld [vmem:[%s508 + $0x38] sm:$0xff]
      %v819 = vld [vmem:[%s8] sm:$0xff]
      %v820 = vld [vmem:[%s8 + $0x8] sm:$0xff]
      %v821 = vld [vmem:[%s8 + $0x10] sm:$0xff]
      %v822 = vld [vmem:[%s8 + $0x18] sm:$0x7f]
      %v823 = vld [vmem:[%s9] sm:$0x1]
      %v825 = vperm.slane %v823, 0
      %vm827 = vcmask 252928
      %v829 = vsel %vm827, %v811, 0
      %v832 = vsel %vm827, %v812, 0
      %v835 = vsel %vm827, %v813, 0
      %v838 = vsel %vm827, %v814, 0
      %v841 = vsel %vm827, %v815, 0
      %v844 = vsel %vm827, %v816, 0
      %v847 = vsel %vm827, %v817, 0
      %v850 = vsel %vm827, %v818, 0
      %vm852 = vcmask 1046528
      %v854 = vsel %vm852, %v822, 0
      %856 = vmatpush.msra.mxu0 0.0
      %857 = vmatpush.msra.mxu0 0.0
      %858 = vmatpush.msra.mxu0 0.0
      %859 = vmatpush.msra.mxu0 0.0
      %860 = vmatpush.msra.mxu0 0.0
      %861 = vmatpush.msra.mxu0 0.0
      %862 = vmatpush.msra.mxu0 0.0
      %863 = vmatpush.msra.mxu0 0.0
      %864 = vmatpush.msra.mxu0 0.0
      %865 = vmatpush.msra.mxu0 0.0
      %866 = vmatpush.msra.mxu0 0.0
      %867 = vmatpush.msra.mxu0 0.0
      %868 = vmatpush.msra.mxu0 %v854
      %869 = vmatpush.msra.mxu0 %v821
      %870 = vmatpush.msra.mxu0 %v820
      %871 = vmatpush.msra.mxu0 %v819
      %872 = vmatmul.f32.gmra.mxu0 %v829
      %v873 = vpop.f32.mrf.mxu0
      %v874 = vadd.f32 %v825, %v873
      %875 = vmatmul.f32.gmra.mxu0 %v832
      %v876 = vpop.f32.mrf.mxu0
      %v877 = vadd.f32 %v825, %v876
      %878 = vmatmul.f32.gmra.mxu0 %v835
      %v879 = vpop.f32.mrf.mxu0
      %v880 = vadd.f32 %v825, %v879
      %881 = vmatmul.f32.gmra.mxu0 %v838
      %v882 = vpop.f32.mrf.mxu0
      %v883 = vadd.f32 %v825, %v882
      %884 = vmatmul.f32.gmra.mxu0 %v841
      %v885 = vpop.f32.mrf.mxu0
      %v886 = vadd.f32 %v825, %v885
      %887 = vmatmul.f32.gmra.mxu0 %v844
      %v888 = vpop.f32.mrf.mxu0
      %v889 = vadd.f32 %v825, %v888
      %890 = vmatmul.f32.gmra.mxu0 %v847
      %v891 = vpop.f32.mrf.mxu0
      %v892 = vadd.f32 %v825, %v891
      %893 = vmatmul.f32.gmra.mxu0 %v850
      %v894 = vpop.f32.mrf.mxu0
      %v895 = vadd.f32 %v825, %v894
      %896 = vdwg.mxu0
      %v897 = vmul.f32 %v874, 0.01
      %v898 = vmul.f32 %v877, 0.01
      %v899 = vmul.f32 %v880, 0.01
      %v900 = vmul.f32 %v883, 0.01
      %v901 = vmul.f32 %v886, 0.01
      %v902 = vmul.f32 %v889, 0.01
      %v903 = vmul.f32 %v892, 0.01
      %v904 = vmul.f32 %v895, 0.01
      %v905 = vmax.f32 %v874, %v897
      %v906 = vmax.f32 %v877, %v898
      %v907 = vmax.f32 %v880, %v899
      %v908 = vmax.f32 %v883, %v900
      %v909 = vmax.f32 %v886, %v901
      %v910 = vmax.f32 %v889, %v902
      %v911 = vmax.f32 %v892, %v903
      %v912 = vmax.f32 %v895, %v904
      %vm913 = vcmask 523264
      %v914 = vsel %vm913, %v905, -inf
      %915 = vmax.xlane.f32.xlu0 %v914
      %v916 = vpop.xlane.xlu0 %915
      %v917 = vsel %vm913, %v906, -inf
      %918 = vmax.xlane.f32.xlu0 %v917
      %v919 = vpop.xlane.xlu0 %918
      %v920 = vsel %vm913, %v907, -inf
      %921 = vmax.xlane.f32.xlu0 %v920
      %v922 = vpop.xlane.xlu0 %921
      %v923 = vsel %vm913, %v908, -inf
      %924 = vmax.xlane.f32.xlu0 %v923
      %v925 = vpop.xlane.xlu0 %924
      %v926 = vsel %vm913, %v909, -inf
      %927 = vmax.xlane.f32.xlu0 %v926
      %v928 = vpop.xlane.xlu0 %927
      %v929 = vsel %vm913, %v910, -inf
      %930 = vmax.xlane.f32.xlu0 %v929
      %v931 = vpop.xlane.xlu0 %930
      %v932 = vsel %vm913, %v911, -inf
      %933 = vmax.xlane.f32.xlu0 %v932
      %v934 = vpop.xlane.xlu0 %933
      %v935 = vsel %vm913, %v912, -inf
      %936 = vmax.xlane.f32.xlu0 %v935
      %v937 = vpop.xlane.xlu0 %936
      %v938 = vsub.f32 %v905, %v916
      %v939 = vsub.f32 %v906, %v919
      %v940 = vsub.f32 %v907, %v922
      %v941 = vsub.f32 %v908, %v925
      %v942 = vsub.f32 %v909, %v928
      %v943 = vsub.f32 %v910, %v931
      %v944 = vsub.f32 %v911, %v934
      %v945 = vsub.f32 %v912, %v937
      %v946 = vmul.f32 %v938, 1.442695
      %v947 = vpow.pop %v946
      %v948 = vmul.f32 %v939, 1.442695
      %v949 = vpow.pop %v948
      %v950 = vmul.f32 %v940, 1.442695
      %v951 = vpow.pop %v950
      %v952 = vmul.f32 %v941, 1.442695
      %v953 = vpow.pop %v952
      %v954 = vmul.f32 %v942, 1.442695
      %v955 = vpow.pop %v954
      %v956 = vmul.f32 %v943, 1.442695
      %v957 = vpow.pop %v956
      %v958 = vmul.f32 %v944, 1.442695
      %v959 = vpow.pop %v958
      %v960 = vmul.f32 %v945, 1.442695
      %v961 = vpow.pop %v960
      %v962 = vsel %vm913, %v947, 0.0
      %963 = vadd.xlane.f32.xlu0 %v962
      %v964 = vpop.xlane.xlu0 %963
      %v965 = vsel %vm913, %v949, 0.0
      %966 = vadd.xlane.f32.xlu0 %v965
      %v967 = vpop.xlane.xlu0 %966
      %v968 = vsel %vm913, %v951, 0.0
      %969 = vadd.xlane.f32.xlu0 %v968
      %v970 = vpop.xlane.xlu0 %969
      %v971 = vsel %vm913, %v953, 0.0
      %972 = vadd.xlane.f32.xlu0 %v971
      %v973 = vpop.xlane.xlu0 %972
      %v974 = vsel %vm913, %v955, 0.0
      %975 = vadd.xlane.f32.xlu0 %v974
      %v976 = vpop.xlane.xlu0 %975
      %v977 = vsel %vm913, %v957, 0.0
      %978 = vadd.xlane.f32.xlu0 %v977
      %v979 = vpop.xlane.xlu0 %978
      %v980 = vsel %vm913, %v959, 0.0
      %981 = vadd.xlane.f32.xlu0 %v980
      %v982 = vpop.xlane.xlu0 %981
      %v983 = vsel %vm913, %v961, 0.0
      %984 = vadd.xlane.f32.xlu0 %v983
      %v985 = vpop.xlane.xlu0 %984
      %v986 = vrcp.pop %v964
      %v987 = vrcp.pop %v967
      %v988 = vrcp.pop %v970
      %v989 = vrcp.pop %v973
      %v990 = vrcp.pop %v976
      %v991 = vrcp.pop %v979
      %v992 = vrcp.pop %v982
      %v993 = vrcp.pop %v985
      %v994 = vmul.f32 %v947, %v986
      %v995 = vmul.f32 %v949, %v987
      %v996 = vmul.f32 %v951, %v988
      %v997 = vmul.f32 %v953, %v989
      %v998 = vmul.f32 %v955, %v990
      %v999 = vmul.f32 %v957, %v991
      %v1000 = vmul.f32 %v959, %v992
      %v1001 = vmul.f32 %v961, %v993
      %v1002 = vld [vmem:[%s518] sm:$0xff]
      %v1003 = vld [vmem:[%s518 + $0x8] sm:$0xff]
      %v1004 = vld [vmem:[%s518 + $0x10] sm:$0xff]
      %v1005 = vld [vmem:[%s518 + $0x18] sm:$0xff]
      %v1006 = vld [vmem:[%s518 + $0x20] sm:$0xff]
      %v1007 = vld [vmem:[%s518 + $0x28] sm:$0xff]
      %v1008 = vld [vmem:[%s518 + $0x30] sm:$0xff]
      %v1009 = vld [vmem:[%s518 + $0x38] sm:$0xff]
      %v1010 = vmul.f32 %v994, %v803
      %v1011 = vmul.f32 %v995, %v804
      %v1012 = vmul.f32 %v996, %v805
      %v1013 = vmul.f32 %v997, %v806
      %v1014 = vmul.f32 %v998, %v807
      %v1015 = vmul.f32 %v999, %v808
      %v1016 = vmul.f32 %v1000, %v809
      %v1017 = vmul.f32 %v1001, %v810
      %v1018 = vadd.f32 %v1002, %v1010
      %v1019 = vadd.f32 %v1003, %v1011
      %v1020 = vadd.f32 %v1004, %v1012
      %v1021 = vadd.f32 %v1005, %v1013
      %v1022 = vadd.f32 %v1006, %v1014
      %v1023 = vadd.f32 %v1007, %v1015
      %v1024 = vadd.f32 %v1008, %v1016
      %v1025 = vadd.f32 %v1009, %v1017
      %1026 = vst.msk [vmem:[%s518] sm:$0xff] %vm913, %v1018
      %1027 = vst.msk [vmem:[%s518 + $0x8] sm:$0xff] %vm913, %v1019
      %1028 = vst.msk [vmem:[%s518 + $0x10] sm:$0xff] %vm913, %v1020
      %1029 = vst.msk [vmem:[%s518 + $0x18] sm:$0xff] %vm913, %v1021
      %1030 = vst.msk [vmem:[%s518 + $0x20] sm:$0xff] %vm913, %v1022
      %1031 = vst.msk [vmem:[%s518 + $0x28] sm:$0xff] %vm913, %v1023
      %1032 = vst.msk [vmem:[%s518 + $0x30] sm:$0xff] %vm913, %v1024
      %1033 = vst.msk [vmem:[%s518 + $0x38] sm:$0xff] %vm913, %v1025
      %s1034 = smul.u32 8, %s27
      %p1035 = scmp.lt.s32.totalorder %s26, 1
      %s1036 = scalar_select %p1035, %s26, 1
      %p1037 = scmp.lt.s32.totalorder %s1034, 7
      %s1038 = scalar_select %p1037, %s1034, 7
      %s1039 = smul.addr %s1036, 8
      %s1040 = sadd.s32 %s1038, %s1039
      %s1041 = smul.addr %s1040, 8
      %s1042 = scalar_lea.vmem %s10, %s1041
      // Predicated region
      $region65: #{gac_seg2_forward.6} parent=59 // pred_check
        %p1043 = pneg %p297
      $region66: #{gac_seg2_forward.6} parent=59 // pred_check_branch
        %1045 = sbr.rel (%p1043) target = $region68
      $region67: #{gac_seg2_forward.6} parent=59 // pred_region
        %s1046 = smul.u32 8, %s27
      $region68: #{gac_seg2_forward.6} parent=59 // pred_fallthru
        _
    $region60: #{gac_seg2_forward.6} parent=5 // pred_fallthru
      _
    %p1047 = scmp.le.s32.totalorder 2, %s16
    // Predicated region
    $region69: #{gac_seg2_forward.6} parent=5 // pred_check
      %p1048 = pneg %p1047
    $region70: #{gac_seg2_forward.6} parent=5 // pred_check_branch
      %1050 = sbr.rel (%p1048) target = $region72
    $region71: #{gac_seg2_forward.6} parent=5 // pred_region
      %s1051 = ssub.s32 %s16, 2
      // Predicated region
      $region73: #{gac_seg2_forward.6} parent=71 // pred_check
        %p1052 = pneg %p303
      $region74: #{gac_seg2_forward.6} parent=71 // pred_check_branch
        %1054 = sbr.rel (%p1052) target = $region76
      $region75: #{gac_seg2_forward.6} parent=71 // pred_region
        %s1055 = smul.u32 8, %s30
        %p1056 = scmp.lt.s32.totalorder %s29, 1
        %s1057 = scalar_select %p1056, %s29, 1
        %p1058 = scmp.lt.s32.totalorder %s1055, 7
        %s1059 = scalar_select %p1058, %s1055, 7
        %s1060 = smul.addr %s1057, 8
        %s1061 = sadd.s32 %s1059, %s1060
        %s1062 = smul.addr %s1061, 8
        %s1063 = scalar_lea.vmem %s10, %s1062
      $region76: #{gac_seg2_forward.6} parent=71 // pred_fallthru
        _
    $region72: #{gac_seg2_forward.6} parent=5 // pred_fallthru
      _
  $region6: #{gac_seg2_forward.6} parent=0 // loop_footer
    %s20 = sadd.s32 1, %s16
  $region7: #{gac_seg2_forward.6} parent=0 // loop_footer_branch
    %15 = sbr.rel target = $region3
  $region8: #{gac_seg2_forward.6} parent=0 // loop_exit
    _

// kernel: gac_seg2_forward.7
$region0: #{gac_seg2_forward.7}
  #allocation0 [shape = 'u32[]', space=smem, size = 0x4, offset = 0x4, fixed_abs, tag = 'smem constant byte address 0x4 - core index']
  #allocation1 [shape = 'u32[72,128]{1,0:T(1,128)}', space=vmem, size = 0x9000, scoped, tag = 'internal scratch']
  %s0 = inlined_call_operand.vmem [shape: f32[2,24,64,9], index: 0, kind: input, shape index: {}]
  %s1 = inlined_call_operand.vmem [shape: f32[2,24,64,128], index: 1, kind: input, shape index: {}]
  %s2 = inlined_call_operand.vmem [shape: f32[2,24,64,129], index: 2, kind: input, shape index: {}]
  %s3 = inlined_call_operand.vmem [shape: f32[9,16], index: 3, kind: input, shape index: {}]
  %s4 = inlined_call_operand.vmem [shape: f32[1,16], index: 4, kind: input, shape index: {}]
  %s5 = inlined_call_operand.vmem [shape: f32[128,128], index: 5, kind: input, shape index: {}]
  %s6 = inlined_call_operand.vmem [shape: f32[16,128], index: 6, kind: input, shape index: {}]
  %s7 = inlined_call_operand.vmem [shape: f32[1,128], index: 7, kind: input, shape index: {}]
  %s8 = inlined_call_operand.vmem [shape: f32[129,128], index: 8, kind: input, shape index: {}]
  %s9 = inlined_call_operand.vmem [shape: f32[1,128], index: 9, kind: input, shape index: {}]
  %s10 = inlined_call_operand.vmem [shape: f32[2,64,128], index: 10, kind: output, shape index: {}]
  %s11 = sld [smem:[#allocation0]]
  $region77: #{gac_seg2_forward.7} parent=0
    _
  %s13 = ssub.s32 1, %s11
  %s14 = scalar_select 0, %s13, %s11
  loop: start=0, step=1, limit=50
  $region2: #{gac_seg2_forward.7} parent=0 // loop_pre_header
    _
  $region3: #{gac_seg2_forward.7} parent=0 // loop_header
    %s16 = sphi 0, %s20
    %p17 = scmp.ge.s32.totalorder %s16, 50
    %s23 = sphi 0, %s42
    %s24 = sphi 0, %s38
    %s25 = sphi 0, %s34
    %s26 = sphi 0, %s23
    %s27 = sphi 0, %s24
    %s28 = sphi 0, %s25
    %s29 = sphi 0, %s26
    %s30 = sphi 0, %s27
    %s31 = sphi 0, %s28
    %s49 = sphi 0, %s51
    %s52 = sphi 0, %s49
    %s53 = sphi 0, %s52
    %s69 = sphi 0, %s53
    %s79 = sphi 0, %s81
    %s82 = sphi 0, %s79
    %s83 = sphi 0, %s82
    %s99 = sphi 0, %s83
    %s109 = sphi 0, %s111
    %s112 = sphi 0, %s109
    %s113 = sphi 0, %s112
    %s129 = sphi 0, %s113
    %s133 = sphi 0, %s133
    %s135 = sphi 0, %s133
    %s136 = sphi 0, %s135
    %s150 = sphi 0, %s136
    %s154 = sphi 0, %s154
    %s156 = sphi 0, %s154
    %s157 = sphi 0, %s156
    %s171 = sphi 0, %s157
    %s175 = sphi 0, %s175
    %s177 = sphi 0, %s175
    %s178 = sphi 0, %s177
    %s192 = sphi 0, %s178
    %s196 = sphi 0, %s196
    %s198 = sphi 0, %s196
    %s199 = sphi 0, %s198
    %s213 = sphi 0, %s199
    %s217 = sphi 0, %s217
    %s219 = sphi 0, %s217
    %s220 = sphi 0, %s219
    %s234 = sphi 0, %s220
    %s238 = sphi 0, %s238
    %s240 = sphi 0, %s238
    %s241 = sphi 0, %s240
    %s255 = sphi 0, %s241
    %s259 = sphi 0, %s259
    %s261 = sphi 0, %s259
    %s262 = sphi 0, %s261
    %s276 = sphi 0, %s262
    %s284 = sphi 0, %s286
    %s287 = sphi 0, %s284
    %s288 = sphi 0, %s287
    %s304 = sphi 0, %s288
  $region4: #{gac_seg2_forward.7} parent=0 // loop_header_branch
    %19 = sbr.rel (%p17) target = $region8
  $region5: #{gac_seg2_forward.7} parent=0 // loop_body
    %s21 = ssub.s32 %s16, 1
    %s22 = ssub.s32 %s16, 2
    %s32 = sadd.s32 1, %s25
    %p33 = scmp.ge.s32.totalorder %s32, 24
    %s34 = scalar_select %p33, 0, %s32
    %s35 = sadd.s32 1, %s24
    %s36 = scalar_select %p33, %s35, %s24
    %p37 = scmp.ge.s32.totalorder %s36, 1
    %s38 = scalar_select %p37, 0, %s36
    %s39 = sadd.s32 1, %s23
    %s40 = scalar_select %p37, %s39, %s23
    %p41 = scmp.ge.s32.totalorder %s40, 2
    %s42 = scalar_select %p41, 0, %s40
    %s43 = ssub.s32 %s23, %s42
    %s44 = ssub.s32 %s25, %s34
    %s45 = sor.u32 %s43, %s44
    %s46 = ssub.s32 %s24, %s38
    %s47 = sor.u32 %s45, %s46
    %p48 = scmp.eq.s32.totalorder %s47, 0
    %s50 = sadd.s32 %s49, 1
    %s51 = scalar_select %p48, %s49, %s50
    %p54 = pneg %p48
    %p55 = scmp.eq.s32.totalorder %s16, 47
    %p56 = por %p54, %p55
    %p57 = scmp.ne.s32.totalorder %s49, %s52
    %p58 = scmp.eq.s32.totalorder %s16, 0
    %p59 = por %p57, %p58
    %p60 = scmp.ne.s32.totalorder %s49, %s52
    %p61 = scmp.eq.s32.totalorder %s21, 47
    %p62 = por %p60, %p61
    %p63 = scmp.ne.s32.totalorder %s52, %s53
    %p64 = scmp.eq.s32.totalorder %s21, 0
    %p65 = por %p63, %p64
    %p66 = scmp.ne.s32.totalorder %s52, %s53
    %p67 = scmp.eq.s32.totalorder %s22, 47
    %p68 = por %p66, %p67
    %p70 = scmp.ne.s32.totalorder %s53, %s69
    %p71 = scmp.eq.s32.totalorder %s22, 0
    %p72 = por %p70, %p71
    %s73 = ssub.s32 %s23, %s42
    %s74 = ssub.s32 %s25, %s34
    %s75 = sor.u32 %s73, %s74
    %s76 = ssub.s32 %s24, %s38
    %s77 = sor.u32 %s75, %s76
    %p78 = scmp.eq.s32.totalorder %s77, 0
    %s80 = sadd.s32 %s79, 1
    %s81 = scalar_select %p78, %s79, %s80
    %p84 = pneg %p78
    %p85 = scmp.eq.s32.totalorder %s16, 47
    %p86 = por %p84, %p85
    %p87 = scmp.ne.s32.totalorder %s79, %s82
    %p88 = scmp.eq.s32.totalorder %s16, 0
    %p89 = por %p87, %p88
    %p90 = scmp.ne.s32.totalorder %s79, %s82
    %p91 = scmp.eq.s32.totalorder %s21, 47
    %p92 = por %p90, %p91
    %p93 = scmp.ne.s32.totalorder %s82, %s83
    %p94 = scmp.eq.s32.totalorder %s21, 0
    %p95 = por %p93, %p94
    %p96 = scmp.ne.s32.totalorder %s82, %s83
    %p97 = scmp.eq.s32.totalorder %s22, 47
    %p98 = por %p96, %p97
    %p100 = scmp.ne.s32.totalorder %s83, %s99
    %p101 = scmp.eq.s32.totalorder %s22, 0
    %p102 = por %p100, %p101
    %s103 = ssub.s32 %s23, %s42
    %s104 = ssub.s32 %s25, %s34
    %s105 = sor.u32 %s103, %s104
    %s106 = ssub.s32 %s24, %s38
    %s107 = sor.u32 %s105, %s106
    %p108 = scmp.eq.s32.totalorder %s107, 0
    %s110 = sadd.s32 %s109, 1
    %s111 = scalar_select %p108, %s109, %s110
    %p114 = pneg %p108
    %p115 = scmp.eq.s32.totalorder %s16, 47
    %p116 = por %p114, %p115
    %p117 = scmp.ne.s32.totalorder %s109, %s112
    %p118 = scmp.eq.s32.totalorder %s16, 0
    %p119 = por %p117, %p118
    %p120 = scmp.ne.s32.totalorder %s109, %s112
    %p121 = scmp.eq.s32.totalorder %s21, 47
    %p122 = por %p120, %p121
    %p123 = scmp.ne.s32.totalorder %s112, %s113
    %p124 = scmp.eq.s32.totalorder %s21, 0
    %p125 = por %p123, %p124
    %p126 = scmp.ne.s32.totalorder %s112, %s113
    %p127 = scmp.eq.s32.totalorder %s22, 47
    %p128 = por %p126, %p127
    %p130 = scmp.ne.s32.totalorder %s113, %s129
    %p131 = scmp.eq.s32.totalorder %s22, 0
    %p132 = por %p130, %p131
    %s134 = sadd.s32 %s133, 1
    %p137 = scmp.eq.s32.totalorder %s16, 47
    %p138 = scmp.ne.s32.totalorder %s133, %s135
    %p139 = scmp.eq.s32.totalorder %s16, 0
    %p140 = por %p138, %p139
    %p141 = scmp.ne.s32.totalorder %s133, %s135
    %p142 = scmp.eq.s32.totalorder %s21, 47
    %p143 = por %p141, %p142
    %p144 = scmp.ne.s32.totalorder %s135, %s136
    %p145 = scmp.eq.s32.totalorder %s21, 0
    %p146 = por %p144, %p145
    %p147 = scmp.ne.s32.totalorder %s135, %s136
    %p148 = scmp.eq.s32.totalorder %s22, 47
    %p149 = por %p147, %p148
    %p151 = scmp.ne.s32.totalorder %s136, %s150
    %p152 = scmp.eq.s32.totalorder %s22, 0
    %p153 = por %p151, %p152
    %s155 = sadd.s32 %s154, 1
    %p158 = scmp.eq.s32.totalorder %s16, 47
    %p159 = scmp.ne.s32.totalorder %s154, %s156
    %p160 = scmp.eq.s32.totalorder %s16, 0
    %p161 = por %p159, %p160
    %p162 = scmp.ne.s32.totalorder %s154, %s156
    %p163 = scmp.eq.s32.totalorder %s21, 47
    %p164 = por %p162, %p163
    %p165 = scmp.ne.s32.totalorder %s156, %s157
    %p166 = scmp.eq.s32.totalorder %s21, 0
    %p167 = por %p165, %p166
    %p168 = scmp.ne.s32.totalorder %s156, %s157
    %p169 = scmp.eq.s32.totalorder %s22, 47
    %p170 = por %p168, %p169
    %p172 = scmp.ne.s32.totalorder %s157, %s171
    %p173 = scmp.eq.s32.totalorder %s22, 0
    %p174 = por %p172, %p173
    %s176 = sadd.s32 %s175, 1
    %p179 = scmp.eq.s32.totalorder %s16, 47
    %p180 = scmp.ne.s32.totalorder %s175, %s177
    %p181 = scmp.eq.s32.totalorder %s16, 0
    %p182 = por %p180, %p181
    %p183 = scmp.ne.s32.totalorder %s175, %s177
    %p184 = scmp.eq.s32.totalorder %s21, 47
    %p185 = por %p183, %p184
    %p186 = scmp.ne.s32.totalorder %s177, %s178
    %p187 = scmp.eq.s32.totalorder %s21, 0
    %p188 = por %p186, %p187
    %p189 = scmp.ne.s32.totalorder %s177, %s178
    %p190 = scmp.eq.s32.totalorder %s22, 47
    %p191 = por %p189, %p190
    %p193 = scmp.ne.s32.totalorder %s178, %s192
    %p194 = scmp.eq.s32.totalorder %s22, 0
    %p195 = por %p193, %p194
    %s197 = sadd.s32 %s196, 1
    %p200 = scmp.eq.s32.totalorder %s16, 47
    %p201 = scmp.ne.s32.totalorder %s196, %s198
    %p202 = scmp.eq.s32.totalorder %s16, 0
    %p203 = por %p201, %p202
    %p204 = scmp.ne.s32.totalorder %s196, %s198
    %p205 = scmp.eq.s32.totalorder %s21, 47
    %p206 = por %p204, %p205
    %p207 = scmp.ne.s32.totalorder %s198, %s199
    %p208 = scmp.eq.s32.totalorder %s21, 0
    %p209 = por %p207, %p208
    %p210 = scmp.ne.s32.totalorder %s198, %s199
    %p211 = scmp.eq.s32.totalorder %s22, 47
    %p212 = por %p210, %p211
    %p214 = scmp.ne.s32.totalorder %s199, %s213
    %p215 = scmp.eq.s32.totalorder %s22, 0
    %p216 = por %p214, %p215
    %s218 = sadd.s32 %s217, 1
    %p221 = scmp.eq.s32.totalorder %s16, 47
    %p222 = scmp.ne.s32.totalorder %s217, %s219
    %p223 = scmp.eq.s32.totalorder %s16, 0
    %p224 = por %p222, %p223
    %p225 = scmp.ne.s32.totalorder %s217, %s219
    %p226 = scmp.eq.s32.totalorder %s21, 47
    %p227 = por %p225, %p226
    %p228 = scmp.ne.s32.totalorder %s219, %s220
    %p229 = scmp.eq.s32.totalorder %s21, 0
    %p230 = por %p228, %p229
    %p231 = scmp.ne.s32.totalorder %s219, %s220
    %p232 = scmp.eq.s32.totalorder %s22, 47
    %p233 = por %p231, %p232
    %p235 = scmp.ne.s32.totalorder %s220, %s234
    %p236 = scmp.eq.s32.totalorder %s22, 0
    %p237 = por %p235, %p236
    %s239 = sadd.s32 %s238, 1
    %p242 = scmp.eq.s32.totalorder %s16, 47
    %p243 = scmp.ne.s32.totalorder %s238, %s240
    %p244 = scmp.eq.s32.totalorder %s16, 0
    %p245 = por %p243, %p244
    %p246 = scmp.ne.s32.totalorder %s238, %s240
    %p247 = scmp.eq.s32.totalorder %s21, 47
    %p248 = por %p246, %p247
    %p249 = scmp.ne.s32.totalorder %s240, %s241
    %p250 = scmp.eq.s32.totalorder %s21, 0
    %p251 = por %p249, %p250
    %p252 = scmp.ne.s32.totalorder %s240, %s241
    %p253 = scmp.eq.s32.totalorder %s22, 47
    %p254 = por %p252, %p253
    %p256 = scmp.ne.s32.totalorder %s241, %s255
    %p257 = scmp.eq.s32.totalorder %s22, 0
    %p258 = por %p256, %p257
    %s260 = sadd.s32 %s259, 1
    %p263 = scmp.eq.s32.totalorder %s16, 47
    %p264 = scmp.ne.s32.totalorder %s259, %s261
    %p265 = scmp.eq.s32.totalorder %s16, 0
    %p266 = por %p264, %p265
    %p267 = scmp.ne.s32.totalorder %s259, %s261
    %p268 = scmp.eq.s32.totalorder %s21, 47
    %p269 = por %p267, %p268
    %p270 = scmp.ne.s32.totalorder %s261, %s262
    %p271 = scmp.eq.s32.totalorder %s21, 0
    %p272 = por %p270, %p271
    %p273 = scmp.ne.s32.totalorder %s261, %s262
    %p274 = scmp.eq.s32.totalorder %s22, 47
    %p275 = por %p273, %p274
    %p277 = scmp.ne.s32.totalorder %s262, %s276
    %p278 = scmp.eq.s32.totalorder %s22, 0
    %p279 = por %p277, %p278
    %s280 = ssub.s32 %s23, %s42
    %s281 = ssub.s32 %s24, %s38
    %s282 = sor.u32 %s280, %s281
    %p283 = scmp.eq.s32.totalorder %s282, 0
    %s285 = sadd.s32 %s284, 1
    %s286 = scalar_select %p283, %s284, %s285
    %p289 = pneg %p283
    %p290 = scmp.eq.s32.totalorder %s16, 47
    %p291 = por %p289, %p290
    %p292 = scmp.ne.s32.totalorder %s284, %s287
    %p293 = scmp.eq.s32.totalorder %s16, 0
    %p294 = por %p292, %p293
    %p295 = scmp.ne.s32.totalorder %s284, %s287
    %p296 = scmp.eq.s32.totalorder %s21, 47
    %p297 = por %p295, %p296
    %p298 = scmp.ne.s32.totalorder %s287, %s288
    %p299 = scmp.eq.s32.totalorder %s21, 0
    %p300 = por %p298, %p299
    %p301 = scmp.ne.s32.totalorder %s287, %s288
    %p302 = scmp.eq.s32.totalorder %s22, 47
    %p303 = por %p301, %p302
    %p305 = scmp.ne.s32.totalorder %s288, %s304
    %p306 = scmp.eq.s32.totalorder %s22, 0
    %p307 = por %p305, %p306
    %p308 = scmp.le.s32.totalorder 1, %s16
    %p309 = scmp.lt.s32.totalorder %s16, 49
    %p310 = pnand %p308, %p309
    %p311 = pneg %p310
    // Predicated region
    $region9: #{gac_seg2_forward.7} parent=5 // pred_check
      _
    $region10: #{gac_seg2_forward.7} parent=5 // pred_check_branch
      %313 = sbr.rel (%p310) target = $region12
    $region11: #{gac_seg2_forward.7} parent=5 // pred_region
      %s314 = ssub.s32 %s16, 1
      // Predicated region
      $region13: #{gac_seg2_forward.7} parent=11 // pred_check
        %p315 = pneg %p146
      $region14: #{gac_seg2_forward.7} parent=11 // pred_check_branch
        %317 = sbr.rel (%p315) target = $region16
      $region15: #{gac_seg2_forward.7} parent=11 // pred_region
        _
      $region16: #{gac_seg2_forward.7} parent=11 // pred_fallthru
        _
      // Predicated region
      $region17: #{gac_seg2_forward.7} parent=11 // pred_check
        %p318 = pneg %p167
      $region18: #{gac_seg2_forward.7} parent=11 // pred_check_branch
        %320 = sbr.rel (%p318) target = $region20
      $region19: #{gac_seg2_forward.7} parent=11 // pred_region
        _
      $region20: #{gac_seg2_forward.7} parent=11 // pred_fallthru
        _
      // Predicated region
      $region21: #{gac_seg2_forward.7} parent=11 // pred_check
        %p321 = pneg %p188
      $region22: #{gac_seg2_forward.7} parent=11 // pred_check_branch
        %323 = sbr.rel (%p321) target = $region24
      $region23: #{gac_seg2_forward.7} parent=11 // pred_region
        _
      $region24: #{gac_seg2_forward.7} parent=11 // pred_fallthru
        _
      // Predicated region
      $region25: #{gac_seg2_forward.7} parent=11 // pred_check
        %p324 = pneg %p209
      $region26: #{gac_seg2_forward.7} parent=11 // pred_check_branch
        %326 = sbr.rel (%p324) target = $region28
      $region27: #{gac_seg2_forward.7} parent=11 // pred_region
        _
      $region28: #{gac_seg2_forward.7} parent=11 // pred_fallthru
        _
      // Predicated region
      $region29: #{gac_seg2_forward.7} parent=11 // pred_check
        %p327 = pneg %p230
      $region30: #{gac_seg2_forward.7} parent=11 // pred_check_branch
        %329 = sbr.rel (%p327) target = $region32
      $region31: #{gac_seg2_forward.7} parent=11 // pred_region
        _
      $region32: #{gac_seg2_forward.7} parent=11 // pred_fallthru
        _
      // Predicated region
      $region33: #{gac_seg2_forward.7} parent=11 // pred_check
        %p330 = pneg %p251
      $region34: #{gac_seg2_forward.7} parent=11 // pred_check_branch
        %332 = sbr.rel (%p330) target = $region36
      $region35: #{gac_seg2_forward.7} parent=11 // pred_region
        _
      $region36: #{gac_seg2_forward.7} parent=11 // pred_fallthru
        _
      // Predicated region
      $region37: #{gac_seg2_forward.7} parent=11 // pred_check
        %p333 = pneg %p272
      $region38: #{gac_seg2_forward.7} parent=11 // pred_check_branch
        %335 = sbr.rel (%p333) target = $region40
      $region39: #{gac_seg2_forward.7} parent=11 // pred_region
        _
      $region40: #{gac_seg2_forward.7} parent=11 // pred_fallthru
        _
    $region12: #{gac_seg2_forward.7} parent=5 // pred_fallthru
      _
    %p336 = scmp.lt.s32.totalorder %s16, 48
    // Predicated region
    $region41: #{gac_seg2_forward.7} parent=5 // pred_check
      %p337 = pneg %p336
    $region42: #{gac_seg2_forward.7} parent=5 // pred_check_branch
      %339 = sbr.rel (%p337) target = $region44
    $region43: #{gac_seg2_forward.7} parent=5 // pred_region
      // Predicated region
      $region45: #{gac_seg2_forward.7} parent=43 // pred_check
        %p340 = pneg %p59
      $region46: #{gac_seg2_forward.7} parent=43 // pred_check_branch
        %342 = sbr.rel (%p340) target = $region48
      $region47: #{gac_seg2_forward.7} parent=43 // pred_region
        %s343 = smul.u32 8, %s24
        %p344 = scmp.lt.s32.totalorder %s23, 1
        %s345 = scalar_select %p344, %s23, 1
        %p346 = scmp.lt.s32.totalorder %s25, 23
        %s347 = scalar_select %p346, %s25, 23
        %p348 = scmp.lt.s32.totalorder %s343, 7
        %s349 = scalar_select %p348, %s343, 7
        %s350 = smul.addr %s347, 8
        %s351 = sadd.s32 %s349, %s350
        %s352 = smul.addr %s345, 192
        %s353 = sadd.s32 %s351, %s352
        %s354 = smul.addr %s353, 8
        %s355 = scalar_lea.vmem %s0, %s354
        %s356 = smul.u32 8, %s24
      $region48: #{gac_seg2_forward.7} parent=43 // pred_fallthru
        _
      // Predicated region
      $region49: #{gac_seg2_forward.7} parent=43 // pred_check
        %p357 = pneg %p89
      $region50: #{gac_seg2_forward.7} parent=43 // pred_check_branch
        %359 = sbr.rel (%p357) target = $region52
      $region51: #{gac_seg2_forward.7} parent=43 // pred_region
        %s360 = smul.u32 8, %s24
        %p361 = scmp.lt.s32.totalorder %s23, 1
        %s362 = scalar_select %p361, %s23, 1
        %p363 = scmp.lt.s32.totalorder %s25, 23
        %s364 = scalar_select %p363, %s25, 23
        %p365 = scmp.lt.s32.totalorder %s360, 7
        %s366 = scalar_select %p365, %s360, 7
        %s367 = smul.addr %s364, 8
        %s368 = sadd.s32 %s366, %s367
        %s369 = smul.addr %s362, 192
        %s370 = sadd.s32 %s368, %s369
        %s371 = smul.addr %s370, 8
        %s372 = scalar_lea.vmem %s1, %s371
        %s373 = smul.u32 8, %s24
      $region52: #{gac_seg2_forward.7} parent=43 // pred_fallthru
        _
      // Predicated region
      $region53: #{gac_seg2_forward.7} parent=43 // pred_check
        %p374 = pneg %p119
      $region54: #{gac_seg2_forward.7} parent=43 // pred_check_branch
        %376 = sbr.rel (%p374) target = $region56
      $region55: #{gac_seg2_forward.7} parent=43 // pred_region
        %s377 = smul.u32 8, %s24
        %p378 = scmp.lt.s32.totalorder %s23, 1
        %s379 = scalar_select %p378, %s23, 1
        %p380 = scmp.lt.s32.totalorder %s25, 23
        %s381 = scalar_select %p380, %s25, 23
        %p382 = scmp.lt.s32.totalorder %s377, 7
        %s383 = scalar_select %p382, %s377, 7
        %s384 = smul.addr %s383, 2
        %s385 = smul.addr %s381, 16
        %s386 = sadd.s32 %s384, %s385
        %s387 = smul.addr %s379, 384
        %s388 = sadd.s32 %s386, %s387
        %s389 = smul.addr %s388, 8
        %s390 = scalar_lea.vmem %s2, %s389
        %s391 = smul.u32 8, %s24
      $region56: #{gac_seg2_forward.7} parent=43 // pred_fallthru
        _
    $region44: #{gac_seg2_forward.7} parent=5 // pred_fallthru
      _
    %p392 = scmp.le.s32.totalorder 1, %s16
    %p393 = scmp.lt.s32.totalorder %s16, 49
    %p394 = pnand %p392, %p393
    %p395 = pneg %p394
    // Predicated region
    $region57: #{gac_seg2_forward.7} parent=5 // pred_check
      _
    $region58: #{gac_seg2_forward.7} parent=5 // pred_check_branch
      %397 = sbr.rel (%p394) target = $region60
    $region59: #{gac_seg2_forward.7} parent=5 // pred_region
      %s398 = ssub.s32 %s16, 1
      %s399 = smul.u32 8, %s27
      %p400 = scmp.lt.s32.totalorder %s26, 1
      %s401 = scalar_select %p400, %s26, 1
      %p402 = scmp.lt.s32.totalorder %s28, 23
      %s403 = scalar_select %p402, %s28, 23
      %p404 = scmp.lt.s32.totalorder %s399, 7
      %s405 = scalar_select %p404, %s399, 7
      %s406 = smul.addr %s403, 8
      %s407 = sadd.s32 %s405, %s406
      %s408 = smul.addr %s401, 192
      %s409 = sadd.s32 %s407, %s408
      %s410 = smul.addr %s409, 8
      %s411 = scalar_lea.vmem %s0, %s410
      %p412 = pneg %p65
      %p413 = pneg %p62
      %s414 = smul.u32 8, %s27
      %p415 = scmp.lt.s32.totalorder %s26, 1
      %s416 = scalar_select %p415, %s26, 1
      %p417 = scmp.lt.s32.totalorder %s28, 23
      %s418 = scalar_select %p417, %s28, 23
      %p419 = scmp.lt.s32.totalorder %s414, 7
      %s420 = scalar_select %p419, %s414, 7
      %s421 = smul.addr %s418, 8
      %s422 = sadd.s32 %s420, %s421
      %s423 = smul.addr %s416, 192
      %s424 = sadd.s32 %s422, %s423
      %s425 = smul.addr %s424, 8
      %s426 = scalar_lea.vmem %s1, %s425
      %p427 = pneg %p95
      %p428 = pneg %p92
      %s429 = smul.u32 8, %s27
      %p430 = scmp.lt.s32.totalorder %s26, 1
      %s431 = scalar_select %p430, %s26, 1
      %p432 = scmp.lt.s32.totalorder %s28, 23
      %s433 = scalar_select %p432, %s28, 23
      %p434 = scmp.lt.s32.totalorder %s429, 7
      %s435 = scalar_select %p434, %s429, 7
      %s436 = smul.addr %s435, 2
      %s437 = smul.addr %s433, 16
      %s438 = sadd.s32 %s436, %s437
      %s439 = smul.addr %s431, 384
      %s440 = sadd.s32 %s438, %s439
      %s441 = smul.addr %s440, 8
      %s442 = scalar_lea.vmem %s2, %s441
      %p443 = pneg %p125
      %p444 = pneg %p122
      %p445 = pneg %p146
      %p446 = pneg %p143
      %p447 = pneg %p167
      %p448 = pneg %p164
      %p449 = pneg %p188
      %p450 = pneg %p185
      %p451 = pneg %p209
      %p452 = pneg %p206
      %p453 = pneg %p230
      %p454 = pneg %p227
      %p455 = pneg %p251
      %p456 = pneg %p248
      %p457 = pneg %p272
      %p458 = pneg %p269
      %p459 = pneg %p300
      %p460 = pneg %p297
      %s461 = smul.u32 8, %s27
      %p462 = scmp.lt.s32.totalorder %s26, 1
      %s463 = scalar_select %p462, %s26, 1
      %p464 = scmp.lt.s32.totalorder %s461, 7
      %s465 = scalar_select %p464, %s461, 7
      %s466 = smul.addr %s463, 8
      %s467 = sadd.s32 %s465, %s466
      %s468 = smul.addr %s467, 8
      %s469 = scalar_lea.vmem %s10, %s468
      %s470 = smul.u32 8, %s27
      %p471 = scmp.lt.s32.totalorder %s26, 1
      %s472 = scalar_select %p471, %s26, 1
      %p473 = scmp.lt.s32.totalorder %s28, 23
      %s474 = scalar_select %p473, %s28, 23
      %p475 = scmp.lt.s32.totalorder %s470, 7
      %s476 = scalar_select %p475, %s470, 7
      %s477 = smul.addr %s474, 8
      %s478 = sadd.s32 %s476, %s477
      %s479 = smul.addr %s472, 192
      %s480 = sadd.s32 %s478, %s479
      %s481 = smul.addr %s480, 8
      %s482 = scalar_lea.vmem %s0, %s481
      %s483 = smul.u32 8, %s27
      %s484 = smul.u32 8, %s27
      %p485 = scmp.lt.s32.totalorder %s26, 1
      %s486 = scalar_select %p485, %s26, 1
      %p487 = scmp.lt.s32.totalorder %s28, 23
      %s488 = scalar_select %p487, %s28, 23
      %p489 = scmp.lt.s32.totalorder %s484, 7
      %s490 = scalar_select %p489, %s484, 7
      %s491 = smul.addr %s488, 8
      %s492 = sadd.s32 %s490, %s491
      %s493 = smul.addr %s486, 192
      %s494 = sadd.s32 %s492, %s493
      %s495 = smul.addr %s494, 8
      %s496 = scalar_lea.vmem %s1, %s495
      %s497 = smul.u32 8, %s27
      %s498 = smul.u32 8, %s27
      %p499 = scmp.lt.s32.totalorder %s26, 1
      %s500 = scalar_select %p499, %s26, 1
      %p501 = scmp.lt.s32.totalorder %s28, 23
      %s502 = scalar_select %p501, %s28, 23
      %p503 = scmp.lt.s32.totalorder %s498, 7
      %s504 = scalar_select %p503, %s498, 7
      %s505 = smul.addr %s504, 2
      %s506 = smul.addr %s502, 16
      %s507 = sadd.s32 %s505, %s506
      %s508 = smul.addr %s500, 384
      %s509 = sadd.s32 %s507, %s508
      %s510 = smul.addr %s509, 8
      %s511 = scalar_lea.vmem %s2, %s510
      %s512 = smul.u32 8, %s27
      %s513 = smul.u32 8, %s27
      %p514 = scmp.lt.s32.totalorder %s26, 1
      %s515 = scalar_select %p514, %s26, 1
      %p516 = scmp.lt.s32.totalorder %s513, 7
      %s517 = scalar_select %p516, %s513, 7
      %s518 = smul.addr %s515, 8
      %s519 = sadd.s32 %s517, %s518
      %s520 = smul.addr %s519, 8
      %s521 = scalar_lea.vmem %s10, %s520
      %s522 = smul.u32 8, %s27
      %p523 = scmp.eq.s32.totalorder %s28, 0
      // Predicated region
      $region61: #{gac_seg2_forward.7} parent=59 // pred_check
        %p524 = pneg %p523
      $region62: #{gac_seg2_forward.7} parent=59 // pred_check_branch
        %526 = sbr.rel (%p524) target = $region64
      $region63: #{gac_seg2_forward.7} parent=59 // pred_region
        %527 = vst [vmem:[%s521] sm:$0xff] 0.0
        %528 = vst [vmem:[%s521 + $0x8] sm:$0xff] 0.0
        %529 = vst [vmem:[%s521 + $0x10] sm:$0xff] 0.0
        %530 = vst [vmem:[%s521 + $0x18] sm:$0xff] 0.0
        %531 = vst [vmem:[%s521 + $0x20] sm:$0xff] 0.0
        %532 = vst [vmem:[%s521 + $0x28] sm:$0xff] 0.0
        %533 = vst [vmem:[%s521 + $0x30] sm:$0xff] 0.0
        %534 = vst [vmem:[%s521 + $0x38] sm:$0xff] 0.0
      $region64: #{gac_seg2_forward.7} parent=59 // pred_fallthru
        _
      %v535 = vld [vmem:[%s482] sm:$0xff]
      %v536 = vld [vmem:[%s482 + $0x8] sm:$0xff]
      %v537 = vld [vmem:[%s482 + $0x10] sm:$0xff]
      %v538 = vld [vmem:[%s482 + $0x18] sm:$0xff]
      %v539 = vld [vmem:[%s482 + $0x20] sm:$0xff]
      %v540 = vld [vmem:[%s482 + $0x28] sm:$0xff]
      %v541 = vld [vmem:[%s482 + $0x30] sm:$0xff]
      %v542 = vld [vmem:[%s482 + $0x38] sm:$0xff]
      %v543 = vld [vmem:[%s3] sm:$0xff]
      %v544 = vld [vmem:[%s3 + $0x8] sm:$0x1]
      %v545 = vld [vmem:[%s4] sm:$0x1]
      %v547 = vperm.slane %v545, 0
      %vm549 = vcmask 72704
      %v551 = vsel %vm549, %v535, 0
      %v554 = vsel %vm549, %v536, 0
      %v557 = vsel %vm549, %v537, 0
      %v560 = vsel %vm549, %v538, 0
      %v563 = vsel %vm549, %v539, 0
      %v566 = vsel %vm549, %v540, 0
      %v569 = vsel %vm549, %v541, 0
      %v572 = vsel %vm549, %v542, 0
      %vm574 = vcmask 1040384
      %v576 = vsel %vm574, %v544, 0
      %578 = vmatpush.msra.mxu0 0.0
      %579 = vmatpush.msra.mxu0 0.0
      %580 = vmatpush.msra.mxu0 0.0
      %581 = vmatpush.msra.mxu0 0.0
      %582 = vmatpush.msra.mxu0 0.0
      %583 = vmatpush.msra.mxu0 0.0
      %584 = vmatpush.msra.mxu0 0.0
      %585 = vmatpush.msra.mxu0 0.0
      %586 = vmatpush.msra.mxu0 0.0
      %587 = vmatpush.msra.mxu0 0.0
      %588 = vmatpush.msra.mxu0 0.0
      %589 = vmatpush.msra.mxu0 0.0
      %590 = vmatpush.msra.mxu0 0.0
      %591 = vmatpush.msra.mxu0 0.0
      %592 = vmatpush.msra.mxu0 %v576
      %593 = vmatpush.msra.mxu0 %v543
      %594 = vmatmul.f32.gmra.mxu0 %v551
      %v595 = vpop.f32.mrf.mxu0
      %v596 = vadd.f32 %v547, %v595
      %597 = vmatmul.f32.gmra.mxu0 %v554
      %v598 = vpop.f32.mrf.mxu0
      %v599 = vadd.f32 %v547, %v598
      %600 = vmatmul.f32.gmra.mxu0 %v557
      %v601 = vpop.f32.mrf.mxu0
      %v602 = vadd.f32 %v547, %v601
      %603 = vmatmul.f32.gmra.mxu0 %v560
      %v604 = vpop.f32.mrf.mxu0
      %v605 = vadd.f32 %v547, %v604
      %606 = vmatmul.f32.gmra.mxu0 %v563
      %v607 = vpop.f32.mrf.mxu0
      %v608 = vadd.f32 %v547, %v607
      %609 = vmatmul.f32.gmra.mxu0 %v566
      %v610 = vpop.f32.mrf.mxu0
      %v611 = vadd.f32 %v547, %v610
      %612 = vmatmul.f32.gmra.mxu0 %v569
      %v613 = vpop.f32.mrf.mxu0
      %v614 = vadd.f32 %v547, %v613
      %615 = vmatmul.f32.gmra.mxu0 %v572
      %v616 = vpop.f32.mrf.mxu0
      %v617 = vadd.f32 %v547, %v616
      %618 = vdwg.mxu0
      %v619 = vmul.f32 %v596, 0.01
      %v620 = vmul.f32 %v599, 0.01
      %v621 = vmul.f32 %v602, 0.01
      %v622 = vmul.f32 %v605, 0.01
      %v623 = vmul.f32 %v608, 0.01
      %v624 = vmul.f32 %v611, 0.01
      %v625 = vmul.f32 %v614, 0.01
      %v626 = vmul.f32 %v617, 0.01
      %v627 = vmax.f32 %v596, %v619
      %v628 = vmax.f32 %v599, %v620
      %v629 = vmax.f32 %v602, %v621
      %v630 = vmax.f32 %v605, %v622
      %v631 = vmax.f32 %v608, %v623
      %v632 = vmax.f32 %v611, %v624
      %v633 = vmax.f32 %v614, %v625
      %v634 = vmax.f32 %v617, %v626
      %v635 = vld [vmem:[%s496] sm:$0xff]
      %v636 = vld [vmem:[%s496 + $0x8] sm:$0xff]
      %v637 = vld [vmem:[%s496 + $0x10] sm:$0xff]
      %v638 = vld [vmem:[%s496 + $0x18] sm:$0xff]
      %v639 = vld [vmem:[%s496 + $0x20] sm:$0xff]
      %v640 = vld [vmem:[%s496 + $0x28] sm:$0xff]
      %v641 = vld [vmem:[%s496 + $0x30] sm:$0xff]
      %v642 = vld [vmem:[%s496 + $0x38] sm:$0xff]
      %v643 = vld [vmem:[%s5] sm:$0xff]
      %v644 = vld [vmem:[%s5 + $0x8] sm:$0xff]
      %v645 = vld [vmem:[%s5 + $0x10] sm:$0xff]
      %v646 = vld [vmem:[%s5 + $0x18] sm:$0xff]
      %v647 = vld [vmem:[%s5 + $0x20] sm:$0xff]
      %v648 = vld [vmem:[%s5 + $0x28] sm:$0xff]
      %v649 = vld [vmem:[%s5 + $0x30] sm:$0xff]
      %v650 = vld [vmem:[%s5 + $0x38] sm:$0xff]
      %v651 = vld [vmem:[%s5 + $0x40] sm:$0xff]
      %v652 = vld [vmem:[%s5 + $0x48] sm:$0xff]
      %v653 = vld [vmem:[%s5 + $0x50] sm:$0xff]
      %v654 = vld [vmem:[%s5 + $0x58] sm:$0xff]
      %v655 = vld [vmem:[%s5 + $0x60] sm:$0xff]
      %v656 = vld [vmem:[%s5 + $0x68] sm:$0xff]
      %v657 = vld [vmem:[%s5 + $0x70] sm:$0xff]
      %v658 = vld [vmem:[%s5 + $0x78] sm:$0xff]
      %v659 = vld [vmem:[%s6] sm:$0xff]
      %v660 = vld [vmem:[%s6 + $0x8] sm:$0xff]
      %vm661 = vcmask 130048
      %v663 = vsel %vm661, %v627, 0
      %v666 = vsel %vm661, %v628, 0
      %v669 = vsel %vm661, %v629, 0
      %v672 = vsel %vm661, %v630, 0
      %v675 = vsel %vm661, %v631, 0
      %v678 = vsel %vm661, %v632, 0
      %v681 = vsel %vm661, %v633, 0
      %v684 = vsel %vm661, %v634, 0
      %686 = vmatpush.msra.mxu0 0.0
      %687 = vmatpush.msra.mxu0 0.0
      %688 = vmatpush.msra.mxu0 0.0
      %689 = vmatpush.msra.mxu0 0.0
      %690 = vmatpush.msra.mxu0 0.0
      %691 = vmatpush.msra.mxu0 0.0
      %692 = vmatpush.msra.mxu0 0.0
      %693 = vmatpush.msra.mxu0 0.0
      %694 = vmatpush.msra.mxu0 0.0
      %695 = vmatpush.msra.mxu0 0.0
      %696 = vmatpush.msra.mxu0 0.0
      %697 = vmatpush.msra.mxu0 0.0
      %698 = vmatpush.msra.mxu0 0.0
      %699 = vmatpush.msra.mxu0 0.0
      %700 = vmatpush.msra.mxu0 %v660
      %701 = vmatpush.msra.mxu0 %v659
      %702 = vmatmul.f32.gmra.mxu0 %v663
      %v703 = vpop.f32.mrf.mxu0
      %v704 = vadd.f32 0.0, %v703
      %705 = vmatmul.f32.gmra.mxu0 %v666
      %v706 = vpop.f32.mrf.mxu0
      %v707 = vadd.f32 0.0, %v706
      %708 = vmatmul.f32.gmra.mxu0 %v669
      %v709 = vpop.f32.mrf.mxu0
      %v710 = vadd.f32 0.0, %v709
      %711 = vmatmul.f32.gmra.mxu0 %v672
      %v712 = vpop.f32.mrf.mxu0
      %v713 = vadd.f32 0.0, %v712
      %714 = vmatmul.f32.gmra.mxu0 %v675
      %v715 = vpop.f32.mrf.mxu0
      %v716 = vadd.f32 0.0, %v715
      %717 = vmatmul.f32.gmra.mxu0 %v678
      %v718 = vpop.f32.mrf.mxu0
      %v719 = vadd.f32 0.0, %v718
      %720 = vmatmul.f32.gmra.mxu0 %v681
      %v721 = vpop.f32.mrf.mxu0
      %v722 = vadd.f32 0.0, %v721
      %723 = vmatmul.f32.gmra.mxu0 %v684
      %v724 = vpop.f32.mrf.mxu0
      %v725 = vadd.f32 0.0, %v724
      %726 = vdwg.mxu0
      %727 = vmatpush.msra.mxu0 %v658
      %728 = vmatpush.msra.mxu0 %v657
      %729 = vmatpush.msra.mxu0 %v656
      %730 = vmatpush.msra.mxu0 %v655
      %731 = vmatpush.msra.mxu0 %v654
      %732 = vmatpush.msra.mxu0 %v653
      %733 = vmatpush.msra.mxu0 %v652
      %734 = vmatpush.msra.mxu0 %v651
      %735 = vmatpush.msra.mxu0 %v650
      %736 = vmatpush.msra.mxu0 %v649
      %737 = vmatpush.msra.mxu0 %v648
      %738 = vmatpush.msra.mxu0 %v647
      %739 = vmatpush.msra.mxu0 %v646
      %740 = vmatpush.msra.mxu0 %v645
      %741 = vmatpush.msra.mxu0 %v644
      %742 = vmatpush.msra.mxu0 %v643
      %743 = vmatmul.f32.gmra.mxu0 %v635
      %v744 = vpop.f32.mrf.mxu0
      %v745 = vadd.f32 %v704, %v744
      %746 = vmatmul.f32.gmra.mxu0 %v636
      %v747 = vpop.f32.mrf.mxu0
      %v748 = vadd.f32 %v707, %v747
      %749 = vmatmul.f32.gmra.mxu0 %v637
      %v750 = vpop.f32.mrf.mxu0
      %v751 = vadd.f32 %v710, %v750
      %752 = vmatmul.f32.gmra.mxu0 %v638
      %v753 = vpop.f32.mrf.mxu0
      %v754 = vadd.f32 %v713, %v753
      %755 = vmatmul.f32.gmra.mxu0 %v639
      %v756 = vpop.f32.mrf.mxu0
      %v757 = vadd.f32 %v716, %v756
      %758 = vmatmul.f32.gmra.mxu0 %v640
      %v759 = vpop.f32.mrf.mxu0
      %v760 = vadd.f32 %v719, %v759
      %761 = vmatmul.f32.gmra.mxu0 %v641
      %v762 = vpop.f32.mrf.mxu0
      %v763 = vadd.f32 %v722, %v762
      %764 = vmatmul.f32.gmra.mxu0 %v642
      %v765 = vpop.f32.mrf.mxu0
      %v766 = vadd.f32 %v725, %v765
      %767 = vdwg.mxu0
      %v768 = vld [vmem:[%s7] sm:$0x1]
      %v770 = vperm.slane %v768, 0
      %v772 = vadd.f32 %v745, %v770
      %v773 = vadd.f32 %v748, %v770
      %v774 = vadd.f32 %v751, %v770
      %v775 = vadd.f32 %v754, %v770
      %v776 = vadd.f32 %v757, %v770
      %v777 = vadd.f32 %v760, %v770
      %v778 = vadd.f32 %v763, %v770
      %v779 = vadd.f32 %v766, %v770
      %v780 = vmul.f32 %v772, 0.01
      %v781 = vmul.f32 %v773, 0.01
      %v782 = vmul.f32 %v774, 0.01
      %v783 = vmul.f32 %v775, 0.01
      %v784 = vmul.f32 %v776, 0.01
      %v785 = vmul.f32 %v777, 0.01
      %v786 = vmul.f32 %v778, 0.01
      %v787 = vmul.f32 %v779, 0.01
      %v788 = vmax.f32 %v772, %v780
      %v789 = vmax.f32 %v773, %v781
      %v790 = vmax.f32 %v774, %v782
      %v791 = vmax.f32 %v775, %v783
      %v792 = vmax.f32 %v776, %v784
      %v793 = vmax.f32 %v777, %v785
      %v794 = vmax.f32 %v778, %v786
      %v795 = vmax.f32 %v779, %v787
      %v796 = vld [vmem:[%s511] sm:$0xff]
      %v797 = vld [vmem:[%s511 + $0x8] sm:$0xff]
      %v798 = vld [vmem:[%s511 + $0x10] sm:$0xff]
      %v799 = vld [vmem:[%s511 + $0x18] sm:$0xff]
      %v800 = vld [vmem:[%s511 + $0x20] sm:$0xff]
      %v801 = vld [vmem:[%s511 + $0x28] sm:$0xff]
      %v802 = vld [vmem:[%s511 + $0x30] sm:$0xff]
      %v803 = vld [vmem:[%s511 + $0x38] sm:$0xff]
      %v804 = vld [vmem:[%s511 + $0x40] sm:$0xff]
      %v805 = vld [vmem:[%s511 + $0x48] sm:$0xff]
      %v806 = vld [vmem:[%s511 + $0x50] sm:$0xff]
      %v807 = vld [vmem:[%s511 + $0x58] sm:$0xff]
      %v808 = vld [vmem:[%s511 + $0x60] sm:$0xff]
      %v809 = vld [vmem:[%s511 + $0x68] sm:$0xff]
      %v810 = vld [vmem:[%s511 + $0x70] sm:$0xff]
      %v811 = vld [vmem:[%s511 + $0x78] sm:$0xff]
      %v812 = vld [vmem:[%s8] sm:$0xff]
      %v813 = vld [vmem:[%s8 + $0x8] sm:$0xff]
      %v814 = vld [vmem:[%s8 + $0x10] sm:$0xff]
      %v815 = vld [vmem:[%s8 + $0x18] sm:$0xff]
      %v816 = vld [vmem:[%s8 + $0x20] sm:$0xff]
      %v817 = vld [vmem:[%s8 + $0x28] sm:$0xff]
      %v818 = vld [vmem:[%s8 + $0x30] sm:$0xff]
      %v819 = vld [vmem:[%s8 + $0x38] sm:$0xff]
      %v820 = vld [vmem:[%s8 + $0x40] sm:$0xff]
      %v821 = vld [vmem:[%s8 + $0x48] sm:$0xff]
      %v822 = vld [vmem:[%s8 + $0x50] sm:$0xff]
      %v823 = vld [vmem:[%s8 + $0x58] sm:$0xff]
      %v824 = vld [vmem:[%s8 + $0x60] sm:$0xff]
      %v825 = vld [vmem:[%s8 + $0x68] sm:$0xff]
      %v826 = vld [vmem:[%s8 + $0x70] sm:$0xff]
      %v827 = vld [vmem:[%s8 + $0x78] sm:$0xff]
      %v828 = vld [vmem:[%s8 + $0x80] sm:$0x1]
      %v829 = vld [vmem:[%s9] sm:$0x1]
      %v831 = vperm.slane %v829, 0
      %vm833 = vcmask 7168
      %v835 = vsel %vm833, %v797, 0
      %v838 = vsel %vm833, %v799, 0
      %v841 = vsel %vm833, %v801, 0
      %v844 = vsel %vm833, %v803, 0
      %v847 = vsel %vm833, %v805, 0
      %v850 = vsel %vm833, %v807, 0
      %v853 = vsel %vm833, %v809, 0
      %v856 = vsel %vm833, %v811, 0
      %v859 = vsel %vm574, %v828, 0
      %861 = vmatpush.msra.mxu0 %v827
      %862 = vmatpush.msra.mxu0 %v826
      %863 = vmatpush.msra.mxu0 %v825
      %864 = vmatpush.msra.mxu0 %v824
      %865 = vmatpush.msra.mxu0 %v823
      %866 = vmatpush.msra.mxu0 %v822
      %867 = vmatpush.msra.mxu0 %v821
      %868 = vmatpush.msra.mxu0 %v820
      %869 = vmatpush.msra.mxu0 %v819
      %870 = vmatpush.msra.mxu0 %v818
      %871 = vmatpush.msra.mxu0 %v817
      %872 = vmatpush.msra.mxu0 %v816
      %873 = vmatpush.msra.mxu0 %v815
      %874 = vmatpush.msra.mxu0 %v814
      %875 = vmatpush.msra.mxu0 %v813
      %876 = vmatpush.msra.mxu0 %v812
      %877 = vmatmul.f32.gmra.mxu0 %v796
      %v878 = vpop.f32.mrf.mxu0
      %v879 = vadd.f32 %v831, %v878
      %880 = vmatmul.f32.gmra.mxu0 %v798
      %v881 = vpop.f32.mrf.mxu0
      %v882 = vadd.f32 %v831, %v881
      %883 = vmatmul.f32.gmra.mxu0 %v800
      %v884 = vpop.f32.mrf.mxu0
      %v885 = vadd.f32 %v831, %v884
      %886 = vmatmul.f32.gmra.mxu0 %v802
      %v887 = vpop.f32.mrf.mxu0
      %v888 = vadd.f32 %v831, %v887
      %889 = vmatmul.f32.gmra.mxu0 %v804
      %v890 = vpop.f32.mrf.mxu0
      %v891 = vadd.f32 %v831, %v890
      %892 = vmatmul.f32.gmra.mxu0 %v806
      %v893 = vpop.f32.mrf.mxu0
      %v894 = vadd.f32 %v831, %v893
      %895 = vmatmul.f32.gmra.mxu0 %v808
      %v896 = vpop.f32.mrf.mxu0
      %v897 = vadd.f32 %v831, %v896
      %898 = vmatmul.f32.gmra.mxu0 %v810
      %v899 = vpop.f32.mrf.mxu0
      %v900 = vadd.f32 %v831, %v899
      %901 = vdwg.mxu0
      %902 = vmatpush.msra.mxu0 0.0
      %903 = vmatpush.msra.mxu0 0.0
      %904 = vmatpush.msra.mxu0 0.0
      %905 = vmatpush.msra.mxu0 0.0
      %906 = vmatpush.msra.mxu0 0.0
      %907 = vmatpush.msra.mxu0 0.0
      %908 = vmatpush.msra.mxu0 0.0
      %909 = vmatpush.msra.mxu0 0.0
      %910 = vmatpush.msra.mxu0 0.0
      %911 = vmatpush.msra.mxu0 0.0
      %912 = vmatpush.msra.mxu0 0.0
      %913 = vmatpush.msra.mxu0 0.0
      %914 = vmatpush.msra.mxu0 0.0
      %915 = vmatpush.msra.mxu0 0.0
      %916 = vmatpush.msra.mxu0 0.0
      %917 = vmatpush.msra.mxu0 %v859
      %918 = vmatmul.f32.gmra.mxu0 %v835
      %v919 = vpop.f32.mrf.mxu0
      %v920 = vadd.f32 %v879, %v919
      %921 = vmatmul.f32.gmra.mxu0 %v838
      %v922 = vpop.f32.mrf.mxu0
      %v923 = vadd.f32 %v882, %v922
      %924 = vmatmul.f32.gmra.mxu0 %v841
      %v925 = vpop.f32.mrf.mxu0
      %v926 = vadd.f32 %v885, %v925
      %927 = vmatmul.f32.gmra.mxu0 %v844
      %v928 = vpop.f32.mrf.mxu0
      %v929 = vadd.f32 %v888, %v928
      %930 = vmatmul.f32.gmra.mxu0 %v847
      %v931 = vpop.f32.mrf.mxu0
      %v932 = vadd.f32 %v891, %v931
      %933 = vmatmul.f32.gmra.mxu0 %v850
      %v934 = vpop.f32.mrf.mxu0
      %v935 = vadd.f32 %v894, %v934
      %936 = vmatmul.f32.gmra.mxu0 %v853
      %v937 = vpop.f32.mrf.mxu0
      %v938 = vadd.f32 %v897, %v937
      %939 = vmatmul.f32.gmra.mxu0 %v856
      %v940 = vpop.f32.mrf.mxu0
      %v941 = vadd.f32 %v900, %v940
      %942 = vdwg.mxu0
      %v943 = vmul.f32 %v920, 0.01
      %v944 = vmul.f32 %v923, 0.01
      %v945 = vmul.f32 %v926, 0.01
      %v946 = vmul.f32 %v929, 0.01
      %v947 = vmul.f32 %v932, 0.01
      %v948 = vmul.f32 %v935, 0.01
      %v949 = vmul.f32 %v938, 0.01
      %v950 = vmul.f32 %v941, 0.01
      %v951 = vmax.f32 %v920, %v943
      %v952 = vmax.f32 %v923, %v944
      %v953 = vmax.f32 %v926, %v945
      %v954 = vmax.f32 %v929, %v946
      %v955 = vmax.f32 %v932, %v947
      %v956 = vmax.f32 %v935, %v948
      %v957 = vmax.f32 %v938, %v949
      %v958 = vmax.f32 %v941, %v950
      %959 = vmax.xlane.f32.xlu0 %v951
      %v960 = vpop.xlane.xlu0 %959
      %961 = vmax.xlane.f32.xlu0 %v952
      %v962 = vpop.xlane.xlu0 %961
      %963 = vmax.xlane.f32.xlu0 %v953
      %v964 = vpop.xlane.xlu0 %963
      %965 = vmax.xlane.f32.xlu0 %v954
      %v966 = vpop.xlane.xlu0 %965
      %967 = vmax.xlane.f32.xlu0 %v955
      %v968 = vpop.xlane.xlu0 %967
      %969 = vmax.xlane.f32.xlu0 %v956
      %v970 = vpop.xlane.xlu0 %969
      %971 = vmax.xlane.f32.xlu0 %v957
      %v972 = vpop.xlane.xlu0 %971
      %973 = vmax.xlane.f32.xlu0 %v958
      %v974 = vpop.xlane.xlu0 %973
      %v975 = vsub.f32 %v951, %v960
      %v976 = vsub.f32 %v952, %v962
      %v977 = vsub.f32 %v953, %v964
      %v978 = vsub.f32 %v954, %v966
      %v979 = vsub.f32 %v955, %v968
      %v980 = vsub.f32 %v956, %v970
      %v981 = vsub.f32 %v957, %v972
      %v982 = vsub.f32 %v958, %v974
      %v983 = vmul.f32 %v975, 1.442695
      %v984 = vpow.pop %v983
      %v985 = vmul.f32 %v976, 1.442695
      %v986 = vpow.pop %v985
      %v987 = vmul.f32 %v977, 1.442695
      %v988 = vpow.pop %v987
      %v989 = vmul.f32 %v978, 1.442695
      %v990 = vpow.pop %v989
      %v991 = vmul.f32 %v979, 1.442695
      %v992 = vpow.pop %v991
      %v993 = vmul.f32 %v980, 1.442695
      %v994 = vpow.pop %v993
      %v995 = vmul.f32 %v981, 1.442695
      %v996 = vpow.pop %v995
      %v997 = vmul.f32 %v982, 1.442695
      %v998 = vpow.pop %v997
      %999 = vadd.xlane.f32.xlu0 %v984
      %v1000 = vpop.xlane.xlu0 %999
      %1001 = vadd.xlane.f32.xlu0 %v986
      %v1002 = vpop.xlane.xlu0 %1001
      %1003 = vadd.xlane.f32.xlu0 %v988
      %v1004 = vpop.xlane.xlu0 %1003
      %1005 = vadd.xlane.f32.xlu0 %v990
      %v1006 = vpop.xlane.xlu0 %1005
      %1007 = vadd.xlane.f32.xlu0 %v992
      %v1008 = vpop.xlane.xlu0 %1007
      %1009 = vadd.xlane.f32.xlu0 %v994
      %v1010 = vpop.xlane.xlu0 %1009
      %1011 = vadd.xlane.f32.xlu0 %v996
      %v1012 = vpop.xlane.xlu0 %1011
      %1013 = vadd.xlane.f32.xlu0 %v998
      %v1014 = vpop.xlane.xlu0 %1013
      %v1015 = vrcp.pop %v1000
      %v1016 = vrcp.pop %v1002
      %v1017 = vrcp.pop %v1004
      %v1018 = vrcp.pop %v1006
      %v1019 = vrcp.pop %v1008
      %v1020 = vrcp.pop %v1010
      %v1021 = vrcp.pop %v1012
      %v1022 = vrcp.pop %v1014
      %v1023 = vmul.f32 %v984, %v1015
      %v1024 = vmul.f32 %v986, %v1016
      %v1025 = vmul.f32 %v988, %v1017
      %v1026 = vmul.f32 %v990, %v1018
      %v1027 = vmul.f32 %v992, %v1019
      %v1028 = vmul.f32 %v994, %v1020
      %v1029 = vmul.f32 %v996, %v1021
      %v1030 = vmul.f32 %v998, %v1022
      %v1031 = vld [vmem:[%s521] sm:$0xff]
      %v1032 = vld [vmem:[%s521 + $0x8] sm:$0xff]
      %v1033 = vld [vmem:[%s521 + $0x10] sm:$0xff]
      %v1034 = vld [vmem:[%s521 + $0x18] sm:$0xff]
      %v1035 = vld [vmem:[%s521 + $0x20] sm:$0xff]
      %v1036 = vld [vmem:[%s521 + $0x28] sm:$0xff]
      %v1037 = vld [vmem:[%s521 + $0x30] sm:$0xff]
      %v1038 = vld [vmem:[%s521 + $0x38] sm:$0xff]
      %v1039 = vmul.f32 %v1023, %v788
      %v1040 = vmul.f32 %v1024, %v789
      %v1041 = vmul.f32 %v1025, %v790
      %v1042 = vmul.f32 %v1026, %v791
      %v1043 = vmul.f32 %v1027, %v792
      %v1044 = vmul.f32 %v1028, %v793
      %v1045 = vmul.f32 %v1029, %v794
      %v1046 = vmul.f32 %v1030, %v795
      %v1047 = vadd.f32 %v1031, %v1039
      %v1048 = vadd.f32 %v1032, %v1040
      %v1049 = vadd.f32 %v1033, %v1041
      %v1050 = vadd.f32 %v1034, %v1042
      %v1051 = vadd.f32 %v1035, %v1043
      %v1052 = vadd.f32 %v1036, %v1044
      %v1053 = vadd.f32 %v1037, %v1045
      %v1054 = vadd.f32 %v1038, %v1046
      %1055 = vst [vmem:[%s521] sm:$0xff] %v1047
      %1056 = vst [vmem:[%s521 + $0x8] sm:$0xff] %v1048
      %1057 = vst [vmem:[%s521 + $0x10] sm:$0xff] %v1049
      %1058 = vst [vmem:[%s521 + $0x18] sm:$0xff] %v1050
      %1059 = vst [vmem:[%s521 + $0x20] sm:$0xff] %v1051
      %1060 = vst [vmem:[%s521 + $0x28] sm:$0xff] %v1052
      %1061 = vst [vmem:[%s521 + $0x30] sm:$0xff] %v1053
      %1062 = vst [vmem:[%s521 + $0x38] sm:$0xff] %v1054
      %s1063 = smul.u32 8, %s27
      %p1064 = scmp.lt.s32.totalorder %s26, 1
      %s1065 = scalar_select %p1064, %s26, 1
      %p1066 = scmp.lt.s32.totalorder %s1063, 7
      %s1067 = scalar_select %p1066, %s1063, 7
      %s1068 = smul.addr %s1065, 8
      %s1069 = sadd.s32 %s1067, %s1068
      %s1070 = smul.addr %s1069, 8
      %s1071 = scalar_lea.vmem %s10, %s1070
      // Predicated region
      $region65: #{gac_seg2_forward.7} parent=59 // pred_check
        %p1072 = pneg %p297
      $region66: #{gac_seg2_forward.7} parent=59 // pred_check_branch
        %1074 = sbr.rel (%p1072) target = $region68
      $region67: #{gac_seg2_forward.7} parent=59 // pred_region
        %s1075 = smul.u32 8, %s27
      $region68: #{gac_seg2_forward.7} parent=59 // pred_fallthru
        _
    $region60: #{gac_seg2_forward.7} parent=5 // pred_fallthru
      _
    %p1076 = scmp.le.s32.totalorder 2, %s16
    // Predicated region
    $region69: #{gac_seg2_forward.7} parent=5 // pred_check
      %p1077 = pneg %p1076
    $region70: #{gac_seg2_forward.7} parent=5 // pred_check_branch
      %1079 = sbr.rel (%p1077) target = $region72
    $region71: #{gac_seg2_forward.7} parent=5 // pred_region
      %s1080 = ssub.s32 %s16, 2
      // Predicated region
      $region73: #{gac_seg2_forward.7} parent=71 // pred_check
        %p1081 = pneg %p303
      $region74: #{gac_seg2_forward.7} parent=71 // pred_check_branch
        %1083 = sbr.rel (%p1081) target = $region76
      $region75: #{gac_seg2_forward.7} parent=71 // pred_region
        %s1084 = smul.u32 8, %s30
        %p1085 = scmp.lt.s32.totalorder %s29, 1
        %s1086 = scalar_select %p1085, %s29, 1
        %p1087 = scmp.lt.s32.totalorder %s1084, 7
        %s1088 = scalar_select %p1087, %s1084, 7
        %s1089 = smul.addr %s1086, 8
        %s1090 = sadd.s32 %s1088, %s1089
        %s1091 = smul.addr %s1090, 8
        %s1092 = scalar_lea.vmem %s10, %s1091
      $region76: #{gac_seg2_forward.7} parent=71 // pred_fallthru
        _
    $region72: #{gac_seg2_forward.7} parent=5 // pred_fallthru
      _
  $region6: #{gac_seg2_forward.7} parent=0 // loop_footer
    %s20 = sadd.s32 1, %s16
  $region7: #{gac_seg2_forward.7} parent=0 // loop_footer_branch
    %15 = sbr.rel target = $region3
  $region8: #{gac_seg2_forward.7} parent=0 // loop_exit
    _

// kernel: gac_seg2_forward.8
$region0: #{gac_seg2_forward.8}
  #allocation0 [shape = 'u32[]', space=smem, size = 0x4, offset = 0x4, fixed_abs, tag = 'smem constant byte address 0x4 - core index']
  #allocation1 [shape = 'u32[72,128]{1,0:T(1,128)}', space=vmem, size = 0x9000, scoped, tag = 'internal scratch']
  %s0 = inlined_call_operand.vmem [shape: f32[2,24,64,9], index: 0, kind: input, shape index: {}]
  %s1 = inlined_call_operand.vmem [shape: f32[2,24,64,256], index: 1, kind: input, shape index: {}]
  %s2 = inlined_call_operand.vmem [shape: f32[2,24,64,257], index: 2, kind: input, shape index: {}]
  %s3 = inlined_call_operand.vmem [shape: f32[9,16], index: 3, kind: input, shape index: {}]
  %s4 = inlined_call_operand.vmem [shape: f32[1,16], index: 4, kind: input, shape index: {}]
  %s5 = inlined_call_operand.vmem [shape: f32[256,256], index: 5, kind: input, shape index: {}]
  %s6 = inlined_call_operand.vmem [shape: f32[16,256], index: 6, kind: input, shape index: {}]
  %s7 = inlined_call_operand.vmem [shape: f32[1,256], index: 7, kind: input, shape index: {}]
  %s8 = inlined_call_operand.vmem [shape: f32[257,256], index: 8, kind: input, shape index: {}]
  %s9 = inlined_call_operand.vmem [shape: f32[1,256], index: 9, kind: input, shape index: {}]
  %s10 = inlined_call_operand.vmem [shape: f32[2,64,256], index: 10, kind: output, shape index: {}]
  %s11 = sld [smem:[#allocation0]]
  $region77: #{gac_seg2_forward.8} parent=0
    _
  %s13 = ssub.s32 1, %s11
  %s14 = scalar_select 0, %s13, %s11
  loop: start=0, step=1, limit=50
  $region2: #{gac_seg2_forward.8} parent=0 // loop_pre_header
    _
  $region3: #{gac_seg2_forward.8} parent=0 // loop_header
    %s16 = sphi 0, %s20
    %p17 = scmp.ge.s32.totalorder %s16, 50
    %s23 = sphi 0, %s42
    %s24 = sphi 0, %s38
    %s25 = sphi 0, %s34
    %s26 = sphi 0, %s23
    %s27 = sphi 0, %s24
    %s28 = sphi 0, %s25
    %s29 = sphi 0, %s26
    %s30 = sphi 0, %s27
    %s31 = sphi 0, %s28
    %s49 = sphi 0, %s51
    %s52 = sphi 0, %s49
    %s53 = sphi 0, %s52
    %s69 = sphi 0, %s53
    %s79 = sphi 0, %s81
    %s82 = sphi 0, %s79
    %s83 = sphi 0, %s82
    %s99 = sphi 0, %s83
    %s109 = sphi 0, %s111
    %s112 = sphi 0, %s109
    %s113 = sphi 0, %s112
    %s129 = sphi 0, %s113
    %s133 = sphi 0, %s133
    %s135 = sphi 0, %s133
    %s136 = sphi 0, %s135
    %s150 = sphi 0, %s136
    %s154 = sphi 0, %s154
    %s156 = sphi 0, %s154
    %s157 = sphi 0, %s156
    %s171 = sphi 0, %s157
    %s175 = sphi 0, %s175
    %s177 = sphi 0, %s175
    %s178 = sphi 0, %s177
    %s192 = sphi 0, %s178
    %s196 = sphi 0, %s196
    %s198 = sphi 0, %s196
    %s199 = sphi 0, %s198
    %s213 = sphi 0, %s199
    %s217 = sphi 0, %s217
    %s219 = sphi 0, %s217
    %s220 = sphi 0, %s219
    %s234 = sphi 0, %s220
    %s238 = sphi 0, %s238
    %s240 = sphi 0, %s238
    %s241 = sphi 0, %s240
    %s255 = sphi 0, %s241
    %s259 = sphi 0, %s259
    %s261 = sphi 0, %s259
    %s262 = sphi 0, %s261
    %s276 = sphi 0, %s262
    %s284 = sphi 0, %s286
    %s287 = sphi 0, %s284
    %s288 = sphi 0, %s287
    %s304 = sphi 0, %s288
  $region4: #{gac_seg2_forward.8} parent=0 // loop_header_branch
    %19 = sbr.rel (%p17) target = $region8
  $region5: #{gac_seg2_forward.8} parent=0 // loop_body
    %s21 = ssub.s32 %s16, 1
    %s22 = ssub.s32 %s16, 2
    %s32 = sadd.s32 1, %s25
    %p33 = scmp.ge.s32.totalorder %s32, 24
    %s34 = scalar_select %p33, 0, %s32
    %s35 = sadd.s32 1, %s24
    %s36 = scalar_select %p33, %s35, %s24
    %p37 = scmp.ge.s32.totalorder %s36, 1
    %s38 = scalar_select %p37, 0, %s36
    %s39 = sadd.s32 1, %s23
    %s40 = scalar_select %p37, %s39, %s23
    %p41 = scmp.ge.s32.totalorder %s40, 2
    %s42 = scalar_select %p41, 0, %s40
    %s43 = ssub.s32 %s23, %s42
    %s44 = ssub.s32 %s25, %s34
    %s45 = sor.u32 %s43, %s44
    %s46 = ssub.s32 %s24, %s38
    %s47 = sor.u32 %s45, %s46
    %p48 = scmp.eq.s32.totalorder %s47, 0
    %s50 = sadd.s32 %s49, 1
    %s51 = scalar_select %p48, %s49, %s50
    %p54 = pneg %p48
    %p55 = scmp.eq.s32.totalorder %s16, 47
    %p56 = por %p54, %p55
    %p57 = scmp.ne.s32.totalorder %s49, %s52
    %p58 = scmp.eq.s32.totalorder %s16, 0
    %p59 = por %p57, %p58
    %p60 = scmp.ne.s32.totalorder %s49, %s52
    %p61 = scmp.eq.s32.totalorder %s21, 47
    %p62 = por %p60, %p61
    %p63 = scmp.ne.s32.totalorder %s52, %s53
    %p64 = scmp.eq.s32.totalorder %s21, 0
    %p65 = por %p63, %p64
    %p66 = scmp.ne.s32.totalorder %s52, %s53
    %p67 = scmp.eq.s32.totalorder %s22, 47
    %p68 = por %p66, %p67
    %p70 = scmp.ne.s32.totalorder %s53, %s69
    %p71 = scmp.eq.s32.totalorder %s22, 0
    %p72 = por %p70, %p71
    %s73 = ssub.s32 %s23, %s42
    %s74 = ssub.s32 %s25, %s34
    %s75 = sor.u32 %s73, %s74
    %s76 = ssub.s32 %s24, %s38
    %s77 = sor.u32 %s75, %s76
    %p78 = scmp.eq.s32.totalorder %s77, 0
    %s80 = sadd.s32 %s79, 1
    %s81 = scalar_select %p78, %s79, %s80
    %p84 = pneg %p78
    %p85 = scmp.eq.s32.totalorder %s16, 47
    %p86 = por %p84, %p85
    %p87 = scmp.ne.s32.totalorder %s79, %s82
    %p88 = scmp.eq.s32.totalorder %s16, 0
    %p89 = por %p87, %p88
    %p90 = scmp.ne.s32.totalorder %s79, %s82
    %p91 = scmp.eq.s32.totalorder %s21, 47
    %p92 = por %p90, %p91
    %p93 = scmp.ne.s32.totalorder %s82, %s83
    %p94 = scmp.eq.s32.totalorder %s21, 0
    %p95 = por %p93, %p94
    %p96 = scmp.ne.s32.totalorder %s82, %s83
    %p97 = scmp.eq.s32.totalorder %s22, 47
    %p98 = por %p96, %p97
    %p100 = scmp.ne.s32.totalorder %s83, %s99
    %p101 = scmp.eq.s32.totalorder %s22, 0
    %p102 = por %p100, %p101
    %s103 = ssub.s32 %s23, %s42
    %s104 = ssub.s32 %s25, %s34
    %s105 = sor.u32 %s103, %s104
    %s106 = ssub.s32 %s24, %s38
    %s107 = sor.u32 %s105, %s106
    %p108 = scmp.eq.s32.totalorder %s107, 0
    %s110 = sadd.s32 %s109, 1
    %s111 = scalar_select %p108, %s109, %s110
    %p114 = pneg %p108
    %p115 = scmp.eq.s32.totalorder %s16, 47
    %p116 = por %p114, %p115
    %p117 = scmp.ne.s32.totalorder %s109, %s112
    %p118 = scmp.eq.s32.totalorder %s16, 0
    %p119 = por %p117, %p118
    %p120 = scmp.ne.s32.totalorder %s109, %s112
    %p121 = scmp.eq.s32.totalorder %s21, 47
    %p122 = por %p120, %p121
    %p123 = scmp.ne.s32.totalorder %s112, %s113
    %p124 = scmp.eq.s32.totalorder %s21, 0
    %p125 = por %p123, %p124
    %p126 = scmp.ne.s32.totalorder %s112, %s113
    %p127 = scmp.eq.s32.totalorder %s22, 47
    %p128 = por %p126, %p127
    %p130 = scmp.ne.s32.totalorder %s113, %s129
    %p131 = scmp.eq.s32.totalorder %s22, 0
    %p132 = por %p130, %p131
    %s134 = sadd.s32 %s133, 1
    %p137 = scmp.eq.s32.totalorder %s16, 47
    %p138 = scmp.ne.s32.totalorder %s133, %s135
    %p139 = scmp.eq.s32.totalorder %s16, 0
    %p140 = por %p138, %p139
    %p141 = scmp.ne.s32.totalorder %s133, %s135
    %p142 = scmp.eq.s32.totalorder %s21, 47
    %p143 = por %p141, %p142
    %p144 = scmp.ne.s32.totalorder %s135, %s136
    %p145 = scmp.eq.s32.totalorder %s21, 0
    %p146 = por %p144, %p145
    %p147 = scmp.ne.s32.totalorder %s135, %s136
    %p148 = scmp.eq.s32.totalorder %s22, 47
    %p149 = por %p147, %p148
    %p151 = scmp.ne.s32.totalorder %s136, %s150
    %p152 = scmp.eq.s32.totalorder %s22, 0
    %p153 = por %p151, %p152
    %s155 = sadd.s32 %s154, 1
    %p158 = scmp.eq.s32.totalorder %s16, 47
    %p159 = scmp.ne.s32.totalorder %s154, %s156
    %p160 = scmp.eq.s32.totalorder %s16, 0
    %p161 = por %p159, %p160
    %p162 = scmp.ne.s32.totalorder %s154, %s156
    %p163 = scmp.eq.s32.totalorder %s21, 47
    %p164 = por %p162, %p163
    %p165 = scmp.ne.s32.totalorder %s156, %s157
    %p166 = scmp.eq.s32.totalorder %s21, 0
    %p167 = por %p165, %p166
    %p168 = scmp.ne.s32.totalorder %s156, %s157
    %p169 = scmp.eq.s32.totalorder %s22, 47
    %p170 = por %p168, %p169
    %p172 = scmp.ne.s32.totalorder %s157, %s171
    %p173 = scmp.eq.s32.totalorder %s22, 0
    %p174 = por %p172, %p173
    %s176 = sadd.s32 %s175, 1
    %p179 = scmp.eq.s32.totalorder %s16, 47
    %p180 = scmp.ne.s32.totalorder %s175, %s177
    %p181 = scmp.eq.s32.totalorder %s16, 0
    %p182 = por %p180, %p181
    %p183 = scmp.ne.s32.totalorder %s175, %s177
    %p184 = scmp.eq.s32.totalorder %s21, 47
    %p185 = por %p183, %p184
    %p186 = scmp.ne.s32.totalorder %s177, %s178
    %p187 = scmp.eq.s32.totalorder %s21, 0
    %p188 = por %p186, %p187
    %p189 = scmp.ne.s32.totalorder %s177, %s178
    %p190 = scmp.eq.s32.totalorder %s22, 47
    %p191 = por %p189, %p190
    %p193 = scmp.ne.s32.totalorder %s178, %s192
    %p194 = scmp.eq.s32.totalorder %s22, 0
    %p195 = por %p193, %p194
    %s197 = sadd.s32 %s196, 1
    %p200 = scmp.eq.s32.totalorder %s16, 47
    %p201 = scmp.ne.s32.totalorder %s196, %s198
    %p202 = scmp.eq.s32.totalorder %s16, 0
    %p203 = por %p201, %p202
    %p204 = scmp.ne.s32.totalorder %s196, %s198
    %p205 = scmp.eq.s32.totalorder %s21, 47
    %p206 = por %p204, %p205
    %p207 = scmp.ne.s32.totalorder %s198, %s199
    %p208 = scmp.eq.s32.totalorder %s21, 0
    %p209 = por %p207, %p208
    %p210 = scmp.ne.s32.totalorder %s198, %s199
    %p211 = scmp.eq.s32.totalorder %s22, 47
    %p212 = por %p210, %p211
    %p214 = scmp.ne.s32.totalorder %s199, %s213
    %p215 = scmp.eq.s32.totalorder %s22, 0
    %p216 = por %p214, %p215
    %s218 = sadd.s32 %s217, 1
    %p221 = scmp.eq.s32.totalorder %s16, 47
    %p222 = scmp.ne.s32.totalorder %s217, %s219
    %p223 = scmp.eq.s32.totalorder %s16, 0
    %p224 = por %p222, %p223
    %p225 = scmp.ne.s32.totalorder %s217, %s219
    %p226 = scmp.eq.s32.totalorder %s21, 47
    %p227 = por %p225, %p226
    %p228 = scmp.ne.s32.totalorder %s219, %s220
    %p229 = scmp.eq.s32.totalorder %s21, 0
    %p230 = por %p228, %p229
    %p231 = scmp.ne.s32.totalorder %s219, %s220
    %p232 = scmp.eq.s32.totalorder %s22, 47
    %p233 = por %p231, %p232
    %p235 = scmp.ne.s32.totalorder %s220, %s234
    %p236 = scmp.eq.s32.totalorder %s22, 0
    %p237 = por %p235, %p236
    %s239 = sadd.s32 %s238, 1
    %p242 = scmp.eq.s32.totalorder %s16, 47
    %p243 = scmp.ne.s32.totalorder %s238, %s240
    %p244 = scmp.eq.s32.totalorder %s16, 0
    %p245 = por %p243, %p244
    %p246 = scmp.ne.s32.totalorder %s238, %s240
    %p247 = scmp.eq.s32.totalorder %s21, 47
    %p248 = por %p246, %p247
    %p249 = scmp.ne.s32.totalorder %s240, %s241
    %p250 = scmp.eq.s32.totalorder %s21, 0
    %p251 = por %p249, %p250
    %p252 = scmp.ne.s32.totalorder %s240, %s241
    %p253 = scmp.eq.s32.totalorder %s22, 47
    %p254 = por %p252, %p253
    %p256 = scmp.ne.s32.totalorder %s241, %s255
    %p257 = scmp.eq.s32.totalorder %s22, 0
    %p258 = por %p256, %p257
    %s260 = sadd.s32 %s259, 1
    %p263 = scmp.eq.s32.totalorder %s16, 47
    %p264 = scmp.ne.s32.totalorder %s259, %s261
    %p265 = scmp.eq.s32.totalorder %s16, 0
    %p266 = por %p264, %p265
    %p267 = scmp.ne.s32.totalorder %s259, %s261
    %p268 = scmp.eq.s32.totalorder %s21, 47
    %p269 = por %p267, %p268
    %p270 = scmp.ne.s32.totalorder %s261, %s262
    %p271 = scmp.eq.s32.totalorder %s21, 0
    %p272 = por %p270, %p271
    %p273 = scmp.ne.s32.totalorder %s261, %s262
    %p274 = scmp.eq.s32.totalorder %s22, 47
    %p275 = por %p273, %p274
    %p277 = scmp.ne.s32.totalorder %s262, %s276
    %p278 = scmp.eq.s32.totalorder %s22, 0
    %p279 = por %p277, %p278
    %s280 = ssub.s32 %s23, %s42
    %s281 = ssub.s32 %s24, %s38
    %s282 = sor.u32 %s280, %s281
    %p283 = scmp.eq.s32.totalorder %s282, 0
    %s285 = sadd.s32 %s284, 1
    %s286 = scalar_select %p283, %s284, %s285
    %p289 = pneg %p283
    %p290 = scmp.eq.s32.totalorder %s16, 47
    %p291 = por %p289, %p290
    %p292 = scmp.ne.s32.totalorder %s284, %s287
    %p293 = scmp.eq.s32.totalorder %s16, 0
    %p294 = por %p292, %p293
    %p295 = scmp.ne.s32.totalorder %s284, %s287
    %p296 = scmp.eq.s32.totalorder %s21, 47
    %p297 = por %p295, %p296
    %p298 = scmp.ne.s32.totalorder %s287, %s288
    %p299 = scmp.eq.s32.totalorder %s21, 0
    %p300 = por %p298, %p299
    %p301 = scmp.ne.s32.totalorder %s287, %s288
    %p302 = scmp.eq.s32.totalorder %s22, 47
    %p303 = por %p301, %p302
    %p305 = scmp.ne.s32.totalorder %s288, %s304
    %p306 = scmp.eq.s32.totalorder %s22, 0
    %p307 = por %p305, %p306
    %p308 = scmp.le.s32.totalorder 1, %s16
    %p309 = scmp.lt.s32.totalorder %s16, 49
    %p310 = pnand %p308, %p309
    %p311 = pneg %p310
    // Predicated region
    $region9: #{gac_seg2_forward.8} parent=5 // pred_check
      _
    $region10: #{gac_seg2_forward.8} parent=5 // pred_check_branch
      %313 = sbr.rel (%p310) target = $region12
    $region11: #{gac_seg2_forward.8} parent=5 // pred_region
      %s314 = ssub.s32 %s16, 1
      // Predicated region
      $region13: #{gac_seg2_forward.8} parent=11 // pred_check
        %p315 = pneg %p146
      $region14: #{gac_seg2_forward.8} parent=11 // pred_check_branch
        %317 = sbr.rel (%p315) target = $region16
      $region15: #{gac_seg2_forward.8} parent=11 // pred_region
        _
      $region16: #{gac_seg2_forward.8} parent=11 // pred_fallthru
        _
      // Predicated region
      $region17: #{gac_seg2_forward.8} parent=11 // pred_check
        %p318 = pneg %p167
      $region18: #{gac_seg2_forward.8} parent=11 // pred_check_branch
        %320 = sbr.rel (%p318) target = $region20
      $region19: #{gac_seg2_forward.8} parent=11 // pred_region
        _
      $region20: #{gac_seg2_forward.8} parent=11 // pred_fallthru
        _
      // Predicated region
      $region21: #{gac_seg2_forward.8} parent=11 // pred_check
        %p321 = pneg %p188
      $region22: #{gac_seg2_forward.8} parent=11 // pred_check_branch
        %323 = sbr.rel (%p321) target = $region24
      $region23: #{gac_seg2_forward.8} parent=11 // pred_region
        _
      $region24: #{gac_seg2_forward.8} parent=11 // pred_fallthru
        _
      // Predicated region
      $region25: #{gac_seg2_forward.8} parent=11 // pred_check
        %p324 = pneg %p209
      $region26: #{gac_seg2_forward.8} parent=11 // pred_check_branch
        %326 = sbr.rel (%p324) target = $region28
      $region27: #{gac_seg2_forward.8} parent=11 // pred_region
        _
      $region28: #{gac_seg2_forward.8} parent=11 // pred_fallthru
        _
      // Predicated region
      $region29: #{gac_seg2_forward.8} parent=11 // pred_check
        %p327 = pneg %p230
      $region30: #{gac_seg2_forward.8} parent=11 // pred_check_branch
        %329 = sbr.rel (%p327) target = $region32
      $region31: #{gac_seg2_forward.8} parent=11 // pred_region
        _
      $region32: #{gac_seg2_forward.8} parent=11 // pred_fallthru
        _
      // Predicated region
      $region33: #{gac_seg2_forward.8} parent=11 // pred_check
        %p330 = pneg %p251
      $region34: #{gac_seg2_forward.8} parent=11 // pred_check_branch
        %332 = sbr.rel (%p330) target = $region36
      $region35: #{gac_seg2_forward.8} parent=11 // pred_region
        _
      $region36: #{gac_seg2_forward.8} parent=11 // pred_fallthru
        _
      // Predicated region
      $region37: #{gac_seg2_forward.8} parent=11 // pred_check
        %p333 = pneg %p272
      $region38: #{gac_seg2_forward.8} parent=11 // pred_check_branch
        %335 = sbr.rel (%p333) target = $region40
      $region39: #{gac_seg2_forward.8} parent=11 // pred_region
        _
      $region40: #{gac_seg2_forward.8} parent=11 // pred_fallthru
        _
    $region12: #{gac_seg2_forward.8} parent=5 // pred_fallthru
      _
    %p336 = scmp.lt.s32.totalorder %s16, 48
    // Predicated region
    $region41: #{gac_seg2_forward.8} parent=5 // pred_check
      %p337 = pneg %p336
    $region42: #{gac_seg2_forward.8} parent=5 // pred_check_branch
      %339 = sbr.rel (%p337) target = $region44
    $region43: #{gac_seg2_forward.8} parent=5 // pred_region
      // Predicated region
      $region45: #{gac_seg2_forward.8} parent=43 // pred_check
        %p340 = pneg %p59
      $region46: #{gac_seg2_forward.8} parent=43 // pred_check_branch
        %342 = sbr.rel (%p340) target = $region48
      $region47: #{gac_seg2_forward.8} parent=43 // pred_region
        %s343 = smul.u32 8, %s24
        %p344 = scmp.lt.s32.totalorder %s23, 1
        %s345 = scalar_select %p344, %s23, 1
        %p346 = scmp.lt.s32.totalorder %s25, 23
        %s347 = scalar_select %p346, %s25, 23
        %p348 = scmp.lt.s32.totalorder %s343, 7
        %s349 = scalar_select %p348, %s343, 7
        %s350 = smul.addr %s347, 8
        %s351 = sadd.s32 %s349, %s350
        %s352 = smul.addr %s345, 192
        %s353 = sadd.s32 %s351, %s352
        %s354 = smul.addr %s353, 8
        %s355 = scalar_lea.vmem %s0, %s354
        %s356 = smul.u32 8, %s24
      $region48: #{gac_seg2_forward.8} parent=43 // pred_fallthru
        _
      // Predicated region
      $region49: #{gac_seg2_forward.8} parent=43 // pred_check
        %p357 = pneg %p89
      $region50: #{gac_seg2_forward.8} parent=43 // pred_check_branch
        %359 = sbr.rel (%p357) target = $region52
      $region51: #{gac_seg2_forward.8} parent=43 // pred_region
        %s360 = smul.u32 8, %s24
        %p361 = scmp.lt.s32.totalorder %s23, 1
        %s362 = scalar_select %p361, %s23, 1
        %p363 = scmp.lt.s32.totalorder %s25, 23
        %s364 = scalar_select %p363, %s25, 23
        %p365 = scmp.lt.s32.totalorder %s360, 7
        %s366 = scalar_select %p365, %s360, 7
        %s367 = smul.addr %s366, 2
        %s368 = smul.addr %s364, 16
        %s369 = sadd.s32 %s367, %s368
        %s370 = smul.addr %s362, 384
        %s371 = sadd.s32 %s369, %s370
        %s372 = smul.addr %s371, 8
        %s373 = scalar_lea.vmem %s1, %s372
        %s374 = smul.u32 8, %s24
      $region52: #{gac_seg2_forward.8} parent=43 // pred_fallthru
        _
      // Predicated region
      $region53: #{gac_seg2_forward.8} parent=43 // pred_check
        %p375 = pneg %p119
      $region54: #{gac_seg2_forward.8} parent=43 // pred_check_branch
        %377 = sbr.rel (%p375) target = $region56
      $region55: #{gac_seg2_forward.8} parent=43 // pred_region
        %s378 = smul.u32 8, %s24
        %p379 = scmp.lt.s32.totalorder %s23, 1
        %s380 = scalar_select %p379, %s23, 1
        %p381 = scmp.lt.s32.totalorder %s25, 23
        %s382 = scalar_select %p381, %s25, 23
        %p383 = scmp.lt.s32.totalorder %s378, 7
        %s384 = scalar_select %p383, %s378, 7
        %s385 = smul.addr %s384, 3
        %s386 = smul.addr %s382, 24
        %s387 = sadd.s32 %s385, %s386
        %s388 = smul.addr %s380, 576
        %s389 = sadd.s32 %s387, %s388
        %s390 = smul.addr %s389, 8
        %s391 = scalar_lea.vmem %s2, %s390
        %s392 = smul.u32 8, %s24
      $region56: #{gac_seg2_forward.8} parent=43 // pred_fallthru
        _
    $region44: #{gac_seg2_forward.8} parent=5 // pred_fallthru
      _
    %p393 = scmp.le.s32.totalorder 1, %s16
    %p394 = scmp.lt.s32.totalorder %s16, 49
    %p395 = pnand %p393, %p394
    %p396 = pneg %p395
    // Predicated region
    $region57: #{gac_seg2_forward.8} parent=5 // pred_check
      _
    $region58: #{gac_seg2_forward.8} parent=5 // pred_check_branch
      %398 = sbr.rel (%p395) target = $region60
    $region59: #{gac_seg2_forward.8} parent=5 // pred_region
      %s399 = ssub.s32 %s16, 1
      %s400 = smul.u32 8, %s27
      %p401 = scmp.lt.s32.totalorder %s26, 1
      %s402 = scalar_select %p401, %s26, 1
      %p403 = scmp.lt.s32.totalorder %s28, 23
      %s404 = scalar_select %p403, %s28, 23
      %p405 = scmp.lt.s32.totalorder %s400, 7
      %s406 = scalar_select %p405, %s400, 7
      %s407 = smul.addr %s404, 8
      %s408 = sadd.s32 %s406, %s407
      %s409 = smul.addr %s402, 192
      %s410 = sadd.s32 %s408, %s409
      %s411 = smul.addr %s410, 8
      %s412 = scalar_lea.vmem %s0, %s411
      %p413 = pneg %p65
      %p414 = pneg %p62
      %s415 = smul.u32 8, %s27
      %p416 = scmp.lt.s32.totalorder %s26, 1
      %s417 = scalar_select %p416, %s26, 1
      %p418 = scmp.lt.s32.totalorder %s28, 23
      %s419 = scalar_select %p418, %s28, 23
      %p420 = scmp.lt.s32.totalorder %s415, 7
      %s421 = scalar_select %p420, %s415, 7
      %s422 = smul.addr %s421, 2
      %s423 = smul.addr %s419, 16
      %s424 = sadd.s32 %s422, %s423
      %s425 = smul.addr %s417, 384
      %s426 = sadd.s32 %s424, %s425
      %s427 = smul.addr %s426, 8
      %s428 = scalar_lea.vmem %s1, %s427
      %p429 = pneg %p95
      %p430 = pneg %p92
      %s431 = smul.u32 8, %s27
      %p432 = scmp.lt.s32.totalorder %s26, 1
      %s433 = scalar_select %p432, %s26, 1
      %p434 = scmp.lt.s32.totalorder %s28, 23
      %s435 = scalar_select %p434, %s28, 23
      %p436 = scmp.lt.s32.totalorder %s431, 7
      %s437 = scalar_select %p436, %s431, 7
      %s438 = smul.addr %s437, 3
      %s439 = smul.addr %s435, 24
      %s440 = sadd.s32 %s438, %s439
      %s441 = smul.addr %s433, 576
      %s442 = sadd.s32 %s440, %s441
      %s443 = smul.addr %s442, 8
      %s444 = scalar_lea.vmem %s2, %s443
      %p445 = pneg %p125
      %p446 = pneg %p122
      %p447 = pneg %p146
      %p448 = pneg %p143
      %p449 = pneg %p167
      %p450 = pneg %p164
      %p451 = pneg %p188
      %p452 = pneg %p185
      %p453 = pneg %p209
      %p454 = pneg %p206
      %p455 = pneg %p230
      %p456 = pneg %p227
      %p457 = pneg %p251
      %p458 = pneg %p248
      %p459 = pneg %p272
      %p460 = pneg %p269
      %p461 = pneg %p300
      %p462 = pneg %p297
      %s463 = smul.u32 8, %s27
      %p464 = scmp.lt.s32.totalorder %s26, 1
      %s465 = scalar_select %p464, %s26, 1
      %p466 = scmp.lt.s32.totalorder %s463, 7
      %s467 = scalar_select %p466, %s463, 7
      %s468 = smul.addr %s467, 2
      %s469 = smul.addr %s465, 16
      %s470 = sadd.s32 %s468, %s469
      %s471 = smul.addr %s470, 8
      %s472 = scalar_lea.vmem %s10, %s471
      %s473 = smul.u32 8, %s27
      %p474 = scmp.lt.s32.totalorder %s26, 1
      %s475 = scalar_select %p474, %s26, 1
      %p476 = scmp.lt.s32.totalorder %s28, 23
      %s477 = scalar_select %p476, %s28, 23
      %p478 = scmp.lt.s32.totalorder %s473, 7
      %s479 = scalar_select %p478, %s473, 7
      %s480 = smul.addr %s477, 8
      %s481 = sadd.s32 %s479, %s480
      %s482 = smul.addr %s475, 192
      %s483 = sadd.s32 %s481, %s482
      %s484 = smul.addr %s483, 8
      %s485 = scalar_lea.vmem %s0, %s484
      %s486 = smul.u32 8, %s27
      %s487 = smul.u32 8, %s27
      %p488 = scmp.lt.s32.totalorder %s26, 1
      %s489 = scalar_select %p488, %s26, 1
      %p490 = scmp.lt.s32.totalorder %s28, 23
      %s491 = scalar_select %p490, %s28, 23
      %p492 = scmp.lt.s32.totalorder %s487, 7
      %s493 = scalar_select %p492, %s487, 7
      %s494 = smul.addr %s493, 2
      %s495 = smul.addr %s491, 16
      %s496 = sadd.s32 %s494, %s495
      %s497 = smul.addr %s489, 384
      %s498 = sadd.s32 %s496, %s497
      %s499 = smul.addr %s498, 8
      %s500 = scalar_lea.vmem %s1, %s499
      %s501 = smul.u32 8, %s27
      %s502 = smul.u32 8, %s27
      %p503 = scmp.lt.s32.totalorder %s26, 1
      %s504 = scalar_select %p503, %s26, 1
      %p505 = scmp.lt.s32.totalorder %s28, 23
      %s506 = scalar_select %p505, %s28, 23
      %p507 = scmp.lt.s32.totalorder %s502, 7
      %s508 = scalar_select %p507, %s502, 7
      %s509 = smul.addr %s508, 3
      %s510 = smul.addr %s506, 24
      %s511 = sadd.s32 %s509, %s510
      %s512 = smul.addr %s504, 576
      %s513 = sadd.s32 %s511, %s512
      %s514 = smul.addr %s513, 8
      %s515 = scalar_lea.vmem %s2, %s514
      %s516 = smul.u32 8, %s27
      %s517 = smul.u32 8, %s27
      %p518 = scmp.lt.s32.totalorder %s26, 1
      %s519 = scalar_select %p518, %s26, 1
      %p520 = scmp.lt.s32.totalorder %s517, 7
      %s521 = scalar_select %p520, %s517, 7
      %s522 = smul.addr %s521, 2
      %s523 = smul.addr %s519, 16
      %s524 = sadd.s32 %s522, %s523
      %s525 = smul.addr %s524, 8
      %s526 = scalar_lea.vmem %s10, %s525
      %s527 = smul.u32 8, %s27
      %p528 = scmp.eq.s32.totalorder %s28, 0
      // Predicated region
      $region61: #{gac_seg2_forward.8} parent=59 // pred_check
        %p529 = pneg %p528
      $region62: #{gac_seg2_forward.8} parent=59 // pred_check_branch
        %531 = sbr.rel (%p529) target = $region64
      $region63: #{gac_seg2_forward.8} parent=59 // pred_region
        %532 = vst [vmem:[%s526] sm:$0xff] 0.0
        %533 = vst [vmem:[%s526 + $0x8] sm:$0xff] 0.0
        %534 = vst [vmem:[%s526 + $0x10] sm:$0xff] 0.0
        %535 = vst [vmem:[%s526 + $0x18] sm:$0xff] 0.0
        %536 = vst [vmem:[%s526 + $0x20] sm:$0xff] 0.0
        %537 = vst [vmem:[%s526 + $0x28] sm:$0xff] 0.0
        %538 = vst [vmem:[%s526 + $0x30] sm:$0xff] 0.0
        %539 = vst [vmem:[%s526 + $0x38] sm:$0xff] 0.0
        %540 = vst [vmem:[%s526 + $0x40] sm:$0xff] 0.0
        %541 = vst [vmem:[%s526 + $0x48] sm:$0xff] 0.0
        %542 = vst [vmem:[%s526 + $0x50] sm:$0xff] 0.0
        %543 = vst [vmem:[%s526 + $0x58] sm:$0xff] 0.0
        %544 = vst [vmem:[%s526 + $0x60] sm:$0xff] 0.0
        %545 = vst [vmem:[%s526 + $0x68] sm:$0xff] 0.0
        %546 = vst [vmem:[%s526 + $0x70] sm:$0xff] 0.0
        %547 = vst [vmem:[%s526 + $0x78] sm:$0xff] 0.0
      $region64: #{gac_seg2_forward.8} parent=59 // pred_fallthru
        _
      %v548 = vld [vmem:[%s485] sm:$0xff]
      %v549 = vld [vmem:[%s485 + $0x8] sm:$0xff]
      %v550 = vld [vmem:[%s485 + $0x10] sm:$0xff]
      %v551 = vld [vmem:[%s485 + $0x18] sm:$0xff]
      %v552 = vld [vmem:[%s485 + $0x20] sm:$0xff]
      %v553 = vld [vmem:[%s485 + $0x28] sm:$0xff]
      %v554 = vld [vmem:[%s485 + $0x30] sm:$0xff]
      %v555 = vld [vmem:[%s485 + $0x38] sm:$0xff]
      %v556 = vld [vmem:[%s3] sm:$0xff]
      %v557 = vld [vmem:[%s3 + $0x8] sm:$0x1]
      %v558 = vld [vmem:[%s4] sm:$0x1]
      %v560 = vperm.slane %v558, 0
      %vm562 = vcmask 72704
      %v564 = vsel %vm562, %v548, 0
      %v567 = vsel %vm562, %v549, 0
      %v570 = vsel %vm562, %v550, 0
      %v573 = vsel %vm562, %v551, 0
      %v576 = vsel %vm562, %v552, 0
      %v579 = vsel %vm562, %v553, 0
      %v582 = vsel %vm562, %v554, 0
      %v585 = vsel %vm562, %v555, 0
      %vm587 = vcmask 1040384
      %v589 = vsel %vm587, %v557, 0
      %591 = vmatpush.msra.mxu0 0.0
      %592 = vmatpush.msra.mxu0 0.0
      %593 = vmatpush.msra.mxu0 0.0
      %594 = vmatpush.msra.mxu0 0.0
      %595 = vmatpush.msra.mxu0 0.0
      %596 = vmatpush.msra.mxu0 0.0
      %597 = vmatpush.msra.mxu0 0.0
      %598 = vmatpush.msra.mxu0 0.0
      %599 = vmatpush.msra.mxu0 0.0
      %600 = vmatpush.msra.mxu0 0.0
      %601 = vmatpush.msra.mxu0 0.0
      %602 = vmatpush.msra.mxu0 0.0
      %603 = vmatpush.msra.mxu0 0.0
      %604 = vmatpush.msra.mxu0 0.0
      %605 = vmatpush.msra.mxu0 %v589
      %606 = vmatpush.msra.mxu0 %v556
      %607 = vmatmul.f32.gmra.mxu0 %v564
      %v608 = vpop.f32.mrf.mxu0
      %v609 = vadd.f32 %v560, %v608
      %610 = vmatmul.f32.gmra.mxu0 %v567
      %v611 = vpop.f32.mrf.mxu0
      %v612 = vadd.f32 %v560, %v611
      %613 = vmatmul.f32.gmra.mxu0 %v570
      %v614 = vpop.f32.mrf.mxu0
      %v615 = vadd.f32 %v560, %v614
      %616 = vmatmul.f32.gmra.mxu0 %v573
      %v617 = vpop.f32.mrf.mxu0
      %v618 = vadd.f32 %v560, %v617
      %619 = vmatmul.f32.gmra.mxu0 %v576
      %v620 = vpop.f32.mrf.mxu0
      %v621 = vadd.f32 %v560, %v620
      %622 = vmatmul.f32.gmra.mxu0 %v579
      %v623 = vpop.f32.mrf.mxu0
      %v624 = vadd.f32 %v560, %v623
      %625 = vmatmul.f32.gmra.mxu0 %v582
      %v626 = vpop.f32.mrf.mxu0
      %v627 = vadd.f32 %v560, %v626
      %628 = vmatmul.f32.gmra.mxu0 %v585
      %v629 = vpop.f32.mrf.mxu0
      %v630 = vadd.f32 %v560, %v629
      %631 = vdwg.mxu0
      %v632 = vmul.f32 %v609, 0.01
      %v633 = vmul.f32 %v612, 0.01
      %v634 = vmul.f32 %v615, 0.01
      %v635 = vmul.f32 %v618, 0.01
      %v636 = vmul.f32 %v621, 0.01
      %v637 = vmul.f32 %v624, 0.01
      %v638 = vmul.f32 %v627, 0.01
      %v639 = vmul.f32 %v630, 0.01
      %v640 = vmax.f32 %v609, %v632
      %v641 = vmax.f32 %v612, %v633
      %v642 = vmax.f32 %v615, %v634
      %v643 = vmax.f32 %v618, %v635
      %v644 = vmax.f32 %v621, %v636
      %v645 = vmax.f32 %v624, %v637
      %v646 = vmax.f32 %v627, %v638
      %v647 = vmax.f32 %v630, %v639
      %v648 = vld [vmem:[%s500] sm:$0xff]
      %v649 = vld [vmem:[%s500 + $0x8] sm:$0xff]
      %v650 = vld [vmem:[%s500 + $0x10] sm:$0xff]
      %v651 = vld [vmem:[%s500 + $0x18] sm:$0xff]
      %v652 = vld [vmem:[%s500 + $0x20] sm:$0xff]
      %v653 = vld [vmem:[%s500 + $0x28] sm:$0xff]
      %v654 = vld [vmem:[%s500 + $0x30] sm:$0xff]
      %v655 = vld [vmem:[%s500 + $0x38] sm:$0xff]
      %v656 = vld [vmem:[%s500 + $0x40] sm:$0xff]
      %v657 = vld [vmem:[%s500 + $0x48] sm:$0xff]
      %v658 = vld [vmem:[%s500 + $0x50] sm:$0xff]
      %v659 = vld [vmem:[%s500 + $0x58] sm:$0xff]
      %v660 = vld [vmem:[%s500 + $0x60] sm:$0xff]
      %v661 = vld [vmem:[%s500 + $0x68] sm:$0xff]
      %v662 = vld [vmem:[%s500 + $0x70] sm:$0xff]
      %v663 = vld [vmem:[%s500 + $0x78] sm:$0xff]
      %v664 = vld [vmem:[%s5] sm:$0xff]
      %v665 = vld [vmem:[%s5 + $0x8] sm:$0xff]
      %v666 = vld [vmem:[%s5 + $0x10] sm:$0xff]
      %v667 = vld [vmem:[%s5 + $0x18] sm:$0xff]
      %v668 = vld [vmem:[%s5 + $0x20] sm:$0xff]
      %v669 = vld [vmem:[%s5 + $0x28] sm:$0xff]
      %v670 = vld [vmem:[%s5 + $0x30] sm:$0xff]
      %v671 = vld [vmem:[%s5 + $0x38] sm:$0xff]
      %v672 = vld [vmem:[%s5 + $0x40] sm:$0xff]
      %v673 = vld [vmem:[%s5 + $0x48] sm:$0xff]
      %v674 = vld [vmem:[%s5 + $0x50] sm:$0xff]
      %v675 = vld [vmem:[%s5 + $0x58] sm:$0xff]
      %v676 = vld [vmem:[%s5 + $0x60] sm:$0xff]
      %v677 = vld [vmem:[%s5 + $0x68] sm:$0xff]
      %v678 = vld [vmem:[%s5 + $0x70] sm:$0xff]
      %v679 = vld [vmem:[%s5 + $0x78] sm:$0xff]
      %v680 = vld [vmem:[%s5 + $0x80] sm:$0xff]
      %v681 = vld [vmem:[%s5 + $0x88] sm:$0xff]
      %v682 = vld [vmem:[%s5 + $0x90] sm:$0xff]
      %v683 = vld [vmem:[%s5 + $0x98] sm:$0xff]
      %v684 = vld [vmem:[%s5 + $0xa0] sm:$0xff]
      %v685 = vld [vmem:[%s5 + $0xa8] sm:$0xff]
      %v686 = vld [vmem:[%s5 + $0xb0] sm:$0xff]
      %v687 = vld [vmem:[%s5 + $0xb8] sm:$0xff]
      %v688 = vld [vmem:[%s5 + $0xc0] sm:$0xff]
      %v689 = vld [vmem:[%s5 + $0xc8] sm:$0xff]
      %v690 = vld [vmem:[%s5 + $0xd0] sm:$0xff]
      %v691 = vld [vmem:[%s5 + $0xd8] sm:$0xff]
      %v692 = vld [vmem:[%s5 + $0xe0] sm:$0xff]
      %v693 = vld [vmem:[%s5 + $0xe8] sm:$0xff]
      %v694 = vld [vmem:[%s5 + $0xf0] sm:$0xff]
      %v695 = vld [vmem:[%s5 + $0xf8] sm:$0xff]
      %v696 = vld [vmem:[%s5 + $0x100] sm:$0xff]
      %v697 = vld [vmem:[%s5 + $0x108] sm:$0xff]
      %v698 = vld [vmem:[%s5 + $0x110] sm:$0xff]
      %v699 = vld [vmem:[%s5 + $0x118] sm:$0xff]
      %v700 = vld [vmem:[%s5 + $0x120] sm:$0xff]
      %v701 = vld [vmem:[%s5 + $0x128] sm:$0xff]
      %v702 = vld [vmem:[%s5 + $0x130] sm:$0xff]
      %v703 = vld [vmem:[%s5 + $0x138] sm:$0xff]
      %v704 = vld [vmem:[%s5 + $0x140] sm:$0xff]
      %v705 = vld [vmem:[%s5 + $0x148] sm:$0xff]
      %v706 = vld [vmem:[%s5 + $0x150] sm:$0xff]
      %v707 = vld [vmem:[%s5 + $0x158] sm:$0xff]
      %v708 = vld [vmem:[%s5 + $0x160] sm:$0xff]
      %v709 = vld [vmem:[%s5 + $0x168] sm:$0xff]
      %v710 = vld [vmem:[%s5 + $0x170] sm:$0xff]
      %v711 = vld [vmem:[%s5 + $0x178] sm:$0xff]
      %v712 = vld [vmem:[%s5 + $0x180] sm:$0xff]
      %v713 = vld [vmem:[%s5 + $0x188] sm:$0xff]
      %v714 = vld [vmem:[%s5 + $0x190] sm:$0xff]
      %v715 = vld [vmem:[%s5 + $0x198] sm:$0xff]
      %v716 = vld [vmem:[%s5 + $0x1a0] sm:$0xff]
      %v717 = vld [vmem:[%s5 + $0x1a8] sm:$0xff]
      %v718 = vld [vmem:[%s5 + $0x1b0] sm:$0xff]
      %v719 = vld [vmem:[%s5 + $0x1b8] sm:$0xff]
      %v720 = vld [vmem:[%s5 + $0x1c0] sm:$0xff]
      %v721 = vld [vmem:[%s5 + $0x1c8] sm:$0xff]
      %v722 = vld [vmem:[%s5 + $0x1d0] sm:$0xff]
      %v723 = vld [vmem:[%s5 + $0x1d8] sm:$0xff]
      %v724 = vld [vmem:[%s5 + $0x1e0] sm:$0xff]
      %v725 = vld [vmem:[%s5 + $0x1e8] sm:$0xff]
      %v726 = vld [vmem:[%s5 + $0x1f0] sm:$0xff]
      %v727 = vld [vmem:[%s5 + $0x1f8] sm:$0xff]
      %v728 = vld [vmem:[%s6] sm:$0xff]
      %v729 = vld [vmem:[%s6 + $0x8] sm:$0xff]
      %v730 = vld [vmem:[%s6 + $0x10] sm:$0xff]
      %v731 = vld [vmem:[%s6 + $0x18] sm:$0xff]
      %vm732 = vcmask 130048
      %v734 = vsel %vm732, %v640, 0
      %v737 = vsel %vm732, %v641, 0
      %v740 = vsel %vm732, %v642, 0
      %v743 = vsel %vm732, %v643, 0
      %v746 = vsel %vm732, %v644, 0
      %v749 = vsel %vm732, %v645, 0
      %v752 = vsel %vm732, %v646, 0
      %v755 = vsel %vm732, %v647, 0
      %757 = vmatpush.msra.mxu0 0.0
      %758 = vmatpush.msra.mxu0 0.0
      %759 = vmatpush.msra.mxu0 0.0
      %760 = vmatpush.msra.mxu0 0.0
      %761 = vmatpush.msra.mxu0 0.0
      %762 = vmatpush.msra.mxu0 0.0
      %763 = vmatpush.msra.mxu0 0.0
      %764 = vmatpush.msra.mxu0 0.0
      %765 = vmatpush.msra.mxu0 0.0
      %766 = vmatpush.msra.mxu0 0.0
      %767 = vmatpush.msra.mxu0 0.0
      %768 = vmatpush.msra.mxu0 0.0
      %769 = vmatpush.msra.mxu0 0.0
      %770 = vmatpush.msra.mxu0 0.0
      %771 = vmatpush.msra.mxu0 %v730
      %772 = vmatpush.msra.mxu0 %v728
      %773 = vmatmul.f32.gmra.mxu0 %v734
      %v774 = vpop.f32.mrf.mxu0
      %v775 = vadd.f32 0.0, %v774
      %776 = vmatmul.f32.gmra.mxu0 %v737
      %v777 = vpop.f32.mrf.mxu0
      %v778 = vadd.f32 0.0, %v777
      %779 = vmatmul.f32.gmra.mxu0 %v740
      %v780 = vpop.f32.mrf.mxu0
      %v781 = vadd.f32 0.0, %v780
      %782 = vmatmul.f32.gmra.mxu0 %v743
      %v783 = vpop.f32.mrf.mxu0
      %v784 = vadd.f32 0.0, %v783
      %785 = vmatmul.f32.gmra.mxu0 %v746
      %v786 = vpop.f32.mrf.mxu0
      %v787 = vadd.f32 0.0, %v786
      %788 = vmatmul.f32.gmra.mxu0 %v749
      %v789 = vpop.f32.mrf.mxu0
      %v790 = vadd.f32 0.0, %v789
      %791 = vmatmul.f32.gmra.mxu0 %v752
      %v792 = vpop.f32.mrf.mxu0
      %v793 = vadd.f32 0.0, %v792
      %794 = vmatmul.f32.gmra.mxu0 %v755
      %v795 = vpop.f32.mrf.mxu0
      %v796 = vadd.f32 0.0, %v795
      %797 = vdwg.mxu0
      %798 = vmatpush.msra.mxu0 0.0
      %799 = vmatpush.msra.mxu0 0.0
      %800 = vmatpush.msra.mxu0 0.0
      %801 = vmatpush.msra.mxu0 0.0
      %802 = vmatpush.msra.mxu0 0.0
      %803 = vmatpush.msra.mxu0 0.0
      %804 = vmatpush.msra.mxu0 0.0
      %805 = vmatpush.msra.mxu0 0.0
      %806 = vmatpush.msra.mxu0 0.0
      %807 = vmatpush.msra.mxu0 0.0
      %808 = vmatpush.msra.mxu0 0.0
      %809 = vmatpush.msra.mxu0 0.0
      %810 = vmatpush.msra.mxu0 0.0
      %811 = vmatpush.msra.mxu0 0.0
      %812 = vmatpush.msra.mxu0 %v731
      %813 = vmatpush.msra.mxu0 %v729
      %814 = vmatmul.f32.gmra.mxu0 %v734
      %v815 = vpop.f32.mrf.mxu0
      %v816 = vadd.f32 0.0, %v815
      %817 = vmatmul.f32.gmra.mxu0 %v737
      %v818 = vpop.f32.mrf.mxu0
      %v819 = vadd.f32 0.0, %v818
      %820 = vmatmul.f32.gmra.mxu0 %v740
      %v821 = vpop.f32.mrf.mxu0
      %v822 = vadd.f32 0.0, %v821
      %823 = vmatmul.f32.gmra.mxu0 %v743
      %v824 = vpop.f32.mrf.mxu0
      %v825 = vadd.f32 0.0, %v824
      %826 = vmatmul.f32.gmra.mxu0 %v746
      %v827 = vpop.f32.mrf.mxu0
      %v828 = vadd.f32 0.0, %v827
      %829 = vmatmul.f32.gmra.mxu0 %v749
      %v830 = vpop.f32.mrf.mxu0
      %v831 = vadd.f32 0.0, %v830
      %832 = vmatmul.f32.gmra.mxu0 %v752
      %v833 = vpop.f32.mrf.mxu0
      %v834 = vadd.f32 0.0, %v833
      %835 = vmatmul.f32.gmra.mxu0 %v755
      %v836 = vpop.f32.mrf.mxu0
      %v837 = vadd.f32 0.0, %v836
      %838 = vdwg.mxu0
      %839 = vmatpush.msra.mxu0 %v694
      %840 = vmatpush.msra.mxu0 %v692
      %841 = vmatpush.msra.mxu0 %v690
      %842 = vmatpush.msra.mxu0 %v688
      %843 = vmatpush.msra.mxu0 %v686
      %844 = vmatpush.msra.mxu0 %v684
      %845 = vmatpush.msra.mxu0 %v682
      %846 = vmatpush.msra.mxu0 %v680
      %847 = vmatpush.msra.mxu0 %v678
      %848 = vmatpush.msra.mxu0 %v676
      %849 = vmatpush.msra.mxu0 %v674
      %850 = vmatpush.msra.mxu0 %v672
      %851 = vmatpush.msra.mxu0 %v670
      %852 = vmatpush.msra.mxu0 %v668
      %853 = vmatpush.msra.mxu0 %v666
      %854 = vmatpush.msra.mxu0 %v664
      %855 = vmatmul.f32.gmra.mxu0 %v648
      %v856 = vpop.f32.mrf.mxu0
      %v857 = vadd.f32 %v775, %v856
      %858 = vmatmul.f32.gmra.mxu0 %v650
      %v859 = vpop.f32.mrf.mxu0
      %v860 = vadd.f32 %v778, %v859
      %861 = vmatmul.f32.gmra.mxu0 %v652
      %v862 = vpop.f32.mrf.mxu0
      %v863 = vadd.f32 %v781, %v862
      %864 = vmatmul.f32.gmra.mxu0 %v654
      %v865 = vpop.f32.mrf.mxu0
      %v866 = vadd.f32 %v784, %v865
      %867 = vmatmul.f32.gmra.mxu0 %v656
      %v868 = vpop.f32.mrf.mxu0
      %v869 = vadd.f32 %v787, %v868
      %870 = vmatmul.f32.gmra.mxu0 %v658
      %v871 = vpop.f32.mrf.mxu0
      %v872 = vadd.f32 %v790, %v871
      %873 = vmatmul.f32.gmra.mxu0 %v660
      %v874 = vpop.f32.mrf.mxu0
      %v875 = vadd.f32 %v793, %v874
      %876 = vmatmul.f32.gmra.mxu0 %v662
      %v877 = vpop.f32.mrf.mxu0
      %v878 = vadd.f32 %v796, %v877
      %879 = vdwg.mxu0
      %880 = vmatpush.msra.mxu0 %v726
      %881 = vmatpush.msra.mxu0 %v724
      %882 = vmatpush.msra.mxu0 %v722
      %883 = vmatpush.msra.mxu0 %v720
      %884 = vmatpush.msra.mxu0 %v718
      %885 = vmatpush.msra.mxu0 %v716
      %886 = vmatpush.msra.mxu0 %v714
      %887 = vmatpush.msra.mxu0 %v712
      %888 = vmatpush.msra.mxu0 %v710
      %889 = vmatpush.msra.mxu0 %v708
      %890 = vmatpush.msra.mxu0 %v706
      %891 = vmatpush.msra.mxu0 %v704
      %892 = vmatpush.msra.mxu0 %v702
      %893 = vmatpush.msra.mxu0 %v700
      %894 = vmatpush.msra.mxu0 %v698
      %895 = vmatpush.msra.mxu0 %v696
      %896 = vmatmul.f32.gmra.mxu0 %v649
      %v897 = vpop.f32.mrf.mxu0
      %v898 = vadd.f32 %v857, %v897
      %899 = vmatmul.f32.gmra.mxu0 %v651
      %v900 = vpop.f32.mrf.mxu0
      %v901 = vadd.f32 %v860, %v900
      %902 = vmatmul.f32.gmra.mxu0 %v653
      %v903 = vpop.f32.mrf.mxu0
      %v904 = vadd.f32 %v863, %v903
      %905 = vmatmul.f32.gmra.mxu0 %v655
      %v906 = vpop.f32.mrf.mxu0
      %v907 = vadd.f32 %v866, %v906
      %908 = vmatmul.f32.gmra.mxu0 %v657
      %v909 = vpop.f32.mrf.mxu0
      %v910 = vadd.f32 %v869, %v909
      %911 = vmatmul.f32.gmra.mxu0 %v659
      %v912 = vpop.f32.mrf.mxu0
      %v913 = vadd.f32 %v872, %v912
      %914 = vmatmul.f32.gmra.mxu0 %v661
      %v915 = vpop.f32.mrf.mxu0
      %v916 = vadd.f32 %v875, %v915
      %917 = vmatmul.f32.gmra.mxu0 %v663
      %v918 = vpop.f32.mrf.mxu0
      %v919 = vadd.f32 %v878, %v918
      %920 = vdwg.mxu0
      %921 = vmatpush.msra.mxu0 %v695
      %922 = vmatpush.msra.mxu0 %v693
      %923 = vmatpush.msra.mxu0 %v691
      %924 = vmatpush.msra.mxu0 %v689
      %925 = vmatpush.msra.mxu0 %v687
      %926 = vmatpush.msra.mxu0 %v685
      %927 = vmatpush.msra.mxu0 %v683
      %928 = vmatpush.msra.mxu0 %v681
      %929 = vmatpush.msra.mxu0 %v679
      %930 = vmatpush.msra.mxu0 %v677
      %931 = vmatpush.msra.mxu0 %v675
      %932 = vmatpush.msra.mxu0 %v673
      %933 = vmatpush.msra.mxu0 %v671
      %934 = vmatpush.msra.mxu0 %v669
      %935 = vmatpush.msra.mxu0 %v667
      %936 = vmatpush.msra.mxu0 %v665
      %937 = vmatmul.f32.gmra.mxu0 %v648
      %v938 = vpop.f32.mrf.mxu0
      %v939 = vadd.f32 %v816, %v938
      %940 = vmatmul.f32.gmra.mxu0 %v650
      %v941 = vpop.f32.mrf.mxu0
      %v942 = vadd.f32 %v819, %v941
      %943 = vmatmul.f32.gmra.mxu0 %v652
      %v944 = vpop.f32.mrf.mxu0
      %v945 = vadd.f32 %v822, %v944
      %946 = vmatmul.f32.gmra.mxu0 %v654
      %v947 = vpop.f32.mrf.mxu0
      %v948 = vadd.f32 %v825, %v947
      %949 = vmatmul.f32.gmra.mxu0 %v656
      %v950 = vpop.f32.mrf.mxu0
      %v951 = vadd.f32 %v828, %v950
      %952 = vmatmul.f32.gmra.mxu0 %v658
      %v953 = vpop.f32.mrf.mxu0
      %v954 = vadd.f32 %v831, %v953
      %955 = vmatmul.f32.gmra.mxu0 %v660
      %v956 = vpop.f32.mrf.mxu0
      %v957 = vadd.f32 %v834, %v956
      %958 = vmatmul.f32.gmra.mxu0 %v662
      %v959 = vpop.f32.mrf.mxu0
      %v960 = vadd.f32 %v837, %v959
      %961 = vdwg.mxu0
      %962 = vmatpush.msra.mxu0 %v727
      %963 = vmatpush.msra.mxu0 %v725
      %964 = vmatpush.msra.mxu0 %v723
      %965 = vmatpush.msra.mxu0 %v721
      %966 = vmatpush.msra.mxu0 %v719
      %967 = vmatpush.msra.mxu0 %v717
      %968 = vmatpush.msra.mxu0 %v715
      %969 = vmatpush.msra.mxu0 %v713
      %970 = vmatpush.msra.mxu0 %v711
      %971 = vmatpush.msra.mxu0 %v709
      %972 = vmatpush.msra.mxu0 %v707
      %973 = vmatpush.msra.mxu0 %v705
      %974 = vmatpush.msra.mxu0 %v703
      %975 = vmatpush.msra.mxu0 %v701
      %976 = vmatpush.msra.mxu0 %v699
      %977 = vmatpush.msra.mxu0 %v697
      %978 = vmatmul.f32.gmra.mxu0 %v649
      %v979 = vpop.f32.mrf.mxu0
      %v980 = vadd.f32 %v939, %v979
      %981 = vmatmul.f32.gmra.mxu0 %v651
      %v982 = vpop.f32.mrf.mxu0
      %v983 = vadd.f32 %v942, %v982
      %984 = vmatmul.f32.gmra.mxu0 %v653
      %v985 = vpop.f32.mrf.mxu0
      %v986 = vadd.f32 %v945, %v985
      %987 = vmatmul.f32.gmra.mxu0 %v655
      %v988 = vpop.f32.mrf.mxu0
      %v989 = vadd.f32 %v948, %v988
      %990 = vmatmul.f32.gmra.mxu0 %v657
      %v991 = vpop.f32.mrf.mxu0
      %v992 = vadd.f32 %v951, %v991
      %993 = vmatmul.f32.gmra.mxu0 %v659
      %v994 = vpop.f32.mrf.mxu0
      %v995 = vadd.f32 %v954, %v994
      %996 = vmatmul.f32.gmra.mxu0 %v661
      %v997 = vpop.f32.mrf.mxu0
      %v998 = vadd.f32 %v957, %v997
      %999 = vmatmul.f32.gmra.mxu0 %v663
      %v1000 = vpop.f32.mrf.mxu0
      %v1001 = vadd.f32 %v960, %v1000
      %1002 = vdwg.mxu0
      %v1003 = vld [vmem:[%s7] sm:$0x3]
      %v1005 = vperm.slane %v1003, 0
      %v1006 = vperm.slane %v1003, 1
      %v1009 = vadd.f32 %v898, %v1005
      %v1010 = vadd.f32 %v980, %v1006
      %v1011 = vadd.f32 %v901, %v1005
      %v1012 = vadd.f32 %v983, %v1006
      %v1013 = vadd.f32 %v904, %v1005
      %v1014 = vadd.f32 %v986, %v1006
      %v1015 = vadd.f32 %v907, %v1005
      %v1016 = vadd.f32 %v989, %v1006
      %v1017 = vadd.f32 %v910, %v1005
      %v1018 = vadd.f32 %v992, %v1006
      %v1019 = vadd.f32 %v913, %v1005
      %v1020 = vadd.f32 %v995, %v1006
      %v1021 = vadd.f32 %v916, %v1005
      %v1022 = vadd.f32 %v998, %v1006
      %v1023 = vadd.f32 %v919, %v1005
      %v1024 = vadd.f32 %v1001, %v1006
      %v1025 = vmul.f32 %v1009, 0.01
      %v1026 = vmul.f32 %v1010, 0.01
      %v1027 = vmul.f32 %v1011, 0.01
      %v1028 = vmul.f32 %v1012, 0.01
      %v1029 = vmul.f32 %v1013, 0.01
      %v1030 = vmul.f32 %v1014, 0.01
      %v1031 = vmul.f32 %v1015, 0.01
      %v1032 = vmul.f32 %v1016, 0.01
      %v1033 = vmul.f32 %v1017, 0.01
      %v1034 = vmul.f32 %v1018, 0.01
      %v1035 = vmul.f32 %v1019, 0.01
      %v1036 = vmul.f32 %v1020, 0.01
      %v1037 = vmul.f32 %v1021, 0.01
      %v1038 = vmul.f32 %v1022, 0.01
      %v1039 = vmul.f32 %v1023, 0.01
      %v1040 = vmul.f32 %v1024, 0.01
      %v1041 = vmax.f32 %v1009, %v1025
      %v1042 = vmax.f32 %v1010, %v1026
      %v1043 = vmax.f32 %v1011, %v1027
      %v1044 = vmax.f32 %v1012, %v1028
      %v1045 = vmax.f32 %v1013, %v1029
      %v1046 = vmax.f32 %v1014, %v1030
      %v1047 = vmax.f32 %v1015, %v1031
      %v1048 = vmax.f32 %v1016, %v1032
      %v1049 = vmax.f32 %v1017, %v1033
      %v1050 = vmax.f32 %v1018, %v1034
      %v1051 = vmax.f32 %v1019, %v1035
      %v1052 = vmax.f32 %v1020, %v1036
      %v1053 = vmax.f32 %v1021, %v1037
      %v1054 = vmax.f32 %v1022, %v1038
      %v1055 = vmax.f32 %v1023, %v1039
      %v1056 = vmax.f32 %v1024, %v1040
      %v1057 = vld [vmem:[%s515] sm:$0xff]
      %v1058 = vld [vmem:[%s515 + $0x8] sm:$0xff]
      %v1059 = vld [vmem:[%s515 + $0x10] sm:$0xff]
      %v1060 = vld [vmem:[%s515 + $0x18] sm:$0xff]
      %v1061 = vld [vmem:[%s515 + $0x20] sm:$0xff]
      %v1062 = vld [vmem:[%s515 + $0x28] sm:$0xff]
      %v1063 = vld [vmem:[%s515 + $0x30] sm:$0xff]
      %v1064 = vld [vmem:[%s515 + $0x38] sm:$0xff]
      %v1065 = vld [vmem:[%s515 + $0x40] sm:$0xff]
      %v1066 = vld [vmem:[%s515 + $0x48] sm:$0xff]
      %v1067 = vld [vmem:[%s515 + $0x50] sm:$0xff]
      %v1068 = vld [vmem:[%s515 + $0x58] sm:$0xff]
      %v1069 = vld [vmem:[%s515 + $0x60] sm:$0xff]
      %v1070 = vld [vmem:[%s515 + $0x68] sm:$0xff]
      %v1071 = vld [vmem:[%s515 + $0x70] sm:$0xff]
      %v1072 = vld [vmem:[%s515 + $0x78] sm:$0xff]
      %v1073 = vld [vmem:[%s515 + $0x80] sm:$0xff]
      %v1074 = vld [vmem:[%s515 + $0x88] sm:$0xff]
      %v1075 = vld [vmem:[%s515 + $0x90] sm:$0xff]
      %v1076 = vld [vmem:[%s515 + $0x98] sm:$0xff]
      %v1077 = vld [vmem:[%s515 + $0xa0] sm:$0xff]
      %v1078 = vld [vmem:[%s515 + $0xa8] sm:$0xff]
      %v1079 = vld [vmem:[%s515 + $0xb0] sm:$0xff]
      %v1080 = vld [vmem:[%s515 + $0xb8] sm:$0xff]
      %v1081 = vld [vmem:[%s8] sm:$0xff]
      %v1082 = vld [vmem:[%s8 + $0x8] sm:$0xff]
      %v1083 = vld [vmem:[%s8 + $0x10] sm:$0xff]
      %v1084 = vld [vmem:[%s8 + $0x18] sm:$0xff]
      %v1085 = vld [vmem:[%s8 + $0x20] sm:$0xff]
      %v1086 = vld [vmem:[%s8 + $0x28] sm:$0xff]
      %v1087 = vld [vmem:[%s8 + $0x30] sm:$0xff]
      %v1088 = vld [vmem:[%s8 + $0x38] sm:$0xff]
      %v1089 = vld [vmem:[%s8 + $0x40] sm:$0xff]
      %v1090 = vld [vmem:[%s8 + $0x48] sm:$0xff]
      %v1091 = vld [vmem:[%s8 + $0x50] sm:$0xff]
      %v1092 = vld [vmem:[%s8 + $0x58] sm:$0xff]
      %v1093 = vld [vmem:[%s8 + $0x60] sm:$0xff]
      %v1094 = vld [vmem:[%s8 + $0x68] sm:$0xff]
      %v1095 = vld [vmem:[%s8 + $0x70] sm:$0xff]
      %v1096 = vld [vmem:[%s8 + $0x78] sm:$0xff]
      %v1097 = vld [vmem:[%s8 + $0x80] sm:$0xff]
      %v1098 = vld [vmem:[%s8 + $0x88] sm:$0xff]
      %v1099 = vld [vmem:[%s8 + $0x90] sm:$0xff]
      %v1100 = vld [vmem:[%s8 + $0x98] sm:$0xff]
      %v1101 = vld [vmem:[%s8 + $0xa0] sm:$0xff]
      %v1102 = vld [vmem:[%s8 + $0xa8] sm:$0xff]
      %v1103 = vld [vmem:[%s8 + $0xb0] sm:$0xff]
      %v1104 = vld [vmem:[%s8 + $0xb8] sm:$0xff]
      %v1105 = vld [vmem:[%s8 + $0xc0] sm:$0xff]
      %v1106 = vld [vmem:[%s8 + $0xc8] sm:$0xff]
      %v1107 = vld [vmem:[%s8 + $0xd0] sm:$0xff]
      %v1108 = vld [vmem:[%s8 + $0xd8] sm:$0xff]
      %v1109 = vld [vmem:[%s8 + $0xe0] sm:$0xff]
      %v1110 = vld [vmem:[%s8 + $0xe8] sm:$0xff]
      %v1111 = vld [vmem:[%s8 + $0xf0] sm:$0xff]
      %v1112 = vld [vmem:[%s8 + $0xf8] sm:$0xff]
      %v1113 = vld [vmem:[%s8 + $0x100] sm:$0xff]
      %v1114 = vld [vmem:[%s8 + $0x108] sm:$0xff]
      %v1115 = vld [vmem:[%s8 + $0x110] sm:$0xff]
      %v1116 = vld [vmem:[%s8 + $0x118] sm:$0xff]
      %v1117 = vld [vmem:[%s8 + $0x120] sm:$0xff]
      %v1118 = vld [vmem:[%s8 + $0x128] sm:$0xff]
      %v1119 = vld [vmem:[%s8 + $0x130] sm:$0xff]
      %v1120 = vld [vmem:[%s8 + $0x138] sm:$0xff]
      %v1121 = vld [vmem:[%s8 + $0x140] sm:$0xff]
      %v1122 = vld [vmem:[%s8 + $0x148] sm:$0xff]
      %v1123 = vld [vmem:[%s8 + $0x150] sm:$0xff]
      %v1124 = vld [vmem:[%s8 + $0x158] sm:$0xff]
      %v1125 = vld [vmem:[%s8 + $0x160] sm:$0xff]
      %v1126 = vld [vmem:[%s8 + $0x168] sm:$0xff]
      %v1127 = vld [vmem:[%s8 + $0x170] sm:$0xff]
      %v1128 = vld [vmem:[%s8 + $0x178] sm:$0xff]
      %v1129 = vld [vmem:[%s8 + $0x180] sm:$0xff]
      %v1130 = vld [vmem:[%s8 + $0x188] sm:$0xff]
      %v1131 = vld [vmem:[%s8 + $0x190] sm:$0xff]
      %v1132 = vld [vmem:[%s8 + $0x198] sm:$0xff]
      %v1133 = vld [vmem:[%s8 + $0x1a0] sm:$0xff]
      %v1134 = vld [vmem:[%s8 + $0x1a8] sm:$0xff]
      %v1135 = vld [vmem:[%s8 + $0x1b0] sm:$0xff]
      %v1136 = vld [vmem:[%s8 + $0x1b8] sm:$0xff]
      %v1137 = vld [vmem:[%s8 + $0x1c0] sm:$0xff]
      %v1138 = vld [vmem:[%s8 + $0x1c8] sm:$0xff]
      %v1139 = vld [vmem:[%s8 + $0x1d0] sm:$0xff]
      %v1140 = vld [vmem:[%s8 + $0x1d8] sm:$0xff]
      %v1141 = vld [vmem:[%s8 + $0x1e0] sm:$0xff]
      %v1142 = vld [vmem:[%s8 + $0x1e8] sm:$0xff]
      %v1143 = vld [vmem:[%s8 + $0x1f0] sm:$0xff]
      %v1144 = vld [vmem:[%s8 + $0x1f8] sm:$0xff]
      %v1145 = vld [vmem:[%s8 + $0x200] sm:$0x1]
      %v1146 = vld [vmem:[%s8 + $0x208] sm:$0x1]
      %v1147 = vld [vmem:[%s9] sm:$0x3]
      %v1149 = vperm.slane %v1147, 0
      %v1150 = vperm.slane %v1147, 1
      %vm1153 = vcmask 7168
      %v1155 = vsel %vm1153, %v1059, 0
      %v1158 = vsel %vm1153, %v1062, 0
      %v1161 = vsel %vm1153, %v1065, 0
      %v1164 = vsel %vm1153, %v1068, 0
      %v1167 = vsel %vm1153, %v1071, 0
      %v1170 = vsel %vm1153, %v1074, 0
      %v1173 = vsel %vm1153, %v1077, 0
      %v1176 = vsel %vm1153, %v1080, 0
      %v1179 = vsel %vm587, %v1145, 0
      %v1182 = vsel %vm587, %v1146, 0
      %1184 = vmatpush.msra.mxu0 %v1111
      %1185 = vmatpush.msra.mxu0 %v1109
      %1186 = vmatpush.msra.mxu0 %v1107
      %1187 = vmatpush.msra.mxu0 %v1105
      %1188 = vmatpush.msra.mxu0 %v1103
      %1189 = vmatpush.msra.mxu0 %v1101
      %1190 = vmatpush.msra.mxu0 %v1099
      %1191 = vmatpush.msra.mxu0 %v1097
      %1192 = vmatpush.msra.mxu0 %v1095
      %1193 = vmatpush.msra.mxu0 %v1093
      %1194 = vmatpush.msra.mxu0 %v1091
      %1195 = vmatpush.msra.mxu0 %v1089
      %1196 = vmatpush.msra.mxu0 %v1087
      %1197 = vmatpush.msra.mxu0 %v1085
      %1198 = vmatpush.msra.mxu0 %v1083
      %1199 = vmatpush.msra.mxu0 %v1081
      %1200 = vmatmul.f32.gmra.mxu0 %v1057
      %v1201 = vpop.f32.mrf.mxu0
      %v1202 = vadd.f32 %v1149, %v1201
      %1203 = vmatmul.f32.gmra.mxu0 %v1060
      %v1204 = vpop.f32.mrf.mxu0
      %v1205 = vadd.f32 %v1149, %v1204
      %1206 = vmatmul.f32.gmra.mxu0 %v1063
      %v1207 = vpop.f32.mrf.mxu0
      %v1208 = vadd.f32 %v1149, %v1207
      %1209 = vmatmul.f32.gmra.mxu0 %v1066
      %v1210 = vpop.f32.mrf.mxu0
      %v1211 = vadd.f32 %v1149, %v1210
      %1212 = vmatmul.f32.gmra.mxu0 %v1069
      %v1213 = vpop.f32.mrf.mxu0
      %v1214 = vadd.f32 %v1149, %v1213
      %1215 = vmatmul.f32.gmra.mxu0 %v1072
      %v1216 = vpop.f32.mrf.mxu0
      %v1217 = vadd.f32 %v1149, %v1216
      %1218 = vmatmul.f32.gmra.mxu0 %v1075
      %v1219 = vpop.f32.mrf.mxu0
      %v1220 = vadd.f32 %v1149, %v1219
      %1221 = vmatmul.f32.gmra.mxu0 %v1078
      %v1222 = vpop.f32.mrf.mxu0
      %v1223 = vadd.f32 %v1149, %v1222
      %1224 = vdwg.mxu0
      %1225 = vmatpush.msra.mxu0 %v1143
      %1226 = vmatpush.msra.mxu0 %v1141
      %1227 = vmatpush.msra.mxu0 %v1139
      %1228 = vmatpush.msra.mxu0 %v1137
      %1229 = vmatpush.msra.mxu0 %v1135
      %1230 = vmatpush.msra.mxu0 %v1133
      %1231 = vmatpush.msra.mxu0 %v1131
      %1232 = vmatpush.msra.mxu0 %v1129
      %1233 = vmatpush.msra.mxu0 %v1127
      %1234 = vmatpush.msra.mxu0 %v1125
      %1235 = vmatpush.msra.mxu0 %v1123
      %1236 = vmatpush.msra.mxu0 %v1121
      %1237 = vmatpush.msra.mxu0 %v1119
      %1238 = vmatpush.msra.mxu0 %v1117
      %1239 = vmatpush.msra.mxu0 %v1115
      %1240 = vmatpush.msra.mxu0 %v1113
      %1241 = vmatmul.f32.gmra.mxu0 %v1058
      %v1242 = vpop.f32.mrf.mxu0
      %v1243 = vadd.f32 %v1202, %v1242
      %1244 = vmatmul.f32.gmra.mxu0 %v1061
      %v1245 = vpop.f32.mrf.mxu0
      %v1246 = vadd.f32 %v1205, %v1245
      %1247 = vmatmul.f32.gmra.mxu0 %v1064
      %v1248 = vpop.f32.mrf.mxu0
      %v1249 = vadd.f32 %v1208, %v1248
      %1250 = vmatmul.f32.gmra.mxu0 %v1067
      %v1251 = vpop.f32.mrf.mxu0
      %v1252 = vadd.f32 %v1211, %v1251
      %1253 = vmatmul.f32.gmra.mxu0 %v1070
      %v1254 = vpop.f32.mrf.mxu0
      %v1255 = vadd.f32 %v1214, %v1254
      %1256 = vmatmul.f32.gmra.mxu0 %v1073
      %v1257 = vpop.f32.mrf.mxu0
      %v1258 = vadd.f32 %v1217, %v1257
      %1259 = vmatmul.f32.gmra.mxu0 %v1076
      %v1260 = vpop.f32.mrf.mxu0
      %v1261 = vadd.f32 %v1220, %v1260
      %1262 = vmatmul.f32.gmra.mxu0 %v1079
      %v1263 = vpop.f32.mrf.mxu0
      %v1264 = vadd.f32 %v1223, %v1263
      %1265 = vdwg.mxu0
      %1266 = vmatpush.msra.mxu0 0.0
      %1267 = vmatpush.msra.mxu0 0.0
      %1268 = vmatpush.msra.mxu0 0.0
      %1269 = vmatpush.msra.mxu0 0.0
      %1270 = vmatpush.msra.mxu0 0.0
      %1271 = vmatpush.msra.mxu0 0.0
      %1272 = vmatpush.msra.mxu0 0.0
      %1273 = vmatpush.msra.mxu0 0.0
      %1274 = vmatpush.msra.mxu0 0.0
      %1275 = vmatpush.msra.mxu0 0.0
      %1276 = vmatpush.msra.mxu0 0.0
      %1277 = vmatpush.msra.mxu0 0.0
      %1278 = vmatpush.msra.mxu0 0.0
      %1279 = vmatpush.msra.mxu0 0.0
      %1280 = vmatpush.msra.mxu0 0.0
      %1281 = vmatpush.msra.mxu0 %v1179
      %1282 = vmatmul.f32.gmra.mxu0 %v1155
      %v1283 = vpop.f32.mrf.mxu0
      %v1284 = vadd.f32 %v1243, %v1283
      %1285 = vmatmul.f32.gmra.mxu0 %v1158
      %v1286 = vpop.f32.mrf.mxu0
      %v1287 = vadd.f32 %v1246, %v1286
      %1288 = vmatmul.f32.gmra.mxu0 %v1161
      %v1289 = vpop.f32.mrf.mxu0
      %v1290 = vadd.f32 %v1249, %v1289
      %1291 = vmatmul.f32.gmra.mxu0 %v1164
      %v1292 = vpop.f32.mrf.mxu0
      %v1293 = vadd.f32 %v1252, %v1292
      %1294 = vmatmul.f32.gmra.mxu0 %v1167
      %v1295 = vpop.f32.mrf.mxu0
      %v1296 = vadd.f32 %v1255, %v1295
      %1297 = vmatmul.f32.gmra.mxu0 %v1170
      %v1298 = vpop.f32.mrf.mxu0
      %v1299 = vadd.f32 %v1258, %v1298
      %1300 = vmatmul.f32.gmra.mxu0 %v1173
      %v1301 = vpop.f32.mrf.mxu0
      %v1302 = vadd.f32 %v1261, %v1301
      %1303 = vmatmul.f32.gmra.mxu0 %v1176
      %v1304 = vpop.f32.mrf.mxu0
      %v1305 = vadd.f32 %v1264, %v1304
      %1306 = vdwg.mxu0
      %1307 = vmatpush.msra.mxu0 %v1112
      %1308 = vmatpush.msra.mxu0 %v1110
      %1309 = vmatpush.msra.mxu0 %v1108
      %1310 = vmatpush.msra.mxu0 %v1106
      %1311 = vmatpush.msra.mxu0 %v1104
      %1312 = vmatpush.msra.mxu0 %v1102
      %1313 = vmatpush.msra.mxu0 %v1100
      %1314 = vmatpush.msra.mxu0 %v1098
      %1315 = vmatpush.msra.mxu0 %v1096
      %1316 = vmatpush.msra.mxu0 %v1094
      %1317 = vmatpush.msra.mxu0 %v1092
      %1318 = vmatpush.msra.mxu0 %v1090
      %1319 = vmatpush.msra.mxu0 %v1088
      %1320 = vmatpush.msra.mxu0 %v1086
      %1321 = vmatpush.msra.mxu0 %v1084
      %1322 = vmatpush.msra.mxu0 %v1082
      %1323 = vmatmul.f32.gmra.mxu0 %v1057
      %v1324 = vpop.f32.mrf.mxu0
      %v1325 = vadd.f32 %v1150, %v1324
      %1326 = vmatmul.f32.gmra.mxu0 %v1060
      %v1327 = vpop.f32.mrf.mxu0
      %v1328 = vadd.f32 %v1150, %v1327
      %1329 = vmatmul.f32.gmra.mxu0 %v1063
      %v1330 = vpop.f32.mrf.mxu0
      %v1331 = vadd.f32 %v1150, %v1330
      %1332 = vmatmul.f32.gmra.mxu0 %v1066
      %v1333 = vpop.f32.mrf.mxu0
      %v1334 = vadd.f32 %v1150, %v1333
      %1335 = vmatmul.f32.gmra.mxu0 %v1069
      %v1336 = vpop.f32.mrf.mxu0
      %v1337 = vadd.f32 %v1150, %v1336
      %1338 = vmatmul.f32.gmra.mxu0 %v1072
      %v1339 = vpop.f32.mrf.mxu0
      %v1340 = vadd.f32 %v1150, %v1339
      %1341 = vmatmul.f32.gmra.mxu0 %v1075
      %v1342 = vpop.f32.mrf.mxu0
      %v1343 = vadd.f32 %v1150, %v1342
      %1344 = vmatmul.f32.gmra.mxu0 %v1078
      %v1345 = vpop.f32.mrf.mxu0
      %v1346 = vadd.f32 %v1150, %v1345
      %1347 = vdwg.mxu0
      %1348 = vmatpush.msra.mxu0 %v1144
      %1349 = vmatpush.msra.mxu0 %v1142
      %1350 = vmatpush.msra.mxu0 %v1140
      %1351 = vmatpush.msra.mxu0 %v1138
      %1352 = vmatpush.msra.mxu0 %v1136
      %1353 = vmatpush.msra.mxu0 %v1134
      %1354 = vmatpush.msra.mxu0 %v1132
      %1355 = vmatpush.msra.mxu0 %v1130
      %1356 = vmatpush.msra.mxu0 %v1128
      %1357 = vmatpush.msra.mxu0 %v1126
      %1358 = vmatpush.msra.mxu0 %v1124
      %1359 = vmatpush.msra.mxu0 %v1122
      %1360 = vmatpush.msra.mxu0 %v1120
      %1361 = vmatpush.msra.mxu0 %v1118
      %1362 = vmatpush.msra.mxu0 %v1116
      %1363 = vmatpush.msra.mxu0 %v1114
      %1364 = vmatmul.f32.gmra.mxu0 %v1058
      %v1365 = vpop.f32.mrf.mxu0
      %v1366 = vadd.f32 %v1325, %v1365
      %1367 = vmatmul.f32.gmra.mxu0 %v1061
      %v1368 = vpop.f32.mrf.mxu0
      %v1369 = vadd.f32 %v1328, %v1368
      %1370 = vmatmul.f32.gmra.mxu0 %v1064
      %v1371 = vpop.f32.mrf.mxu0
      %v1372 = vadd.f32 %v1331, %v1371
      %1373 = vmatmul.f32.gmra.mxu0 %v1067
      %v1374 = vpop.f32.mrf.mxu0
      %v1375 = vadd.f32 %v1334, %v1374
      %1376 = vmatmul.f32.gmra.mxu0 %v1070
      %v1377 = vpop.f32.mrf.mxu0
      %v1378 = vadd.f32 %v1337, %v1377
      %1379 = vmatmul.f32.gmra.mxu0 %v1073
      %v1380 = vpop.f32.mrf.mxu0
      %v1381 = vadd.f32 %v1340, %v1380
      %1382 = vmatmul.f32.gmra.mxu0 %v1076
      %v1383 = vpop.f32.mrf.mxu0
      %v1384 = vadd.f32 %v1343, %v1383
      %1385 = vmatmul.f32.gmra.mxu0 %v1079
      %v1386 = vpop.f32.mrf.mxu0
      %v1387 = vadd.f32 %v1346, %v1386
      %1388 = vdwg.mxu0
      %1389 = vmatpush.msra.mxu0 0.0
      %1390 = vmatpush.msra.mxu0 0.0
      %1391 = vmatpush.msra.mxu0 0.0
      %1392 = vmatpush.msra.mxu0 0.0
      %1393 = vmatpush.msra.mxu0 0.0
      %1394 = vmatpush.msra.mxu0 0.0
      %1395 = vmatpush.msra.mxu0 0.0
      %1396 = vmatpush.msra.mxu0 0.0
      %1397 = vmatpush.msra.mxu0 0.0
      %1398 = vmatpush.msra.mxu0 0.0
      %1399 = vmatpush.msra.mxu0 0.0
      %1400 = vmatpush.msra.mxu0 0.0
      %1401 = vmatpush.msra.mxu0 0.0
      %1402 = vmatpush.msra.mxu0 0.0
      %1403 = vmatpush.msra.mxu0 0.0
      %1404 = vmatpush.msra.mxu0 %v1182
      %1405 = vmatmul.f32.gmra.mxu0 %v1155
      %v1406 = vpop.f32.mrf.mxu0
      %v1407 = vadd.f32 %v1366, %v1406
      %1408 = vmatmul.f32.gmra.mxu0 %v1158
      %v1409 = vpop.f32.mrf.mxu0
      %v1410 = vadd.f32 %v1369, %v1409
      %1411 = vmatmul.f32.gmra.mxu0 %v1161
      %v1412 = vpop.f32.mrf.mxu0
      %v1413 = vadd.f32 %v1372, %v1412
      %1414 = vmatmul.f32.gmra.mxu0 %v1164
      %v1415 = vpop.f32.mrf.mxu0
      %v1416 = vadd.f32 %v1375, %v1415
      %1417 = vmatmul.f32.gmra.mxu0 %v1167
      %v1418 = vpop.f32.mrf.mxu0
      %v1419 = vadd.f32 %v1378, %v1418
      %1420 = vmatmul.f32.gmra.mxu0 %v1170
      %v1421 = vpop.f32.mrf.mxu0
      %v1422 = vadd.f32 %v1381, %v1421
      %1423 = vmatmul.f32.gmra.mxu0 %v1173
      %v1424 = vpop.f32.mrf.mxu0
      %v1425 = vadd.f32 %v1384, %v1424
      %1426 = vmatmul.f32.gmra.mxu0 %v1176
      %v1427 = vpop.f32.mrf.mxu0
      %v1428 = vadd.f32 %v1387, %v1427
      %1429 = vdwg.mxu0
      %v1430 = vmul.f32 %v1284, 0.01
      %v1431 = vmul.f32 %v1407, 0.01
      %v1432 = vmul.f32 %v1287, 0.01
      %v1433 = vmul.f32 %v1410, 0.01
      %v1434 = vmul.f32 %v1290, 0.01
      %v1435 = vmul.f32 %v1413, 0.01
      %v1436 = vmul.f32 %v1293, 0.01
      %v1437 = vmul.f32 %v1416, 0.01
      %v1438 = vmul.f32 %v1296, 0.01
      %v1439 = vmul.f32 %v1419, 0.01
      %v1440 = vmul.f32 %v1299, 0.01
      %v1441 = vmul.f32 %v1422, 0.01
      %v1442 = vmul.f32 %v1302, 0.01
      %v1443 = vmul.f32 %v1425, 0.01
      %v1444 = vmul.f32 %v1305, 0.01
      %v1445 = vmul.f32 %v1428, 0.01
      %v1446 = vmax.f32 %v1284, %v1430
      %v1447 = vmax.f32 %v1407, %v1431
      %v1448 = vmax.f32 %v1287, %v1432
      %v1449 = vmax.f32 %v1410, %v1433
      %v1450 = vmax.f32 %v1290, %v1434
      %v1451 = vmax.f32 %v1413, %v1435
      %v1452 = vmax.f32 %v1293, %v1436
      %v1453 = vmax.f32 %v1416, %v1437
      %v1454 = vmax.f32 %v1296, %v1438
      %v1455 = vmax.f32 %v1419, %v1439
      %v1456 = vmax.f32 %v1299, %v1440
      %v1457 = vmax.f32 %v1422, %v1441
      %v1458 = vmax.f32 %v1302, %v1442
      %v1459 = vmax.f32 %v1425, %v1443
      %v1460 = vmax.f32 %v1305, %v1444
      %v1461 = vmax.f32 %v1428, %v1445
      %v1462 = vmax.f32 %v1446, %v1447
      %1463 = vmax.xlane.f32.xlu0 %v1462
      %v1464 = vpop.xlane.xlu0 %1463
      %v1465 = vmax.f32 %v1448, %v1449
      %1466 = vmax.xlane.f32.xlu0 %v1465
      %v1467 = vpop.xlane.xlu0 %1466
      %v1468 = vmax.f32 %v1450, %v1451
      %1469 = vmax.xlane.f32.xlu0 %v1468
      %v1470 = vpop.xlane.xlu0 %1469
      %v1471 = vmax.f32 %v1452, %v1453
      %1472 = vmax.xlane.f32.xlu0 %v1471
      %v1473 = vpop.xlane.xlu0 %1472
      %v1474 = vmax.f32 %v1454, %v1455
      %1475 = vmax.xlane.f32.xlu0 %v1474
      %v1476 = vpop.xlane.xlu0 %1475
      %v1477 = vmax.f32 %v1456, %v1457
      %1478 = vmax.xlane.f32.xlu0 %v1477
      %v1479 = vpop.xlane.xlu0 %1478
      %v1480 = vmax.f32 %v1458, %v1459
      %1481 = vmax.xlane.f32.xlu0 %v1480
      %v1482 = vpop.xlane.xlu0 %1481
      %v1483 = vmax.f32 %v1460, %v1461
      %1484 = vmax.xlane.f32.xlu0 %v1483
      %v1485 = vpop.xlane.xlu0 %1484
      %v1486 = vsub.f32 %v1446, %v1464
      %v1487 = vsub.f32 %v1447, %v1464
      %v1488 = vsub.f32 %v1448, %v1467
      %v1489 = vsub.f32 %v1449, %v1467
      %v1490 = vsub.f32 %v1450, %v1470
      %v1491 = vsub.f32 %v1451, %v1470
      %v1492 = vsub.f32 %v1452, %v1473
      %v1493 = vsub.f32 %v1453, %v1473
      %v1494 = vsub.f32 %v1454, %v1476
      %v1495 = vsub.f32 %v1455, %v1476
      %v1496 = vsub.f32 %v1456, %v1479
      %v1497 = vsub.f32 %v1457, %v1479
      %v1498 = vsub.f32 %v1458, %v1482
      %v1499 = vsub.f32 %v1459, %v1482
      %v1500 = vsub.f32 %v1460, %v1485
      %v1501 = vsub.f32 %v1461, %v1485
      %v1502 = vmul.f32 %v1486, 1.442695
      %v1503 = vpow.pop %v1502
      %v1504 = vmul.f32 %v1487, 1.442695
      %v1505 = vpow.pop %v1504
      %v1506 = vmul.f32 %v1488, 1.442695
      %v1507 = vpow.pop %v1506
      %v1508 = vmul.f32 %v1489, 1.442695
      %v1509 = vpow.pop %v1508
      %v1510 = vmul.f32 %v1490, 1.442695
      %v1511 = vpow.pop %v1510
      %v1512 = vmul.f32 %v1491, 1.442695
      %v1513 = vpow.pop %v1512
      %v1514 = vmul.f32 %v1492, 1.442695
      %v1515 = vpow.pop %v1514
      %v1516 = vmul.f32 %v1493, 1.442695
      %v1517 = vpow.pop %v1516
      %v1518 = vmul.f32 %v1494, 1.442695
      %v1519 = vpow.pop %v1518
      %v1520 = vmul.f32 %v1495, 1.442695
      %v1521 = vpow.pop %v1520
      %v1522 = vmul.f32 %v1496, 1.442695
      %v1523 = vpow.pop %v1522
      %v1524 = vmul.f32 %v1497, 1.442695
      %v1525 = vpow.pop %v1524
      %v1526 = vmul.f32 %v1498, 1.442695
      %v1527 = vpow.pop %v1526
      %v1528 = vmul.f32 %v1499, 1.442695
      %v1529 = vpow.pop %v1528
      %v1530 = vmul.f32 %v1500, 1.442695
      %v1531 = vpow.pop %v1530
      %v1532 = vmul.f32 %v1501, 1.442695
      %v1533 = vpow.pop %v1532
      %v1534 = vadd.f32 %v1503, %v1505
      %1535 = vadd.xlane.f32.xlu0 %v1534
      %v1536 = vpop.xlane.xlu0 %1535
      %v1537 = vadd.f32 %v1507, %v1509
      %1538 = vadd.xlane.f32.xlu0 %v1537
      %v1539 = vpop.xlane.xlu0 %1538
      %v1540 = vadd.f32 %v1511, %v1513
      %1541 = vadd.xlane.f32.xlu0 %v1540
      %v1542 = vpop.xlane.xlu0 %1541
      %v1543 = vadd.f32 %v1515, %v1517
      %1544 = vadd.xlane.f32.xlu0 %v1543
      %v1545 = vpop.xlane.xlu0 %1544
      %v1546 = vadd.f32 %v1519, %v1521
      %1547 = vadd.xlane.f32.xlu0 %v1546
      %v1548 = vpop.xlane.xlu0 %1547
      %v1549 = vadd.f32 %v1523, %v1525
      %1550 = vadd.xlane.f32.xlu0 %v1549
      %v1551 = vpop.xlane.xlu0 %1550
      %v1552 = vadd.f32 %v1527, %v1529
      %1553 = vadd.xlane.f32.xlu0 %v1552
      %v1554 = vpop.xlane.xlu0 %1553
      %v1555 = vadd.f32 %v1531, %v1533
      %1556 = vadd.xlane.f32.xlu0 %v1555
      %v1557 = vpop.xlane.xlu0 %1556
      %v1558 = vrcp.pop %v1536
      %v1559 = vrcp.pop %v1539
      %v1560 = vrcp.pop %v1542
      %v1561 = vrcp.pop %v1545
      %v1562 = vrcp.pop %v1548
      %v1563 = vrcp.pop %v1551
      %v1564 = vrcp.pop %v1554
      %v1565 = vrcp.pop %v1557
      %v1566 = vmul.f32 %v1503, %v1558
      %v1567 = vmul.f32 %v1505, %v1558
      %v1568 = vmul.f32 %v1507, %v1559
      %v1569 = vmul.f32 %v1509, %v1559
      %v1570 = vmul.f32 %v1511, %v1560
      %v1571 = vmul.f32 %v1513, %v1560
      %v1572 = vmul.f32 %v1515, %v1561
      %v1573 = vmul.f32 %v1517, %v1561
      %v1574 = vmul.f32 %v1519, %v1562
      %v1575 = vmul.f32 %v1521, %v1562
      %v1576 = vmul.f32 %v1523, %v1563
      %v1577 = vmul.f32 %v1525, %v1563
      %v1578 = vmul.f32 %v1527, %v1564
      %v1579 = vmul.f32 %v1529, %v1564
      %v1580 = vmul.f32 %v1531, %v1565
      %v1581 = vmul.f32 %v1533, %v1565
      %v1582 = vld [vmem:[%s526] sm:$0xff]
      %v1583 = vld [vmem:[%s526 + $0x8] sm:$0xff]
      %v1584 = vld [vmem:[%s526 + $0x10] sm:$0xff]
      %v1585 = vld [vmem:[%s526 + $0x18] sm:$0xff]
      %v1586 = vld [vmem:[%s526 + $0x20] sm:$0xff]
      %v1587 = vld [vmem:[%s526 + $0x28] sm:$0xff]
      %v1588 = vld [vmem:[%s526 + $0x30] sm:$0xff]
      %v1589 = vld [vmem:[%s526 + $0x38] sm:$0xff]
      %v1590 = vld [vmem:[%s526 + $0x40] sm:$0xff]
      %v1591 = vld [vmem:[%s526 + $0x48] sm:$0xff]
      %v1592 = vld [vmem:[%s526 + $0x50] sm:$0xff]
      %v1593 = vld [vmem:[%s526 + $0x58] sm:$0xff]
      %v1594 = vld [vmem:[%s526 + $0x60] sm:$0xff]
      %v1595 = vld [vmem:[%s526 + $0x68] sm:$0xff]
      %v1596 = vld [vmem:[%s526 + $0x70] sm:$0xff]
      %v1597 = vld [vmem:[%s526 + $0x78] sm:$0xff]
      %v1598 = vmul.f32 %v1566, %v1041
      %v1599 = vmul.f32 %v1567, %v1042
      %v1600 = vmul.f32 %v1568, %v1043
      %v1601 = vmul.f32 %v1569, %v1044
      %v1602 = vmul.f32 %v1570, %v1045
      %v1603 = vmul.f32 %v1571, %v1046
      %v1604 = vmul.f32 %v1572, %v1047
      %v1605 = vmul.f32 %v1573, %v1048
      %v1606 = vmul.f32 %v1574, %v1049
      %v1607 = vmul.f32 %v1575, %v1050
      %v1608 = vmul.f32 %v1576, %v1051
      %v1609 = vmul.f32 %v1577, %v1052
      %v1610 = vmul.f32 %v1578, %v1053
      %v1611 = vmul.f32 %v1579, %v1054
      %v1612 = vmul.f32 %v1580, %v1055
      %v1613 = vmul.f32 %v1581, %v1056
      %v1614 = vadd.f32 %v1582, %v1598
      %v1615 = vadd.f32 %v1583, %v1599
      %v1616 = vadd.f32 %v1584, %v1600
      %v1617 = vadd.f32 %v1585, %v1601
      %v1618 = vadd.f32 %v1586, %v1602
      %v1619 = vadd.f32 %v1587, %v1603
      %v1620 = vadd.f32 %v1588, %v1604
      %v1621 = vadd.f32 %v1589, %v1605
      %v1622 = vadd.f32 %v1590, %v1606
      %v1623 = vadd.f32 %v1591, %v1607
      %v1624 = vadd.f32 %v1592, %v1608
      %v1625 = vadd.f32 %v1593, %v1609
      %v1626 = vadd.f32 %v1594, %v1610
      %v1627 = vadd.f32 %v1595, %v1611
      %v1628 = vadd.f32 %v1596, %v1612
      %v1629 = vadd.f32 %v1597, %v1613
      %1630 = vst [vmem:[%s526] sm:$0xff] %v1614
      %1631 = vst [vmem:[%s526 + $0x8] sm:$0xff] %v1615
      %1632 = vst [vmem:[%s526 + $0x10] sm:$0xff] %v1616
      %1633 = vst [vmem:[%s526 + $0x18] sm:$0xff] %v1617
      %1634 = vst [vmem:[%s526 + $0x20] sm:$0xff] %v1618
      %1635 = vst [vmem:[%s526 + $0x28] sm:$0xff] %v1619
      %1636 = vst [vmem:[%s526 + $0x30] sm:$0xff] %v1620
      %1637 = vst [vmem:[%s526 + $0x38] sm:$0xff] %v1621
      %1638 = vst [vmem:[%s526 + $0x40] sm:$0xff] %v1622
      %1639 = vst [vmem:[%s526 + $0x48] sm:$0xff] %v1623
      %1640 = vst [vmem:[%s526 + $0x50] sm:$0xff] %v1624
      %1641 = vst [vmem:[%s526 + $0x58] sm:$0xff] %v1625
      %1642 = vst [vmem:[%s526 + $0x60] sm:$0xff] %v1626
      %1643 = vst [vmem:[%s526 + $0x68] sm:$0xff] %v1627
      %1644 = vst [vmem:[%s526 + $0x70] sm:$0xff] %v1628
      %1645 = vst [vmem:[%s526 + $0x78] sm:$0xff] %v1629
      %s1646 = smul.u32 8, %s27
      %p1647 = scmp.lt.s32.totalorder %s26, 1
      %s1648 = scalar_select %p1647, %s26, 1
      %p1649 = scmp.lt.s32.totalorder %s1646, 7
      %s1650 = scalar_select %p1649, %s1646, 7
      %s1651 = smul.addr %s1650, 2
      %s1652 = smul.addr %s1648, 16
      %s1653 = sadd.s32 %s1651, %s1652
      %s1654 = smul.addr %s1653, 8
      %s1655 = scalar_lea.vmem %s10, %s1654
      // Predicated region
      $region65: #{gac_seg2_forward.8} parent=59 // pred_check
        %p1656 = pneg %p297
      $region66: #{gac_seg2_forward.8} parent=59 // pred_check_branch
        %1658 = sbr.rel (%p1656) target = $region68
      $region67: #{gac_seg2_forward.8} parent=59 // pred_region
        %s1659 = smul.u32 8, %s27
      $region68: #{gac_seg2_forward.8} parent=59 // pred_fallthru
        _
    $region60: #{gac_seg2_forward.8} parent=5 // pred_fallthru
      _
    %p1660 = scmp.le.s32.totalorder 2, %s16
    // Predicated region
    $region69: #{gac_seg2_forward.8} parent=5 // pred_check
      %p1661 = pneg %p1660
    $region70: #{gac_seg2_forward.8} parent=5 // pred_check_branch
      %1663 = sbr.rel (%p1661) target = $region72
    $region71: #{gac_seg2_forward.8} parent=5 // pred_region
      %s1664 = ssub.s32 %s16, 2
      // Predicated region
      $region73: #{gac_seg2_forward.8} parent=71 // pred_check
        %p1665 = pneg %p303
      $region74: #{gac_seg2_forward.8} parent=71 // pred_check_branch
        %1667 = sbr.rel (%p1665) target = $region76
      $region75: #{gac_seg2_forward.8} parent=71 // pred_region
        %s1668 = smul.u32 8, %s30
        %p1669 = scmp.lt.s32.totalorder %s29, 1
        %s1670 = scalar_select %p1669, %s29, 1
        %p1671 = scmp.lt.s32.totalorder %s1668, 7
        %s1672 = scalar_select %p1671, %s1668, 7
        %s1673 = smul.addr %s1672, 2
        %s1674 = smul.addr %s1670, 16
        %s1675 = sadd.s32 %s1673, %s1674
        %s1676 = smul.addr %s1675, 8
        %s1677 = scalar_lea.vmem %s10, %s1676
      $region76: #{gac_seg2_forward.8} parent=71 // pred_fallthru
        _
    $region72: #{gac_seg2_forward.8} parent=5 // pred_fallthru
      _
  $region6: #{gac_seg2_forward.8} parent=0 // loop_footer
    %s20 = sadd.s32 1, %s16
  $region7: #{gac_seg2_forward.8} parent=0 // loop_footer_branch
    %15 = sbr.rel target = $region3
  $region8: #{gac_seg2_forward.8} parent=0 // loop_exit
    _

// kernel: gac_seg2_forward.5
$region0: #{gac_seg2_forward.5}
  #allocation0 [shape = 'u32[]', space=smem, size = 0x4, offset = 0x4, fixed_abs, tag = 'smem constant byte address 0x4 - core index']
  #allocation1 [shape = 'u32[72,128]{1,0:T(1,128)}', space=vmem, size = 0x9000, scoped, tag = 'internal scratch']
  #allocation2 [shape = 'f32[8,256]{1,0:T(8,128)}', space=vmem, size = 0x2000, scoped, tag = 'scratch operand']
  %s0 = inlined_call_operand.vmem [shape: f32[2,64,15], index: 0, kind: input, shape index: {}]
  %s1 = inlined_call_operand.vmem [shape: f32[15,64], index: 1, kind: input, shape index: {}]
  %s2 = inlined_call_operand.vmem [shape: f32[1,64], index: 2, kind: input, shape index: {}]
  %s3 = inlined_call_operand.vmem [shape: f32[64,128], index: 3, kind: input, shape index: {}]
  %s4 = inlined_call_operand.vmem [shape: f32[1,128], index: 4, kind: input, shape index: {}]
  %s5 = inlined_call_operand.vmem [shape: f32[128,256], index: 5, kind: input, shape index: {}]
  %s6 = inlined_call_operand.vmem [shape: f32[1,256], index: 6, kind: input, shape index: {}]
  %s7 = inlined_call_operand.vmem [shape: f32[2,1,256], index: 7, kind: output, shape index: {}]
  %s8 = sld [smem:[#allocation0]]
  $region69: #{gac_seg2_forward.5} parent=0
    _
  %s10 = ssub.s32 1, %s8
  %s11 = scalar_select 0, %s10, %s8
  loop: start=0, step=1, limit=4
  $region2: #{gac_seg2_forward.5} parent=0 // loop_pre_header
    _
  $region3: #{gac_seg2_forward.5} parent=0 // loop_header
    %s13 = sphi 0, %s17
    %p14 = scmp.ge.s32.totalorder %s13, 4
    %s20 = sphi 0, %s32
    %s21 = sphi 0, %s28
    %s22 = sphi 0, %s20
    %s23 = sphi 0, %s21
    %s24 = sphi 0, %s22
    %s25 = sphi 0, %s23
    %s37 = sphi 0, %s39
    %s40 = sphi 0, %s37
    %s41 = sphi 0, %s40
    %s57 = sphi 0, %s41
    %s61 = sphi 0, %s61
    %s63 = sphi 0, %s61
    %s64 = sphi 0, %s63
    %s78 = sphi 0, %s64
    %s82 = sphi 0, %s82
    %s84 = sphi 0, %s82
    %s85 = sphi 0, %s84
    %s99 = sphi 0, %s85
    %s103 = sphi 0, %s103
    %s105 = sphi 0, %s103
    %s106 = sphi 0, %s105
    %s120 = sphi 0, %s106
    %s124 = sphi 0, %s124
    %s126 = sphi 0, %s124
    %s127 = sphi 0, %s126
    %s141 = sphi 0, %s127
    %s145 = sphi 0, %s145
    %s147 = sphi 0, %s145
    %s148 = sphi 0, %s147
    %s162 = sphi 0, %s148
    %s166 = sphi 0, %s166
    %s168 = sphi 0, %s166
    %s169 = sphi 0, %s168
    %s183 = sphi 0, %s169
    %s189 = sphi 0, %s191
    %s192 = sphi 0, %s189
    %s193 = sphi 0, %s192
    %s209 = sphi 0, %s193
  $region4: #{gac_seg2_forward.5} parent=0 // loop_header_branch
    %16 = sbr.rel (%p14) target = $region8
  $region5: #{gac_seg2_forward.5} parent=0 // loop_body
    %s18 = ssub.s32 %s13, 1
    %s19 = ssub.s32 %s13, 2
    %s26 = sadd.s32 1, %s21
    %p27 = scmp.ge.s32.totalorder %s26, 1
    %s28 = scalar_select %p27, 0, %s26
    %s29 = sadd.s32 1, %s20
    %s30 = scalar_select %p27, %s29, %s20
    %p31 = scmp.ge.s32.totalorder %s30, 2
    %s32 = scalar_select %p31, 0, %s30
    %s33 = ssub.s32 %s20, %s32
    %s34 = ssub.s32 %s21, %s28
    %s35 = sor.u32 %s33, %s34
    %p36 = scmp.eq.s32.totalorder %s35, 0
    %s38 = sadd.s32 %s37, 1
    %s39 = scalar_select %p36, %s37, %s38
    %p42 = pneg %p36
    %p43 = scmp.eq.s32.totalorder %s13, 1
    %p44 = por %p42, %p43
    %p45 = scmp.ne.s32.totalorder %s37, %s40
    %p46 = scmp.eq.s32.totalorder %s13, 0
    %p47 = por %p45, %p46
    %p48 = scmp.ne.s32.totalorder %s37, %s40
    %p49 = scmp.eq.s32.totalorder %s18, 1
    %p50 = por %p48, %p49
    %p51 = scmp.ne.s32.totalorder %s40, %s41
    %p52 = scmp.eq.s32.totalorder %s18, 0
    %p53 = por %p51, %p52
    %p54 = scmp.ne.s32.totalorder %s40, %s41
    %p55 = scmp.eq.s32.totalorder %s19, 1
    %p56 = por %p54, %p55
    %p58 = scmp.ne.s32.totalorder %s41, %s57
    %p59 = scmp.eq.s32.totalorder %s19, 0
    %p60 = por %p58, %p59
    %s62 = sadd.s32 %s61, 1
    %p65 = scmp.eq.s32.totalorder %s13, 1
    %p66 = scmp.ne.s32.totalorder %s61, %s63
    %p67 = scmp.eq.s32.totalorder %s13, 0
    %p68 = por %p66, %p67
    %p69 = scmp.ne.s32.totalorder %s61, %s63
    %p70 = scmp.eq.s32.totalorder %s18, 1
    %p71 = por %p69, %p70
    %p72 = scmp.ne.s32.totalorder %s63, %s64
    %p73 = scmp.eq.s32.totalorder %s18, 0
    %p74 = por %p72, %p73
    %p75 = scmp.ne.s32.totalorder %s63, %s64
    %p76 = scmp.eq.s32.totalorder %s19, 1
    %p77 = por %p75, %p76
    %p79 = scmp.ne.s32.totalorder %s64, %s78
    %p80 = scmp.eq.s32.totalorder %s19, 0
    %p81 = por %p79, %p80
    %s83 = sadd.s32 %s82, 1
    %p86 = scmp.eq.s32.totalorder %s13, 1
    %p87 = scmp.ne.s32.totalorder %s82, %s84
    %p88 = scmp.eq.s32.totalorder %s13, 0
    %p89 = por %p87, %p88
    %p90 = scmp.ne.s32.totalorder %s82, %s84
    %p91 = scmp.eq.s32.totalorder %s18, 1
    %p92 = por %p90, %p91
    %p93 = scmp.ne.s32.totalorder %s84, %s85
    %p94 = scmp.eq.s32.totalorder %s18, 0
    %p95 = por %p93, %p94
    %p96 = scmp.ne.s32.totalorder %s84, %s85
    %p97 = scmp.eq.s32.totalorder %s19, 1
    %p98 = por %p96, %p97
    %p100 = scmp.ne.s32.totalorder %s85, %s99
    %p101 = scmp.eq.s32.totalorder %s19, 0
    %p102 = por %p100, %p101
    %s104 = sadd.s32 %s103, 1
    %p107 = scmp.eq.s32.totalorder %s13, 1
    %p108 = scmp.ne.s32.totalorder %s103, %s105
    %p109 = scmp.eq.s32.totalorder %s13, 0
    %p110 = por %p108, %p109
    %p111 = scmp.ne.s32.totalorder %s103, %s105
    %p112 = scmp.eq.s32.totalorder %s18, 1
    %p113 = por %p111, %p112
    %p114 = scmp.ne.s32.totalorder %s105, %s106
    %p115 = scmp.eq.s32.totalorder %s18, 0
    %p116 = por %p114, %p115
    %p117 = scmp.ne.s32.totalorder %s105, %s106
    %p118 = scmp.eq.s32.totalorder %s19, 1
    %p119 = por %p117, %p118
    %p121 = scmp.ne.s32.totalorder %s106, %s120
    %p122 = scmp.eq.s32.totalorder %s19, 0
    %p123 = por %p121, %p122
    %s125 = sadd.s32 %s124, 1
    %p128 = scmp.eq.s32.totalorder %s13, 1
    %p129 = scmp.ne.s32.totalorder %s124, %s126
    %p130 = scmp.eq.s32.totalorder %s13, 0
    %p131 = por %p129, %p130
    %p132 = scmp.ne.s32.totalorder %s124, %s126
    %p133 = scmp.eq.s32.totalorder %s18, 1
    %p134 = por %p132, %p133
    %p135 = scmp.ne.s32.totalorder %s126, %s127
    %p136 = scmp.eq.s32.totalorder %s18, 0
    %p137 = por %p135, %p136
    %p138 = scmp.ne.s32.totalorder %s126, %s127
    %p139 = scmp.eq.s32.totalorder %s19, 1
    %p140 = por %p138, %p139
    %p142 = scmp.ne.s32.totalorder %s127, %s141
    %p143 = scmp.eq.s32.totalorder %s19, 0
    %p144 = por %p142, %p143
    %s146 = sadd.s32 %s145, 1
    %p149 = scmp.eq.s32.totalorder %s13, 1
    %p150 = scmp.ne.s32.totalorder %s145, %s147
    %p151 = scmp.eq.s32.totalorder %s13, 0
    %p152 = por %p150, %p151
    %p153 = scmp.ne.s32.totalorder %s145, %s147
    %p154 = scmp.eq.s32.totalorder %s18, 1
    %p155 = por %p153, %p154
    %p156 = scmp.ne.s32.totalorder %s147, %s148
    %p157 = scmp.eq.s32.totalorder %s18, 0
    %p158 = por %p156, %p157
    %p159 = scmp.ne.s32.totalorder %s147, %s148
    %p160 = scmp.eq.s32.totalorder %s19, 1
    %p161 = por %p159, %p160
    %p163 = scmp.ne.s32.totalorder %s148, %s162
    %p164 = scmp.eq.s32.totalorder %s19, 0
    %p165 = por %p163, %p164
    %s167 = sadd.s32 %s166, 1
    %p170 = scmp.eq.s32.totalorder %s13, 1
    %p171 = scmp.ne.s32.totalorder %s166, %s168
    %p172 = scmp.eq.s32.totalorder %s13, 0
    %p173 = por %p171, %p172
    %p174 = scmp.ne.s32.totalorder %s166, %s168
    %p175 = scmp.eq.s32.totalorder %s18, 1
    %p176 = por %p174, %p175
    %p177 = scmp.ne.s32.totalorder %s168, %s169
    %p178 = scmp.eq.s32.totalorder %s18, 0
    %p179 = por %p177, %p178
    %p180 = scmp.ne.s32.totalorder %s168, %s169
    %p181 = scmp.eq.s32.totalorder %s19, 1
    %p182 = por %p180, %p181
    %p184 = scmp.ne.s32.totalorder %s169, %s183
    %p185 = scmp.eq.s32.totalorder %s19, 0
    %p186 = por %p184, %p185
    %s187 = ssub.s32 %s20, %s32
    %p188 = scmp.eq.s32.totalorder %s187, 0
    %s190 = sadd.s32 %s189, 1
    %s191 = scalar_select %p188, %s189, %s190
    %p194 = pneg %p188
    %p195 = scmp.eq.s32.totalorder %s13, 1
    %p196 = por %p194, %p195
    %p197 = scmp.ne.s32.totalorder %s189, %s192
    %p198 = scmp.eq.s32.totalorder %s13, 0
    %p199 = por %p197, %p198
    %p200 = scmp.ne.s32.totalorder %s189, %s192
    %p201 = scmp.eq.s32.totalorder %s18, 1
    %p202 = por %p200, %p201
    %p203 = scmp.ne.s32.totalorder %s192, %s193
    %p204 = scmp.eq.s32.totalorder %s18, 0
    %p205 = por %p203, %p204
    %p206 = scmp.ne.s32.totalorder %s192, %s193
    %p207 = scmp.eq.s32.totalorder %s19, 1
    %p208 = por %p206, %p207
    %p210 = scmp.ne.s32.totalorder %s193, %s209
    %p211 = scmp.eq.s32.totalorder %s19, 0
    %p212 = por %p210, %p211
    %p213 = scmp.le.s32.totalorder 1, %s13
    %p214 = scmp.lt.s32.totalorder %s13, 3
    %p215 = pnand %p213, %p214
    %p216 = pneg %p215
    // Predicated region
    $region9: #{gac_seg2_forward.5} parent=5 // pred_check
      _
    $region10: #{gac_seg2_forward.5} parent=5 // pred_check_branch
      %218 = sbr.rel (%p215) target = $region12
    $region11: #{gac_seg2_forward.5} parent=5 // pred_region
      %s219 = ssub.s32 %s13, 1
      // Predicated region
      $region13: #{gac_seg2_forward.5} parent=11 // pred_check
        %p220 = pneg %p74
      $region14: #{gac_seg2_forward.5} parent=11 // pred_check_branch
        %222 = sbr.rel (%p220) target = $region16
      $region15: #{gac_seg2_forward.5} parent=11 // pred_region
        _
      $region16: #{gac_seg2_forward.5} parent=11 // pred_fallthru
        _
      // Predicated region
      $region17: #{gac_seg2_forward.5} parent=11 // pred_check
        %p223 = pneg %p95
      $region18: #{gac_seg2_forward.5} parent=11 // pred_check_branch
        %225 = sbr.rel (%p223) target = $region20
      $region19: #{gac_seg2_forward.5} parent=11 // pred_region
        _
      $region20: #{gac_seg2_forward.5} parent=11 // pred_fallthru
        _
      // Predicated region
      $region21: #{gac_seg2_forward.5} parent=11 // pred_check
        %p226 = pneg %p116
      $region22: #{gac_seg2_forward.5} parent=11 // pred_check_branch
        %228 = sbr.rel (%p226) target = $region24
      $region23: #{gac_seg2_forward.5} parent=11 // pred_region
        _
      $region24: #{gac_seg2_forward.5} parent=11 // pred_fallthru
        _
      // Predicated region
      $region25: #{gac_seg2_forward.5} parent=11 // pred_check
        %p229 = pneg %p137
      $region26: #{gac_seg2_forward.5} parent=11 // pred_check_branch
        %231 = sbr.rel (%p229) target = $region28
      $region27: #{gac_seg2_forward.5} parent=11 // pred_region
        _
      $region28: #{gac_seg2_forward.5} parent=11 // pred_fallthru
        _
      // Predicated region
      $region29: #{gac_seg2_forward.5} parent=11 // pred_check
        %p232 = pneg %p158
      $region30: #{gac_seg2_forward.5} parent=11 // pred_check_branch
        %234 = sbr.rel (%p232) target = $region32
      $region31: #{gac_seg2_forward.5} parent=11 // pred_region
        _
      $region32: #{gac_seg2_forward.5} parent=11 // pred_fallthru
        _
      // Predicated region
      $region33: #{gac_seg2_forward.5} parent=11 // pred_check
        %p235 = pneg %p179
      $region34: #{gac_seg2_forward.5} parent=11 // pred_check_branch
        %237 = sbr.rel (%p235) target = $region36
      $region35: #{gac_seg2_forward.5} parent=11 // pred_region
        _
      $region36: #{gac_seg2_forward.5} parent=11 // pred_fallthru
        _
    $region12: #{gac_seg2_forward.5} parent=5 // pred_fallthru
      _
    %p238 = scmp.lt.s32.totalorder %s13, 2
    // Predicated region
    $region37: #{gac_seg2_forward.5} parent=5 // pred_check
      %p239 = pneg %p238
    $region38: #{gac_seg2_forward.5} parent=5 // pred_check_branch
      %241 = sbr.rel (%p239) target = $region40
    $region39: #{gac_seg2_forward.5} parent=5 // pred_region
      // Predicated region
      $region41: #{gac_seg2_forward.5} parent=39 // pred_check
        %p242 = pneg %p47
      $region42: #{gac_seg2_forward.5} parent=39 // pred_check_branch
        %244 = sbr.rel (%p242) target = $region44
      $region43: #{gac_seg2_forward.5} parent=39 // pred_region
        %s245 = smul.u32 8, %s21
        %p246 = scmp.lt.s32.totalorder %s20, 1
        %s247 = scalar_select %p246, %s20, 1
        %p248 = scmp.lt.s32.totalorder %s245, 7
        %s249 = scalar_select %p248, %s245, 7
        %s250 = smul.addr %s247, 8
        %s251 = sadd.s32 %s249, %s250
        %s252 = smul.addr %s251, 8
        %s253 = scalar_lea.vmem %s0, %s252
        %s254 = smul.u32 8, %s21
      $region44: #{gac_seg2_forward.5} parent=39 // pred_fallthru
        _
    $region40: #{gac_seg2_forward.5} parent=5 // pred_fallthru
      _
    %p255 = scmp.le.s32.totalorder 1, %s13
    %p256 = scmp.lt.s32.totalorder %s13, 3
    %p257 = pnand %p255, %p256
    %p258 = pneg %p257
    // Predicated region
    $region45: #{gac_seg2_forward.5} parent=5 // pred_check
      _
    $region46: #{gac_seg2_forward.5} parent=5 // pred_check_branch
      %260 = sbr.rel (%p257) target = $region48
    $region47: #{gac_seg2_forward.5} parent=5 // pred_region
      %s261 = ssub.s32 %s13, 1
      %s262 = smul.u32 8, %s23
      %p263 = scmp.lt.s32.totalorder %s22, 1
      %s264 = scalar_select %p263, %s22, 1
      %p265 = scmp.lt.s32.totalorder %s262, 7
      %s266 = scalar_select %p265, %s262, 7
      %s267 = smul.addr %s264, 8
      %s268 = sadd.s32 %s266, %s267
      %s269 = smul.addr %s268, 8
      %s270 = scalar_lea.vmem %s0, %s269
      %p271 = pneg %p53
      %p272 = pneg %p50
      %p273 = pneg %p74
      %p274 = pneg %p71
      %p275 = pneg %p95
      %p276 = pneg %p92
      %p277 = pneg %p116
      %p278 = pneg %p113
      %p279 = pneg %p137
      %p280 = pneg %p134
      %p281 = pneg %p158
      %p282 = pneg %p155
      %p283 = pneg %p179
      %p284 = pneg %p176
      %p285 = pneg %p205
      %p286 = pneg %p202
      %p287 = scmp.lt.s32.totalorder %s22, 1
      %s288 = scalar_select %p287, %s22, 1
      %s289 = smul.addr %s288, 2
      %s290 = scalar_lea.vmem %s7, %s289
      %s291 = smul.u32 8, %s23
      %p292 = scmp.lt.s32.totalorder %s22, 1
      %s293 = scalar_select %p292, %s22, 1
      %p294 = scmp.lt.s32.totalorder %s291, 7
      %s295 = scalar_select %p294, %s291, 7
      %s296 = smul.addr %s293, 8
      %s297 = sadd.s32 %s295, %s296
      %s298 = smul.addr %s297, 8
      %s299 = scalar_lea.vmem %s0, %s298
      %s300 = smul.u32 8, %s23
      %p301 = scmp.lt.s32.totalorder %s22, 1
      %s302 = scalar_select %p301, %s22, 1
      %s303 = smul.addr %s302, 2
      %s304 = scalar_lea.vmem %s7, %s303
      %p305 = scmp.eq.s32.totalorder %s23, 0
      // Predicated region
      $region49: #{gac_seg2_forward.5} parent=47 // pred_check
        %p306 = pneg %p305
      $region50: #{gac_seg2_forward.5} parent=47 // pred_check_branch
        %308 = sbr.rel (%p306) target = $region52
      $region51: #{gac_seg2_forward.5} parent=47 // pred_region
        %309 = vst [vmem:[#allocation2] sm:$0xff] -inf
        %310 = vst [vmem:[#allocation2 + $0x8] sm:$0xff] -inf
      $region52: #{gac_seg2_forward.5} parent=47 // pred_fallthru
        _
      %v311 = vld [vmem:[%s299] sm:$0xff]
      %v312 = vld [vmem:[%s299 + $0x8] sm:$0xff]
      %v313 = vld [vmem:[%s299 + $0x10] sm:$0xff]
      %v314 = vld [vmem:[%s299 + $0x18] sm:$0xff]
      %v315 = vld [vmem:[%s299 + $0x20] sm:$0xff]
      %v316 = vld [vmem:[%s299 + $0x28] sm:$0xff]
      %v317 = vld [vmem:[%s299 + $0x30] sm:$0xff]
      %v318 = vld [vmem:[%s299 + $0x38] sm:$0xff]
      %v319 = vld [vmem:[%s1] sm:$0xff]
      %v320 = vld [vmem:[%s1 + $0x8] sm:$0x7f]
      %v321 = vld [vmem:[%s2] sm:$0x1]
      %v323 = vperm.slane %v321, 0
      %vm325 = vcmask 121856
      %v327 = vsel %vm325, %v311, 0
      %v330 = vsel %vm325, %v312, 0
      %v333 = vsel %vm325, %v313, 0
      %v336 = vsel %vm325, %v314, 0
      %v339 = vsel %vm325, %v315, 0
      %v342 = vsel %vm325, %v316, 0
      %v345 = vsel %vm325, %v317, 0
      %v348 = vsel %vm325, %v318, 0
      %vm350 = vcmask 1046528
      %v352 = vsel %vm350, %v320, 0
      %354 = vmatpush.msra.mxu0 0.0
      %355 = vmatpush.msra.mxu0 0.0
      %356 = vmatpush.msra.mxu0 0.0
      %357 = vmatpush.msra.mxu0 0.0
      %358 = vmatpush.msra.mxu0 0.0
      %359 = vmatpush.msra.mxu0 0.0
      %360 = vmatpush.msra.mxu0 0.0
      %361 = vmatpush.msra.mxu0 0.0
      %362 = vmatpush.msra.mxu0 0.0
      %363 = vmatpush.msra.mxu0 0.0
      %364 = vmatpush.msra.mxu0 0.0
      %365 = vmatpush.msra.mxu0 0.0
      %366 = vmatpush.msra.mxu0 0.0
      %367 = vmatpush.msra.mxu0 0.0
      %368 = vmatpush.msra.mxu0 %v352
      %369 = vmatpush.msra.mxu0 %v319
      %370 = vmatmul.f32.gmra.mxu0 %v327
      %v371 = vpop.f32.mrf.mxu0
      %v372 = vadd.f32 %v323, %v371
      %373 = vmatmul.f32.gmra.mxu0 %v330
      %v374 = vpop.f32.mrf.mxu0
      %v375 = vadd.f32 %v323, %v374
      %376 = vmatmul.f32.gmra.mxu0 %v333
      %v377 = vpop.f32.mrf.mxu0
      %v378 = vadd.f32 %v323, %v377
      %379 = vmatmul.f32.gmra.mxu0 %v336
      %v380 = vpop.f32.mrf.mxu0
      %v381 = vadd.f32 %v323, %v380
      %382 = vmatmul.f32.gmra.mxu0 %v339
      %v383 = vpop.f32.mrf.mxu0
      %v384 = vadd.f32 %v323, %v383
      %385 = vmatmul.f32.gmra.mxu0 %v342
      %v386 = vpop.f32.mrf.mxu0
      %v387 = vadd.f32 %v323, %v386
      %388 = vmatmul.f32.gmra.mxu0 %v345
      %v389 = vpop.f32.mrf.mxu0
      %v390 = vadd.f32 %v323, %v389
      %391 = vmatmul.f32.gmra.mxu0 %v348
      %v392 = vpop.f32.mrf.mxu0
      %v393 = vadd.f32 %v323, %v392
      %394 = vdwg.mxu0
      %v395 = vmul.f32 %v372, 0.01
      %v396 = vmul.f32 %v375, 0.01
      %v397 = vmul.f32 %v378, 0.01
      %v398 = vmul.f32 %v381, 0.01
      %v399 = vmul.f32 %v384, 0.01
      %v400 = vmul.f32 %v387, 0.01
      %v401 = vmul.f32 %v390, 0.01
      %v402 = vmul.f32 %v393, 0.01
      %v403 = vmax.f32 %v372, %v395
      %v404 = vmax.f32 %v375, %v396
      %v405 = vmax.f32 %v378, %v397
      %v406 = vmax.f32 %v381, %v398
      %v407 = vmax.f32 %v384, %v399
      %v408 = vmax.f32 %v387, %v400
      %v409 = vmax.f32 %v390, %v401
      %v410 = vmax.f32 %v393, %v402
      %v411 = vld [vmem:[%s3] sm:$0xff]
      %v412 = vld [vmem:[%s3 + $0x8] sm:$0xff]
      %v413 = vld [vmem:[%s3 + $0x10] sm:$0xff]
      %v414 = vld [vmem:[%s3 + $0x18] sm:$0xff]
      %v415 = vld [vmem:[%s3 + $0x20] sm:$0xff]
      %v416 = vld [vmem:[%s3 + $0x28] sm:$0xff]
      %v417 = vld [vmem:[%s3 + $0x30] sm:$0xff]
      %v418 = vld [vmem:[%s3 + $0x38] sm:$0xff]
      %v419 = vld [vmem:[%s4] sm:$0x1]
      %v421 = vperm.slane %v419, 0
      %vm423 = vcmask 523264
      %v425 = vsel %vm423, %v403, 0
      %v428 = vsel %vm423, %v404, 0
      %v431 = vsel %vm423, %v405, 0
      %v434 = vsel %vm423, %v406, 0
      %v437 = vsel %vm423, %v407, 0
      %v440 = vsel %vm423, %v408, 0
      %v443 = vsel %vm423, %v409, 0
      %v446 = vsel %vm423, %v410, 0
      %448 = vmatpush.msra.mxu0 0.0
      %449 = vmatpush.msra.mxu0 0.0
      %450 = vmatpush.msra.mxu0 0.0
      %451 = vmatpush.msra.mxu0 0.0
      %452 = vmatpush.msra.mxu0 0.0
      %453 = vmatpush.msra.mxu0 0.0
      %454 = vmatpush.msra.mxu0 0.0
      %455 = vmatpush.msra.mxu0 0.0
      %456 = vmatpush.msra.mxu0 %v418
      %457 = vmatpush.msra.mxu0 %v417
      %458 = vmatpush.msra.mxu0 %v416
      %459 = vmatpush.msra.mxu0 %v415
      %460 = vmatpush.msra.mxu0 %v414
      %461 = vmatpush.msra.mxu0 %v413
      %462 = vmatpush.msra.mxu0 %v412
      %463 = vmatpush.msra.mxu0 %v411
      %464 = vmatmul.f32.gmra.mxu0 %v425
      %v465 = vpop.f32.mrf.mxu0
      %v466 = vadd.f32 %v421, %v465
      %467 = vmatmul.f32.gmra.mxu0 %v428
      %v468 = vpop.f32.mrf.mxu0
      %v469 = vadd.f32 %v421, %v468
      %470 = vmatmul.f32.gmra.mxu0 %v431
      %v471 = vpop.f32.mrf.mxu0
      %v472 = vadd.f32 %v421, %v471
      %473 = vmatmul.f32.gmra.mxu0 %v434
      %v474 = vpop.f32.mrf.mxu0
      %v475 = vadd.f32 %v421, %v474
      %476 = vmatmul.f32.gmra.mxu0 %v437
      %v477 = vpop.f32.mrf.mxu0
      %v478 = vadd.f32 %v421, %v477
      %479 = vmatmul.f32.gmra.mxu0 %v440
      %v480 = vpop.f32.mrf.mxu0
      %v481 = vadd.f32 %v421, %v480
      %482 = vmatmul.f32.gmra.mxu0 %v443
      %v483 = vpop.f32.mrf.mxu0
      %v484 = vadd.f32 %v421, %v483
      %485 = vmatmul.f32.gmra.mxu0 %v446
      %v486 = vpop.f32.mrf.mxu0
      %v487 = vadd.f32 %v421, %v486
      %488 = vdwg.mxu0
      %v489 = vmul.f32 %v466, 0.01
      %v490 = vmul.f32 %v469, 0.01
      %v491 = vmul.f32 %v472, 0.01
      %v492 = vmul.f32 %v475, 0.01
      %v493 = vmul.f32 %v478, 0.01
      %v494 = vmul.f32 %v481, 0.01
      %v495 = vmul.f32 %v484, 0.01
      %v496 = vmul.f32 %v487, 0.01
      %v497 = vmax.f32 %v466, %v489
      %v498 = vmax.f32 %v469, %v490
      %v499 = vmax.f32 %v472, %v491
      %v500 = vmax.f32 %v475, %v492
      %v501 = vmax.f32 %v478, %v493
      %v502 = vmax.f32 %v481, %v494
      %v503 = vmax.f32 %v484, %v495
      %v504 = vmax.f32 %v487, %v496
      %v505 = vld [vmem:[%s5] sm:$0xff]
      %v506 = vld [vmem:[%s5 + $0x8] sm:$0xff]
      %v507 = vld [vmem:[%s5 + $0x10] sm:$0xff]
      %v508 = vld [vmem:[%s5 + $0x18] sm:$0xff]
      %v509 = vld [vmem:[%s5 + $0x20] sm:$0xff]
      %v510 = vld [vmem:[%s5 + $0x28] sm:$0xff]
      %v511 = vld [vmem:[%s5 + $0x30] sm:$0xff]
      %v512 = vld [vmem:[%s5 + $0x38] sm:$0xff]
      %v513 = vld [vmem:[%s5 + $0x40] sm:$0xff]
      %v514 = vld [vmem:[%s5 + $0x48] sm:$0xff]
      %v515 = vld [vmem:[%s5 + $0x50] sm:$0xff]
      %v516 = vld [vmem:[%s5 + $0x58] sm:$0xff]
      %v517 = vld [vmem:[%s5 + $0x60] sm:$0xff]
      %v518 = vld [vmem:[%s5 + $0x68] sm:$0xff]
      %v519 = vld [vmem:[%s5 + $0x70] sm:$0xff]
      %v520 = vld [vmem:[%s5 + $0x78] sm:$0xff]
      %v521 = vld [vmem:[%s5 + $0x80] sm:$0xff]
      %v522 = vld [vmem:[%s5 + $0x88] sm:$0xff]
      %v523 = vld [vmem:[%s5 + $0x90] sm:$0xff]
      %v524 = vld [vmem:[%s5 + $0x98] sm:$0xff]
      %v525 = vld [vmem:[%s5 + $0xa0] sm:$0xff]
      %v526 = vld [vmem:[%s5 + $0xa8] sm:$0xff]
      %v527 = vld [vmem:[%s5 + $0xb0] sm:$0xff]
      %v528 = vld [vmem:[%s5 + $0xb8] sm:$0xff]
      %v529 = vld [vmem:[%s5 + $0xc0] sm:$0xff]
      %v530 = vld [vmem:[%s5 + $0xc8] sm:$0xff]
      %v531 = vld [vmem:[%s5 + $0xd0] sm:$0xff]
      %v532 = vld [vmem:[%s5 + $0xd8] sm:$0xff]
      %v533 = vld [vmem:[%s5 + $0xe0] sm:$0xff]
      %v534 = vld [vmem:[%s5 + $0xe8] sm:$0xff]
      %v535 = vld [vmem:[%s5 + $0xf0] sm:$0xff]
      %v536 = vld [vmem:[%s5 + $0xf8] sm:$0xff]
      %v537 = vld [vmem:[%s6] sm:$0x3]
      %v539 = vperm.slane %v537, 0
      %v540 = vperm.slane %v537, 1
      %543 = vmatpush.msra.mxu0 %v535
      %544 = vmatpush.msra.mxu0 %v533
      %545 = vmatpush.msra.mxu0 %v531
      %546 = vmatpush.msra.mxu0 %v529
      %547 = vmatpush.msra.mxu0 %v527
      %548 = vmatpush.msra.mxu0 %v525
      %549 = vmatpush.msra.mxu0 %v523
      %550 = vmatpush.msra.mxu0 %v521
      %551 = vmatpush.msra.mxu0 %v519
      %552 = vmatpush.msra.mxu0 %v517
      %553 = vmatpush.msra.mxu0 %v515
      %554 = vmatpush.msra.mxu0 %v513
      %555 = vmatpush.msra.mxu0 %v511
      %556 = vmatpush.msra.mxu0 %v509
      %557 = vmatpush.msra.mxu0 %v507
      %558 = vmatpush.msra.mxu0 %v505
      %559 = vmatmul.f32.gmra.mxu0 %v497
      %v560 = vpop.f32.mrf.mxu0
      %v561 = vadd.f32 %v539, %v560
      %562 = vmatmul.f32.gmra.mxu0 %v498
      %v563 = vpop.f32.mrf.mxu0
      %v564 = vadd.f32 %v539, %v563
      %565 = vmatmul.f32.gmra.mxu0 %v499
      %v566 = vpop.f32.mrf.mxu0
      %v567 = vadd.f32 %v539, %v566
      %568 = vmatmul.f32.gmra.mxu0 %v500
      %v569 = vpop.f32.mrf.mxu0
      %v570 = vadd.f32 %v539, %v569
      %571 = vmatmul.f32.gmra.mxu0 %v501
      %v572 = vpop.f32.mrf.mxu0
      %v573 = vadd.f32 %v539, %v572
      %574 = vmatmul.f32.gmra.mxu0 %v502
      %v575 = vpop.f32.mrf.mxu0
      %v576 = vadd.f32 %v539, %v575
      %577 = vmatmul.f32.gmra.mxu0 %v503
      %v578 = vpop.f32.mrf.mxu0
      %v579 = vadd.f32 %v539, %v578
      %580 = vmatmul.f32.gmra.mxu0 %v504
      %v581 = vpop.f32.mrf.mxu0
      %v582 = vadd.f32 %v539, %v581
      %583 = vdwg.mxu0
      %584 = vmatpush.msra.mxu0 %v536
      %585 = vmatpush.msra.mxu0 %v534
      %586 = vmatpush.msra.mxu0 %v532
      %587 = vmatpush.msra.mxu0 %v530
      %588 = vmatpush.msra.mxu0 %v528
      %589 = vmatpush.msra.mxu0 %v526
      %590 = vmatpush.msra.mxu0 %v524
      %591 = vmatpush.msra.mxu0 %v522
      %592 = vmatpush.msra.mxu0 %v520
      %593 = vmatpush.msra.mxu0 %v518
      %594 = vmatpush.msra.mxu0 %v516
      %595 = vmatpush.msra.mxu0 %v514
      %596 = vmatpush.msra.mxu0 %v512
      %597 = vmatpush.msra.mxu0 %v510
      %598 = vmatpush.msra.mxu0 %v508
      %599 = vmatpush.msra.mxu0 %v506
      %600 = vmatmul.f32.gmra.mxu0 %v497
      %v601 = vpop.f32.mrf.mxu0
      %v602 = vadd.f32 %v540, %v601
      %603 = vmatmul.f32.gmra.mxu0 %v498
      %v604 = vpop.f32.mrf.mxu0
      %v605 = vadd.f32 %v540, %v604
      %606 = vmatmul.f32.gmra.mxu0 %v499
      %v607 = vpop.f32.mrf.mxu0
      %v608 = vadd.f32 %v540, %v607
      %609 = vmatmul.f32.gmra.mxu0 %v500
      %v610 = vpop.f32.mrf.mxu0
      %v611 = vadd.f32 %v540, %v610
      %612 = vmatmul.f32.gmra.mxu0 %v501
      %v613 = vpop.f32.mrf.mxu0
      %v614 = vadd.f32 %v540, %v613
      %615 = vmatmul.f32.gmra.mxu0 %v502
      %v616 = vpop.f32.mrf.mxu0
      %v617 = vadd.f32 %v540, %v616
      %618 = vmatmul.f32.gmra.mxu0 %v503
      %v619 = vpop.f32.mrf.mxu0
      %v620 = vadd.f32 %v540, %v619
      %621 = vmatmul.f32.gmra.mxu0 %v504
      %v622 = vpop.f32.mrf.mxu0
      %v623 = vadd.f32 %v540, %v622
      %624 = vdwg.mxu0
      %v625 = vmul.f32 %v561, 0.01
      %v626 = vmul.f32 %v602, 0.01
      %v627 = vmul.f32 %v564, 0.01
      %v628 = vmul.f32 %v605, 0.01
      %v629 = vmul.f32 %v567, 0.01
      %v630 = vmul.f32 %v608, 0.01
      %v631 = vmul.f32 %v570, 0.01
      %v632 = vmul.f32 %v611, 0.01
      %v633 = vmul.f32 %v573, 0.01
      %v634 = vmul.f32 %v614, 0.01
      %v635 = vmul.f32 %v576, 0.01
      %v636 = vmul.f32 %v617, 0.01
      %v637 = vmul.f32 %v579, 0.01
      %v638 = vmul.f32 %v620, 0.01
      %v639 = vmul.f32 %v582, 0.01
      %v640 = vmul.f32 %v623, 0.01
      %v641 = vmax.f32 %v561, %v625
      %v642 = vmax.f32 %v602, %v626
      %v643 = vmax.f32 %v564, %v627
      %v644 = vmax.f32 %v605, %v628
      %v645 = vmax.f32 %v567, %v629
      %v646 = vmax.f32 %v608, %v630
      %v647 = vmax.f32 %v570, %v631
      %v648 = vmax.f32 %v611, %v632
      %v649 = vmax.f32 %v573, %v633
      %v650 = vmax.f32 %v614, %v634
      %v651 = vmax.f32 %v576, %v635
      %v652 = vmax.f32 %v617, %v636
      %v653 = vmax.f32 %v579, %v637
      %v654 = vmax.f32 %v620, %v638
      %v655 = vmax.f32 %v582, %v639
      %v656 = vmax.f32 %v623, %v640
      %v657 = vmax.f32 %v641, %v643
      %v658 = vmax.f32 %v642, %v644
      %v659 = vmax.f32 %v645, %v647
      %v660 = vmax.f32 %v646, %v648
      %v661 = vmax.f32 %v649, %v651
      %v662 = vmax.f32 %v650, %v652
      %v663 = vmax.f32 %v653, %v655
      %v664 = vmax.f32 %v654, %v656
      %v665 = vmax.f32 %v657, %v659
      %v666 = vmax.f32 %v658, %v660
      %v667 = vmax.f32 %v661, %v663
      %v668 = vmax.f32 %v662, %v664
      %v669 = vmax.f32 %v665, %v667
      %v670 = vmax.f32 %v666, %v668
      %v671 = vld [vmem:[#allocation2] sm:$0xff]
      %v672 = vld [vmem:[#allocation2 + $0x8] sm:$0xff]
      %v673 = vmax.f32 %v671, %v669
      %v674 = vmax.f32 %v672, %v670
      %675 = vst [vmem:[#allocation2] sm:$0xff] %v673
      %676 = vst [vmem:[#allocation2 + $0x8] sm:$0xff] %v674
      // Predicated region
      $region53: #{gac_seg2_forward.5} parent=47 // pred_check
        %p677 = pneg %p305
      $region54: #{gac_seg2_forward.5} parent=47 // pred_check_branch
        %679 = sbr.rel (%p677) target = $region56
      $region55: #{gac_seg2_forward.5} parent=47 // pred_region
        %v680 = vld [vmem:[#allocation2] sm:$0xff]
        %v681 = vld [vmem:[#allocation2 + $0x8] sm:$0xff]
        %v682 = vrot.slane %v680, 4
        %v683 = vmax.f32 %v680, %v682
        %v684 = vrot.slane %v683, 2
        %v685 = vmax.f32 %v683, %v684
        %v686 = vrot.slane %v685, 1
        %v687 = vmax.f32 %v685, %v686
        %v688 = vrot.slane %v681, 4
        %v689 = vmax.f32 %v681, %v688
        %v690 = vrot.slane %v689, 2
        %v691 = vmax.f32 %v689, %v690
        %v692 = vrot.slane %v691, 1
        %v693 = vmax.f32 %v691, %v692
        %v696 = vrot.slane %v693, 7
        %vm697 = vcmask 1040384
        %v698 = vsel %vm697, %v687, %v696
        %v700 = vlaneseq
        %vm701 = vcmp.ge.s32.totalorder %v700, 0
        %vm702 = vcmp.lt.s32.totalorder %v700, 256
        %vm703 = vmand %vm701, %vm702
        %704 = vst.msk [vmem:[%s304] sm:$0x3] %vm703, %v698
      $region56: #{gac_seg2_forward.5} parent=47 // pred_fallthru
        _
      %p705 = scmp.lt.s32.totalorder %s22, 1
      %s706 = scalar_select %p705, %s22, 1
      %s707 = smul.addr %s706, 2
      %s708 = scalar_lea.vmem %s7, %s707
      // Predicated region
      $region57: #{gac_seg2_forward.5} parent=47 // pred_check
        %p709 = pneg %p202
      $region58: #{gac_seg2_forward.5} parent=47 // pred_check_branch
        %711 = sbr.rel (%p709) target = $region60
      $region59: #{gac_seg2_forward.5} parent=47 // pred_region
        _
      $region60: #{gac_seg2_forward.5} parent=47 // pred_fallthru
        _
    $region48: #{gac_seg2_forward.5} parent=5 // pred_fallthru
      _
    %p712 = scmp.le.s32.totalorder 2, %s13
    // Predicated region
    $region61: #{gac_seg2_forward.5} parent=5 // pred_check
      %p713 = pneg %p712
    $region62: #{gac_seg2_forward.5} parent=5 // pred_check_branch
      %715 = sbr.rel (%p713) target = $region64
    $region63: #{gac_seg2_forward.5} parent=5 // pred_region
      %s716 = ssub.s32 %s13, 2
      // Predicated region
      $region65: #{gac_seg2_forward.5} parent=63 // pred_check
        %p717 = pneg %p208
      $region66: #{gac_seg2_forward.5} parent=63 // pred_check_branch
        %719 = sbr.rel (%p717) target = $region68
      $region67: #{gac_seg2_forward.5} parent=63 // pred_region
        %p720 = scmp.lt.s32.totalorder %s24, 1
        %s721 = scalar_select %p720, %s24, 1
        %s722 = smul.addr %s721, 2
        %s723 = scalar_lea.vmem %s7, %s722
      $region68: #{gac_seg2_forward.5} parent=63 // pred_fallthru
        _
    $region64: #{gac_seg2_forward.5} parent=5 // pred_fallthru
      _
  $region6: #{gac_seg2_forward.5} parent=0 // loop_footer
    %s17 = sadd.s32 1, %s13
  $region7: #{gac_seg2_forward.5} parent=0 // loop_footer_branch
    %12 = sbr.rel target = $region3
  $region8: #{gac_seg2_forward.5} parent=0 // loop_exit
    _

// kernel: gac_seg2_forward.9
$region0: #{gac_seg2_forward.9}
  #allocation0 [shape = 'u32[]', space=smem, size = 0x4, offset = 0x4, fixed_abs, tag = 'smem constant byte address 0x4 - core index']
  #allocation1 [shape = 'u32[72,128]{1,0:T(1,128)}', space=vmem, size = 0x9000, scoped, tag = 'internal scratch']
  %s0 = inlined_call_operand.vmem [shape: f32[2,64,448], index: 0, kind: input, shape index: {}]
  %s1 = inlined_call_operand.vmem [shape: f32[2,1,512], index: 1, kind: input, shape index: {}]
  %s2 = inlined_call_operand.vmem [shape: f32[448,256], index: 2, kind: input, shape index: {}]
  %s3 = inlined_call_operand.vmem [shape: f32[1,256], index: 3, kind: input, shape index: {}]
  %s4 = inlined_call_operand.vmem [shape: f32[256,512], index: 4, kind: input, shape index: {}]
  %s5 = inlined_call_operand.vmem [shape: f32[1,512], index: 5, kind: input, shape index: {}]
  %s6 = inlined_call_operand.vmem [shape: f32[512,256], index: 6, kind: input, shape index: {}]
  %s7 = inlined_call_operand.vmem [shape: f32[1,256], index: 7, kind: input, shape index: {}]
  %s8 = inlined_call_operand.vmem [shape: f32[256,128], index: 8, kind: input, shape index: {}]
  %s9 = inlined_call_operand.vmem [shape: f32[1,128], index: 9, kind: input, shape index: {}]
  %s10 = inlined_call_operand.vmem [shape: f32[128,128], index: 10, kind: input, shape index: {}]
  %s11 = inlined_call_operand.vmem [shape: f32[1,128], index: 11, kind: input, shape index: {}]
  %s12 = inlined_call_operand.vmem [shape: f32[2,64,128], index: 12, kind: output, shape index: {}]
  %s13 = sld [smem:[#allocation0]]
  $region81: #{gac_seg2_forward.9} parent=0
    _
  %s15 = ssub.s32 1, %s13
  %s16 = scalar_select 0, %s15, %s13
  loop: start=0, step=1, limit=4
  $region2: #{gac_seg2_forward.9} parent=0 // loop_pre_header
    _
  $region3: #{gac_seg2_forward.9} parent=0 // loop_header
    %s18 = sphi 0, %s22
    %p19 = scmp.ge.s32.totalorder %s18, 4
    %s25 = sphi 0, %s37
    %s26 = sphi 0, %s33
    %s27 = sphi 0, %s25
    %s28 = sphi 0, %s26
    %s29 = sphi 0, %s27
    %s30 = sphi 0, %s28
    %s42 = sphi 0, %s44
    %s45 = sphi 0, %s42
    %s46 = sphi 0, %s45
    %s62 = sphi 0, %s46
    %s68 = sphi 0, %s70
    %s71 = sphi 0, %s68
    %s72 = sphi 0, %s71
    %s88 = sphi 0, %s72
    %s92 = sphi 0, %s92
    %s94 = sphi 0, %s92
    %s95 = sphi 0, %s94
    %s109 = sphi 0, %s95
    %s113 = sphi 0, %s113
    %s115 = sphi 0, %s113
    %s116 = sphi 0, %s115
    %s130 = sphi 0, %s116
    %s134 = sphi 0, %s134
    %s136 = sphi 0, %s134
    %s137 = sphi 0, %s136
    %s151 = sphi 0, %s137
    %s155 = sphi 0, %s155
    %s157 = sphi 0, %s155
    %s158 = sphi 0, %s157
    %s172 = sphi 0, %s158
    %s176 = sphi 0, %s176
    %s178 = sphi 0, %s176
    %s179 = sphi 0, %s178
    %s193 = sphi 0, %s179
    %s197 = sphi 0, %s197
    %s199 = sphi 0, %s197
    %s200 = sphi 0, %s199
    %s214 = sphi 0, %s200
    %s218 = sphi 0, %s218
    %s220 = sphi 0, %s218
    %s221 = sphi 0, %s220
    %s235 = sphi 0, %s221
    %s239 = sphi 0, %s239
    %s241 = sphi 0, %s239
    %s242 = sphi 0, %s241
    %s256 = sphi 0, %s242
    %s260 = sphi 0, %s260
    %s262 = sphi 0, %s260
    %s263 = sphi 0, %s262
    %s277 = sphi 0, %s263
    %s281 = sphi 0, %s281
    %s283 = sphi 0, %s281
    %s284 = sphi 0, %s283
    %s298 = sphi 0, %s284
    %s306 = sphi 0, %s308
    %s309 = sphi 0, %s306
    %s310 = sphi 0, %s309
    %s326 = sphi 0, %s310
  $region4: #{gac_seg2_forward.9} parent=0 // loop_header_branch
    %21 = sbr.rel (%p19) target = $region8
  $region5: #{gac_seg2_forward.9} parent=0 // loop_body
    %s23 = ssub.s32 %s18, 1
    %s24 = ssub.s32 %s18, 2
    %s31 = sadd.s32 1, %s26
    %p32 = scmp.ge.s32.totalorder %s31, 1
    %s33 = scalar_select %p32, 0, %s31
    %s34 = sadd.s32 1, %s25
    %s35 = scalar_select %p32, %s34, %s25
    %p36 = scmp.ge.s32.totalorder %s35, 2
    %s37 = scalar_select %p36, 0, %s35
    %s38 = ssub.s32 %s25, %s37
    %s39 = ssub.s32 %s26, %s33
    %s40 = sor.u32 %s38, %s39
    %p41 = scmp.eq.s32.totalorder %s40, 0
    %s43 = sadd.s32 %s42, 1
    %s44 = scalar_select %p41, %s42, %s43
    %p47 = pneg %p41
    %p48 = scmp.eq.s32.totalorder %s18, 1
    %p49 = por %p47, %p48
    %p50 = scmp.ne.s32.totalorder %s42, %s45
    %p51 = scmp.eq.s32.totalorder %s18, 0
    %p52 = por %p50, %p51
    %p53 = scmp.ne.s32.totalorder %s42, %s45
    %p54 = scmp.eq.s32.totalorder %s23, 1
    %p55 = por %p53, %p54
    %p56 = scmp.ne.s32.totalorder %s45, %s46
    %p57 = scmp.eq.s32.totalorder %s23, 0
    %p58 = por %p56, %p57
    %p59 = scmp.ne.s32.totalorder %s45, %s46
    %p60 = scmp.eq.s32.totalorder %s24, 1
    %p61 = por %p59, %p60
    %p63 = scmp.ne.s32.totalorder %s46, %s62
    %p64 = scmp.eq.s32.totalorder %s24, 0
    %p65 = por %p63, %p64
    %s66 = ssub.s32 %s25, %s37
    %p67 = scmp.eq.s32.totalorder %s66, 0
    %s69 = sadd.s32 %s68, 1
    %s70 = scalar_select %p67, %s68, %s69
    %p73 = pneg %p67
    %p74 = scmp.eq.s32.totalorder %s18, 1
    %p75 = por %p73, %p74
    %p76 = scmp.ne.s32.totalorder %s68, %s71
    %p77 = scmp.eq.s32.totalorder %s18, 0
    %p78 = por %p76, %p77
    %p79 = scmp.ne.s32.totalorder %s68, %s71
    %p80 = scmp.eq.s32.totalorder %s23, 1
    %p81 = por %p79, %p80
    %p82 = scmp.ne.s32.totalorder %s71, %s72
    %p83 = scmp.eq.s32.totalorder %s23, 0
    %p84 = por %p82, %p83
    %p85 = scmp.ne.s32.totalorder %s71, %s72
    %p86 = scmp.eq.s32.totalorder %s24, 1
    %p87 = por %p85, %p86
    %p89 = scmp.ne.s32.totalorder %s72, %s88
    %p90 = scmp.eq.s32.totalorder %s24, 0
    %p91 = por %p89, %p90
    %s93 = sadd.s32 %s92, 1
    %p96 = scmp.eq.s32.totalorder %s18, 1
    %p97 = scmp.ne.s32.totalorder %s92, %s94
    %p98 = scmp.eq.s32.totalorder %s18, 0
    %p99 = por %p97, %p98
    %p100 = scmp.ne.s32.totalorder %s92, %s94
    %p101 = scmp.eq.s32.totalorder %s23, 1
    %p102 = por %p100, %p101
    %p103 = scmp.ne.s32.totalorder %s94, %s95
    %p104 = scmp.eq.s32.totalorder %s23, 0
    %p105 = por %p103, %p104
    %p106 = scmp.ne.s32.totalorder %s94, %s95
    %p107 = scmp.eq.s32.totalorder %s24, 1
    %p108 = por %p106, %p107
    %p110 = scmp.ne.s32.totalorder %s95, %s109
    %p111 = scmp.eq.s32.totalorder %s24, 0
    %p112 = por %p110, %p111
    %s114 = sadd.s32 %s113, 1
    %p117 = scmp.eq.s32.totalorder %s18, 1
    %p118 = scmp.ne.s32.totalorder %s113, %s115
    %p119 = scmp.eq.s32.totalorder %s18, 0
    %p120 = por %p118, %p119
    %p121 = scmp.ne.s32.totalorder %s113, %s115
    %p122 = scmp.eq.s32.totalorder %s23, 1
    %p123 = por %p121, %p122
    %p124 = scmp.ne.s32.totalorder %s115, %s116
    %p125 = scmp.eq.s32.totalorder %s23, 0
    %p126 = por %p124, %p125
    %p127 = scmp.ne.s32.totalorder %s115, %s116
    %p128 = scmp.eq.s32.totalorder %s24, 1
    %p129 = por %p127, %p128
    %p131 = scmp.ne.s32.totalorder %s116, %s130
    %p132 = scmp.eq.s32.totalorder %s24, 0
    %p133 = por %p131, %p132
    %s135 = sadd.s32 %s134, 1
    %p138 = scmp.eq.s32.totalorder %s18, 1
    %p139 = scmp.ne.s32.totalorder %s134, %s136
    %p140 = scmp.eq.s32.totalorder %s18, 0
    %p141 = por %p139, %p140
    %p142 = scmp.ne.s32.totalorder %s134, %s136
    %p143 = scmp.eq.s32.totalorder %s23, 1
    %p144 = por %p142, %p143
    %p145 = scmp.ne.s32.totalorder %s136, %s137
    %p146 = scmp.eq.s32.totalorder %s23, 0
    %p147 = por %p145, %p146
    %p148 = scmp.ne.s32.totalorder %s136, %s137
    %p149 = scmp.eq.s32.totalorder %s24, 1
    %p150 = por %p148, %p149
    %p152 = scmp.ne.s32.totalorder %s137, %s151
    %p153 = scmp.eq.s32.totalorder %s24, 0
    %p154 = por %p152, %p153
    %s156 = sadd.s32 %s155, 1
    %p159 = scmp.eq.s32.totalorder %s18, 1
    %p160 = scmp.ne.s32.totalorder %s155, %s157
    %p161 = scmp.eq.s32.totalorder %s18, 0
    %p162 = por %p160, %p161
    %p163 = scmp.ne.s32.totalorder %s155, %s157
    %p164 = scmp.eq.s32.totalorder %s23, 1
    %p165 = por %p163, %p164
    %p166 = scmp.ne.s32.totalorder %s157, %s158
    %p167 = scmp.eq.s32.totalorder %s23, 0
    %p168 = por %p166, %p167
    %p169 = scmp.ne.s32.totalorder %s157, %s158
    %p170 = scmp.eq.s32.totalorder %s24, 1
    %p171 = por %p169, %p170
    %p173 = scmp.ne.s32.totalorder %s158, %s172
    %p174 = scmp.eq.s32.totalorder %s24, 0
    %p175 = por %p173, %p174
    %s177 = sadd.s32 %s176, 1
    %p180 = scmp.eq.s32.totalorder %s18, 1
    %p181 = scmp.ne.s32.totalorder %s176, %s178
    %p182 = scmp.eq.s32.totalorder %s18, 0
    %p183 = por %p181, %p182
    %p184 = scmp.ne.s32.totalorder %s176, %s178
    %p185 = scmp.eq.s32.totalorder %s23, 1
    %p186 = por %p184, %p185
    %p187 = scmp.ne.s32.totalorder %s178, %s179
    %p188 = scmp.eq.s32.totalorder %s23, 0
    %p189 = por %p187, %p188
    %p190 = scmp.ne.s32.totalorder %s178, %s179
    %p191 = scmp.eq.s32.totalorder %s24, 1
    %p192 = por %p190, %p191
    %p194 = scmp.ne.s32.totalorder %s179, %s193
    %p195 = scmp.eq.s32.totalorder %s24, 0
    %p196 = por %p194, %p195
    %s198 = sadd.s32 %s197, 1
    %p201 = scmp.eq.s32.totalorder %s18, 1
    %p202 = scmp.ne.s32.totalorder %s197, %s199
    %p203 = scmp.eq.s32.totalorder %s18, 0
    %p204 = por %p202, %p203
    %p205 = scmp.ne.s32.totalorder %s197, %s199
    %p206 = scmp.eq.s32.totalorder %s23, 1
    %p207 = por %p205, %p206
    %p208 = scmp.ne.s32.totalorder %s199, %s200
    %p209 = scmp.eq.s32.totalorder %s23, 0
    %p210 = por %p208, %p209
    %p211 = scmp.ne.s32.totalorder %s199, %s200
    %p212 = scmp.eq.s32.totalorder %s24, 1
    %p213 = por %p211, %p212
    %p215 = scmp.ne.s32.totalorder %s200, %s214
    %p216 = scmp.eq.s32.totalorder %s24, 0
    %p217 = por %p215, %p216
    %s219 = sadd.s32 %s218, 1
    %p222 = scmp.eq.s32.totalorder %s18, 1
    %p223 = scmp.ne.s32.totalorder %s218, %s220
    %p224 = scmp.eq.s32.totalorder %s18, 0
    %p225 = por %p223, %p224
    %p226 = scmp.ne.s32.totalorder %s218, %s220
    %p227 = scmp.eq.s32.totalorder %s23, 1
    %p228 = por %p226, %p227
    %p229 = scmp.ne.s32.totalorder %s220, %s221
    %p230 = scmp.eq.s32.totalorder %s23, 0
    %p231 = por %p229, %p230
    %p232 = scmp.ne.s32.totalorder %s220, %s221
    %p233 = scmp.eq.s32.totalorder %s24, 1
    %p234 = por %p232, %p233
    %p236 = scmp.ne.s32.totalorder %s221, %s235
    %p237 = scmp.eq.s32.totalorder %s24, 0
    %p238 = por %p236, %p237
    %s240 = sadd.s32 %s239, 1
    %p243 = scmp.eq.s32.totalorder %s18, 1
    %p244 = scmp.ne.s32.totalorder %s239, %s241
    %p245 = scmp.eq.s32.totalorder %s18, 0
    %p246 = por %p244, %p245
    %p247 = scmp.ne.s32.totalorder %s239, %s241
    %p248 = scmp.eq.s32.totalorder %s23, 1
    %p249 = por %p247, %p248
    %p250 = scmp.ne.s32.totalorder %s241, %s242
    %p251 = scmp.eq.s32.totalorder %s23, 0
    %p252 = por %p250, %p251
    %p253 = scmp.ne.s32.totalorder %s241, %s242
    %p254 = scmp.eq.s32.totalorder %s24, 1
    %p255 = por %p253, %p254
    %p257 = scmp.ne.s32.totalorder %s242, %s256
    %p258 = scmp.eq.s32.totalorder %s24, 0
    %p259 = por %p257, %p258
    %s261 = sadd.s32 %s260, 1
    %p264 = scmp.eq.s32.totalorder %s18, 1
    %p265 = scmp.ne.s32.totalorder %s260, %s262
    %p266 = scmp.eq.s32.totalorder %s18, 0
    %p267 = por %p265, %p266
    %p268 = scmp.ne.s32.totalorder %s260, %s262
    %p269 = scmp.eq.s32.totalorder %s23, 1
    %p270 = por %p268, %p269
    %p271 = scmp.ne.s32.totalorder %s262, %s263
    %p272 = scmp.eq.s32.totalorder %s23, 0
    %p273 = por %p271, %p272
    %p274 = scmp.ne.s32.totalorder %s262, %s263
    %p275 = scmp.eq.s32.totalorder %s24, 1
    %p276 = por %p274, %p275
    %p278 = scmp.ne.s32.totalorder %s263, %s277
    %p279 = scmp.eq.s32.totalorder %s24, 0
    %p280 = por %p278, %p279
    %s282 = sadd.s32 %s281, 1
    %p285 = scmp.eq.s32.totalorder %s18, 1
    %p286 = scmp.ne.s32.totalorder %s281, %s283
    %p287 = scmp.eq.s32.totalorder %s18, 0
    %p288 = por %p286, %p287
    %p289 = scmp.ne.s32.totalorder %s281, %s283
    %p290 = scmp.eq.s32.totalorder %s23, 1
    %p291 = por %p289, %p290
    %p292 = scmp.ne.s32.totalorder %s283, %s284
    %p293 = scmp.eq.s32.totalorder %s23, 0
    %p294 = por %p292, %p293
    %p295 = scmp.ne.s32.totalorder %s283, %s284
    %p296 = scmp.eq.s32.totalorder %s24, 1
    %p297 = por %p295, %p296
    %p299 = scmp.ne.s32.totalorder %s284, %s298
    %p300 = scmp.eq.s32.totalorder %s24, 0
    %p301 = por %p299, %p300
    %s302 = ssub.s32 %s25, %s37
    %s303 = ssub.s32 %s26, %s33
    %s304 = sor.u32 %s302, %s303
    %p305 = scmp.eq.s32.totalorder %s304, 0
    %s307 = sadd.s32 %s306, 1
    %s308 = scalar_select %p305, %s306, %s307
    %p311 = pneg %p305
    %p312 = scmp.eq.s32.totalorder %s18, 1
    %p313 = por %p311, %p312
    %p314 = scmp.ne.s32.totalorder %s306, %s309
    %p315 = scmp.eq.s32.totalorder %s18, 0
    %p316 = por %p314, %p315
    %p317 = scmp.ne.s32.totalorder %s306, %s309
    %p318 = scmp.eq.s32.totalorder %s23, 1
    %p319 = por %p317, %p318
    %p320 = scmp.ne.s32.totalorder %s309, %s310
    %p321 = scmp.eq.s32.totalorder %s23, 0
    %p322 = por %p320, %p321
    %p323 = scmp.ne.s32.totalorder %s309, %s310
    %p324 = scmp.eq.s32.totalorder %s24, 1
    %p325 = por %p323, %p324
    %p327 = scmp.ne.s32.totalorder %s310, %s326
    %p328 = scmp.eq.s32.totalorder %s24, 0
    %p329 = por %p327, %p328
    %p330 = scmp.le.s32.totalorder 1, %s18
    %p331 = scmp.lt.s32.totalorder %s18, 3
    %p332 = pnand %p330, %p331
    %p333 = pneg %p332
    // Predicated region
    $region9: #{gac_seg2_forward.9} parent=5 // pred_check
      _
    $region10: #{gac_seg2_forward.9} parent=5 // pred_check_branch
      %335 = sbr.rel (%p332) target = $region12
    $region11: #{gac_seg2_forward.9} parent=5 // pred_region
      %s336 = ssub.s32 %s18, 1
      // Predicated region
      $region13: #{gac_seg2_forward.9} parent=11 // pred_check
        %p337 = pneg %p105
      $region14: #{gac_seg2_forward.9} parent=11 // pred_check_branch
        %339 = sbr.rel (%p337) target = $region16
      $region15: #{gac_seg2_forward.9} parent=11 // pred_region
        _
      $region16: #{gac_seg2_forward.9} parent=11 // pred_fallthru
        _
      // Predicated region
      $region17: #{gac_seg2_forward.9} parent=11 // pred_check
        %p340 = pneg %p126
      $region18: #{gac_seg2_forward.9} parent=11 // pred_check_branch
        %342 = sbr.rel (%p340) target = $region20
      $region19: #{gac_seg2_forward.9} parent=11 // pred_region
        _
      $region20: #{gac_seg2_forward.9} parent=11 // pred_fallthru
        _
      // Predicated region
      $region21: #{gac_seg2_forward.9} parent=11 // pred_check
        %p343 = pneg %p147
      $region22: #{gac_seg2_forward.9} parent=11 // pred_check_branch
        %345 = sbr.rel (%p343) target = $region24
      $region23: #{gac_seg2_forward.9} parent=11 // pred_region
        _
      $region24: #{gac_seg2_forward.9} parent=11 // pred_fallthru
        _
      // Predicated region
      $region25: #{gac_seg2_forward.9} parent=11 // pred_check
        %p346 = pneg %p168
      $region26: #{gac_seg2_forward.9} parent=11 // pred_check_branch
        %348 = sbr.rel (%p346) target = $region28
      $region27: #{gac_seg2_forward.9} parent=11 // pred_region
        _
      $region28: #{gac_seg2_forward.9} parent=11 // pred_fallthru
        _
      // Predicated region
      $region29: #{gac_seg2_forward.9} parent=11 // pred_check
        %p349 = pneg %p189
      $region30: #{gac_seg2_forward.9} parent=11 // pred_check_branch
        %351 = sbr.rel (%p349) target = $region32
      $region31: #{gac_seg2_forward.9} parent=11 // pred_region
        _
      $region32: #{gac_seg2_forward.9} parent=11 // pred_fallthru
        _
      // Predicated region
      $region33: #{gac_seg2_forward.9} parent=11 // pred_check
        %p352 = pneg %p210
      $region34: #{gac_seg2_forward.9} parent=11 // pred_check_branch
        %354 = sbr.rel (%p352) target = $region36
      $region35: #{gac_seg2_forward.9} parent=11 // pred_region
        _
      $region36: #{gac_seg2_forward.9} parent=11 // pred_fallthru
        _
      // Predicated region
      $region37: #{gac_seg2_forward.9} parent=11 // pred_check
        %p355 = pneg %p231
      $region38: #{gac_seg2_forward.9} parent=11 // pred_check_branch
        %357 = sbr.rel (%p355) target = $region40
      $region39: #{gac_seg2_forward.9} parent=11 // pred_region
        _
      $region40: #{gac_seg2_forward.9} parent=11 // pred_fallthru
        _
      // Predicated region
      $region41: #{gac_seg2_forward.9} parent=11 // pred_check
        %p358 = pneg %p252
      $region42: #{gac_seg2_forward.9} parent=11 // pred_check_branch
        %360 = sbr.rel (%p358) target = $region44
      $region43: #{gac_seg2_forward.9} parent=11 // pred_region
        _
      $region44: #{gac_seg2_forward.9} parent=11 // pred_fallthru
        _
      // Predicated region
      $region45: #{gac_seg2_forward.9} parent=11 // pred_check
        %p361 = pneg %p273
      $region46: #{gac_seg2_forward.9} parent=11 // pred_check_branch
        %363 = sbr.rel (%p361) target = $region48
      $region47: #{gac_seg2_forward.9} parent=11 // pred_region
        _
      $region48: #{gac_seg2_forward.9} parent=11 // pred_fallthru
        _
      // Predicated region
      $region49: #{gac_seg2_forward.9} parent=11 // pred_check
        %p364 = pneg %p294
      $region50: #{gac_seg2_forward.9} parent=11 // pred_check_branch
        %366 = sbr.rel (%p364) target = $region52
      $region51: #{gac_seg2_forward.9} parent=11 // pred_region
        _
      $region52: #{gac_seg2_forward.9} parent=11 // pred_fallthru
        _
    $region12: #{gac_seg2_forward.9} parent=5 // pred_fallthru
      _
    %p367 = scmp.lt.s32.totalorder %s18, 2
    // Predicated region
    $region53: #{gac_seg2_forward.9} parent=5 // pred_check
      %p368 = pneg %p367
    $region54: #{gac_seg2_forward.9} parent=5 // pred_check_branch
      %370 = sbr.rel (%p368) target = $region56
    $region55: #{gac_seg2_forward.9} parent=5 // pred_region
      // Predicated region
      $region57: #{gac_seg2_forward.9} parent=55 // pred_check
        %p371 = pneg %p52
      $region58: #{gac_seg2_forward.9} parent=55 // pred_check_branch
        %373 = sbr.rel (%p371) target = $region60
      $region59: #{gac_seg2_forward.9} parent=55 // pred_region
        %s374 = smul.u32 8, %s26
        %p375 = scmp.lt.s32.totalorder %s25, 1
        %s376 = scalar_select %p375, %s25, 1
        %p377 = scmp.lt.s32.totalorder %s374, 7
        %s378 = scalar_select %p377, %s374, 7
        %s379 = smul.addr %s378, 4
        %s380 = smul.addr %s376, 32
        %s381 = sadd.s32 %s379, %s380
        %s382 = smul.addr %s381, 8
        %s383 = scalar_lea.vmem %s0, %s382
        %s384 = smul.u32 8, %s26
      $region60: #{gac_seg2_forward.9} parent=55 // pred_fallthru
        _
      // Predicated region
      $region61: #{gac_seg2_forward.9} parent=55 // pred_check
        %p385 = pneg %p78
      $region62: #{gac_seg2_forward.9} parent=55 // pred_check_branch
        %387 = sbr.rel (%p385) target = $region64
      $region63: #{gac_seg2_forward.9} parent=55 // pred_region
        %p388 = scmp.lt.s32.totalorder %s25, 1
        %s389 = scalar_select %p388, %s25, 1
        %s390 = smul.addr %s389, 4
        %s391 = scalar_lea.vmem %s1, %s390
      $region64: #{gac_seg2_forward.9} parent=55 // pred_fallthru
        _
    $region56: #{gac_seg2_forward.9} parent=5 // pred_fallthru
      _
    %p392 = scmp.le.s32.totalorder 1, %s18
    %p393 = scmp.lt.s32.totalorder %s18, 3
    %p394 = pnand %p392, %p393
    %p395 = pneg %p394
    // Predicated region
    $region65: #{gac_seg2_forward.9} parent=5 // pred_check
      _
    $region66: #{gac_seg2_forward.9} parent=5 // pred_check_branch
      %397 = sbr.rel (%p394) target = $region68
    $region67: #{gac_seg2_forward.9} parent=5 // pred_region
      %s398 = ssub.s32 %s18, 1
      %s399 = smul.u32 8, %s28
      %p400 = scmp.lt.s32.totalorder %s27, 1
      %s401 = scalar_select %p400, %s27, 1
      %p402 = scmp.lt.s32.totalorder %s399, 7
      %s403 = scalar_select %p402, %s399, 7
      %s404 = smul.addr %s403, 4
      %s405 = smul.addr %s401, 32
      %s406 = sadd.s32 %s404, %s405
      %s407 = smul.addr %s406, 8
      %s408 = scalar_lea.vmem %s0, %s407
      %p409 = pneg %p58
      %p410 = pneg %p55
      %p411 = scmp.lt.s32.totalorder %s27, 1
      %s412 = scalar_select %p411, %s27, 1
      %s413 = smul.addr %s412, 4
      %s414 = scalar_lea.vmem %s1, %s413
      %p415 = pneg %p84
      %p416 = pneg %p81
      %p417 = pneg %p105
      %p418 = pneg %p102
      %p419 = pneg %p126
      %p420 = pneg %p123
      %p421 = pneg %p147
      %p422 = pneg %p144
      %p423 = pneg %p168
      %p424 = pneg %p165
      %p425 = pneg %p189
      %p426 = pneg %p186
      %p427 = pneg %p210
      %p428 = pneg %p207
      %p429 = pneg %p231
      %p430 = pneg %p228
      %p431 = pneg %p252
      %p432 = pneg %p249
      %p433 = pneg %p273
      %p434 = pneg %p270
      %p435 = pneg %p294
      %p436 = pneg %p291
      %p437 = pneg %p322
      %p438 = pneg %p319
      %s439 = smul.u32 8, %s28
      %p440 = scmp.lt.s32.totalorder %s27, 1
      %s441 = scalar_select %p440, %s27, 1
      %p442 = scmp.lt.s32.totalorder %s439, 7
      %s443 = scalar_select %p442, %s439, 7
      %s444 = smul.addr %s441, 8
      %s445 = sadd.s32 %s443, %s444
      %s446 = smul.addr %s445, 8
      %s447 = scalar_lea.vmem %s12, %s446
      %s448 = smul.u32 8, %s28
      %p449 = scmp.lt.s32.totalorder %s27, 1
      %s450 = scalar_select %p449, %s27, 1
      %p451 = scmp.lt.s32.totalorder %s448, 7
      %s452 = scalar_select %p451, %s448, 7
      %s453 = smul.addr %s452, 4
      %s454 = smul.addr %s450, 32
      %s455 = sadd.s32 %s453, %s454
      %s456 = smul.addr %s455, 8
      %s457 = scalar_lea.vmem %s0, %s456
      %s458 = smul.u32 8, %s28
      %p459 = scmp.lt.s32.totalorder %s27, 1
      %s460 = scalar_select %p459, %s27, 1
      %s461 = smul.addr %s460, 4
      %s462 = scalar_lea.vmem %s1, %s461
      %s463 = smul.u32 8, %s28
      %p464 = scmp.lt.s32.totalorder %s27, 1
      %s465 = scalar_select %p464, %s27, 1
      %p466 = scmp.lt.s32.totalorder %s463, 7
      %s467 = scalar_select %p466, %s463, 7
      %s468 = smul.addr %s465, 8
      %s469 = sadd.s32 %s467, %s468
      %s470 = smul.addr %s469, 8
      %s471 = scalar_lea.vmem %s12, %s470
      %s472 = smul.u32 8, %s28
      %v473 = vld [vmem:[%s457] sm:$0xff]
      %v474 = vld [vmem:[%s457 + $0x8] sm:$0xff]
      %v475 = vld [vmem:[%s457 + $0x10] sm:$0xff]
      %v476 = vld [vmem:[%s457 + $0x18] sm:$0xff]
      %v477 = vld [vmem:[%s457 + $0x20] sm:$0xff]
      %v478 = vld [vmem:[%s457 + $0x28] sm:$0xff]
      %v479 = vld [vmem:[%s457 + $0x30] sm:$0xff]
      %v480 = vld [vmem:[%s457 + $0x38] sm:$0xff]
      %v481 = vld [vmem:[%s457 + $0x40] sm:$0xff]
      %v482 = vld [vmem:[%s457 + $0x48] sm:$0xff]
      %v483 = vld [vmem:[%s457 + $0x50] sm:$0xff]
      %v484 = vld [vmem:[%s457 + $0x58] sm:$0xff]
      %v485 = vld [vmem:[%s457 + $0x60] sm:$0xff]
      %v486 = vld [vmem:[%s457 + $0x68] sm:$0xff]
      %v487 = vld [vmem:[%s457 + $0x70] sm:$0xff]
      %v488 = vld [vmem:[%s457 + $0x78] sm:$0xff]
      %v489 = vld [vmem:[%s457 + $0x80] sm:$0xff]
      %v490 = vld [vmem:[%s457 + $0x88] sm:$0xff]
      %v491 = vld [vmem:[%s457 + $0x90] sm:$0xff]
      %v492 = vld [vmem:[%s457 + $0x98] sm:$0xff]
      %v493 = vld [vmem:[%s457 + $0xa0] sm:$0xff]
      %v494 = vld [vmem:[%s457 + $0xa8] sm:$0xff]
      %v495 = vld [vmem:[%s457 + $0xb0] sm:$0xff]
      %v496 = vld [vmem:[%s457 + $0xb8] sm:$0xff]
      %v497 = vld [vmem:[%s457 + $0xc0] sm:$0xff]
      %v498 = vld [vmem:[%s457 + $0xc8] sm:$0xff]
      %v499 = vld [vmem:[%s457 + $0xd0] sm:$0xff]
      %v500 = vld [vmem:[%s457 + $0xd8] sm:$0xff]
      %v501 = vld [vmem:[%s457 + $0xe0] sm:$0xff]
      %v502 = vld [vmem:[%s457 + $0xe8] sm:$0xff]
      %v503 = vld [vmem:[%s457 + $0xf0] sm:$0xff]
      %v504 = vld [vmem:[%s457 + $0xf8] sm:$0xff]
      %v505 = vld [vmem:[%s2] sm:$0xff]
      %v506 = vld [vmem:[%s2 + $0x8] sm:$0xff]
      %v507 = vld [vmem:[%s2 + $0x10] sm:$0xff]
      %v508 = vld [vmem:[%s2 + $0x18] sm:$0xff]
      %v509 = vld [vmem:[%s2 + $0x20] sm:$0xff]
      %v510 = vld [vmem:[%s2 + $0x28] sm:$0xff]
      %v511 = vld [vmem:[%s2 + $0x30] sm:$0xff]
      %v512 = vld [vmem:[%s2 + $0x38] sm:$0xff]
      %v513 = vld [vmem:[%s2 + $0x40] sm:$0xff]
      %v514 = vld [vmem:[%s2 + $0x48] sm:$0xff]
      %v515 = vld [vmem:[%s2 + $0x50] sm:$0xff]
      %v516 = vld [vmem:[%s2 + $0x58] sm:$0xff]
      %v517 = vld [vmem:[%s2 + $0x60] sm:$0xff]
      %v518 = vld [vmem:[%s2 + $0x68] sm:$0xff]
      %v519 = vld [vmem:[%s2 + $0x70] sm:$0xff]
      %v520 = vld [vmem:[%s2 + $0x78] sm:$0xff]
      %v521 = vld [vmem:[%s2 + $0x80] sm:$0xff]
      %v522 = vld [vmem:[%s2 + $0x88] sm:$0xff]
      %v523 = vld [vmem:[%s2 + $0x90] sm:$0xff]
      %v524 = vld [vmem:[%s2 + $0x98] sm:$0xff]
      %v525 = vld [vmem:[%s2 + $0xa0] sm:$0xff]
      %v526 = vld [vmem:[%s2 + $0xa8] sm:$0xff]
      %v527 = vld [vmem:[%s2 + $0xb0] sm:$0xff]
      %v528 = vld [vmem:[%s2 + $0xb8] sm:$0xff]
      %v529 = vld [vmem:[%s2 + $0xc0] sm:$0xff]
      %v530 = vld [vmem:[%s2 + $0xc8] sm:$0xff]
      %v531 = vld [vmem:[%s2 + $0xd0] sm:$0xff]
      %v532 = vld [vmem:[%s2 + $0xd8] sm:$0xff]
      %v533 = vld [vmem:[%s2 + $0xe0] sm:$0xff]
      %v534 = vld [vmem:[%s2 + $0xe8] sm:$0xff]
      %v535 = vld [vmem:[%s2 + $0xf0] sm:$0xff]
      %v536 = vld [vmem:[%s2 + $0xf8] sm:$0xff]
      %v537 = vld [vmem:[%s2 + $0x100] sm:$0xff]
      %v538 = vld [vmem:[%s2 + $0x108] sm:$0xff]
      %v539 = vld [vmem:[%s2 + $0x110] sm:$0xff]
      %v540 = vld [vmem:[%s2 + $0x118] sm:$0xff]
      %v541 = vld [vmem:[%s2 + $0x120] sm:$0xff]
      %v542 = vld [vmem:[%s2 + $0x128] sm:$0xff]
      %v543 = vld [vmem:[%s2 + $0x130] sm:$0xff]
      %v544 = vld [vmem:[%s2 + $0x138] sm:$0xff]
      %v545 = vld [vmem:[%s2 + $0x140] sm:$0xff]
      %v546 = vld [vmem:[%s2 + $0x148] sm:$0xff]
      %v547 = vld [vmem:[%s2 + $0x150] sm:$0xff]
      %v548 = vld [vmem:[%s2 + $0x158] sm:$0xff]
      %v549 = vld [vmem:[%s2 + $0x160] sm:$0xff]
      %v550 = vld [vmem:[%s2 + $0x168] sm:$0xff]
      %v551 = vld [vmem:[%s2 + $0x170] sm:$0xff]
      %v552 = vld [vmem:[%s2 + $0x178] sm:$0xff]
      %v553 = vld [vmem:[%s2 + $0x180] sm:$0xff]
      %v554 = vld [vmem:[%s2 + $0x188] sm:$0xff]
      %v555 = vld [vmem:[%s2 + $0x190] sm:$0xff]
      %v556 = vld [vmem:[%s2 + $0x198] sm:$0xff]
      %v557 = vld [vmem:[%s2 + $0x1a0] sm:$0xff]
      %v558 = vld [vmem:[%s2 + $0x1a8] sm:$0xff]
      %v559 = vld [vmem:[%s2 + $0x1b0] sm:$0xff]
      %v560 = vld [vmem:[%s2 + $0x1b8] sm:$0xff]
      %v561 = vld [vmem:[%s2 + $0x1c0] sm:$0xff]
      %v562 = vld [vmem:[%s2 + $0x1c8] sm:$0xff]
      %v563 = vld [vmem:[%s2 + $0x1d0] sm:$0xff]
      %v564 = vld [vmem:[%s2 + $0x1d8] sm:$0xff]
      %v565 = vld [vmem:[%s2 + $0x1e0] sm:$0xff]
      %v566 = vld [vmem:[%s2 + $0x1e8] sm:$0xff]
      %v567 = vld [vmem:[%s2 + $0x1f0] sm:$0xff]
      %v568 = vld [vmem:[%s2 + $0x1f8] sm:$0xff]
      %v569 = vld [vmem:[%s2 + $0x200] sm:$0xff]
      %v570 = vld [vmem:[%s2 + $0x208] sm:$0xff]
      %v571 = vld [vmem:[%s2 + $0x210] sm:$0xff]
      %v572 = vld [vmem:[%s2 + $0x218] sm:$0xff]
      %v573 = vld [vmem:[%s2 + $0x220] sm:$0xff]
      %v574 = vld [vmem:[%s2 + $0x228] sm:$0xff]
      %v575 = vld [vmem:[%s2 + $0x230] sm:$0xff]
      %v576 = vld [vmem:[%s2 + $0x238] sm:$0xff]
      %v577 = vld [vmem:[%s2 + $0x240] sm:$0xff]
      %v578 = vld [vmem:[%s2 + $0x248] sm:$0xff]
      %v579 = vld [vmem:[%s2 + $0x250] sm:$0xff]
      %v580 = vld [vmem:[%s2 + $0x258] sm:$0xff]
      %v581 = vld [vmem:[%s2 + $0x260] sm:$0xff]
      %v582 = vld [vmem:[%s2 + $0x268] sm:$0xff]
      %v583 = vld [vmem:[%s2 + $0x270] sm:$0xff]
      %v584 = vld [vmem:[%s2 + $0x278] sm:$0xff]
      %v585 = vld [vmem:[%s2 + $0x280] sm:$0xff]
      %v586 = vld [vmem:[%s2 + $0x288] sm:$0xff]
      %v587 = vld [vmem:[%s2 + $0x290] sm:$0xff]
      %v588 = vld [vmem:[%s2 + $0x298] sm:$0xff]
      %v589 = vld [vmem:[%s2 + $0x2a0] sm:$0xff]
      %v590 = vld [vmem:[%s2 + $0x2a8] sm:$0xff]
      %v591 = vld [vmem:[%s2 + $0x2b0] sm:$0xff]
      %v592 = vld [vmem:[%s2 + $0x2b8] sm:$0xff]
      %v593 = vld [vmem:[%s2 + $0x2c0] sm:$0xff]
      %v594 = vld [vmem:[%s2 + $0x2c8] sm:$0xff]
      %v595 = vld [vmem:[%s2 + $0x2d0] sm:$0xff]
      %v596 = vld [vmem:[%s2 + $0x2d8] sm:$0xff]
      %v597 = vld [vmem:[%s2 + $0x2e0] sm:$0xff]
      %v598 = vld [vmem:[%s2 + $0x2e8] sm:$0xff]
      %v599 = vld [vmem:[%s2 + $0x2f0] sm:$0xff]
      %v600 = vld [vmem:[%s2 + $0x2f8] sm:$0xff]
      %v601 = vld [vmem:[%s2 + $0x300] sm:$0xff]
      %v602 = vld [vmem:[%s2 + $0x308] sm:$0xff]
      %v603 = vld [vmem:[%s2 + $0x310] sm:$0xff]
      %v604 = vld [vmem:[%s2 + $0x318] sm:$0xff]
      %v605 = vld [vmem:[%s2 + $0x320] sm:$0xff]
      %v606 = vld [vmem:[%s2 + $0x328] sm:$0xff]
      %v607 = vld [vmem:[%s2 + $0x330] sm:$0xff]
      %v608 = vld [vmem:[%s2 + $0x338] sm:$0xff]
      %v609 = vld [vmem:[%s2 + $0x340] sm:$0xff]
      %v610 = vld [vmem:[%s2 + $0x348] sm:$0xff]
      %v611 = vld [vmem:[%s2 + $0x350] sm:$0xff]
      %v612 = vld [vmem:[%s2 + $0x358] sm:$0xff]
      %v613 = vld [vmem:[%s2 + $0x360] sm:$0xff]
      %v614 = vld [vmem:[%s2 + $0x368] sm:$0xff]
      %v615 = vld [vmem:[%s2 + $0x370] sm:$0xff]
      %v616 = vld [vmem:[%s2 + $0x378] sm:$0xff]
      %v617 = vld [vmem:[%s3] sm:$0x3]
      %v619 = vperm.slane %v617, 0
      %v620 = vperm.slane %v617, 1
      %vm623 = vcmask 523264
      %v625 = vsel %vm623, %v476, 0
      %v628 = vsel %vm623, %v480, 0
      %v631 = vsel %vm623, %v484, 0
      %v634 = vsel %vm623, %v488, 0
      %v637 = vsel %vm623, %v492, 0
      %v640 = vsel %vm623, %v496, 0
      %v643 = vsel %vm623, %v500, 0
      %v646 = vsel %vm623, %v504, 0
      %648 = vmatpush.msra.mxu0 %v535
      %649 = vmatpush.msra.mxu0 %v533
      %650 = vmatpush.msra.mxu0 %v531
      %651 = vmatpush.msra.mxu0 %v529
      %652 = vmatpush.msra.mxu0 %v527
      %653 = vmatpush.msra.mxu0 %v525
      %654 = vmatpush.msra.mxu0 %v523
      %655 = vmatpush.msra.mxu0 %v521
      %656 = vmatpush.msra.mxu0 %v519
      %657 = vmatpush.msra.mxu0 %v517
      %658 = vmatpush.msra.mxu0 %v515
      %659 = vmatpush.msra.mxu0 %v513
      %660 = vmatpush.msra.mxu0 %v511
      %661 = vmatpush.msra.mxu0 %v509
      %662 = vmatpush.msra.mxu0 %v507
      %663 = vmatpush.msra.mxu0 %v505
      %664 = vmatmul.f32.gmra.mxu0 %v473
      %v665 = vpop.f32.mrf.mxu0
      %v666 = vadd.f32 %v619, %v665
      %667 = vmatmul.f32.gmra.mxu0 %v477
      %v668 = vpop.f32.mrf.mxu0
      %v669 = vadd.f32 %v619, %v668
      %670 = vmatmul.f32.gmra.mxu0 %v481
      %v671 = vpop.f32.mrf.mxu0
      %v672 = vadd.f32 %v619, %v671
      %673 = vmatmul.f32.gmra.mxu0 %v485
      %v674 = vpop.f32.mrf.mxu0
      %v675 = vadd.f32 %v619, %v674
      %676 = vmatmul.f32.gmra.mxu0 %v489
      %v677 = vpop.f32.mrf.mxu0
      %v678 = vadd.f32 %v619, %v677
      %679 = vmatmul.f32.gmra.mxu0 %v493
      %v680 = vpop.f32.mrf.mxu0
      %v681 = vadd.f32 %v619, %v680
      %682 = vmatmul.f32.gmra.mxu0 %v497
      %v683 = vpop.f32.mrf.mxu0
      %v684 = vadd.f32 %v619, %v683
      %685 = vmatmul.f32.gmra.mxu0 %v501
      %v686 = vpop.f32.mrf.mxu0
      %v687 = vadd.f32 %v619, %v686
      %688 = vdwg.mxu0
      %689 = vmatpush.msra.mxu0 %v567
      %690 = vmatpush.msra.mxu0 %v565
      %691 = vmatpush.msra.mxu0 %v563
      %692 = vmatpush.msra.mxu0 %v561
      %693 = vmatpush.msra.mxu0 %v559
      %694 = vmatpush.msra.mxu0 %v557
      %695 = vmatpush.msra.mxu0 %v555
      %696 = vmatpush.msra.mxu0 %v553
      %697 = vmatpush.msra.mxu0 %v551
      %698 = vmatpush.msra.mxu0 %v549
      %699 = vmatpush.msra.mxu0 %v547
      %700 = vmatpush.msra.mxu0 %v545
      %701 = vmatpush.msra.mxu0 %v543
      %702 = vmatpush.msra.mxu0 %v541
      %703 = vmatpush.msra.mxu0 %v539
      %704 = vmatpush.msra.mxu0 %v537
      %705 = vmatmul.f32.gmra.mxu0 %v474
      %v706 = vpop.f32.mrf.mxu0
      %v707 = vadd.f32 %v666, %v706
      %708 = vmatmul.f32.gmra.mxu0 %v478
      %v709 = vpop.f32.mrf.mxu0
      %v710 = vadd.f32 %v669, %v709
      %711 = vmatmul.f32.gmra.mxu0 %v482
      %v712 = vpop.f32.mrf.mxu0
      %v713 = vadd.f32 %v672, %v712
      %714 = vmatmul.f32.gmra.mxu0 %v486
      %v715 = vpop.f32.mrf.mxu0
      %v716 = vadd.f32 %v675, %v715
      %717 = vmatmul.f32.gmra.mxu0 %v490
      %v718 = vpop.f32.mrf.mxu0
      %v719 = vadd.f32 %v678, %v718
      %720 = vmatmul.f32.gmra.mxu0 %v494
      %v721 = vpop.f32.mrf.mxu0
      %v722 = vadd.f32 %v681, %v721
      %723 = vmatmul.f32.gmra.mxu0 %v498
      %v724 = vpop.f32.mrf.mxu0
      %v725 = vadd.f32 %v684, %v724
      %726 = vmatmul.f32.gmra.mxu0 %v502
      %v727 = vpop.f32.mrf.mxu0
      %v728 = vadd.f32 %v687, %v727
      %729 = vdwg.mxu0
      %730 = vmatpush.msra.mxu0 %v599
      %731 = vmatpush.msra.mxu0 %v597
      %732 = vmatpush.msra.mxu0 %v595
      %733 = vmatpush.msra.mxu0 %v593
      %734 = vmatpush.msra.mxu0 %v591
      %735 = vmatpush.msra.mxu0 %v589
      %736 = vmatpush.msra.mxu0 %v587
      %737 = vmatpush.msra.mxu0 %v585
      %738 = vmatpush.msra.mxu0 %v583
      %739 = vmatpush.msra.mxu0 %v581
      %740 = vmatpush.msra.mxu0 %v579
      %741 = vmatpush.msra.mxu0 %v577
      %742 = vmatpush.msra.mxu0 %v575
      %743 = vmatpush.msra.mxu0 %v573
      %744 = vmatpush.msra.mxu0 %v571
      %745 = vmatpush.msra.mxu0 %v569
      %746 = vmatmul.f32.gmra.mxu0 %v475
      %v747 = vpop.f32.mrf.mxu0
      %v748 = vadd.f32 %v707, %v747
      %749 = vmatmul.f32.gmra.mxu0 %v479
      %v750 = vpop.f32.mrf.mxu0
      %v751 = vadd.f32 %v710, %v750
      %752 = vmatmul.f32.gmra.mxu0 %v483
      %v753 = vpop.f32.mrf.mxu0
      %v754 = vadd.f32 %v713, %v753
      %755 = vmatmul.f32.gmra.mxu0 %v487
      %v756 = vpop.f32.mrf.mxu0
      %v757 = vadd.f32 %v716, %v756
      %758 = vmatmul.f32.gmra.mxu0 %v491
      %v759 = vpop.f32.mrf.mxu0
      %v760 = vadd.f32 %v719, %v759
      %761 = vmatmul.f32.gmra.mxu0 %v495
      %v762 = vpop.f32.mrf.mxu0
      %v763 = vadd.f32 %v722, %v762
      %764 = vmatmul.f32.gmra.mxu0 %v499
      %v765 = vpop.f32.mrf.mxu0
      %v766 = vadd.f32 %v725, %v765
      %767 = vmatmul.f32.gmra.mxu0 %v503
      %v768 = vpop.f32.mrf.mxu0
      %v769 = vadd.f32 %v728, %v768
      %770 = vdwg.mxu0
      %771 = vmatpush.msra.mxu0 0.0
      %772 = vmatpush.msra.mxu0 0.0
      %773 = vmatpush.msra.mxu0 0.0
      %774 = vmatpush.msra.mxu0 0.0
      %775 = vmatpush.msra.mxu0 0.0
      %776 = vmatpush.msra.mxu0 0.0
      %777 = vmatpush.msra.mxu0 0.0
      %778 = vmatpush.msra.mxu0 0.0
      %779 = vmatpush.msra.mxu0 %v615
      %780 = vmatpush.msra.mxu0 %v613
      %781 = vmatpush.msra.mxu0 %v611
      %782 = vmatpush.msra.mxu0 %v609
      %783 = vmatpush.msra.mxu0 %v607
      %784 = vmatpush.msra.mxu0 %v605
      %785 = vmatpush.msra.mxu0 %v603
      %786 = vmatpush.msra.mxu0 %v601
      %787 = vmatmul.f32.gmra.mxu0 %v625
      %v788 = vpop.f32.mrf.mxu0
      %v789 = vadd.f32 %v748, %v788
      %790 = vmatmul.f32.gmra.mxu0 %v628
      %v791 = vpop.f32.mrf.mxu0
      %v792 = vadd.f32 %v751, %v791
      %793 = vmatmul.f32.gmra.mxu0 %v631
      %v794 = vpop.f32.mrf.mxu0
      %v795 = vadd.f32 %v754, %v794
      %796 = vmatmul.f32.gmra.mxu0 %v634
      %v797 = vpop.f32.mrf.mxu0
      %v798 = vadd.f32 %v757, %v797
      %799 = vmatmul.f32.gmra.mxu0 %v637
      %v800 = vpop.f32.mrf.mxu0
      %v801 = vadd.f32 %v760, %v800
      %802 = vmatmul.f32.gmra.mxu0 %v640
      %v803 = vpop.f32.mrf.mxu0
      %v804 = vadd.f32 %v763, %v803
      %805 = vmatmul.f32.gmra.mxu0 %v643
      %v806 = vpop.f32.mrf.mxu0
      %v807 = vadd.f32 %v766, %v806
      %808 = vmatmul.f32.gmra.mxu0 %v646
      %v809 = vpop.f32.mrf.mxu0
      %v810 = vadd.f32 %v769, %v809
      %811 = vdwg.mxu0
      %812 = vmatpush.msra.mxu0 %v536
      %813 = vmatpush.msra.mxu0 %v534
      %814 = vmatpush.msra.mxu0 %v532
      %815 = vmatpush.msra.mxu0 %v530
      %816 = vmatpush.msra.mxu0 %v528
      %817 = vmatpush.msra.mxu0 %v526
      %818 = vmatpush.msra.mxu0 %v524
      %819 = vmatpush.msra.mxu0 %v522
      %820 = vmatpush.msra.mxu0 %v520
      %821 = vmatpush.msra.mxu0 %v518
      %822 = vmatpush.msra.mxu0 %v516
      %823 = vmatpush.msra.mxu0 %v514
      %824 = vmatpush.msra.mxu0 %v512
      %825 = vmatpush.msra.mxu0 %v510
      %826 = vmatpush.msra.mxu0 %v508
      %827 = vmatpush.msra.mxu0 %v506
      %828 = vmatmul.f32.gmra.mxu0 %v473
      %v829 = vpop.f32.mrf.mxu0
      %v830 = vadd.f32 %v620, %v829
      %831 = vmatmul.f32.gmra.mxu0 %v477
      %v832 = vpop.f32.mrf.mxu0
      %v833 = vadd.f32 %v620, %v832
      %834 = vmatmul.f32.gmra.mxu0 %v481
      %v835 = vpop.f32.mrf.mxu0
      %v836 = vadd.f32 %v620, %v835
      %837 = vmatmul.f32.gmra.mxu0 %v485
      %v838 = vpop.f32.mrf.mxu0
      %v839 = vadd.f32 %v620, %v838
      %840 = vmatmul.f32.gmra.mxu0 %v489
      %v841 = vpop.f32.mrf.mxu0
      %v842 = vadd.f32 %v620, %v841
      %843 = vmatmul.f32.gmra.mxu0 %v493
      %v844 = vpop.f32.mrf.mxu0
      %v845 = vadd.f32 %v620, %v844
      %846 = vmatmul.f32.gmra.mxu0 %v497
      %v847 = vpop.f32.mrf.mxu0
      %v848 = vadd.f32 %v620, %v847
      %849 = vmatmul.f32.gmra.mxu0 %v501
      %v850 = vpop.f32.mrf.mxu0
      %v851 = vadd.f32 %v620, %v850
      %852 = vdwg.mxu0
      %853 = vmatpush.msra.mxu0 %v568
      %854 = vmatpush.msra.mxu0 %v566
      %855 = vmatpush.msra.mxu0 %v564
      %856 = vmatpush.msra.mxu0 %v562
      %857 = vmatpush.msra.mxu0 %v560
      %858 = vmatpush.msra.mxu0 %v558
      %859 = vmatpush.msra.mxu0 %v556
      %860 = vmatpush.msra.mxu0 %v554
      %861 = vmatpush.msra.mxu0 %v552
      %862 = vmatpush.msra.mxu0 %v550
      %863 = vmatpush.msra.mxu0 %v548
      %864 = vmatpush.msra.mxu0 %v546
      %865 = vmatpush.msra.mxu0 %v544
      %866 = vmatpush.msra.mxu0 %v542
      %867 = vmatpush.msra.mxu0 %v540
      %868 = vmatpush.msra.mxu0 %v538
      %869 = vmatmul.f32.gmra.mxu0 %v474
      %v870 = vpop.f32.mrf.mxu0
      %v871 = vadd.f32 %v830, %v870
      %872 = vmatmul.f32.gmra.mxu0 %v478
      %v873 = vpop.f32.mrf.mxu0
      %v874 = vadd.f32 %v833, %v873
      %875 = vmatmul.f32.gmra.mxu0 %v482
      %v876 = vpop.f32.mrf.mxu0
      %v877 = vadd.f32 %v836, %v876
      %878 = vmatmul.f32.gmra.mxu0 %v486
      %v879 = vpop.f32.mrf.mxu0
      %v880 = vadd.f32 %v839, %v879
      %881 = vmatmul.f32.gmra.mxu0 %v490
      %v882 = vpop.f32.mrf.mxu0
      %v883 = vadd.f32 %v842, %v882
      %884 = vmatmul.f32.gmra.mxu0 %v494
      %v885 = vpop.f32.mrf.mxu0
      %v886 = vadd.f32 %v845, %v885
      %887 = vmatmul.f32.gmra.mxu0 %v498
      %v888 = vpop.f32.mrf.mxu0
      %v889 = vadd.f32 %v848, %v888
      %890 = vmatmul.f32.gmra.mxu0 %v502
      %v891 = vpop.f32.mrf.mxu0
      %v892 = vadd.f32 %v851, %v891
      %893 = vdwg.mxu0
      %894 = vmatpush.msra.mxu0 %v600
      %895 = vmatpush.msra.mxu0 %v598
      %896 = vmatpush.msra.mxu0 %v596
      %897 = vmatpush.msra.mxu0 %v594
      %898 = vmatpush.msra.mxu0 %v592
      %899 = vmatpush.msra.mxu0 %v590
      %900 = vmatpush.msra.mxu0 %v588
      %901 = vmatpush.msra.mxu0 %v586
      %902 = vmatpush.msra.mxu0 %v584
      %903 = vmatpush.msra.mxu0 %v582
      %904 = vmatpush.msra.mxu0 %v580
      %905 = vmatpush.msra.mxu0 %v578
      %906 = vmatpush.msra.mxu0 %v576
      %907 = vmatpush.msra.mxu0 %v574
      %908 = vmatpush.msra.mxu0 %v572
      %909 = vmatpush.msra.mxu0 %v570
      %910 = vmatmul.f32.gmra.mxu0 %v475
      %v911 = vpop.f32.mrf.mxu0
      %v912 = vadd.f32 %v871, %v911
      %913 = vmatmul.f32.gmra.mxu0 %v479
      %v914 = vpop.f32.mrf.mxu0
      %v915 = vadd.f32 %v874, %v914
      %916 = vmatmul.f32.gmra.mxu0 %v483
      %v917 = vpop.f32.mrf.mxu0
      %v918 = vadd.f32 %v877, %v917
      %919 = vmatmul.f32.gmra.mxu0 %v487
      %v920 = vpop.f32.mrf.mxu0
      %v921 = vadd.f32 %v880, %v920
      %922 = vmatmul.f32.gmra.mxu0 %v491
      %v923 = vpop.f32.mrf.mxu0
      %v924 = vadd.f32 %v883, %v923
      %925 = vmatmul.f32.gmra.mxu0 %v495
      %v926 = vpop.f32.mrf.mxu0
      %v927 = vadd.f32 %v886, %v926
      %928 = vmatmul.f32.gmra.mxu0 %v499
      %v929 = vpop.f32.mrf.mxu0
      %v930 = vadd.f32 %v889, %v929
      %931 = vmatmul.f32.gmra.mxu0 %v503
      %v932 = vpop.f32.mrf.mxu0
      %v933 = vadd.f32 %v892, %v932
      %934 = vdwg.mxu0
      %935 = vmatpush.msra.mxu0 0.0
      %936 = vmatpush.msra.mxu0 0.0
      %937 = vmatpush.msra.mxu0 0.0
      %938 = vmatpush.msra.mxu0 0.0
      %939 = vmatpush.msra.mxu0 0.0
      %940 = vmatpush.msra.mxu0 0.0
      %941 = vmatpush.msra.mxu0 0.0
      %942 = vmatpush.msra.mxu0 0.0
      %943 = vmatpush.msra.mxu0 %v616
      %944 = vmatpush.msra.mxu0 %v614
      %945 = vmatpush.msra.mxu0 %v612
      %946 = vmatpush.msra.mxu0 %v610
      %947 = vmatpush.msra.mxu0 %v608
      %948 = vmatpush.msra.mxu0 %v606
      %949 = vmatpush.msra.mxu0 %v604
      %950 = vmatpush.msra.mxu0 %v602
      %951 = vmatmul.f32.gmra.mxu0 %v625
      %v952 = vpop.f32.mrf.mxu0
      %v953 = vadd.f32 %v912, %v952
      %954 = vmatmul.f32.gmra.mxu0 %v628
      %v955 = vpop.f32.mrf.mxu0
      %v956 = vadd.f32 %v915, %v955
      %957 = vmatmul.f32.gmra.mxu0 %v631
      %v958 = vpop.f32.mrf.mxu0
      %v959 = vadd.f32 %v918, %v958
      %960 = vmatmul.f32.gmra.mxu0 %v634
      %v961 = vpop.f32.mrf.mxu0
      %v962 = vadd.f32 %v921, %v961
      %963 = vmatmul.f32.gmra.mxu0 %v637
      %v964 = vpop.f32.mrf.mxu0
      %v965 = vadd.f32 %v924, %v964
      %966 = vmatmul.f32.gmra.mxu0 %v640
      %v967 = vpop.f32.mrf.mxu0
      %v968 = vadd.f32 %v927, %v967
      %969 = vmatmul.f32.gmra.mxu0 %v643
      %v970 = vpop.f32.mrf.mxu0
      %v971 = vadd.f32 %v930, %v970
      %972 = vmatmul.f32.gmra.mxu0 %v646
      %v973 = vpop.f32.mrf.mxu0
      %v974 = vadd.f32 %v933, %v973
      %975 = vdwg.mxu0
      %v976 = vmul.f32 %v789, 0.01
      %v977 = vmul.f32 %v953, 0.01
      %v978 = vmul.f32 %v792, 0.01
      %v979 = vmul.f32 %v956, 0.01
      %v980 = vmul.f32 %v795, 0.01
      %v981 = vmul.f32 %v959, 0.01
      %v982 = vmul.f32 %v798, 0.01
      %v983 = vmul.f32 %v962, 0.01
      %v984 = vmul.f32 %v801, 0.01
      %v985 = vmul.f32 %v965, 0.01
      %v986 = vmul.f32 %v804, 0.01
      %v987 = vmul.f32 %v968, 0.01
      %v988 = vmul.f32 %v807, 0.01
      %v989 = vmul.f32 %v971, 0.01
      %v990 = vmul.f32 %v810, 0.01
      %v991 = vmul.f32 %v974, 0.01
      %v992 = vmax.f32 %v789, %v976
      %v993 = vmax.f32 %v953, %v977
      %v994 = vmax.f32 %v792, %v978
      %v995 = vmax.f32 %v956, %v979
      %v996 = vmax.f32 %v795, %v980
      %v997 = vmax.f32 %v959, %v981
      %v998 = vmax.f32 %v798, %v982
      %v999 = vmax.f32 %v962, %v983
      %v1000 = vmax.f32 %v801, %v984
      %v1001 = vmax.f32 %v965, %v985
      %v1002 = vmax.f32 %v804, %v986
      %v1003 = vmax.f32 %v968, %v987
      %v1004 = vmax.f32 %v807, %v988
      %v1005 = vmax.f32 %v971, %v989
      %v1006 = vmax.f32 %v810, %v990
      %v1007 = vmax.f32 %v974, %v991
      %v1008 = vld [vmem:[%s4] sm:$0xff]
      %v1009 = vld [vmem:[%s4 + $0x8] sm:$0xff]
      %v1010 = vld [vmem:[%s4 + $0x10] sm:$0xff]
      %v1011 = vld [vmem:[%s4 + $0x18] sm:$0xff]
      %v1012 = vld [vmem:[%s4 + $0x20] sm:$0xff]
      %v1013 = vld [vmem:[%s4 + $0x28] sm:$0xff]
      %v1014 = vld [vmem:[%s4 + $0x30] sm:$0xff]
      %v1015 = vld [vmem:[%s4 + $0x38] sm:$0xff]
      %v1016 = vld [vmem:[%s4 + $0x40] sm:$0xff]
      %v1017 = vld [vmem:[%s4 + $0x48] sm:$0xff]
      %v1018 = vld [vmem:[%s4 + $0x50] sm:$0xff]
      %v1019 = vld [vmem:[%s4 + $0x58] sm:$0xff]
      %v1020 = vld [vmem:[%s4 + $0x60] sm:$0xff]
      %v1021 = vld [vmem:[%s4 + $0x68] sm:$0xff]
      %v1022 = vld [vmem:[%s4 + $0x70] sm:$0xff]
      %v1023 = vld [vmem:[%s4 + $0x78] sm:$0xff]
      %v1024 = vld [vmem:[%s4 + $0x80] sm:$0xff]
      %v1025 = vld [vmem:[%s4 + $0x88] sm:$0xff]
      %v1026 = vld [vmem:[%s4 + $0x90] sm:$0xff]
      %v1027 = vld [vmem:[%s4 + $0x98] sm:$0xff]
      %v1028 = vld [vmem:[%s4 + $0xa0] sm:$0xff]
      %v1029 = vld [vmem:[%s4 + $0xa8] sm:$0xff]
      %v1030 = vld [vmem:[%s4 + $0xb0] sm:$0xff]
      %v1031 = vld [vmem:[%s4 + $0xb8] sm:$0xff]
      %v1032 = vld [vmem:[%s4 + $0xc0] sm:$0xff]
      %v1033 = vld [vmem:[%s4 + $0xc8] sm:$0xff]
      %v1034 = vld [vmem:[%s4 + $0xd0] sm:$0xff]
      %v1035 = vld [vmem:[%s4 + $0xd8] sm:$0xff]
      %v1036 = vld [vmem:[%s4 + $0xe0] sm:$0xff]
      %v1037 = vld [vmem:[%s4 + $0xe8] sm:$0xff]
      %v1038 = vld [vmem:[%s4 + $0xf0] sm:$0xff]
      %v1039 = vld [vmem:[%s4 + $0xf8] sm:$0xff]
      %v1040 = vld [vmem:[%s4 + $0x100] sm:$0xff]
      %v1041 = vld [vmem:[%s4 + $0x108] sm:$0xff]
      %v1042 = vld [vmem:[%s4 + $0x110] sm:$0xff]
      %v1043 = vld [vmem:[%s4 + $0x118] sm:$0xff]
      %v1044 = vld [vmem:[%s4 + $0x120] sm:$0xff]
      %v1045 = vld [vmem:[%s4 + $0x128] sm:$0xff]
      %v1046 = vld [vmem:[%s4 + $0x130] sm:$0xff]
      %v1047 = vld [vmem:[%s4 + $0x138] sm:$0xff]
      %v1048 = vld [vmem:[%s4 + $0x140] sm:$0xff]
      %v1049 = vld [vmem:[%s4 + $0x148] sm:$0xff]
      %v1050 = vld [vmem:[%s4 + $0x150] sm:$0xff]
      %v1051 = vld [vmem:[%s4 + $0x158] sm:$0xff]
      %v1052 = vld [vmem:[%s4 + $0x160] sm:$0xff]
      %v1053 = vld [vmem:[%s4 + $0x168] sm:$0xff]
      %v1054 = vld [vmem:[%s4 + $0x170] sm:$0xff]
      %v1055 = vld [vmem:[%s4 + $0x178] sm:$0xff]
      %v1056 = vld [vmem:[%s4 + $0x180] sm:$0xff]
      %v1057 = vld [vmem:[%s4 + $0x188] sm:$0xff]
      %v1058 = vld [vmem:[%s4 + $0x190] sm:$0xff]
      %v1059 = vld [vmem:[%s4 + $0x198] sm:$0xff]
      %v1060 = vld [vmem:[%s4 + $0x1a0] sm:$0xff]
      %v1061 = vld [vmem:[%s4 + $0x1a8] sm:$0xff]
      %v1062 = vld [vmem:[%s4 + $0x1b0] sm:$0xff]
      %v1063 = vld [vmem:[%s4 + $0x1b8] sm:$0xff]
      %v1064 = vld [vmem:[%s4 + $0x1c0] sm:$0xff]
      %v1065 = vld [vmem:[%s4 + $0x1c8] sm:$0xff]
      %v1066 = vld [vmem:[%s4 + $0x1d0] sm:$0xff]
      %v1067 = vld [vmem:[%s4 + $0x1d8] sm:$0xff]
      %v1068 = vld [vmem:[%s4 + $0x1e0] sm:$0xff]
      %v1069 = vld [vmem:[%s4 + $0x1e8] sm:$0xff]
      %v1070 = vld [vmem:[%s4 + $0x1f0] sm:$0xff]
      %v1071 = vld [vmem:[%s4 + $0x1f8] sm:$0xff]
      %v1072 = vld [vmem:[%s4 + $0x200] sm:$0xff]
      %v1073 = vld [vmem:[%s4 + $0x208] sm:$0xff]
      %v1074 = vld [vmem:[%s4 + $0x210] sm:$0xff]
      %v1075 = vld [vmem:[%s4 + $0x218] sm:$0xff]
      %v1076 = vld [vmem:[%s4 + $0x220] sm:$0xff]
      %v1077 = vld [vmem:[%s4 + $0x228] sm:$0xff]
      %v1078 = vld [vmem:[%s4 + $0x230] sm:$0xff]
      %v1079 = vld [vmem:[%s4 + $0x238] sm:$0xff]
      %v1080 = vld [vmem:[%s4 + $0x240] sm:$0xff]
      %v1081 = vld [vmem:[%s4 + $0x248] sm:$0xff]
      %v1082 = vld [vmem:[%s4 + $0x250] sm:$0xff]
      %v1083 = vld [vmem:[%s4 + $0x258] sm:$0xff]
      %v1084 = vld [vmem:[%s4 + $0x260] sm:$0xff]
      %v1085 = vld [vmem:[%s4 + $0x268] sm:$0xff]
      %v1086 = vld [vmem:[%s4 + $0x270] sm:$0xff]
      %v1087 = vld [vmem:[%s4 + $0x278] sm:$0xff]
      %v1088 = vld [vmem:[%s4 + $0x280] sm:$0xff]
      %v1089 = vld [vmem:[%s4 + $0x288] sm:$0xff]
      %v1090 = vld [vmem:[%s4 + $0x290] sm:$0xff]
      %v1091 = vld [vmem:[%s4 + $0x298] sm:$0xff]
      %v1092 = vld [vmem:[%s4 + $0x2a0] sm:$0xff]
      %v1093 = vld [vmem:[%s4 + $0x2a8] sm:$0xff]
      %v1094 = vld [vmem:[%s4 + $0x2b0] sm:$0xff]
      %v1095 = vld [vmem:[%s4 + $0x2b8] sm:$0xff]
      %v1096 = vld [vmem:[%s4 + $0x2c0] sm:$0xff]
      %v1097 = vld [vmem:[%s4 + $0x2c8] sm:$0xff]
      %v1098 = vld [vmem:[%s4 + $0x2d0] sm:$0xff]
      %v1099 = vld [vmem:[%s4 + $0x2d8] sm:$0xff]
      %v1100 = vld [vmem:[%s4 + $0x2e0] sm:$0xff]
      %v1101 = vld [vmem:[%s4 + $0x2e8] sm:$0xff]
      %v1102 = vld [vmem:[%s4 + $0x2f0] sm:$0xff]
      %v1103 = vld [vmem:[%s4 + $0x2f8] sm:$0xff]
      %v1104 = vld [vmem:[%s4 + $0x300] sm:$0xff]
      %v1105 = vld [vmem:[%s4 + $0x308] sm:$0xff]
      %v1106 = vld [vmem:[%s4 + $0x310] sm:$0xff]
      %v1107 = vld [vmem:[%s4 + $0x318] sm:$0xff]
      %v1108 = vld [vmem:[%s4 + $0x320] sm:$0xff]
      %v1109 = vld [vmem:[%s4 + $0x328] sm:$0xff]
      %v1110 = vld [vmem:[%s4 + $0x330] sm:$0xff]
      %v1111 = vld [vmem:[%s4 + $0x338] sm:$0xff]
      %v1112 = vld [vmem:[%s4 + $0x340] sm:$0xff]
      %v1113 = vld [vmem:[%s4 + $0x348] sm:$0xff]
      %v1114 = vld [vmem:[%s4 + $0x350] sm:$0xff]
      %v1115 = vld [vmem:[%s4 + $0x358] sm:$0xff]
      %v1116 = vld [vmem:[%s4 + $0x360] sm:$0xff]
      %v1117 = vld [vmem:[%s4 + $0x368] sm:$0xff]
      %v1118 = vld [vmem:[%s4 + $0x370] sm:$0xff]
      %v1119 = vld [vmem:[%s4 + $0x378] sm:$0xff]
      %v1120 = vld [vmem:[%s4 + $0x380] sm:$0xff]
      %v1121 = vld [vmem:[%s4 + $0x388] sm:$0xff]
      %v1122 = vld [vmem:[%s4 + $0x390] sm:$0xff]
      %v1123 = vld [vmem:[%s4 + $0x398] sm:$0xff]
      %v1124 = vld [vmem:[%s4 + $0x3a0] sm:$0xff]
      %v1125 = vld [vmem:[%s4 + $0x3a8] sm:$0xff]
      %v1126 = vld [vmem:[%s4 + $0x3b0] sm:$0xff]
      %v1127 = vld [vmem:[%s4 + $0x3b8] sm:$0xff]
      %v1128 = vld [vmem:[%s4 + $0x3c0] sm:$0xff]
      %v1129 = vld [vmem:[%s4 + $0x3c8] sm:$0xff]
      %v1130 = vld [vmem:[%s4 + $0x3d0] sm:$0xff]
      %v1131 = vld [vmem:[%s4 + $0x3d8] sm:$0xff]
      %v1132 = vld [vmem:[%s4 + $0x3e0] sm:$0xff]
      %v1133 = vld [vmem:[%s4 + $0x3e8] sm:$0xff]
      %v1134 = vld [vmem:[%s4 + $0x3f0] sm:$0xff]
      %v1135 = vld [vmem:[%s4 + $0x3f8] sm:$0xff]
      %v1136 = vld [vmem:[%s462] sm:$0xf]
      %v1138 = vperm.slane %v1136, 0
      %v1139 = vperm.slane %v1136, 1
      %v1140 = vperm.slane %v1136, 2
      %v1141 = vperm.slane %v1136, 3
      %1146 = vmatpush.msra.mxu0 %v1068
      %1147 = vmatpush.msra.mxu0 %v1064
      %1148 = vmatpush.msra.mxu0 %v1060
      %1149 = vmatpush.msra.mxu0 %v1056
      %1150 = vmatpush.msra.mxu0 %v1052
      %1151 = vmatpush.msra.mxu0 %v1048
      %1152 = vmatpush.msra.mxu0 %v1044
      %1153 = vmatpush.msra.mxu0 %v1040
      %1154 = vmatpush.msra.mxu0 %v1036
      %1155 = vmatpush.msra.mxu0 %v1032
      %1156 = vmatpush.msra.mxu0 %v1028
      %1157 = vmatpush.msra.mxu0 %v1024
      %1158 = vmatpush.msra.mxu0 %v1020
      %1159 = vmatpush.msra.mxu0 %v1016
      %1160 = vmatpush.msra.mxu0 %v1012
      %1161 = vmatpush.msra.mxu0 %v1008
      %1162 = vmatmul.f32.gmra.mxu0 %v992
      %v1163 = vpop.f32.mrf.mxu0
      %v1164 = vadd.f32 %v1138, %v1163
      %1165 = vmatmul.f32.gmra.mxu0 %v994
      %v1166 = vpop.f32.mrf.mxu0
      %v1167 = vadd.f32 %v1138, %v1166
      %1168 = vmatmul.f32.gmra.mxu0 %v996
      %v1169 = vpop.f32.mrf.mxu0
      %v1170 = vadd.f32 %v1138, %v1169
      %1171 = vmatmul.f32.gmra.mxu0 %v998
      %v1172 = vpop.f32.mrf.mxu0
      %v1173 = vadd.f32 %v1138, %v1172
      %1174 = vmatmul.f32.gmra.mxu0 %v1000
      %v1175 = vpop.f32.mrf.mxu0
      %v1176 = vadd.f32 %v1138, %v1175
      %1177 = vmatmul.f32.gmra.mxu0 %v1002
      %v1178 = vpop.f32.mrf.mxu0
      %v1179 = vadd.f32 %v1138, %v1178
      %1180 = vmatmul.f32.gmra.mxu0 %v1004
      %v1181 = vpop.f32.mrf.mxu0
      %v1182 = vadd.f32 %v1138, %v1181
      %1183 = vmatmul.f32.gmra.mxu0 %v1006
      %v1184 = vpop.f32.mrf.mxu0
      %v1185 = vadd.f32 %v1138, %v1184
      %1186 = vdwg.mxu0
      %1187 = vmatpush.msra.mxu0 %v1132
      %1188 = vmatpush.msra.mxu0 %v1128
      %1189 = vmatpush.msra.mxu0 %v1124
      %1190 = vmatpush.msra.mxu0 %v1120
      %1191 = vmatpush.msra.mxu0 %v1116
      %1192 = vmatpush.msra.mxu0 %v1112
      %1193 = vmatpush.msra.mxu0 %v1108
      %1194 = vmatpush.msra.mxu0 %v1104
      %1195 = vmatpush.msra.mxu0 %v1100
      %1196 = vmatpush.msra.mxu0 %v1096
      %1197 = vmatpush.msra.mxu0 %v1092
      %1198 = vmatpush.msra.mxu0 %v1088
      %1199 = vmatpush.msra.mxu0 %v1084
      %1200 = vmatpush.msra.mxu0 %v1080
      %1201 = vmatpush.msra.mxu0 %v1076
      %1202 = vmatpush.msra.mxu0 %v1072
      %1203 = vmatmul.f32.gmra.mxu0 %v993
      %v1204 = vpop.f32.mrf.mxu0
      %v1205 = vadd.f32 %v1164, %v1204
      %1206 = vmatmul.f32.gmra.mxu0 %v995
      %v1207 = vpop.f32.mrf.mxu0
      %v1208 = vadd.f32 %v1167, %v1207
      %1209 = vmatmul.f32.gmra.mxu0 %v997
      %v1210 = vpop.f32.mrf.mxu0
      %v1211 = vadd.f32 %v1170, %v1210
      %1212 = vmatmul.f32.gmra.mxu0 %v999
      %v1213 = vpop.f32.mrf.mxu0
      %v1214 = vadd.f32 %v1173, %v1213
      %1215 = vmatmul.f32.gmra.mxu0 %v1001
      %v1216 = vpop.f32.mrf.mxu0
      %v1217 = vadd.f32 %v1176, %v1216
      %1218 = vmatmul.f32.gmra.mxu0 %v1003
      %v1219 = vpop.f32.mrf.mxu0
      %v1220 = vadd.f32 %v1179, %v1219
      %1221 = vmatmul.f32.gmra.mxu0 %v1005
      %v1222 = vpop.f32.mrf.mxu0
      %v1223 = vadd.f32 %v1182, %v1222
      %1224 = vmatmul.f32.gmra.mxu0 %v1007
      %v1225 = vpop.f32.mrf.mxu0
      %v1226 = vadd.f32 %v1185, %v1225
      %1227 = vdwg.mxu0
      %1228 = vmatpush.msra.mxu0 %v1069
      %1229 = vmatpush.msra.mxu0 %v1065
      %1230 = vmatpush.msra.mxu0 %v1061
      %1231 = vmatpush.msra.mxu0 %v1057
      %1232 = vmatpush.msra.mxu0 %v1053
      %1233 = vmatpush.msra.mxu0 %v1049
      %1234 = vmatpush.msra.mxu0 %v1045
      %1235 = vmatpush.msra.mxu0 %v1041
      %1236 = vmatpush.msra.mxu0 %v1037
      %1237 = vmatpush.msra.mxu0 %v1033
      %1238 = vmatpush.msra.mxu0 %v1029
      %1239 = vmatpush.msra.mxu0 %v1025
      %1240 = vmatpush.msra.mxu0 %v1021
      %1241 = vmatpush.msra.mxu0 %v1017
      %1242 = vmatpush.msra.mxu0 %v1013
      %1243 = vmatpush.msra.mxu0 %v1009
      %1244 = vmatmul.f32.gmra.mxu0 %v992
      %v1245 = vpop.f32.mrf.mxu0
      %v1246 = vadd.f32 %v1139, %v1245
      %1247 = vmatmul.f32.gmra.mxu0 %v994
      %v1248 = vpop.f32.mrf.mxu0
      %v1249 = vadd.f32 %v1139, %v1248
      %1250 = vmatmul.f32.gmra.mxu0 %v996
      %v1251 = vpop.f32.mrf.mxu0
      %v1252 = vadd.f32 %v1139, %v1251
      %1253 = vmatmul.f32.gmra.mxu0 %v998
      %v1254 = vpop.f32.mrf.mxu0
      %v1255 = vadd.f32 %v1139, %v1254
      %1256 = vmatmul.f32.gmra.mxu0 %v1000
      %v1257 = vpop.f32.mrf.mxu0
      %v1258 = vadd.f32 %v1139, %v1257
      %1259 = vmatmul.f32.gmra.mxu0 %v1002
      %v1260 = vpop.f32.mrf.mxu0
      %v1261 = vadd.f32 %v1139, %v1260
      %1262 = vmatmul.f32.gmra.mxu0 %v1004
      %v1263 = vpop.f32.mrf.mxu0
      %v1264 = vadd.f32 %v1139, %v1263
      %1265 = vmatmul.f32.gmra.mxu0 %v1006
      %v1266 = vpop.f32.mrf.mxu0
      %v1267 = vadd.f32 %v1139, %v1266
      %1268 = vdwg.mxu0
      %1269 = vmatpush.msra.mxu0 %v1133
      %1270 = vmatpush.msra.mxu0 %v1129
      %1271 = vmatpush.msra.mxu0 %v1125
      %1272 = vmatpush.msra.mxu0 %v1121
      %1273 = vmatpush.msra.mxu0 %v1117
      %1274 = vmatpush.msra.mxu0 %v1113
      %1275 = vmatpush.msra.mxu0 %v1109
      %1276 = vmatpush.msra.mxu0 %v1105
      %1277 = vmatpush.msra.mxu0 %v1101
      %1278 = vmatpush.msra.mxu0 %v1097
      %1279 = vmatpush.msra.mxu0 %v1093
      %1280 = vmatpush.msra.mxu0 %v1089
      %1281 = vmatpush.msra.mxu0 %v1085
      %1282 = vmatpush.msra.mxu0 %v1081
      %1283 = vmatpush.msra.mxu0 %v1077
      %1284 = vmatpush.msra.mxu0 %v1073
      %1285 = vmatmul.f32.gmra.mxu0 %v993
      %v1286 = vpop.f32.mrf.mxu0
      %v1287 = vadd.f32 %v1246, %v1286
      %1288 = vmatmul.f32.gmra.mxu0 %v995
      %v1289 = vpop.f32.mrf.mxu0
      %v1290 = vadd.f32 %v1249, %v1289
      %1291 = vmatmul.f32.gmra.mxu0 %v997
      %v1292 = vpop.f32.mrf.mxu0
      %v1293 = vadd.f32 %v1252, %v1292
      %1294 = vmatmul.f32.gmra.mxu0 %v999
      %v1295 = vpop.f32.mrf.mxu0
      %v1296 = vadd.f32 %v1255, %v1295
      %1297 = vmatmul.f32.gmra.mxu0 %v1001
      %v1298 = vpop.f32.mrf.mxu0
      %v1299 = vadd.f32 %v1258, %v1298
      %1300 = vmatmul.f32.gmra.mxu0 %v1003
      %v1301 = vpop.f32.mrf.mxu0
      %v1302 = vadd.f32 %v1261, %v1301
      %1303 = vmatmul.f32.gmra.mxu0 %v1005
      %v1304 = vpop.f32.mrf.mxu0
      %v1305 = vadd.f32 %v1264, %v1304
      %1306 = vmatmul.f32.gmra.mxu0 %v1007
      %v1307 = vpop.f32.mrf.mxu0
      %v1308 = vadd.f32 %v1267, %v1307
      %1309 = vdwg.mxu0
      %1310 = vmatpush.msra.mxu0 %v1070
      %1311 = vmatpush.msra.mxu0 %v1066
      %1312 = vmatpush.msra.mxu0 %v1062
      %1313 = vmatpush.msra.mxu0 %v1058
      %1314 = vmatpush.msra.mxu0 %v1054
      %1315 = vmatpush.msra.mxu0 %v1050
      %1316 = vmatpush.msra.mxu0 %v1046
      %1317 = vmatpush.msra.mxu0 %v1042
      %1318 = vmatpush.msra.mxu0 %v1038
      %1319 = vmatpush.msra.mxu0 %v1034
      %1320 = vmatpush.msra.mxu0 %v1030
      %1321 = vmatpush.msra.mxu0 %v1026
      %1322 = vmatpush.msra.mxu0 %v1022
      %1323 = vmatpush.msra.mxu0 %v1018
      %1324 = vmatpush.msra.mxu0 %v1014
      %1325 = vmatpush.msra.mxu0 %v1010
      %1326 = vmatmul.f32.gmra.mxu0 %v992
      %v1327 = vpop.f32.mrf.mxu0
      %v1328 = vadd.f32 %v1140, %v1327
      %1329 = vmatmul.f32.gmra.mxu0 %v994
      %v1330 = vpop.f32.mrf.mxu0
      %v1331 = vadd.f32 %v1140, %v1330
      %1332 = vmatmul.f32.gmra.mxu0 %v996
      %v1333 = vpop.f32.mrf.mxu0
      %v1334 = vadd.f32 %v1140, %v1333
      %1335 = vmatmul.f32.gmra.mxu0 %v998
      %v1336 = vpop.f32.mrf.mxu0
      %v1337 = vadd.f32 %v1140, %v1336
      %1338 = vmatmul.f32.gmra.mxu0 %v1000
      %v1339 = vpop.f32.mrf.mxu0
      %v1340 = vadd.f32 %v1140, %v1339
      %1341 = vmatmul.f32.gmra.mxu0 %v1002
      %v1342 = vpop.f32.mrf.mxu0
      %v1343 = vadd.f32 %v1140, %v1342
      %1344 = vmatmul.f32.gmra.mxu0 %v1004
      %v1345 = vpop.f32.mrf.mxu0
      %v1346 = vadd.f32 %v1140, %v1345
      %1347 = vmatmul.f32.gmra.mxu0 %v1006
      %v1348 = vpop.f32.mrf.mxu0
      %v1349 = vadd.f32 %v1140, %v1348
      %1350 = vdwg.mxu0
      %1351 = vmatpush.msra.mxu0 %v1134
      %1352 = vmatpush.msra.mxu0 %v1130
      %1353 = vmatpush.msra.mxu0 %v1126
      %1354 = vmatpush.msra.mxu0 %v1122
      %1355 = vmatpush.msra.mxu0 %v1118
      %1356 = vmatpush.msra.mxu0 %v1114
      %1357 = vmatpush.msra.mxu0 %v1110
      %1358 = vmatpush.msra.mxu0 %v1106
      %1359 = vmatpush.msra.mxu0 %v1102
      %1360 = vmatpush.msra.mxu0 %v1098
      %1361 = vmatpush.msra.mxu0 %v1094
      %1362 = vmatpush.msra.mxu0 %v1090
      %1363 = vmatpush.msra.mxu0 %v1086
      %1364 = vmatpush.msra.mxu0 %v1082
      %1365 = vmatpush.msra.mxu0 %v1078
      %1366 = vmatpush.msra.mxu0 %v1074
      %1367 = vmatmul.f32.gmra.mxu0 %v993
      %v1368 = vpop.f32.mrf.mxu0
      %v1369 = vadd.f32 %v1328, %v1368
      %1370 = vmatmul.f32.gmra.mxu0 %v995
      %v1371 = vpop.f32.mrf.mxu0
      %v1372 = vadd.f32 %v1331, %v1371
      %1373 = vmatmul.f32.gmra.mxu0 %v997
      %v1374 = vpop.f32.mrf.mxu0
      %v1375 = vadd.f32 %v1334, %v1374
      %1376 = vmatmul.f32.gmra.mxu0 %v999
      %v1377 = vpop.f32.mrf.mxu0
      %v1378 = vadd.f32 %v1337, %v1377
      %1379 = vmatmul.f32.gmra.mxu0 %v1001
      %v1380 = vpop.f32.mrf.mxu0
      %v1381 = vadd.f32 %v1340, %v1380
      %1382 = vmatmul.f32.gmra.mxu0 %v1003
      %v1383 = vpop.f32.mrf.mxu0
      %v1384 = vadd.f32 %v1343, %v1383
      %1385 = vmatmul.f32.gmra.mxu0 %v1005
      %v1386 = vpop.f32.mrf.mxu0
      %v1387 = vadd.f32 %v1346, %v1386
      %1388 = vmatmul.f32.gmra.mxu0 %v1007
      %v1389 = vpop.f32.mrf.mxu0
      %v1390 = vadd.f32 %v1349, %v1389
      %1391 = vdwg.mxu0
      %1392 = vmatpush.msra.mxu0 %v1071
      %1393 = vmatpush.msra.mxu0 %v1067
      %1394 = vmatpush.msra.mxu0 %v1063
      %1395 = vmatpush.msra.mxu0 %v1059
      %1396 = vmatpush.msra.mxu0 %v1055
      %1397 = vmatpush.msra.mxu0 %v1051
      %1398 = vmatpush.msra.mxu0 %v1047
      %1399 = vmatpush.msra.mxu0 %v1043
      %1400 = vmatpush.msra.mxu0 %v1039
      %1401 = vmatpush.msra.mxu0 %v1035
      %1402 = vmatpush.msra.mxu0 %v1031
      %1403 = vmatpush.msra.mxu0 %v1027
      %1404 = vmatpush.msra.mxu0 %v1023
      %1405 = vmatpush.msra.mxu0 %v1019
      %1406 = vmatpush.msra.mxu0 %v1015
      %1407 = vmatpush.msra.mxu0 %v1011
      %1408 = vmatmul.f32.gmra.mxu0 %v992
      %v1409 = vpop.f32.mrf.mxu0
      %v1410 = vadd.f32 %v1141, %v1409
      %1411 = vmatmul.f32.gmra.mxu0 %v994
      %v1412 = vpop.f32.mrf.mxu0
      %v1413 = vadd.f32 %v1141, %v1412
      %1414 = vmatmul.f32.gmra.mxu0 %v996
      %v1415 = vpop.f32.mrf.mxu0
      %v1416 = vadd.f32 %v1141, %v1415
      %1417 = vmatmul.f32.gmra.mxu0 %v998
      %v1418 = vpop.f32.mrf.mxu0
      %v1419 = vadd.f32 %v1141, %v1418
      %1420 = vmatmul.f32.gmra.mxu0 %v1000
      %v1421 = vpop.f32.mrf.mxu0
      %v1422 = vadd.f32 %v1141, %v1421
      %1423 = vmatmul.f32.gmra.mxu0 %v1002
      %v1424 = vpop.f32.mrf.mxu0
      %v1425 = vadd.f32 %v1141, %v1424
      %1426 = vmatmul.f32.gmra.mxu0 %v1004
      %v1427 = vpop.f32.mrf.mxu0
      %v1428 = vadd.f32 %v1141, %v1427
      %1429 = vmatmul.f32.gmra.mxu0 %v1006
      %v1430 = vpop.f32.mrf.mxu0
      %v1431 = vadd.f32 %v1141, %v1430
      %1432 = vdwg.mxu0
      %1433 = vmatpush.msra.mxu0 %v1135
      %1434 = vmatpush.msra.mxu0 %v1131
      %1435 = vmatpush.msra.mxu0 %v1127
      %1436 = vmatpush.msra.mxu0 %v1123
      %1437 = vmatpush.msra.mxu0 %v1119
      %1438 = vmatpush.msra.mxu0 %v1115
      %1439 = vmatpush.msra.mxu0 %v1111
      %1440 = vmatpush.msra.mxu0 %v1107
      %1441 = vmatpush.msra.mxu0 %v1103
      %1442 = vmatpush.msra.mxu0 %v1099
      %1443 = vmatpush.msra.mxu0 %v1095
      %1444 = vmatpush.msra.mxu0 %v1091
      %1445 = vmatpush.msra.mxu0 %v1087
      %1446 = vmatpush.msra.mxu0 %v1083
      %1447 = vmatpush.msra.mxu0 %v1079
      %1448 = vmatpush.msra.mxu0 %v1075
      %1449 = vmatmul.f32.gmra.mxu0 %v993
      %v1450 = vpop.f32.mrf.mxu0
      %v1451 = vadd.f32 %v1410, %v1450
      %1452 = vmatmul.f32.gmra.mxu0 %v995
      %v1453 = vpop.f32.mrf.mxu0
      %v1454 = vadd.f32 %v1413, %v1453
      %1455 = vmatmul.f32.gmra.mxu0 %v997
      %v1456 = vpop.f32.mrf.mxu0
      %v1457 = vadd.f32 %v1416, %v1456
      %1458 = vmatmul.f32.gmra.mxu0 %v999
      %v1459 = vpop.f32.mrf.mxu0
      %v1460 = vadd.f32 %v1419, %v1459
      %1461 = vmatmul.f32.gmra.mxu0 %v1001
      %v1462 = vpop.f32.mrf.mxu0
      %v1463 = vadd.f32 %v1422, %v1462
      %1464 = vmatmul.f32.gmra.mxu0 %v1003
      %v1465 = vpop.f32.mrf.mxu0
      %v1466 = vadd.f32 %v1425, %v1465
      %1467 = vmatmul.f32.gmra.mxu0 %v1005
      %v1468 = vpop.f32.mrf.mxu0
      %v1469 = vadd.f32 %v1428, %v1468
      %1470 = vmatmul.f32.gmra.mxu0 %v1007
      %v1471 = vpop.f32.mrf.mxu0
      %v1472 = vadd.f32 %v1431, %v1471
      %1473 = vdwg.mxu0
      %v1474 = vld [vmem:[%s5] sm:$0xf]
      %v1476 = vperm.slane %v1474, 0
      %v1477 = vperm.slane %v1474, 1
      %v1478 = vperm.slane %v1474, 2
      %v1479 = vperm.slane %v1474, 3
      %v1484 = vadd.f32 %v1205, %v1476
      %v1485 = vadd.f32 %v1287, %v1477
      %v1486 = vadd.f32 %v1369, %v1478
      %v1487 = vadd.f32 %v1451, %v1479
      %v1488 = vadd.f32 %v1208, %v1476
      %v1489 = vadd.f32 %v1290, %v1477
      %v1490 = vadd.f32 %v1372, %v1478
      %v1491 = vadd.f32 %v1454, %v1479
      %v1492 = vadd.f32 %v1211, %v1476
      %v1493 = vadd.f32 %v1293, %v1477
      %v1494 = vadd.f32 %v1375, %v1478
      %v1495 = vadd.f32 %v1457, %v1479
      %v1496 = vadd.f32 %v1214, %v1476
      %v1497 = vadd.f32 %v1296, %v1477
      %v1498 = vadd.f32 %v1378, %v1478
      %v1499 = vadd.f32 %v1460, %v1479
      %v1500 = vadd.f32 %v1217, %v1476
      %v1501 = vadd.f32 %v1299, %v1477
      %v1502 = vadd.f32 %v1381, %v1478
      %v1503 = vadd.f32 %v1463, %v1479
      %v1504 = vadd.f32 %v1220, %v1476
      %v1505 = vadd.f32 %v1302, %v1477
      %v1506 = vadd.f32 %v1384, %v1478
      %v1507 = vadd.f32 %v1466, %v1479
      %v1508 = vadd.f32 %v1223, %v1476
      %v1509 = vadd.f32 %v1305, %v1477
      %v1510 = vadd.f32 %v1387, %v1478
      %v1511 = vadd.f32 %v1469, %v1479
      %v1512 = vadd.f32 %v1226, %v1476
      %v1513 = vadd.f32 %v1308, %v1477
      %v1514 = vadd.f32 %v1390, %v1478
      %v1515 = vadd.f32 %v1472, %v1479
      %v1516 = vmul.f32 %v1484, 0.01
      %v1517 = vmul.f32 %v1485, 0.01
      %v1518 = vmul.f32 %v1486, 0.01
      %v1519 = vmul.f32 %v1487, 0.01
      %v1520 = vmul.f32 %v1488, 0.01
      %v1521 = vmul.f32 %v1489, 0.01
      %v1522 = vmul.f32 %v1490, 0.01
      %v1523 = vmul.f32 %v1491, 0.01
      %v1524 = vmul.f32 %v1492, 0.01
      %v1525 = vmul.f32 %v1493, 0.01
      %v1526 = vmul.f32 %v1494, 0.01
      %v1527 = vmul.f32 %v1495, 0.01
      %v1528 = vmul.f32 %v1496, 0.01
      %v1529 = vmul.f32 %v1497, 0.01
      %v1530 = vmul.f32 %v1498, 0.01
      %v1531 = vmul.f32 %v1499, 0.01
      %v1532 = vmul.f32 %v1500, 0.01
      %v1533 = vmul.f32 %v1501, 0.01
      %v1534 = vmul.f32 %v1502, 0.01
      %v1535 = vmul.f32 %v1503, 0.01
      %v1536 = vmul.f32 %v1504, 0.01
      %v1537 = vmul.f32 %v1505, 0.01
      %v1538 = vmul.f32 %v1506, 0.01
      %v1539 = vmul.f32 %v1507, 0.01
      %v1540 = vmul.f32 %v1508, 0.01
      %v1541 = vmul.f32 %v1509, 0.01
      %v1542 = vmul.f32 %v1510, 0.01
      %v1543 = vmul.f32 %v1511, 0.01
      %v1544 = vmul.f32 %v1512, 0.01
      %v1545 = vmul.f32 %v1513, 0.01
      %v1546 = vmul.f32 %v1514, 0.01
      %v1547 = vmul.f32 %v1515, 0.01
      %v1548 = vmax.f32 %v1484, %v1516
      %v1549 = vmax.f32 %v1485, %v1517
      %v1550 = vmax.f32 %v1486, %v1518
      %v1551 = vmax.f32 %v1487, %v1519
      %v1552 = vmax.f32 %v1488, %v1520
      %v1553 = vmax.f32 %v1489, %v1521
      %v1554 = vmax.f32 %v1490, %v1522
      %v1555 = vmax.f32 %v1491, %v1523
      %v1556 = vmax.f32 %v1492, %v1524
      %v1557 = vmax.f32 %v1493, %v1525
      %v1558 = vmax.f32 %v1494, %v1526
      %v1559 = vmax.f32 %v1495, %v1527
      %v1560 = vmax.f32 %v1496, %v1528
      %v1561 = vmax.f32 %v1497, %v1529
      %v1562 = vmax.f32 %v1498, %v1530
      %v1563 = vmax.f32 %v1499, %v1531
      %v1564 = vmax.f32 %v1500, %v1532
      %v1565 = vmax.f32 %v1501, %v1533
      %v1566 = vmax.f32 %v1502, %v1534
      %v1567 = vmax.f32 %v1503, %v1535
      %v1568 = vmax.f32 %v1504, %v1536
      %v1569 = vmax.f32 %v1505, %v1537
      %v1570 = vmax.f32 %v1506, %v1538
      %v1571 = vmax.f32 %v1507, %v1539
      %v1572 = vmax.f32 %v1508, %v1540
      %v1573 = vmax.f32 %v1509, %v1541
      %v1574 = vmax.f32 %v1510, %v1542
      %v1575 = vmax.f32 %v1511, %v1543
      %v1576 = vmax.f32 %v1512, %v1544
      %v1577 = vmax.f32 %v1513, %v1545
      %v1578 = vmax.f32 %v1514, %v1546
      %v1579 = vmax.f32 %v1515, %v1547
      %v1580 = vld [vmem:[%s6] sm:$0xff]
      %v1581 = vld [vmem:[%s6 + $0x8] sm:$0xff]
      %v1582 = vld [vmem:[%s6 + $0x10] sm:$0xff]
      %v1583 = vld [vmem:[%s6 + $0x18] sm:$0xff]
      %v1584 = vld [vmem:[%s6 + $0x20] sm:$0xff]
      %v1585 = vld [vmem:[%s6 + $0x28] sm:$0xff]
      %v1586 = vld [vmem:[%s6 + $0x30] sm:$0xff]
      %v1587 = vld [vmem:[%s6 + $0x38] sm:$0xff]
      %v1588 = vld [vmem:[%s6 + $0x40] sm:$0xff]
      %v1589 = vld [vmem:[%s6 + $0x48] sm:$0xff]
      %v1590 = vld [vmem:[%s6 + $0x50] sm:$0xff]
      %v1591 = vld [vmem:[%s6 + $0x58] sm:$0xff]
      %v1592 = vld [vmem:[%s6 + $0x60] sm:$0xff]
      %v1593 = vld [vmem:[%s6 + $0x68] sm:$0xff]
      %v1594 = vld [vmem:[%s6 + $0x70] sm:$0xff]
      %v1595 = vld [vmem:[%s6 + $0x78] sm:$0xff]
      %v1596 = vld [vmem:[%s6 + $0x80] sm:$0xff]
      %v1597 = vld [vmem:[%s6 + $0x88] sm:$0xff]
      %v1598 = vld [vmem:[%s6 + $0x90] sm:$0xff]
      %v1599 = vld [vmem:[%s6 + $0x98] sm:$0xff]
      %v1600 = vld [vmem:[%s6 + $0xa0] sm:$0xff]
      %v1601 = vld [vmem:[%s6 + $0xa8] sm:$0xff]
      %v1602 = vld [vmem:[%s6 + $0xb0] sm:$0xff]
      %v1603 = vld [vmem:[%s6 + $0xb8] sm:$0xff]
      %v1604 = vld [vmem:[%s6 + $0xc0] sm:$0xff]
      %v1605 = vld [vmem:[%s6 + $0xc8] sm:$0xff]
      %v1606 = vld [vmem:[%s6 + $0xd0] sm:$0xff]
      %v1607 = vld [vmem:[%s6 + $0xd8] sm:$0xff]
      %v1608 = vld [vmem:[%s6 + $0xe0] sm:$0xff]
      %v1609 = vld [vmem:[%s6 + $0xe8] sm:$0xff]
      %v1610 = vld [vmem:[%s6 + $0xf0] sm:$0xff]
      %v1611 = vld [vmem:[%s6 + $0xf8] sm:$0xff]
      %v1612 = vld [vmem:[%s6 + $0x100] sm:$0xff]
      %v1613 = vld [vmem:[%s6 + $0x108] sm:$0xff]
      %v1614 = vld [vmem:[%s6 + $0x110] sm:$0xff]
      %v1615 = vld [vmem:[%s6 + $0x118] sm:$0xff]
      %v1616 = vld [vmem:[%s6 + $0x120] sm:$0xff]
      %v1617 = vld [vmem:[%s6 + $0x128] sm:$0xff]
      %v1618 = vld [vmem:[%s6 + $0x130] sm:$0xff]
      %v1619 = vld [vmem:[%s6 + $0x138] sm:$0xff]
      %v1620 = vld [vmem:[%s6 + $0x140] sm:$0xff]
      %v1621 = vld [vmem:[%s6 + $0x148] sm:$0xff]
      %v1622 = vld [vmem:[%s6 + $0x150] sm:$0xff]
      %v1623 = vld [vmem:[%s6 + $0x158] sm:$0xff]
      %v1624 = vld [vmem:[%s6 + $0x160] sm:$0xff]
      %v1625 = vld [vmem:[%s6 + $0x168] sm:$0xff]
      %v1626 = vld [vmem:[%s6 + $0x170] sm:$0xff]
      %v1627 = vld [vmem:[%s6 + $0x178] sm:$0xff]
      %v1628 = vld [vmem:[%s6 + $0x180] sm:$0xff]
      %v1629 = vld [vmem:[%s6 + $0x188] sm:$0xff]
      %v1630 = vld [vmem:[%s6 + $0x190] sm:$0xff]
      %v1631 = vld [vmem:[%s6 + $0x198] sm:$0xff]
      %v1632 = vld [vmem:[%s6 + $0x1a0] sm:$0xff]
      %v1633 = vld [vmem:[%s6 + $0x1a8] sm:$0xff]
      %v1634 = vld [vmem:[%s6 + $0x1b0] sm:$0xff]
      %v1635 = vld [vmem:[%s6 + $0x1b8] sm:$0xff]
      %v1636 = vld [vmem:[%s6 + $0x1c0] sm:$0xff]
      %v1637 = vld [vmem:[%s6 + $0x1c8] sm:$0xff]
      %v1638 = vld [vmem:[%s6 + $0x1d0] sm:$0xff]
      %v1639 = vld [vmem:[%s6 + $0x1d8] sm:$0xff]
      %v1640 = vld [vmem:[%s6 + $0x1e0] sm:$0xff]
      %v1641 = vld [vmem:[%s6 + $0x1e8] sm:$0xff]
      %v1642 = vld [vmem:[%s6 + $0x1f0] sm:$0xff]
      %v1643 = vld [vmem:[%s6 + $0x1f8] sm:$0xff]
      %v1644 = vld [vmem:[%s6 + $0x200] sm:$0xff]
      %v1645 = vld [vmem:[%s6 + $0x208] sm:$0xff]
      %v1646 = vld [vmem:[%s6 + $0x210] sm:$0xff]
      %v1647 = vld [vmem:[%s6 + $0x218] sm:$0xff]
      %v1648 = vld [vmem:[%s6 + $0x220] sm:$0xff]
      %v1649 = vld [vmem:[%s6 + $0x228] sm:$0xff]
      %v1650 = vld [vmem:[%s6 + $0x230] sm:$0xff]
      %v1651 = vld [vmem:[%s6 + $0x238] sm:$0xff]
      %v1652 = vld [vmem:[%s6 + $0x240] sm:$0xff]
      %v1653 = vld [vmem:[%s6 + $0x248] sm:$0xff]
      %v1654 = vld [vmem:[%s6 + $0x250] sm:$0xff]
      %v1655 = vld [vmem:[%s6 + $0x258] sm:$0xff]
      %v1656 = vld [vmem:[%s6 + $0x260] sm:$0xff]
      %v1657 = vld [vmem:[%s6 + $0x268] sm:$0xff]
      %v1658 = vld [vmem:[%s6 + $0x270] sm:$0xff]
      %v1659 = vld [vmem:[%s6 + $0x278] sm:$0xff]
      %v1660 = vld [vmem:[%s6 + $0x280] sm:$0xff]
      %v1661 = vld [vmem:[%s6 + $0x288] sm:$0xff]
      %v1662 = vld [vmem:[%s6 + $0x290] sm:$0xff]
      %v1663 = vld [vmem:[%s6 + $0x298] sm:$0xff]
      %v1664 = vld [vmem:[%s6 + $0x2a0] sm:$0xff]
      %v1665 = vld [vmem:[%s6 + $0x2a8] sm:$0xff]
      %v1666 = vld [vmem:[%s6 + $0x2b0] sm:$0xff]
      %v1667 = vld [vmem:[%s6 + $0x2b8] sm:$0xff]
      %v1668 = vld [vmem:[%s6 + $0x2c0] sm:$0xff]
      %v1669 = vld [vmem:[%s6 + $0x2c8] sm:$0xff]
      %v1670 = vld [vmem:[%s6 + $0x2d0] sm:$0xff]
      %v1671 = vld [vmem:[%s6 + $0x2d8] sm:$0xff]
      %v1672 = vld [vmem:[%s6 + $0x2e0] sm:$0xff]
      %v1673 = vld [vmem:[%s6 + $0x2e8] sm:$0xff]
      %v1674 = vld [vmem:[%s6 + $0x2f0] sm:$0xff]
      %v1675 = vld [vmem:[%s6 + $0x2f8] sm:$0xff]
      %v1676 = vld [vmem:[%s6 + $0x300] sm:$0xff]
      %v1677 = vld [vmem:[%s6 + $0x308] sm:$0xff]
      %v1678 = vld [vmem:[%s6 + $0x310] sm:$0xff]
      %v1679 = vld [vmem:[%s6 + $0x318] sm:$0xff]
      %v1680 = vld [vmem:[%s6 + $0x320] sm:$0xff]
      %v1681 = vld [vmem:[%s6 + $0x328] sm:$0xff]
      %v1682 = vld [vmem:[%s6 + $0x330] sm:$0xff]
      %v1683 = vld [vmem:[%s6 + $0x338] sm:$0xff]
      %v1684 = vld [vmem:[%s6 + $0x340] sm:$0xff]
      %v1685 = vld [vmem:[%s6 + $0x348] sm:$0xff]
      %v1686 = vld [vmem:[%s6 + $0x350] sm:$0xff]
      %v1687 = vld [vmem:[%s6 + $0x358] sm:$0xff]
      %v1688 = vld [vmem:[%s6 + $0x360] sm:$0xff]
      %v1689 = vld [vmem:[%s6 + $0x368] sm:$0xff]
      %v1690 = vld [vmem:[%s6 + $0x370] sm:$0xff]
      %v1691 = vld [vmem:[%s6 + $0x378] sm:$0xff]
      %v1692 = vld [vmem:[%s6 + $0x380] sm:$0xff]
      %v1693 = vld [vmem:[%s6 + $0x388] sm:$0xff]
      %v1694 = vld [vmem:[%s6 + $0x390] sm:$0xff]
      %v1695 = vld [vmem:[%s6 + $0x398] sm:$0xff]
      %v1696 = vld [vmem:[%s6 + $0x3a0] sm:$0xff]
      %v1697 = vld [vmem:[%s6 + $0x3a8] sm:$0xff]
      %v1698 = vld [vmem:[%s6 + $0x3b0] sm:$0xff]
      %v1699 = vld [vmem:[%s6 + $0x3b8] sm:$0xff]
      %v1700 = vld [vmem:[%s6 + $0x3c0] sm:$0xff]
      %v1701 = vld [vmem:[%s6 + $0x3c8] sm:$0xff]
      %v1702 = vld [vmem:[%s6 + $0x3d0] sm:$0xff]
      %v1703 = vld [vmem:[%s6 + $0x3d8] sm:$0xff]
      %v1704 = vld [vmem:[%s6 + $0x3e0] sm:$0xff]
      %v1705 = vld [vmem:[%s6 + $0x3e8] sm:$0xff]
      %v1706 = vld [vmem:[%s6 + $0x3f0] sm:$0xff]
      %v1707 = vld [vmem:[%s6 + $0x3f8] sm:$0xff]
      %v1708 = vld [vmem:[%s7] sm:$0x3]
      %v1710 = vperm.slane %v1708, 0
      %v1711 = vperm.slane %v1708, 1
      %1714 = vmatpush.msra.mxu0 %v1610
      %1715 = vmatpush.msra.mxu0 %v1608
      %1716 = vmatpush.msra.mxu0 %v1606
      %1717 = vmatpush.msra.mxu0 %v1604
      %1718 = vmatpush.msra.mxu0 %v1602
      %1719 = vmatpush.msra.mxu0 %v1600
      %1720 = vmatpush.msra.mxu0 %v1598
      %1721 = vmatpush.msra.mxu0 %v1596
      %1722 = vmatpush.msra.mxu0 %v1594
      %1723 = vmatpush.msra.mxu0 %v1592
      %1724 = vmatpush.msra.mxu0 %v1590
      %1725 = vmatpush.msra.mxu0 %v1588
      %1726 = vmatpush.msra.mxu0 %v1586
      %1727 = vmatpush.msra.mxu0 %v1584
      %1728 = vmatpush.msra.mxu0 %v1582
      %1729 = vmatpush.msra.mxu0 %v1580
      %1730 = vmatmul.f32.gmra.mxu0 %v1548
      %v1731 = vpop.f32.mrf.mxu0
      %v1732 = vadd.f32 %v1710, %v1731
      %1733 = vmatmul.f32.gmra.mxu0 %v1552
      %v1734 = vpop.f32.mrf.mxu0
      %v1735 = vadd.f32 %v1710, %v1734
      %1736 = vmatmul.f32.gmra.mxu0 %v1556
      %v1737 = vpop.f32.mrf.mxu0
      %v1738 = vadd.f32 %v1710, %v1737
      %1739 = vmatmul.f32.gmra.mxu0 %v1560
      %v1740 = vpop.f32.mrf.mxu0
      %v1741 = vadd.f32 %v1710, %v1740
      %1742 = vmatmul.f32.gmra.mxu0 %v1564
      %v1743 = vpop.f32.mrf.mxu0
      %v1744 = vadd.f32 %v1710, %v1743
      %1745 = vmatmul.f32.gmra.mxu0 %v1568
      %v1746 = vpop.f32.mrf.mxu0
      %v1747 = vadd.f32 %v1710, %v1746
      %1748 = vmatmul.f32.gmra.mxu0 %v1572
      %v1749 = vpop.f32.mrf.mxu0
      %v1750 = vadd.f32 %v1710, %v1749
      %1751 = vmatmul.f32.gmra.mxu0 %v1576
      %v1752 = vpop.f32.mrf.mxu0
      %v1753 = vadd.f32 %v1710, %v1752
      %1754 = vdwg.mxu0
      %1755 = vmatpush.msra.mxu0 %v1642
      %1756 = vmatpush.msra.mxu0 %v1640
      %1757 = vmatpush.msra.mxu0 %v1638
      %1758 = vmatpush.msra.mxu0 %v1636
      %1759 = vmatpush.msra.mxu0 %v1634
      %1760 = vmatpush.msra.mxu0 %v1632
      %1761 = vmatpush.msra.mxu0 %v1630
      %1762 = vmatpush.msra.mxu0 %v1628
      %1763 = vmatpush.msra.mxu0 %v1626
      %1764 = vmatpush.msra.mxu0 %v1624
      %1765 = vmatpush.msra.mxu0 %v1622
      %1766 = vmatpush.msra.mxu0 %v1620
      %1767 = vmatpush.msra.mxu0 %v1618
      %1768 = vmatpush.msra.mxu0 %v1616
      %1769 = vmatpush.msra.mxu0 %v1614
      %1770 = vmatpush.msra.mxu0 %v1612
      %1771 = vmatmul.f32.gmra.mxu0 %v1549
      %v1772 = vpop.f32.mrf.mxu0
      %v1773 = vadd.f32 %v1732, %v1772
      %1774 = vmatmul.f32.gmra.mxu0 %v1553
      %v1775 = vpop.f32.mrf.mxu0
      %v1776 = vadd.f32 %v1735, %v1775
      %1777 = vmatmul.f32.gmra.mxu0 %v1557
      %v1778 = vpop.f32.mrf.mxu0
      %v1779 = vadd.f32 %v1738, %v1778
      %1780 = vmatmul.f32.gmra.mxu0 %v1561
      %v1781 = vpop.f32.mrf.mxu0
      %v1782 = vadd.f32 %v1741, %v1781
      %1783 = vmatmul.f32.gmra.mxu0 %v1565
      %v1784 = vpop.f32.mrf.mxu0
      %v1785 = vadd.f32 %v1744, %v1784
      %1786 = vmatmul.f32.gmra.mxu0 %v1569
      %v1787 = vpop.f32.mrf.mxu0
      %v1788 = vadd.f32 %v1747, %v1787
      %1789 = vmatmul.f32.gmra.mxu0 %v1573
      %v1790 = vpop.f32.mrf.mxu0
      %v1791 = vadd.f32 %v1750, %v1790
      %1792 = vmatmul.f32.gmra.mxu0 %v1577
      %v1793 = vpop.f32.mrf.mxu0
      %v1794 = vadd.f32 %v1753, %v1793
      %1795 = vdwg.mxu0
      %1796 = vmatpush.msra.mxu0 %v1674
      %1797 = vmatpush.msra.mxu0 %v1672
      %1798 = vmatpush.msra.mxu0 %v1670
      %1799 = vmatpush.msra.mxu0 %v1668
      %1800 = vmatpush.msra.mxu0 %v1666
      %1801 = vmatpush.msra.mxu0 %v1664
      %1802 = vmatpush.msra.mxu0 %v1662
      %1803 = vmatpush.msra.mxu0 %v1660
      %1804 = vmatpush.msra.mxu0 %v1658
      %1805 = vmatpush.msra.mxu0 %v1656
      %1806 = vmatpush.msra.mxu0 %v1654
      %1807 = vmatpush.msra.mxu0 %v1652
      %1808 = vmatpush.msra.mxu0 %v1650
      %1809 = vmatpush.msra.mxu0 %v1648
      %1810 = vmatpush.msra.mxu0 %v1646
      %1811 = vmatpush.msra.mxu0 %v1644
      %1812 = vmatmul.f32.gmra.mxu0 %v1550
      %v1813 = vpop.f32.mrf.mxu0
      %v1814 = vadd.f32 %v1773, %v1813
      %1815 = vmatmul.f32.gmra.mxu0 %v1554
      %v1816 = vpop.f32.mrf.mxu0
      %v1817 = vadd.f32 %v1776, %v1816
      %1818 = vmatmul.f32.gmra.mxu0 %v1558
      %v1819 = vpop.f32.mrf.mxu0
      %v1820 = vadd.f32 %v1779, %v1819
      %1821 = vmatmul.f32.gmra.mxu0 %v1562
      %v1822 = vpop.f32.mrf.mxu0
      %v1823 = vadd.f32 %v1782, %v1822
      %1824 = vmatmul.f32.gmra.mxu0 %v1566
      %v1825 = vpop.f32.mrf.mxu0
      %v1826 = vadd.f32 %v1785, %v1825
      %1827 = vmatmul.f32.gmra.mxu0 %v1570
      %v1828 = vpop.f32.mrf.mxu0
      %v1829 = vadd.f32 %v1788, %v1828
      %1830 = vmatmul.f32.gmra.mxu0 %v1574
      %v1831 = vpop.f32.mrf.mxu0
      %v1832 = vadd.f32 %v1791, %v1831
      %1833 = vmatmul.f32.gmra.mxu0 %v1578
      %v1834 = vpop.f32.mrf.mxu0
      %v1835 = vadd.f32 %v1794, %v1834
      %1836 = vdwg.mxu0
      %1837 = vmatpush.msra.mxu0 %v1706
      %1838 = vmatpush.msra.mxu0 %v1704
      %1839 = vmatpush.msra.mxu0 %v1702
      %1840 = vmatpush.msra.mxu0 %v1700
      %1841 = vmatpush.msra.mxu0 %v1698
      %1842 = vmatpush.msra.mxu0 %v1696
      %1843 = vmatpush.msra.mxu0 %v1694
      %1844 = vmatpush.msra.mxu0 %v1692
      %1845 = vmatpush.msra.mxu0 %v1690
      %1846 = vmatpush.msra.mxu0 %v1688
      %1847 = vmatpush.msra.mxu0 %v1686
      %1848 = vmatpush.msra.mxu0 %v1684
      %1849 = vmatpush.msra.mxu0 %v1682
      %1850 = vmatpush.msra.mxu0 %v1680
      %1851 = vmatpush.msra.mxu0 %v1678
      %1852 = vmatpush.msra.mxu0 %v1676
      %1853 = vmatmul.f32.gmra.mxu0 %v1551
      %v1854 = vpop.f32.mrf.mxu0
      %v1855 = vadd.f32 %v1814, %v1854
      %1856 = vmatmul.f32.gmra.mxu0 %v1555
      %v1857 = vpop.f32.mrf.mxu0
      %v1858 = vadd.f32 %v1817, %v1857
      %1859 = vmatmul.f32.gmra.mxu0 %v1559
      %v1860 = vpop.f32.mrf.mxu0
      %v1861 = vadd.f32 %v1820, %v1860
      %1862 = vmatmul.f32.gmra.mxu0 %v1563
      %v1863 = vpop.f32.mrf.mxu0
      %v1864 = vadd.f32 %v1823, %v1863
      %1865 = vmatmul.f32.gmra.mxu0 %v1567
      %v1866 = vpop.f32.mrf.mxu0
      %v1867 = vadd.f32 %v1826, %v1866
      %1868 = vmatmul.f32.gmra.mxu0 %v1571
      %v1869 = vpop.f32.mrf.mxu0
      %v1870 = vadd.f32 %v1829, %v1869
      %1871 = vmatmul.f32.gmra.mxu0 %v1575
      %v1872 = vpop.f32.mrf.mxu0
      %v1873 = vadd.f32 %v1832, %v1872
      %1874 = vmatmul.f32.gmra.mxu0 %v1579
      %v1875 = vpop.f32.mrf.mxu0
      %v1876 = vadd.f32 %v1835, %v1875
      %1877 = vdwg.mxu0
      %1878 = vmatpush.msra.mxu0 %v1611
      %1879 = vmatpush.msra.mxu0 %v1609
      %1880 = vmatpush.msra.mxu0 %v1607
      %1881 = vmatpush.msra.mxu0 %v1605
      %1882 = vmatpush.msra.mxu0 %v1603
      %1883 = vmatpush.msra.mxu0 %v1601
      %1884 = vmatpush.msra.mxu0 %v1599
      %1885 = vmatpush.msra.mxu0 %v1597
      %1886 = vmatpush.msra.mxu0 %v1595
      %1887 = vmatpush.msra.mxu0 %v1593
      %1888 = vmatpush.msra.mxu0 %v1591
      %1889 = vmatpush.msra.mxu0 %v1589
      %1890 = vmatpush.msra.mxu0 %v1587
      %1891 = vmatpush.msra.mxu0 %v1585
      %1892 = vmatpush.msra.mxu0 %v1583
      %1893 = vmatpush.msra.mxu0 %v1581
      %1894 = vmatmul.f32.gmra.mxu0 %v1548
      %v1895 = vpop.f32.mrf.mxu0
      %v1896 = vadd.f32 %v1711, %v1895
      %1897 = vmatmul.f32.gmra.mxu0 %v1552
      %v1898 = vpop.f32.mrf.mxu0
      %v1899 = vadd.f32 %v1711, %v1898
      %1900 = vmatmul.f32.gmra.mxu0 %v1556
      %v1901 = vpop.f32.mrf.mxu0
      %v1902 = vadd.f32 %v1711, %v1901
      %1903 = vmatmul.f32.gmra.mxu0 %v1560
      %v1904 = vpop.f32.mrf.mxu0
      %v1905 = vadd.f32 %v1711, %v1904
      %1906 = vmatmul.f32.gmra.mxu0 %v1564
      %v1907 = vpop.f32.mrf.mxu0
      %v1908 = vadd.f32 %v1711, %v1907
      %1909 = vmatmul.f32.gmra.mxu0 %v1568
      %v1910 = vpop.f32.mrf.mxu0
      %v1911 = vadd.f32 %v1711, %v1910
      %1912 = vmatmul.f32.gmra.mxu0 %v1572
      %v1913 = vpop.f32.mrf.mxu0
      %v1914 = vadd.f32 %v1711, %v1913
      %1915 = vmatmul.f32.gmra.mxu0 %v1576
      %v1916 = vpop.f32.mrf.mxu0
      %v1917 = vadd.f32 %v1711, %v1916
      %1918 = vdwg.mxu0
      %1919 = vmatpush.msra.mxu0 %v1643
      %1920 = vmatpush.msra.mxu0 %v1641
      %1921 = vmatpush.msra.mxu0 %v1639
      %1922 = vmatpush.msra.mxu0 %v1637
      %1923 = vmatpush.msra.mxu0 %v1635
      %1924 = vmatpush.msra.mxu0 %v1633
      %1925 = vmatpush.msra.mxu0 %v1631
      %1926 = vmatpush.msra.mxu0 %v1629
      %1927 = vmatpush.msra.mxu0 %v1627
      %1928 = vmatpush.msra.mxu0 %v1625
      %1929 = vmatpush.msra.mxu0 %v1623
      %1930 = vmatpush.msra.mxu0 %v1621
      %1931 = vmatpush.msra.mxu0 %v1619
      %1932 = vmatpush.msra.mxu0 %v1617
      %1933 = vmatpush.msra.mxu0 %v1615
      %1934 = vmatpush.msra.mxu0 %v1613
      %1935 = vmatmul.f32.gmra.mxu0 %v1549
      %v1936 = vpop.f32.mrf.mxu0
      %v1937 = vadd.f32 %v1896, %v1936
      %1938 = vmatmul.f32.gmra.mxu0 %v1553
      %v1939 = vpop.f32.mrf.mxu0
      %v1940 = vadd.f32 %v1899, %v1939
      %1941 = vmatmul.f32.gmra.mxu0 %v1557
      %v1942 = vpop.f32.mrf.mxu0
      %v1943 = vadd.f32 %v1902, %v1942
      %1944 = vmatmul.f32.gmra.mxu0 %v1561
      %v1945 = vpop.f32.mrf.mxu0
      %v1946 = vadd.f32 %v1905, %v1945
      %1947 = vmatmul.f32.gmra.mxu0 %v1565
      %v1948 = vpop.f32.mrf.mxu0
      %v1949 = vadd.f32 %v1908, %v1948
      %1950 = vmatmul.f32.gmra.mxu0 %v1569
      %v1951 = vpop.f32.mrf.mxu0
      %v1952 = vadd.f32 %v1911, %v1951
      %1953 = vmatmul.f32.gmra.mxu0 %v1573
      %v1954 = vpop.f32.mrf.mxu0
      %v1955 = vadd.f32 %v1914, %v1954
      %1956 = vmatmul.f32.gmra.mxu0 %v1577
      %v1957 = vpop.f32.mrf.mxu0
      %v1958 = vadd.f32 %v1917, %v1957
      %1959 = vdwg.mxu0
      %1960 = vmatpush.msra.mxu0 %v1675
      %1961 = vmatpush.msra.mxu0 %v1673
      %1962 = vmatpush.msra.mxu0 %v1671
      %1963 = vmatpush.msra.mxu0 %v1669
      %1964 = vmatpush.msra.mxu0 %v1667
      %1965 = vmatpush.msra.mxu0 %v1665
      %1966 = vmatpush.msra.mxu0 %v1663
      %1967 = vmatpush.msra.mxu0 %v1661
      %1968 = vmatpush.msra.mxu0 %v1659
      %1969 = vmatpush.msra.mxu0 %v1657
      %1970 = vmatpush.msra.mxu0 %v1655
      %1971 = vmatpush.msra.mxu0 %v1653
      %1972 = vmatpush.msra.mxu0 %v1651
      %1973 = vmatpush.msra.mxu0 %v1649
      %1974 = vmatpush.msra.mxu0 %v1647
      %1975 = vmatpush.msra.mxu0 %v1645
      %1976 = vmatmul.f32.gmra.mxu0 %v1550
      %v1977 = vpop.f32.mrf.mxu0
      %v1978 = vadd.f32 %v1937, %v1977
      %1979 = vmatmul.f32.gmra.mxu0 %v1554
      %v1980 = vpop.f32.mrf.mxu0
      %v1981 = vadd.f32 %v1940, %v1980
      %1982 = vmatmul.f32.gmra.mxu0 %v1558
      %v1983 = vpop.f32.mrf.mxu0
      %v1984 = vadd.f32 %v1943, %v1983
      %1985 = vmatmul.f32.gmra.mxu0 %v1562
      %v1986 = vpop.f32.mrf.mxu0
      %v1987 = vadd.f32 %v1946, %v1986
      %1988 = vmatmul.f32.gmra.mxu0 %v1566
      %v1989 = vpop.f32.mrf.mxu0
      %v1990 = vadd.f32 %v1949, %v1989
      %1991 = vmatmul.f32.gmra.mxu0 %v1570
      %v1992 = vpop.f32.mrf.mxu0
      %v1993 = vadd.f32 %v1952, %v1992
      %1994 = vmatmul.f32.gmra.mxu0 %v1574
      %v1995 = vpop.f32.mrf.mxu0
      %v1996 = vadd.f32 %v1955, %v1995
      %1997 = vmatmul.f32.gmra.mxu0 %v1578
      %v1998 = vpop.f32.mrf.mxu0
      %v1999 = vadd.f32 %v1958, %v1998
      %2000 = vdwg.mxu0
      %2001 = vmatpush.msra.mxu0 %v1707
      %2002 = vmatpush.msra.mxu0 %v1705
      %2003 = vmatpush.msra.mxu0 %v1703
      %2004 = vmatpush.msra.mxu0 %v1701
      %2005 = vmatpush.msra.mxu0 %v1699
      %2006 = vmatpush.msra.mxu0 %v1697
      %2007 = vmatpush.msra.mxu0 %v1695
      %2008 = vmatpush.msra.mxu0 %v1693
      %2009 = vmatpush.msra.mxu0 %v1691
      %2010 = vmatpush.msra.mxu0 %v1689
      %2011 = vmatpush.msra.mxu0 %v1687
      %2012 = vmatpush.msra.mxu0 %v1685
      %2013 = vmatpush.msra.mxu0 %v1683
      %2014 = vmatpush.msra.mxu0 %v1681
      %2015 = vmatpush.msra.mxu0 %v1679
      %2016 = vmatpush.msra.mxu0 %v1677
      %2017 = vmatmul.f32.gmra.mxu0 %v1551
      %v2018 = vpop.f32.mrf.mxu0
      %v2019 = vadd.f32 %v1978, %v2018
      %2020 = vmatmul.f32.gmra.mxu0 %v1555
      %v2021 = vpop.f32.mrf.mxu0
      %v2022 = vadd.f32 %v1981, %v2021
      %2023 = vmatmul.f32.gmra.mxu0 %v1559
      %v2024 = vpop.f32.mrf.mxu0
      %v2025 = vadd.f32 %v1984, %v2024
      %2026 = vmatmul.f32.gmra.mxu0 %v1563
      %v2027 = vpop.f32.mrf.mxu0
      %v2028 = vadd.f32 %v1987, %v2027
      %2029 = vmatmul.f32.gmra.mxu0 %v1567
      %v2030 = vpop.f32.mrf.mxu0
      %v2031 = vadd.f32 %v1990, %v2030
      %2032 = vmatmul.f32.gmra.mxu0 %v1571
      %v2033 = vpop.f32.mrf.mxu0
      %v2034 = vadd.f32 %v1993, %v2033
      %2035 = vmatmul.f32.gmra.mxu0 %v1575
      %v2036 = vpop.f32.mrf.mxu0
      %v2037 = vadd.f32 %v1996, %v2036
      %2038 = vmatmul.f32.gmra.mxu0 %v1579
      %v2039 = vpop.f32.mrf.mxu0
      %v2040 = vadd.f32 %v1999, %v2039
      %2041 = vdwg.mxu0
      %v2042 = vmul.f32 %v1855, 0.01
      %v2043 = vmul.f32 %v2019, 0.01
      %v2044 = vmul.f32 %v1858, 0.01
      %v2045 = vmul.f32 %v2022, 0.01
      %v2046 = vmul.f32 %v1861, 0.01
      %v2047 = vmul.f32 %v2025, 0.01
      %v2048 = vmul.f32 %v1864, 0.01
      %v2049 = vmul.f32 %v2028, 0.01
      %v2050 = vmul.f32 %v1867, 0.01
      %v2051 = vmul.f32 %v2031, 0.01
      %v2052 = vmul.f32 %v1870, 0.01
      %v2053 = vmul.f32 %v2034, 0.01
      %v2054 = vmul.f32 %v1873, 0.01
      %v2055 = vmul.f32 %v2037, 0.01
      %v2056 = vmul.f32 %v1876, 0.01
      %v2057 = vmul.f32 %v2040, 0.01
      %v2058 = vmax.f32 %v1855, %v2042
      %v2059 = vmax.f32 %v2019, %v2043
      %v2060 = vmax.f32 %v1858, %v2044
      %v2061 = vmax.f32 %v2022, %v2045
      %v2062 = vmax.f32 %v1861, %v2046
      %v2063 = vmax.f32 %v2025, %v2047
      %v2064 = vmax.f32 %v1864, %v2048
      %v2065 = vmax.f32 %v2028, %v2049
      %v2066 = vmax.f32 %v1867, %v2050
      %v2067 = vmax.f32 %v2031, %v2051
      %v2068 = vmax.f32 %v1870, %v2052
      %v2069 = vmax.f32 %v2034, %v2053
      %v2070 = vmax.f32 %v1873, %v2054
      %v2071 = vmax.f32 %v2037, %v2055
      %v2072 = vmax.f32 %v1876, %v2056
      %v2073 = vmax.f32 %v2040, %v2057
      %v2074 = vld [vmem:[%s8] sm:$0xff]
      %v2075 = vld [vmem:[%s8 + $0x8] sm:$0xff]
      %v2076 = vld [vmem:[%s8 + $0x10] sm:$0xff]
      %v2077 = vld [vmem:[%s8 + $0x18] sm:$0xff]
      %v2078 = vld [vmem:[%s8 + $0x20] sm:$0xff]
      %v2079 = vld [vmem:[%s8 + $0x28] sm:$0xff]
      %v2080 = vld [vmem:[%s8 + $0x30] sm:$0xff]
      %v2081 = vld [vmem:[%s8 + $0x38] sm:$0xff]
      %v2082 = vld [vmem:[%s8 + $0x40] sm:$0xff]
      %v2083 = vld [vmem:[%s8 + $0x48] sm:$0xff]
      %v2084 = vld [vmem:[%s8 + $0x50] sm:$0xff]
      %v2085 = vld [vmem:[%s8 + $0x58] sm:$0xff]
      %v2086 = vld [vmem:[%s8 + $0x60] sm:$0xff]
      %v2087 = vld [vmem:[%s8 + $0x68] sm:$0xff]
      %v2088 = vld [vmem:[%s8 + $0x70] sm:$0xff]
      %v2089 = vld [vmem:[%s8 + $0x78] sm:$0xff]
      %v2090 = vld [vmem:[%s8 + $0x80] sm:$0xff]
      %v2091 = vld [vmem:[%s8 + $0x88] sm:$0xff]
      %v2092 = vld [vmem:[%s8 + $0x90] sm:$0xff]
      %v2093 = vld [vmem:[%s8 + $0x98] sm:$0xff]
      %v2094 = vld [vmem:[%s8 + $0xa0] sm:$0xff]
      %v2095 = vld [vmem:[%s8 + $0xa8] sm:$0xff]
      %v2096 = vld [vmem:[%s8 + $0xb0] sm:$0xff]
      %v2097 = vld [vmem:[%s8 + $0xb8] sm:$0xff]
      %v2098 = vld [vmem:[%s8 + $0xc0] sm:$0xff]
      %v2099 = vld [vmem:[%s8 + $0xc8] sm:$0xff]
      %v2100 = vld [vmem:[%s8 + $0xd0] sm:$0xff]
      %v2101 = vld [vmem:[%s8 + $0xd8] sm:$0xff]
      %v2102 = vld [vmem:[%s8 + $0xe0] sm:$0xff]
      %v2103 = vld [vmem:[%s8 + $0xe8] sm:$0xff]
      %v2104 = vld [vmem:[%s8 + $0xf0] sm:$0xff]
      %v2105 = vld [vmem:[%s8 + $0xf8] sm:$0xff]
      %v2106 = vld [vmem:[%s9] sm:$0x1]
      %v2108 = vperm.slane %v2106, 0
      %2110 = vmatpush.msra.mxu0 %v2089
      %2111 = vmatpush.msra.mxu0 %v2088
      %2112 = vmatpush.msra.mxu0 %v2087
      %2113 = vmatpush.msra.mxu0 %v2086
      %2114 = vmatpush.msra.mxu0 %v2085
      %2115 = vmatpush.msra.mxu0 %v2084
      %2116 = vmatpush.msra.mxu0 %v2083
      %2117 = vmatpush.msra.mxu0 %v2082
      %2118 = vmatpush.msra.mxu0 %v2081
      %2119 = vmatpush.msra.mxu0 %v2080
      %2120 = vmatpush.msra.mxu0 %v2079
      %2121 = vmatpush.msra.mxu0 %v2078
      %2122 = vmatpush.msra.mxu0 %v2077
      %2123 = vmatpush.msra.mxu0 %v2076
      %2124 = vmatpush.msra.mxu0 %v2075
      %2125 = vmatpush.msra.mxu0 %v2074
      %2126 = vmatmul.f32.gmra.mxu0 %v2058
      %v2127 = vpop.f32.mrf.mxu0
      %v2128 = vadd.f32 %v2108, %v2127
      %2129 = vmatmul.f32.gmra.mxu0 %v2060
      %v2130 = vpop.f32.mrf.mxu0
      %v2131 = vadd.f32 %v2108, %v2130
      %2132 = vmatmul.f32.gmra.mxu0 %v2062
      %v2133 = vpop.f32.mrf.mxu0
      %v2134 = vadd.f32 %v2108, %v2133
      %2135 = vmatmul.f32.gmra.mxu0 %v2064
      %v2136 = vpop.f32.mrf.mxu0
      %v2137 = vadd.f32 %v2108, %v2136
      %2138 = vmatmul.f32.gmra.mxu0 %v2066
      %v2139 = vpop.f32.mrf.mxu0
      %v2140 = vadd.f32 %v2108, %v2139
      %2141 = vmatmul.f32.gmra.mxu0 %v2068
      %v2142 = vpop.f32.mrf.mxu0
      %v2143 = vadd.f32 %v2108, %v2142
      %2144 = vmatmul.f32.gmra.mxu0 %v2070
      %v2145 = vpop.f32.mrf.mxu0
      %v2146 = vadd.f32 %v2108, %v2145
      %2147 = vmatmul.f32.gmra.mxu0 %v2072
      %v2148 = vpop.f32.mrf.mxu0
      %v2149 = vadd.f32 %v2108, %v2148
      %2150 = vdwg.mxu0
      %2151 = vmatpush.msra.mxu0 %v2105
      %2152 = vmatpush.msra.mxu0 %v2104
      %2153 = vmatpush.msra.mxu0 %v2103
      %2154 = vmatpush.msra.mxu0 %v2102
      %2155 = vmatpush.msra.mxu0 %v2101
      %2156 = vmatpush.msra.mxu0 %v2100
      %2157 = vmatpush.msra.mxu0 %v2099
      %2158 = vmatpush.msra.mxu0 %v2098
      %2159 = vmatpush.msra.mxu0 %v2097
      %2160 = vmatpush.msra.mxu0 %v2096
      %2161 = vmatpush.msra.mxu0 %v2095
      %2162 = vmatpush.msra.mxu0 %v2094
      %2163 = vmatpush.msra.mxu0 %v2093
      %2164 = vmatpush.msra.mxu0 %v2092
      %2165 = vmatpush.msra.mxu0 %v2091
      %2166 = vmatpush.msra.mxu0 %v2090
      %2167 = vmatmul.f32.gmra.mxu0 %v2059
      %v2168 = vpop.f32.mrf.mxu0
      %v2169 = vadd.f32 %v2128, %v2168
      %2170 = vmatmul.f32.gmra.mxu0 %v2061
      %v2171 = vpop.f32.mrf.mxu0
      %v2172 = vadd.f32 %v2131, %v2171
      %2173 = vmatmul.f32.gmra.mxu0 %v2063
      %v2174 = vpop.f32.mrf.mxu0
      %v2175 = vadd.f32 %v2134, %v2174
      %2176 = vmatmul.f32.gmra.mxu0 %v2065
      %v2177 = vpop.f32.mrf.mxu0
      %v2178 = vadd.f32 %v2137, %v2177
      %2179 = vmatmul.f32.gmra.mxu0 %v2067
      %v2180 = vpop.f32.mrf.mxu0
      %v2181 = vadd.f32 %v2140, %v2180
      %2182 = vmatmul.f32.gmra.mxu0 %v2069
      %v2183 = vpop.f32.mrf.mxu0
      %v2184 = vadd.f32 %v2143, %v2183
      %2185 = vmatmul.f32.gmra.mxu0 %v2071
      %v2186 = vpop.f32.mrf.mxu0
      %v2187 = vadd.f32 %v2146, %v2186
      %2188 = vmatmul.f32.gmra.mxu0 %v2073
      %v2189 = vpop.f32.mrf.mxu0
      %v2190 = vadd.f32 %v2149, %v2189
      %2191 = vdwg.mxu0
      %v2192 = vmul.f32 %v2169, 0.01
      %v2193 = vmul.f32 %v2172, 0.01
      %v2194 = vmul.f32 %v2175, 0.01
      %v2195 = vmul.f32 %v2178, 0.01
      %v2196 = vmul.f32 %v2181, 0.01
      %v2197 = vmul.f32 %v2184, 0.01
      %v2198 = vmul.f32 %v2187, 0.01
      %v2199 = vmul.f32 %v2190, 0.01
      %v2200 = vmax.f32 %v2169, %v2192
      %v2201 = vmax.f32 %v2172, %v2193
      %v2202 = vmax.f32 %v2175, %v2194
      %v2203 = vmax.f32 %v2178, %v2195
      %v2204 = vmax.f32 %v2181, %v2196
      %v2205 = vmax.f32 %v2184, %v2197
      %v2206 = vmax.f32 %v2187, %v2198
      %v2207 = vmax.f32 %v2190, %v2199
      %v2208 = vld [vmem:[%s10] sm:$0xff]
      %v2209 = vld [vmem:[%s10 + $0x8] sm:$0xff]
      %v2210 = vld [vmem:[%s10 + $0x10] sm:$0xff]
      %v2211 = vld [vmem:[%s10 + $0x18] sm:$0xff]
      %v2212 = vld [vmem:[%s10 + $0x20] sm:$0xff]
      %v2213 = vld [vmem:[%s10 + $0x28] sm:$0xff]
      %v2214 = vld [vmem:[%s10 + $0x30] sm:$0xff]
      %v2215 = vld [vmem:[%s10 + $0x38] sm:$0xff]
      %v2216 = vld [vmem:[%s10 + $0x40] sm:$0xff]
      %v2217 = vld [vmem:[%s10 + $0x48] sm:$0xff]
      %v2218 = vld [vmem:[%s10 + $0x50] sm:$0xff]
      %v2219 = vld [vmem:[%s10 + $0x58] sm:$0xff]
      %v2220 = vld [vmem:[%s10 + $0x60] sm:$0xff]
      %v2221 = vld [vmem:[%s10 + $0x68] sm:$0xff]
      %v2222 = vld [vmem:[%s10 + $0x70] sm:$0xff]
      %v2223 = vld [vmem:[%s10 + $0x78] sm:$0xff]
      %v2224 = vld [vmem:[%s11] sm:$0x1]
      %v2226 = vperm.slane %v2224, 0
      %2228 = vmatpush.msra.mxu0 %v2223
      %2229 = vmatpush.msra.mxu0 %v2222
      %2230 = vmatpush.msra.mxu0 %v2221
      %2231 = vmatpush.msra.mxu0 %v2220
      %2232 = vmatpush.msra.mxu0 %v2219
      %2233 = vmatpush.msra.mxu0 %v2218
      %2234 = vmatpush.msra.mxu0 %v2217
      %2235 = vmatpush.msra.mxu0 %v2216
      %2236 = vmatpush.msra.mxu0 %v2215
      %2237 = vmatpush.msra.mxu0 %v2214
      %2238 = vmatpush.msra.mxu0 %v2213
      %2239 = vmatpush.msra.mxu0 %v2212
      %2240 = vmatpush.msra.mxu0 %v2211
      %2241 = vmatpush.msra.mxu0 %v2210
      %2242 = vmatpush.msra.mxu0 %v2209
      %2243 = vmatpush.msra.mxu0 %v2208
      %2244 = vmatmul.f32.gmra.mxu0 %v2200
      %v2245 = vpop.f32.mrf.mxu0
      %v2246 = vadd.f32 %v2226, %v2245
      %2247 = vmatmul.f32.gmra.mxu0 %v2201
      %v2248 = vpop.f32.mrf.mxu0
      %v2249 = vadd.f32 %v2226, %v2248
      %2250 = vmatmul.f32.gmra.mxu0 %v2202
      %v2251 = vpop.f32.mrf.mxu0
      %v2252 = vadd.f32 %v2226, %v2251
      %2253 = vmatmul.f32.gmra.mxu0 %v2203
      %v2254 = vpop.f32.mrf.mxu0
      %v2255 = vadd.f32 %v2226, %v2254
      %2256 = vmatmul.f32.gmra.mxu0 %v2204
      %v2257 = vpop.f32.mrf.mxu0
      %v2258 = vadd.f32 %v2226, %v2257
      %2259 = vmatmul.f32.gmra.mxu0 %v2205
      %v2260 = vpop.f32.mrf.mxu0
      %v2261 = vadd.f32 %v2226, %v2260
      %2262 = vmatmul.f32.gmra.mxu0 %v2206
      %v2263 = vpop.f32.mrf.mxu0
      %v2264 = vadd.f32 %v2226, %v2263
      %2265 = vmatmul.f32.gmra.mxu0 %v2207
      %v2266 = vpop.f32.mrf.mxu0
      %v2267 = vadd.f32 %v2226, %v2266
      %2268 = vdwg.mxu0
      %2269 = vmax.xlane.f32.xlu0 %v2246
      %v2270 = vpop.xlane.xlu0 %2269
      %2271 = vmax.xlane.f32.xlu0 %v2249
      %v2272 = vpop.xlane.xlu0 %2271
      %2273 = vmax.xlane.f32.xlu0 %v2252
      %v2274 = vpop.xlane.xlu0 %2273
      %2275 = vmax.xlane.f32.xlu0 %v2255
      %v2276 = vpop.xlane.xlu0 %2275
      %2277 = vmax.xlane.f32.xlu0 %v2258
      %v2278 = vpop.xlane.xlu0 %2277
      %2279 = vmax.xlane.f32.xlu0 %v2261
      %v2280 = vpop.xlane.xlu0 %2279
      %2281 = vmax.xlane.f32.xlu0 %v2264
      %v2282 = vpop.xlane.xlu0 %2281
      %2283 = vmax.xlane.f32.xlu0 %v2267
      %v2284 = vpop.xlane.xlu0 %2283
      %v2285 = vsub.f32 %v2246, %v2270
      %v2286 = vsub.f32 %v2249, %v2272
      %v2287 = vsub.f32 %v2252, %v2274
      %v2288 = vsub.f32 %v2255, %v2276
      %v2289 = vsub.f32 %v2258, %v2278
      %v2290 = vsub.f32 %v2261, %v2280
      %v2291 = vsub.f32 %v2264, %v2282
      %v2292 = vsub.f32 %v2267, %v2284
      %v2293 = vmul.f32 %v2285, 1.442695
      %v2294 = vpow.pop %v2293
      %v2295 = vmul.f32 %v2286, 1.442695
      %v2296 = vpow.pop %v2295
      %v2297 = vmul.f32 %v2287, 1.442695
      %v2298 = vpow.pop %v2297
      %v2299 = vmul.f32 %v2288, 1.442695
      %v2300 = vpow.pop %v2299
      %v2301 = vmul.f32 %v2289, 1.442695
      %v2302 = vpow.pop %v2301
      %v2303 = vmul.f32 %v2290, 1.442695
      %v2304 = vpow.pop %v2303
      %v2305 = vmul.f32 %v2291, 1.442695
      %v2306 = vpow.pop %v2305
      %v2307 = vmul.f32 %v2292, 1.442695
      %v2308 = vpow.pop %v2307
      %2309 = vadd.xlane.f32.xlu0 %v2294
      %v2310 = vpop.xlane.xlu0 %2309
      %2311 = vadd.xlane.f32.xlu0 %v2296
      %v2312 = vpop.xlane.xlu0 %2311
      %2313 = vadd.xlane.f32.xlu0 %v2298
      %v2314 = vpop.xlane.xlu0 %2313
      %2315 = vadd.xlane.f32.xlu0 %v2300
      %v2316 = vpop.xlane.xlu0 %2315
      %2317 = vadd.xlane.f32.xlu0 %v2302
      %v2318 = vpop.xlane.xlu0 %2317
      %2319 = vadd.xlane.f32.xlu0 %v2304
      %v2320 = vpop.xlane.xlu0 %2319
      %2321 = vadd.xlane.f32.xlu0 %v2306
      %v2322 = vpop.xlane.xlu0 %2321
      %2323 = vadd.xlane.f32.xlu0 %v2308
      %v2324 = vpop.xlane.xlu0 %2323
      %v2325 = vlog2.pop %v2310
      %v2326 = vmul.f32 %v2325, 0.6931472
      %v2327 = vlog2.pop %v2312
      %v2328 = vmul.f32 %v2327, 0.6931472
      %v2329 = vlog2.pop %v2314
      %v2330 = vmul.f32 %v2329, 0.6931472
      %v2331 = vlog2.pop %v2316
      %v2332 = vmul.f32 %v2331, 0.6931472
      %v2333 = vlog2.pop %v2318
      %v2334 = vmul.f32 %v2333, 0.6931472
      %v2335 = vlog2.pop %v2320
      %v2336 = vmul.f32 %v2335, 0.6931472
      %v2337 = vlog2.pop %v2322
      %v2338 = vmul.f32 %v2337, 0.6931472
      %v2339 = vlog2.pop %v2324
      %v2340 = vmul.f32 %v2339, 0.6931472
      %v2341 = vadd.f32 %v2326, %v2270
      %v2342 = vadd.f32 %v2328, %v2272
      %v2343 = vadd.f32 %v2330, %v2274
      %v2344 = vadd.f32 %v2332, %v2276
      %v2345 = vadd.f32 %v2334, %v2278
      %v2346 = vadd.f32 %v2336, %v2280
      %v2347 = vadd.f32 %v2338, %v2282
      %v2348 = vadd.f32 %v2340, %v2284
      %v2349 = vsub.f32 %v2246, %v2341
      %v2350 = vsub.f32 %v2249, %v2342
      %v2351 = vsub.f32 %v2252, %v2343
      %v2352 = vsub.f32 %v2255, %v2344
      %v2353 = vsub.f32 %v2258, %v2345
      %v2354 = vsub.f32 %v2261, %v2346
      %v2355 = vsub.f32 %v2264, %v2347
      %v2356 = vsub.f32 %v2267, %v2348
      %2357 = vst [vmem:[%s471] sm:$0xff] %v2349
      %2358 = vst [vmem:[%s471 + $0x8] sm:$0xff] %v2350
      %2359 = vst [vmem:[%s471 + $0x10] sm:$0xff] %v2351
      %2360 = vst [vmem:[%s471 + $0x18] sm:$0xff] %v2352
      %2361 = vst [vmem:[%s471 + $0x20] sm:$0xff] %v2353
      %2362 = vst [vmem:[%s471 + $0x28] sm:$0xff] %v2354
      %2363 = vst [vmem:[%s471 + $0x30] sm:$0xff] %v2355
      %2364 = vst [vmem:[%s471 + $0x38] sm:$0xff] %v2356
      %s2365 = smul.u32 8, %s28
      %p2366 = scmp.lt.s32.totalorder %s27, 1
      %s2367 = scalar_select %p2366, %s27, 1
      %p2368 = scmp.lt.s32.totalorder %s2365, 7
      %s2369 = scalar_select %p2368, %s2365, 7
      %s2370 = smul.addr %s2367, 8
      %s2371 = sadd.s32 %s2369, %s2370
      %s2372 = smul.addr %s2371, 8
      %s2373 = scalar_lea.vmem %s12, %s2372
      // Predicated region
      $region69: #{gac_seg2_forward.9} parent=67 // pred_check
        %p2374 = pneg %p319
      $region70: #{gac_seg2_forward.9} parent=67 // pred_check_branch
        %2376 = sbr.rel (%p2374) target = $region72
      $region71: #{gac_seg2_forward.9} parent=67 // pred_region
        %s2377 = smul.u32 8, %s28
      $region72: #{gac_seg2_forward.9} parent=67 // pred_fallthru
        _
    $region68: #{gac_seg2_forward.9} parent=5 // pred_fallthru
      _
    %p2378 = scmp.le.s32.totalorder 2, %s18
    // Predicated region
    $region73: #{gac_seg2_forward.9} parent=5 // pred_check
      %p2379 = pneg %p2378
    $region74: #{gac_seg2_forward.9} parent=5 // pred_check_branch
      %2381 = sbr.rel (%p2379) target = $region76
    $region75: #{gac_seg2_forward.9} parent=5 // pred_region
      %s2382 = ssub.s32 %s18, 2
      // Predicated region
      $region77: #{gac_seg2_forward.9} parent=75 // pred_check
        %p2383 = pneg %p325
      $region78: #{gac_seg2_forward.9} parent=75 // pred_check_branch
        %2385 = sbr.rel (%p2383) target = $region80
      $region79: #{gac_seg2_forward.9} parent=75 // pred_region
        %s2386 = smul.u32 8, %s30
        %p2387 = scmp.lt.s32.totalorder %s29, 1
        %s2388 = scalar_select %p2387, %s29, 1
        %p2389 = scmp.lt.s32.totalorder %s2386, 7
        %s2390 = scalar_select %p2389, %s2386, 7
        %s2391 = smul.addr %s2388, 8
        %s2392 = sadd.s32 %s2390, %s2391
        %s2393 = smul.addr %s2392, 8
        %s2394 = scalar_lea.vmem %s12, %s2393
      $region80: #{gac_seg2_forward.9} parent=75 // pred_fallthru
        _
    $region76: #{gac_seg2_forward.9} parent=5 // pred_fallthru
      _
  $region6: #{gac_seg2_forward.9} parent=0 // loop_footer
    %s22 = sadd.s32 1, %s18
  $region7: #{gac_seg2_forward.9} parent=0 // loop_footer_branch
    %17 = sbr.rel target = $region3
  $region8: #{gac_seg2_forward.9} parent=0 // loop_exit
    _

</llo_original>
